<compile_context>
chip_gen: v7x
topology: tpu7x:2x2x1
jax: 0.10.0
libtpu: 0.0.40
codegen_flags: <defaults>
</compile_context>

<pallas_src>
import jax
import jax.numpy as jnp
import numpy as np
from jax.experimental import pallas as pl
from jax.experimental.pallas import tpu as pltpu

D  = 512          # d_model (fixed by nn.LayerNorm(512) / MultiheadAttention(512, 4))
H  = 4            # attention heads
HD = D // H       # head dim = 128 (lane aligned)
EPS = 1e-5        # PyTorch LayerNorm default eps


def _layernorm(x, g, b):
    mean = jnp.mean(x, axis=-1, keepdims=True)
    var = jnp.mean((x - mean) ** 2, axis=-1, keepdims=True)
    return (x - mean) * jax.lax.rsqrt(var + EPS) * g + b


# ---------------------------------------------------------------------------
# Fused kernel: one grid step = one direction (audio or visual), all batches.
# ---------------------------------------------------------------------------
def qst_query_attn_kernel(qst_ref, kv_ref,
                          wq_ref, wk_ref, wv_ref, bq_ref, bk_ref, bv_ref,
                          wo_ref, bo_ref, w1_ref, b1_ref, w2_ref, b2_ref,
                          lng_ref, lnb_ref,
                          out_ref):
    B = qst_ref.shape[0]
    T = kv_ref.shape[1]

    xq = qst_ref[...]                           # (B, D)   f32
    xkv = kv_ref[...].reshape(B * T, D)         # (B*T, D) f32 slab (MXU row utilization)

    # --- Q/K/V projections: bf16 weights, f32 accumulation. 1/sqrt(HD) folded into wq/bq.
    q = jnp.dot(xq.astype(jnp.bfloat16), wq_ref[...],
                preferred_element_type=jnp.float32) + bq_ref[...]
    k = jnp.dot(xkv.astype(jnp.bfloat16), wk_ref[...],
                preferred_element_type=jnp.float32) + bk_ref[...]
    v = jnp.dot(xkv.astype(jnp.bfloat16), wv_ref[...],
                preferred_element_type=jnp.float32) + bv_ref[...]

    q3 = q.reshape(B, 1, D)                     # query length is 1 per batch
    k3 = k.reshape(B, T, D)
    v3 = v.reshape(B, T, D)

    # --- 4-head attention. No concat: accumulate the out-projection per head.
    attn = jnp.zeros((B, D), jnp.float32)
    for h in range(H):                          # static unroll over 4 heads
        sl = slice(h * HD, (h + 1) * HD)        # 128-lane-aligned slice
        qh = q3[:, :, sl]                       # (B, 1, HD)
        kh = k3[:, :, sl]                       # (B, T, HD)
        vh = v3[:, :, sl]                       # (B, T, HD)
        s = jnp.einsum("bqd,bkd->bqk", qh, kh,
                       preferred_element_type=jnp.float32)          # (B, 1, T)
        s = s - jnp.max(s, axis=-1, keepdims=True)
        p = jnp.exp(s)
        p = p * pl.reciprocal(jnp.sum(p, axis=-1, keepdims=True), approx=True)
        ho = jnp.einsum("bqk,bkd->bqd", p, vh,
                        preferred_element_type=jnp.float32)          # (B, 1, HD)
        attn = attn + jnp.dot(ho.reshape(B, HD).astype(jnp.bfloat16),
                              wo_ref[sl, :],
                              preferred_element_type=jnp.float32)
    attn = attn + bo_ref[...]                   # (B, D) == attn_feat from the MHA

    # --- FFN (Linear -> ReLU -> Linear) + residual + LayerNorm (dropouts = identity)
    f = jnp.dot(attn.astype(jnp.bfloat16), w1_ref[...],
                preferred_element_type=jnp.float32) + b1_ref[...]
    f = jnp.maximum(f, 0.0)
    f = jnp.dot(f.astype(jnp.bfloat16), w2_ref[...],
                preferred_element_type=jnp.float32) + b2_ref[...]
    out_ref[...] = _layernorm(attn + f, lng_ref[...], lnb_ref[...])


def qst_temporal_grounding_fwd(qst, audio, visual, kp):
    B, T, _ = audio.shape
    kv = jnp.stack([audio, visual], axis=0)          # (2, B, T, D): direction axis

    def const(shape):
        return pl.BlockSpec(shape, lambda d, s=len(shape): (0,) * s)

    in_specs = [
        pl.BlockSpec((B, D), lambda d: (0, 0)),                    # qst (shared by both dirs)
        pl.BlockSpec((None, B, T, D), lambda d: (d, 0, 0, 0)),     # kv of this direction
        const((D, D)), const((D, D)), const((D, D)),               # wq wk wv   (bf16)
        const((1, D)), const((1, D)), const((1, D)),               # bq bk bv   (f32)
        const((D, D)), const((1, D)),                              # wo bo
        const((D, D)), const((1, D)),                              # w1 b1
        const((D, D)), const((1, D)),                              # w2 b2
        const((1, D)), const((1, D)),                              # ln gamma / beta
    ]
    out_spec = pl.BlockSpec((None, B, D), lambda d: (d, 0, 0))

    flops = 2 * (4 * B * T * D * D + 8 * B * D * D + 4 * B * T * D)
    transcendentals = 2 * (B * H * T + B * H + B)
    bytes_accessed = (6 * D * D * 2 + 8 * D * 4          # bf16 weights + f32 vectors
                      + B * D * 4 + 2 * B * T * D * 4    # qst + kv activations
                      + 2 * B * D * 4)                   # outputs

    out = pl.pallas_call(
        qst_query_attn_kernel,
        out_shape=jax.ShapeDtypeStruct((2, B, D), jnp.float32),
        grid=(2,),
        in_specs=in_specs,
        out_specs=out_spec,
        compiler_params=pltpu.CompilerParams(
            dimension_semantics=("parallel",),
            vmem_limit_bytes=32 * 1024 * 1024),
        cost_estimate=pl.CostEstimate(flops=flops,
                                      transcendentals=transcendentals,
                                      bytes_accessed=bytes_accessed),
    )(qst, kv,
      kp["wq"], kp["wk"], kp["wv"], kp["bq"], kp["bk"], kp["bv"],
      kp["wo"], kp["bo"], kp["w1"], kp["b1"], kp["w2"], kp["b2"],
      kp["ln_g"], kp["ln_b"])
    return out[0], out[1]                              # (audio_feat, visual_feat), each (B, D)


# ---------------------------------------------------------------------------
# Pure-JAX reference (same bf16 weights / f32 accumulation) for correctness check
# ---------------------------------------------------------------------------
def _mm(x, w_bf16):
    return jax.lax.dot_general(x.astype(jnp.bfloat16), w_bf16,
                               (((x.ndim - 1,), (0,)), ((), ())),
                               preferred_element_type=jnp.float32)


def ref_qst_query_attn(qst, kv, kp):
    B, T, _ = kv.shape
    q = _mm(qst, kp["wq"]) + kp["bq"]                      # scale already folded into wq/bq
    kf = _mm(kv.reshape(B * T, D), kp["wk"]) + kp["bk"]
    vf = _mm(kv.reshape(B * T, D), kp["wv"]) + kp["bv"]
    q4 = q.reshape(B, H, HD)
    k4 = kf.reshape(B, T, H, HD)
    v4 = vf.reshape(B, T, H, HD)
    s = jnp.einsum("bhd,bthd->bht", q4, k4, precision=jax.lax.Precision.HIGHEST)
    a = jax.nn.softmax(s, axis=-1)
    o = jnp.einsum("bht,bthd->bhd", a, v4,
                   precision=jax.lax.Precision.HIGHEST).reshape(B, D)
    attn = _mm(o, kp["wo"]) + kp["bo"]
    f = jax.nn.relu(_mm(attn, kp["w1"]) + kp["b1"])
    f = _mm(f, kp["w2"]) + kp["b2"]
    return _layernorm(attn + f, kp["ln_g"], kp["ln_b"])


def ref_forward(qst, audio, visual, kp):
    return ref_qst_query_attn(qst, audio, kp), ref_qst_query_attn(qst, visual, kp)


# ---------------------------------------------------------------------------
# Deterministic parameter init + prep (fold 1/sqrt(HD), cast big matrices to bf16)
# ---------------------------------------------------------------------------
def init_params(key):
    ks = jax.random.split(key, 10)
    s = 0.02
    return dict(
        wq=jax.random.normal(ks[0], (D, D), jnp.float32) * s,
        wk=jax.random.normal(ks[1], (D, D), jnp.float32) * s,
        wv=jax.random.normal(ks[2], (D, D), jnp.float32) * s,
        bq=jax.random.normal(ks[3], (1, D), jnp.float32) * s,
        bk=jnp.zeros((1, D), jnp.float32),
        bv=jnp.zeros((1, D), jnp.float32),
        wo=jax.random.normal(ks[4], (D, D), jnp.float32) * s,
        bo=jax.random.normal(ks[5], (1, D), jnp.float32) * s,
        w1=jax.random.normal(ks[6], (D, D), jnp.float32) * s,
        b1=jax.random.normal(ks[7], (1, D), jnp.float32) * s,
        w2=jax.random.normal(ks[8], (D, D), jnp.float32) * s,
        b2=jax.random.normal(ks[9], (1, D), jnp.float32) * s,
        ln_g=jnp.ones((1, D), jnp.float32),
        ln_b=jnp.zeros((1, D), jnp.float32),
    )


def prep_params(p):
    scale = 1.0 / float(np.sqrt(HD))
    bf = lambda w: w.astype(jnp.bfloat16)
    return dict(
        wq=bf(p["wq"] * scale), wk=bf(p["wk"]), wv=bf(p["wv"]),
        bq=p["bq"] * scale, bk=p["bk"], bv=p["bv"],
        wo=bf(p["wo"]), bo=p["bo"],
        w1=bf(p["w1"]), b1=p["b1"],
        w2=bf(p["w2"]), b2=p["b2"],
        ln_g=p["ln_g"], ln_b=p["ln_b"],
    )


if __name__ == "__main__":
    key = jax.random.PRNGKey(0)
    kq, ka, kvv, kp_ = jax.random.split(key, 4)

    B, T = 2, 8
    qst = jax.random.normal(kq, (B, D), jnp.float32)          # question feature (B, 512)
    audio = jax.random.normal(ka, (B, T, D), jnp.float32)     # audio frames (B, T, 512)
    visual = jax.random.normal(kvv, (B, T, D), jnp.float32)   # visual frames (B, T, 512)

    params = prep_params(init_params(kp_))

    audio_feat, visual_feat = qst_temporal_grounding_fwd(qst, audio, visual, params)
    jax.block_until_ready((audio_feat, visual_feat))

    ref_a, ref_v = ref_forward(qst, audio, visual, params)
    # Tolerance covers the bf16 MXU weight path + the approximate EUP reciprocal in softmax.
    np.testing.assert_allclose(np.asarray(audio_feat), np.asarray(ref_a), atol=1e-2, rtol=1e-2)
    np.testing.assert_allclose(np.asarray(visual_feat), np.asarray(ref_v), atol=1e-2, rtol=1e-2)

    print("KERNEL_OK")
</pallas_src>

<mosaic_0001>
module attributes {stable_mosaic.version = 11 : i64} {
  func.func @qst_query_attn_kernel(%arg0: i32, %arg1: memref<2x512xf32, #tpu.memory_space<vmem>>, %arg2: memref<1x2x8x512xf32, #tpu.memory_space<vmem>>, %arg3: memref<512x512xbf16, #tpu.memory_space<vmem>>, %arg4: memref<512x512xbf16, #tpu.memory_space<vmem>>, %arg5: memref<512x512xbf16, #tpu.memory_space<vmem>>, %arg6: memref<1x512xf32, #tpu.memory_space<vmem>>, %arg7: memref<1x512xf32, #tpu.memory_space<vmem>>, %arg8: memref<1x512xf32, #tpu.memory_space<vmem>>, %arg9: memref<512x512xbf16, #tpu.memory_space<vmem>>, %arg10: memref<1x512xf32, #tpu.memory_space<vmem>>, %arg11: memref<512x512xbf16, #tpu.memory_space<vmem>>, %arg12: memref<1x512xf32, #tpu.memory_space<vmem>>, %arg13: memref<512x512xbf16, #tpu.memory_space<vmem>>, %arg14: memref<1x512xf32, #tpu.memory_space<vmem>>, %arg15: memref<1x512xf32, #tpu.memory_space<vmem>>, %arg16: memref<1x512xf32, #tpu.memory_space<vmem>>, %arg17: memref<1x2x512xf32, #tpu.memory_space<vmem>>) attributes {dimension_semantics = [#tpu.dimension_semantics<parallel>], iteration_bounds = array<i64: 2>, scalar_prefetch = 0 : i64, scratch_operands = 0 : i64, tpu.core_type = #tpu.core_type<tc>, window_params = [{pipeline_mode = #tpu.pipeline_mode<synchronous>, transform_indices = @transform_0, window_bounds = array<i64: 2, 512>}, {transform_indices = @transform_1, window_bounds = array<i64: 1, 2, 8, 512>}, {pipeline_mode = #tpu.pipeline_mode<synchronous>, transform_indices = @transform_2, window_bounds = array<i64: 512, 512>}, {pipeline_mode = #tpu.pipeline_mode<synchronous>, transform_indices = @transform_3, window_bounds = array<i64: 512, 512>}, {pipeline_mode = #tpu.pipeline_mode<synchronous>, transform_indices = @transform_4, window_bounds = array<i64: 512, 512>}, {pipeline_mode = #tpu.pipeline_mode<synchronous>, transform_indices = @transform_5, window_bounds = array<i64: 1, 512>}, {pipeline_mode = #tpu.pipeline_mode<synchronous>, transform_indices = @transform_6, window_bounds = array<i64: 1, 512>}, {pipeline_mode = #tpu.pipeline_mode<synchronous>, transform_indices = @transform_7, window_bounds = array<i64: 1, 512>}, {pipeline_mode = #tpu.pipeline_mode<synchronous>, transform_indices = @transform_8, window_bounds = array<i64: 512, 512>}, {pipeline_mode = #tpu.pipeline_mode<synchronous>, transform_indices = @transform_9, window_bounds = array<i64: 1, 512>}, {pipeline_mode = #tpu.pipeline_mode<synchronous>, transform_indices = @transform_10, window_bounds = array<i64: 512, 512>}, {pipeline_mode = #tpu.pipeline_mode<synchronous>, transform_indices = @transform_11, window_bounds = array<i64: 1, 512>}, {pipeline_mode = #tpu.pipeline_mode<synchronous>, transform_indices = @transform_12, window_bounds = array<i64: 512, 512>}, {pipeline_mode = #tpu.pipeline_mode<synchronous>, transform_indices = @transform_13, window_bounds = array<i64: 1, 512>}, {pipeline_mode = #tpu.pipeline_mode<synchronous>, transform_indices = @transform_14, window_bounds = array<i64: 1, 512>}, {pipeline_mode = #tpu.pipeline_mode<synchronous>, transform_indices = @transform_15, window_bounds = array<i64: 1, 512>}, {transform_indices = @transform_16, window_bounds = array<i64: 1, 2, 512>}]} {
    %c0 = arith.constant 0 : index
    %c0_0 = arith.constant 0 : index
    %0 = vector.load %arg1[%c0, %c0_0] : memref<2x512xf32, #tpu.memory_space<vmem>>, vector<2x512xf32>
    %c0_1 = arith.constant 0 : index
    %c0_2 = arith.constant 0 : index
    %c0_3 = arith.constant 0 : index
    %c0_4 = arith.constant 0 : index
    %1 = vector.load %arg2[%c0_1, %c0_2, %c0_3, %c0_4] : memref<1x2x8x512xf32, #tpu.memory_space<vmem>>, vector<1x2x8x512xf32>
    %2 = vector.shape_cast %1 : vector<1x2x8x512xf32> to vector<2x8x512xf32>
    %3 = vector.shape_cast %2 : vector<2x8x512xf32> to vector<16x512xf32>
    %4 = arith.truncf %0 : vector<2x512xf32> to vector<2x512xbf16>
    %c0_5 = arith.constant 0 : index
    %c0_6 = arith.constant 0 : index
    %5 = vector.load %arg3[%c0_5, %c0_6] : memref<512x512xbf16, #tpu.memory_space<vmem>>, vector<512x512xbf16>
    %cst = arith.constant dense<0.000000e+00> : vector<2x512xf32>
    %6 = tpu.matmul %4, %5, %cst {dimension_numbers = #tpu.dot_dimension_numbers<[1], [0], [0], [1], [0, 0, 1, 1], [], []>} : vector<2x512xbf16>, vector<512x512xbf16>, vector<2x512xf32> -> vector<2x512xf32>
    %c0_7 = arith.constant 0 : index
    %c0_8 = arith.constant 0 : index
    %7 = vector.load %arg6[%c0_7, %c0_8] : memref<1x512xf32, #tpu.memory_space<vmem>>, vector<1x512xf32>
    %8 = vector.broadcast %7 : vector<1x512xf32> to vector<2x512xf32>
    %9 = arith.addf %6, %8 : vector<2x512xf32>
    %10 = arith.truncf %3 : vector<16x512xf32> to vector<16x512xbf16>
    %c0_9 = arith.constant 0 : index
    %c0_10 = arith.constant 0 : index
    %11 = vector.load %arg4[%c0_9, %c0_10] : memref<512x512xbf16, #tpu.memory_space<vmem>>, vector<512x512xbf16>
    %cst_11 = arith.constant dense<0.000000e+00> : vector<16x512xf32>
    %12 = tpu.matmul %10, %11, %cst_11 {dimension_numbers = #tpu.dot_dimension_numbers<[1], [0], [0], [1], [0, 0, 1, 1], [], []>} : vector<16x512xbf16>, vector<512x512xbf16>, vector<16x512xf32> -> vector<16x512xf32>
    %c0_12 = arith.constant 0 : index
    %c0_13 = arith.constant 0 : index
    %13 = vector.load %arg7[%c0_12, %c0_13] : memref<1x512xf32, #tpu.memory_space<vmem>>, vector<1x512xf32>
    %14 = vector.broadcast %13 : vector<1x512xf32> to vector<16x512xf32>
    %15 = arith.addf %12, %14 : vector<16x512xf32>
    %16 = arith.truncf %3 : vector<16x512xf32> to vector<16x512xbf16>
    %c0_14 = arith.constant 0 : index
    %c0_15 = arith.constant 0 : index
    %17 = vector.load %arg5[%c0_14, %c0_15] : memref<512x512xbf16, #tpu.memory_space<vmem>>, vector<512x512xbf16>
    %cst_16 = arith.constant dense<0.000000e+00> : vector<16x512xf32>
    %18 = tpu.matmul %16, %17, %cst_16 {dimension_numbers = #tpu.dot_dimension_numbers<[1], [0], [0], [1], [0, 0, 1, 1], [], []>} : vector<16x512xbf16>, vector<512x512xbf16>, vector<16x512xf32> -> vector<16x512xf32>
    %c0_17 = arith.constant 0 : index
    %c0_18 = arith.constant 0 : index
    %19 = vector.load %arg8[%c0_17, %c0_18] : memref<1x512xf32, #tpu.memory_space<vmem>>, vector<1x512xf32>
    %20 = vector.broadcast %19 : vector<1x512xf32> to vector<16x512xf32>
    %21 = arith.addf %18, %20 : vector<16x512xf32>
    %22 = vector.shape_cast %9 : vector<2x512xf32> to vector<2x1x512xf32>
    %23 = vector.shape_cast %15 : vector<16x512xf32> to vector<2x8x512xf32>
    %24 = vector.shape_cast %21 : vector<16x512xf32> to vector<2x8x512xf32>
    %cst_19 = arith.constant 0.000000e+00 : f32
    %25 = vector.broadcast %cst_19 : f32 to vector<2x512xf32>
    %26 = vector.extract_strided_slice %22 {offsets = [0, 0, 0], sizes = [2, 1, 128], strides = [1, 1, 1]} : vector<2x1x512xf32> to vector<2x1x128xf32>
    %27 = vector.extract_strided_slice %23 {offsets = [0, 0, 0], sizes = [2, 8, 128], strides = [1, 1, 1]} : vector<2x8x512xf32> to vector<2x8x128xf32>
    %28 = vector.extract_strided_slice %24 {offsets = [0, 0, 0], sizes = [2, 8, 128], strides = [1, 1, 1]} : vector<2x8x512xf32> to vector<2x8x128xf32>
    "tpu.trace_start"() <{level = 10 : i32, message = "bqd,bkd->bqk"}> : () -> ()
    %cst_20 = arith.constant dense<0.000000e+00> : vector<2x1x8xf32>
    %29 = tpu.matmul %26, %27, %cst_20 {dimension_numbers = #tpu.dot_dimension_numbers<[2], [2], [1], [1], [0, 0, 0, 1, 1, 1], [0], [0]>} : vector<2x1x128xf32>, vector<2x8x128xf32>, vector<2x1x8xf32> -> vector<2x1x8xf32>
    "tpu.trace_stop"() : () -> ()
    %cst_21 = arith.constant dense<0xFF800000> : vector<2x1xf32>
    %30 = vector.multi_reduction <maximumf>, %29, %cst_21 [2] : vector<2x1x8xf32> to vector<2x1xf32>
    %31 = vector.shape_cast %30 : vector<2x1xf32> to vector<2x1x1xf32>
    %32 = vector.broadcast %31 : vector<2x1x1xf32> to vector<2x1x8xf32>
    %33 = arith.subf %29, %32 : vector<2x1x8xf32>
    %34 = math.exp %33 : vector<2x1x8xf32>
    %cst_22 = arith.constant dense<0.000000e+00> : vector<2x1xf32>
    %35 = vector.multi_reduction <add>, %34, %cst_22 [2] : vector<2x1x8xf32> to vector<2x1xf32>
    %36 = vector.shape_cast %35 : vector<2x1xf32> to vector<2x1x1xf32>
    %37 = tpu.reciprocal %36 {approx = true} : vector<2x1x1xf32> -> vector<2x1x1xf32>
    %38 = vector.broadcast %37 : vector<2x1x1xf32> to vector<2x1x8xf32>
    %39 = arith.mulf %34, %38 : vector<2x1x8xf32>
    "tpu.trace_start"() <{level = 10 : i32, message = "bqk,bkd->bqd"}> : () -> ()
    %cst_23 = arith.constant dense<0.000000e+00> : vector<2x1x128xf32>
    %40 = tpu.matmul %39, %28, %cst_23 {dimension_numbers = #tpu.dot_dimension_numbers<[2], [1], [1], [2], [0, 0, 0, 1, 1, 2], [0], [0]>} : vector<2x1x8xf32>, vector<2x8x128xf32>, vector<2x1x128xf32> -> vector<2x1x128xf32>
    "tpu.trace_stop"() : () -> ()
    %41 = vector.shape_cast %40 : vector<2x1x128xf32> to vector<2x128xf32>
    %42 = arith.truncf %41 : vector<2x128xf32> to vector<2x128xbf16>
    %c0_24 = arith.constant 0 : index
    %c0_25 = arith.constant 0 : index
    %43 = vector.load %arg9[%c0_24, %c0_25] : memref<512x512xbf16, #tpu.memory_space<vmem>>, vector<128x512xbf16>
    %cst_26 = arith.constant dense<0.000000e+00> : vector<2x512xf32>
    %44 = tpu.matmul %42, %43, %cst_26 {dimension_numbers = #tpu.dot_dimension_numbers<[1], [0], [0], [1], [0, 0, 1, 1], [], []>} : vector<2x128xbf16>, vector<128x512xbf16>, vector<2x512xf32> -> vector<2x512xf32>
    %45 = arith.addf %25, %44 : vector<2x512xf32>
    %46 = vector.extract_strided_slice %22 {offsets = [0, 0, 128], sizes = [2, 1, 128], strides = [1, 1, 1]} : vector<2x1x512xf32> to vector<2x1x128xf32>
    %47 = vector.extract_strided_slice %23 {offsets = [0, 0, 128], sizes = [2, 8, 128], strides = [1, 1, 1]} : vector<2x8x512xf32> to vector<2x8x128xf32>
    %48 = vector.extract_strided_slice %24 {offsets = [0, 0, 128], sizes = [2, 8, 128], strides = [1, 1, 1]} : vector<2x8x512xf32> to vector<2x8x128xf32>
    "tpu.trace_start"() <{level = 10 : i32, message = "bqd,bkd->bqk"}> : () -> ()
    %cst_27 = arith.constant dense<0.000000e+00> : vector<2x1x8xf32>
    %49 = tpu.matmul %46, %47, %cst_27 {dimension_numbers = #tpu.dot_dimension_numbers<[2], [2], [1], [1], [0, 0, 0, 1, 1, 1], [0], [0]>} : vector<2x1x128xf32>, vector<2x8x128xf32>, vector<2x1x8xf32> -> vector<2x1x8xf32>
    "tpu.trace_stop"() : () -> ()
    %cst_28 = arith.constant dense<0xFF800000> : vector<2x1xf32>
    %50 = vector.multi_reduction <maximumf>, %49, %cst_28 [2] : vector<2x1x8xf32> to vector<2x1xf32>
    %51 = vector.shape_cast %50 : vector<2x1xf32> to vector<2x1x1xf32>
    %52 = vector.broadcast %51 : vector<2x1x1xf32> to vector<2x1x8xf32>
    %53 = arith.subf %49, %52 : vector<2x1x8xf32>
    %54 = math.exp %53 : vector<2x1x8xf32>
    %cst_29 = arith.constant dense<0.000000e+00> : vector<2x1xf32>
    %55 = vector.multi_reduction <add>, %54, %cst_29 [2] : vector<2x1x8xf32> to vector<2x1xf32>
    %56 = vector.shape_cast %55 : vector<2x1xf32> to vector<2x1x1xf32>
    %57 = tpu.reciprocal %56 {approx = true} : vector<2x1x1xf32> -> vector<2x1x1xf32>
    %58 = vector.broadcast %57 : vector<2x1x1xf32> to vector<2x1x8xf32>
    %59 = arith.mulf %54, %58 : vector<2x1x8xf32>
    "tpu.trace_start"() <{level = 10 : i32, message = "bqk,bkd->bqd"}> : () -> ()
    %cst_30 = arith.constant dense<0.000000e+00> : vector<2x1x128xf32>
    %60 = tpu.matmul %59, %48, %cst_30 {dimension_numbers = #tpu.dot_dimension_numbers<[2], [1], [1], [2], [0, 0, 0, 1, 1, 2], [0], [0]>} : vector<2x1x8xf32>, vector<2x8x128xf32>, vector<2x1x128xf32> -> vector<2x1x128xf32>
    "tpu.trace_stop"() : () -> ()
    %61 = vector.shape_cast %60 : vector<2x1x128xf32> to vector<2x128xf32>
    %62 = arith.truncf %61 : vector<2x128xf32> to vector<2x128xbf16>
    %c128 = arith.constant 128 : index
    %c0_31 = arith.constant 0 : index
    %63 = vector.load %arg9[%c128, %c0_31] : memref<512x512xbf16, #tpu.memory_space<vmem>>, vector<128x512xbf16>
    %cst_32 = arith.constant dense<0.000000e+00> : vector<2x512xf32>
    %64 = tpu.matmul %62, %63, %cst_32 {dimension_numbers = #tpu.dot_dimension_numbers<[1], [0], [0], [1], [0, 0, 1, 1], [], []>} : vector<2x128xbf16>, vector<128x512xbf16>, vector<2x512xf32> -> vector<2x512xf32>
    %65 = arith.addf %45, %64 : vector<2x512xf32>
    %66 = vector.extract_strided_slice %22 {offsets = [0, 0, 256], sizes = [2, 1, 128], strides = [1, 1, 1]} : vector<2x1x512xf32> to vector<2x1x128xf32>
    %67 = vector.extract_strided_slice %23 {offsets = [0, 0, 256], sizes = [2, 8, 128], strides = [1, 1, 1]} : vector<2x8x512xf32> to vector<2x8x128xf32>
    %68 = vector.extract_strided_slice %24 {offsets = [0, 0, 256], sizes = [2, 8, 128], strides = [1, 1, 1]} : vector<2x8x512xf32> to vector<2x8x128xf32>
    "tpu.trace_start"() <{level = 10 : i32, message = "bqd,bkd->bqk"}> : () -> ()
    %cst_33 = arith.constant dense<0.000000e+00> : vector<2x1x8xf32>
    %69 = tpu.matmul %66, %67, %cst_33 {dimension_numbers = #tpu.dot_dimension_numbers<[2], [2], [1], [1], [0, 0, 0, 1, 1, 1], [0], [0]>} : vector<2x1x128xf32>, vector<2x8x128xf32>, vector<2x1x8xf32> -> vector<2x1x8xf32>
    "tpu.trace_stop"() : () -> ()
    %cst_34 = arith.constant dense<0xFF800000> : vector<2x1xf32>
    %70 = vector.multi_reduction <maximumf>, %69, %cst_34 [2] : vector<2x1x8xf32> to vector<2x1xf32>
    %71 = vector.shape_cast %70 : vector<2x1xf32> to vector<2x1x1xf32>
    %72 = vector.broadcast %71 : vector<2x1x1xf32> to vector<2x1x8xf32>
    %73 = arith.subf %69, %72 : vector<2x1x8xf32>
    %74 = math.exp %73 : vector<2x1x8xf32>
    %cst_35 = arith.constant dense<0.000000e+00> : vector<2x1xf32>
    %75 = vector.multi_reduction <add>, %74, %cst_35 [2] : vector<2x1x8xf32> to vector<2x1xf32>
    %76 = vector.shape_cast %75 : vector<2x1xf32> to vector<2x1x1xf32>
    %77 = tpu.reciprocal %76 {approx = true} : vector<2x1x1xf32> -> vector<2x1x1xf32>
    %78 = vector.broadcast %77 : vector<2x1x1xf32> to vector<2x1x8xf32>
    %79 = arith.mulf %74, %78 : vector<2x1x8xf32>
    "tpu.trace_start"() <{level = 10 : i32, message = "bqk,bkd->bqd"}> : () -> ()
    %cst_36 = arith.constant dense<0.000000e+00> : vector<2x1x128xf32>
    %80 = tpu.matmul %79, %68, %cst_36 {dimension_numbers = #tpu.dot_dimension_numbers<[2], [1], [1], [2], [0, 0, 0, 1, 1, 2], [0], [0]>} : vector<2x1x8xf32>, vector<2x8x128xf32>, vector<2x1x128xf32> -> vector<2x1x128xf32>
    "tpu.trace_stop"() : () -> ()
    %81 = vector.shape_cast %80 : vector<2x1x128xf32> to vector<2x128xf32>
    %82 = arith.truncf %81 : vector<2x128xf32> to vector<2x128xbf16>
    %c256 = arith.constant 256 : index
    %c0_37 = arith.constant 0 : index
    %83 = vector.load %arg9[%c256, %c0_37] : memref<512x512xbf16, #tpu.memory_space<vmem>>, vector<128x512xbf16>
    %cst_38 = arith.constant dense<0.000000e+00> : vector<2x512xf32>
    %84 = tpu.matmul %82, %83, %cst_38 {dimension_numbers = #tpu.dot_dimension_numbers<[1], [0], [0], [1], [0, 0, 1, 1], [], []>} : vector<2x128xbf16>, vector<128x512xbf16>, vector<2x512xf32> -> vector<2x512xf32>
    %85 = arith.addf %65, %84 : vector<2x512xf32>
    %86 = vector.extract_strided_slice %22 {offsets = [0, 0, 384], sizes = [2, 1, 128], strides = [1, 1, 1]} : vector<2x1x512xf32> to vector<2x1x128xf32>
    %87 = vector.extract_strided_slice %23 {offsets = [0, 0, 384], sizes = [2, 8, 128], strides = [1, 1, 1]} : vector<2x8x512xf32> to vector<2x8x128xf32>
    %88 = vector.extract_strided_slice %24 {offsets = [0, 0, 384], sizes = [2, 8, 128], strides = [1, 1, 1]} : vector<2x8x512xf32> to vector<2x8x128xf32>
    "tpu.trace_start"() <{level = 10 : i32, message = "bqd,bkd->bqk"}> : () -> ()
    %cst_39 = arith.constant dense<0.000000e+00> : vector<2x1x8xf32>
    %89 = tpu.matmul %86, %87, %cst_39 {dimension_numbers = #tpu.dot_dimension_numbers<[2], [2], [1], [1], [0, 0, 0, 1, 1, 1], [0], [0]>} : vector<2x1x128xf32>, vector<2x8x128xf32>, vector<2x1x8xf32> -> vector<2x1x8xf32>
    "tpu.trace_stop"() : () -> ()
    %cst_40 = arith.constant dense<0xFF800000> : vector<2x1xf32>
    %90 = vector.multi_reduction <maximumf>, %89, %cst_40 [2] : vector<2x1x8xf32> to vector<2x1xf32>
    %91 = vector.shape_cast %90 : vector<2x1xf32> to vector<2x1x1xf32>
    %92 = vector.broadcast %91 : vector<2x1x1xf32> to vector<2x1x8xf32>
    %93 = arith.subf %89, %92 : vector<2x1x8xf32>
    %94 = math.exp %93 : vector<2x1x8xf32>
    %cst_41 = arith.constant dense<0.000000e+00> : vector<2x1xf32>
    %95 = vector.multi_reduction <add>, %94, %cst_41 [2] : vector<2x1x8xf32> to vector<2x1xf32>
    %96 = vector.shape_cast %95 : vector<2x1xf32> to vector<2x1x1xf32>
    %97 = tpu.reciprocal %96 {approx = true} : vector<2x1x1xf32> -> vector<2x1x1xf32>
    %98 = vector.broadcast %97 : vector<2x1x1xf32> to vector<2x1x8xf32>
    %99 = arith.mulf %94, %98 : vector<2x1x8xf32>
    "tpu.trace_start"() <{level = 10 : i32, message = "bqk,bkd->bqd"}> : () -> ()
    %cst_42 = arith.constant dense<0.000000e+00> : vector<2x1x128xf32>
    %100 = tpu.matmul %99, %88, %cst_42 {dimension_numbers = #tpu.dot_dimension_numbers<[2], [1], [1], [2], [0, 0, 0, 1, 1, 2], [0], [0]>} : vector<2x1x8xf32>, vector<2x8x128xf32>, vector<2x1x128xf32> -> vector<2x1x128xf32>
    "tpu.trace_stop"() : () -> ()
    %101 = vector.shape_cast %100 : vector<2x1x128xf32> to vector<2x128xf32>
    %102 = arith.truncf %101 : vector<2x128xf32> to vector<2x128xbf16>
    %c384 = arith.constant 384 : index
    %c0_43 = arith.constant 0 : index
    %103 = vector.load %arg9[%c384, %c0_43] : memref<512x512xbf16, #tpu.memory_space<vmem>>, vector<128x512xbf16>
    %cst_44 = arith.constant dense<0.000000e+00> : vector<2x512xf32>
    %104 = tpu.matmul %102, %103, %cst_44 {dimension_numbers = #tpu.dot_dimension_numbers<[1], [0], [0], [1], [0, 0, 1, 1], [], []>} : vector<2x128xbf16>, vector<128x512xbf16>, vector<2x512xf32> -> vector<2x512xf32>
    %105 = arith.addf %85, %104 : vector<2x512xf32>
    %c0_45 = arith.constant 0 : index
    %c0_46 = arith.constant 0 : index
    %106 = vector.load %arg10[%c0_45, %c0_46] : memref<1x512xf32, #tpu.memory_space<vmem>>, vector<1x512xf32>
    %107 = vector.broadcast %106 : vector<1x512xf32> to vector<2x512xf32>
    %108 = arith.addf %105, %107 : vector<2x512xf32>
    %109 = arith.truncf %108 : vector<2x512xf32> to vector<2x512xbf16>
    %c0_47 = arith.constant 0 : index
    %c0_48 = arith.constant 0 : index
    %110 = vector.load %arg11[%c0_47, %c0_48] : memref<512x512xbf16, #tpu.memory_space<vmem>>, vector<512x512xbf16>
    %cst_49 = arith.constant dense<0.000000e+00> : vector<2x512xf32>
    %111 = tpu.matmul %109, %110, %cst_49 {dimension_numbers = #tpu.dot_dimension_numbers<[1], [0], [0], [1], [0, 0, 1, 1], [], []>} : vector<2x512xbf16>, vector<512x512xbf16>, vector<2x512xf32> -> vector<2x512xf32>
    %c0_50 = arith.constant 0 : index
    %c0_51 = arith.constant 0 : index
    %112 = vector.load %arg12[%c0_50, %c0_51] : memref<1x512xf32, #tpu.memory_space<vmem>>, vector<1x512xf32>
    %113 = vector.broadcast %112 : vector<1x512xf32> to vector<2x512xf32>
    %114 = arith.addf %111, %113 : vector<2x512xf32>
    %cst_52 = arith.constant 0.000000e+00 : f32
    %115 = vector.broadcast %cst_52 : f32 to vector<2x512xf32>
    %116 = arith.maximumf %114, %115 : vector<2x512xf32>
    %117 = arith.truncf %116 : vector<2x512xf32> to vector<2x512xbf16>
    %c0_53 = arith.constant 0 : index
    %c0_54 = arith.constant 0 : index
    %118 = vector.load %arg13[%c0_53, %c0_54] : memref<512x512xbf16, #tpu.memory_space<vmem>>, vector<512x512xbf16>
    %cst_55 = arith.constant dense<0.000000e+00> : vector<2x512xf32>
    %119 = tpu.matmul %117, %118, %cst_55 {dimension_numbers = #tpu.dot_dimension_numbers<[1], [0], [0], [1], [0, 0, 1, 1], [], []>} : vector<2x512xbf16>, vector<512x512xbf16>, vector<2x512xf32> -> vector<2x512xf32>
    %c0_56 = arith.constant 0 : index
    %c0_57 = arith.constant 0 : index
    %120 = vector.load %arg14[%c0_56, %c0_57] : memref<1x512xf32, #tpu.memory_space<vmem>>, vector<1x512xf32>
    %121 = vector.broadcast %120 : vector<1x512xf32> to vector<2x512xf32>
    %122 = arith.addf %119, %121 : vector<2x512xf32>
    %123 = arith.addf %108, %122 : vector<2x512xf32>
    %c0_58 = arith.constant 0 : index
    %c0_59 = arith.constant 0 : index
    %124 = vector.load %arg15[%c0_58, %c0_59] : memref<1x512xf32, #tpu.memory_space<vmem>>, vector<1x512xf32>
    %c0_60 = arith.constant 0 : index
    %c0_61 = arith.constant 0 : index
    %125 = vector.load %arg16[%c0_60, %c0_61] : memref<1x512xf32, #tpu.memory_space<vmem>>, vector<1x512xf32>
    %cst_62 = arith.constant dense<0.000000e+00> : vector<2xf32>
    %126 = vector.multi_reduction <add>, %123, %cst_62 [1] : vector<2x512xf32> to vector<2xf32>
    %127 = vector.shape_cast %126 : vector<2xf32> to vector<2x1xf32>
    %cst_63 = arith.constant 5.120000e+02 : f32
    %128 = vector.broadcast %cst_63 : f32 to vector<2x1xf32>
    %129 = arith.divf %127, %128 : vector<2x1xf32>
    %130 = vector.broadcast %129 : vector<2x1xf32> to vector<2x512xf32>
    %131 = arith.subf %123, %130 : vector<2x512xf32>
    %132 = arith.mulf %131, %131 : vector<2x512xf32>
    %cst_64 = arith.constant dense<0.000000e+00> : vector<2xf32>
    %133 = vector.multi_reduction <add>, %132, %cst_64 [1] : vector<2x512xf32> to vector<2xf32>
    %134 = vector.shape_cast %133 : vector<2xf32> to vector<2x1xf32>
    %cst_65 = arith.constant 5.120000e+02 : f32
    %135 = vector.broadcast %cst_65 : f32 to vector<2x1xf32>
    %136 = arith.divf %134, %135 : vector<2x1xf32>
    %137 = vector.broadcast %129 : vector<2x1xf32> to vector<2x512xf32>
    %138 = arith.subf %123, %137 : vector<2x512xf32>
    %cst_66 = arith.constant 9.99999974E-6 : f32
    %139 = vector.broadcast %cst_66 : f32 to vector<2x1xf32>
    %140 = arith.addf %136, %139 : vector<2x1xf32>
    %141 = math.rsqrt %140 : vector<2x1xf32>
    %142 = vector.broadcast %141 : vector<2x1xf32> to vector<2x512xf32>
    %143 = arith.mulf %138, %142 : vector<2x512xf32>
    %144 = vector.broadcast %124 : vector<1x512xf32> to vector<2x512xf32>
    %145 = arith.mulf %143, %144 : vector<2x512xf32>
    %146 = vector.broadcast %125 : vector<1x512xf32> to vector<2x512xf32>
    %147 = arith.addf %145, %146 : vector<2x512xf32>
    %c0_67 = arith.constant 0 : index
    %c0_68 = arith.constant 0 : index
    %c0_69 = arith.constant 0 : index
    %148 = vector.load %arg17[%c0_67, %c0_68, %c0_69] : memref<1x2x512xf32, #tpu.memory_space<vmem>>, vector<1x2x512xf32>
    %149 = vector.shape_cast %148 : vector<1x2x512xf32> to vector<2x512xf32>
    %150 = vector.shape_cast %147 : vector<2x512xf32> to vector<1x2x512xf32>
    tpu.vector_store %arg17[%c0_67, %c0_68, %c0_69], %150 {strides = array<i32>} : memref<1x2x512xf32, #tpu.memory_space<vmem>>, vector<1x2x512xf32>,
    return
  }
  func.func @transform_0(%arg0: i32) -> (i32, i32) {
    %c0_i32 = arith.constant 0 : i32
    %c0_i32_0 = arith.constant 0 : i32
    %c0_i32_1 = arith.constant 0 : i32
    return %c0_i32, %c0_i32_0 : i32, i32
  }
  func.func @transform_1(%arg0: i32) -> (i32, i32, i32, i32) {
    %c0_i32 = arith.constant 0 : i32
    %c0_i32_0 = arith.constant 0 : i32
    %c0_i32_1 = arith.constant 0 : i32
    %c0_i32_2 = arith.constant 0 : i32
    return %arg0, %c0_i32, %c0_i32_0, %c0_i32_1 : i32, i32, i32, i32
  }
  func.func @transform_2(%arg0: i32) -> (i32, i32) {
    %c0_i32 = arith.constant 0 : i32
    %c0_i32_0 = arith.constant 0 : i32
    %c0_i32_1 = arith.constant 0 : i32
    return %c0_i32, %c0_i32_0 : i32, i32
  }
  func.func @transform_3(%arg0: i32) -> (i32, i32) {
    %c0_i32 = arith.constant 0 : i32
    %c0_i32_0 = arith.constant 0 : i32
    %c0_i32_1 = arith.constant 0 : i32
    return %c0_i32, %c0_i32_0 : i32, i32
  }
  func.func @transform_4(%arg0: i32) -> (i32, i32) {
    %c0_i32 = arith.constant 0 : i32
    %c0_i32_0 = arith.constant 0 : i32
    %c0_i32_1 = arith.constant 0 : i32
    return %c0_i32, %c0_i32_0 : i32, i32
  }
  func.func @transform_5(%arg0: i32) -> (i32, i32) {
    %c0_i32 = arith.constant 0 : i32
    %c0_i32_0 = arith.constant 0 : i32
    %c0_i32_1 = arith.constant 0 : i32
    return %c0_i32, %c0_i32_0 : i32, i32
  }
  func.func @transform_6(%arg0: i32) -> (i32, i32) {
    %c0_i32 = arith.constant 0 : i32
    %c0_i32_0 = arith.constant 0 : i32
    %c0_i32_1 = arith.constant 0 : i32
    return %c0_i32, %c0_i32_0 : i32, i32
  }
  func.func @transform_7(%arg0: i32) -> (i32, i32) {
    %c0_i32 = arith.constant 0 : i32
    %c0_i32_0 = arith.constant 0 : i32
    %c0_i32_1 = arith.constant 0 : i32
    return %c0_i32, %c0_i32_0 : i32, i32
  }
  func.func @transform_8(%arg0: i32) -> (i32, i32) {
    %c0_i32 = arith.constant 0 : i32
    %c0_i32_0 = arith.constant 0 : i32
    %c0_i32_1 = arith.constant 0 : i32
    return %c0_i32, %c0_i32_0 : i32, i32
  }
  func.func @transform_9(%arg0: i32) -> (i32, i32) {
    %c0_i32 = arith.constant 0 : i32
    %c0_i32_0 = arith.constant 0 : i32
    %c0_i32_1 = arith.constant 0 : i32
    return %c0_i32, %c0_i32_0 : i32, i32
  }
  func.func @transform_10(%arg0: i32) -> (i32, i32) {
    %c0_i32 = arith.constant 0 : i32
    %c0_i32_0 = arith.constant 0 : i32
    %c0_i32_1 = arith.constant 0 : i32
    return %c0_i32, %c0_i32_0 : i32, i32
  }
  func.func @transform_11(%arg0: i32) -> (i32, i32) {
    %c0_i32 = arith.constant 0 : i32
    %c0_i32_0 = arith.constant 0 : i32
    %c0_i32_1 = arith.constant 0 : i32
    return %c0_i32, %c0_i32_0 : i32, i32
  }
  func.func @transform_12(%arg0: i32) -> (i32, i32) {
    %c0_i32 = arith.constant 0 : i32
    %c0_i32_0 = arith.constant 0 : i32
    %c0_i32_1 = arith.constant 0 : i32
    return %c0_i32, %c0_i32_0 : i32, i32
  }
  func.func @transform_13(%arg0: i32) -> (i32, i32) {
    %c0_i32 = arith.constant 0 : i32
    %c0_i32_0 = arith.constant 0 : i32
    %c0_i32_1 = arith.constant 0 : i32
    return %c0_i32, %c0_i32_0 : i32, i32
  }
  func.func @transform_14(%arg0: i32) -> (i32, i32) {
    %c0_i32 = arith.constant 0 : i32
    %c0_i32_0 = arith.constant 0 : i32
    %c0_i32_1 = arith.constant 0 : i32
    return %c0_i32, %c0_i32_0 : i32, i32
  }
  func.func @transform_15(%arg0: i32) -> (i32, i32) {
    %c0_i32 = arith.constant 0 : i32
    %c0_i32_0 = arith.constant 0 : i32
    %c0_i32_1 = arith.constant 0 : i32
    return %c0_i32, %c0_i32_0 : i32, i32
  }
  func.func @transform_16(%arg0: i32) -> (i32, i32, i32) {
    %c0_i32 = arith.constant 0 : i32
    %c0_i32_0 = arith.constant 0 : i32
    %c0_i32_1 = arith.constant 0 : i32
    return %arg0, %c0_i32, %c0_i32_0 : i32, i32, i32
  }
}

</mosaic_0001>

<llo_original>
// kernel: tpu_custom_call.1
$region0: #{tpu_custom_call.1}
  #allocation0 [shape = 'u32[]', space=smem, size = 0x4, offset = 0x4, fixed_abs, tag = 'smem constant byte address 0x4 - core index']
  #allocation1 [shape = 'u32[144,128]{1,0:T(1,128)}', space=vmem, size = 0x12000, scoped, tag = 'internal scratch']
  %s0 = inlined_call_operand.hbm [shape: f32[2,512], index: 0, kind: input, shape index: {}]
  %s1 = inlined_call_operand.hbm [shape: f32[2,2,8,512], index: 1, kind: input, shape index: {}]
  %s2 = inlined_call_operand.hbm [shape: bf16[512,512], index: 2, kind: input, shape index: {}]
  %s3 = inlined_call_operand.hbm [shape: bf16[512,512], index: 3, kind: input, shape index: {}]
  %s4 = inlined_call_operand.hbm [shape: bf16[512,512], index: 4, kind: input, shape index: {}]
  %s5 = inlined_call_operand.vmem [shape: f32[1,512], index: 5, kind: input, shape index: {}]
  %s6 = inlined_call_operand.vmem [shape: f32[1,512], index: 6, kind: input, shape index: {}]
  %s7 = inlined_call_operand.vmem [shape: f32[1,512], index: 7, kind: input, shape index: {}]
  %s8 = inlined_call_operand.hbm [shape: bf16[512,512], index: 8, kind: input, shape index: {}]
  %s9 = inlined_call_operand.vmem [shape: f32[1,512], index: 9, kind: input, shape index: {}]
  %s10 = inlined_call_operand.hbm [shape: bf16[512,512], index: 10, kind: input, shape index: {}]
  %s11 = inlined_call_operand.vmem [shape: f32[1,512], index: 11, kind: input, shape index: {}]
  %s12 = inlined_call_operand.hbm [shape: bf16[512,512], index: 12, kind: input, shape index: {}]
  %s13 = inlined_call_operand.vmem [shape: f32[1,512], index: 13, kind: input, shape index: {}]
  %s14 = inlined_call_operand.vmem [shape: f32[1,512], index: 14, kind: input, shape index: {}]
  %s15 = inlined_call_operand.vmem [shape: f32[1,512], index: 15, kind: input, shape index: {}]
  %s16 = inlined_call_operand.hbm [shape: f32[2,2,512], index: 16, kind: output, shape index: {}]
  %s17 = sld [smem:[#allocation0]]
  $region129: #{tpu_custom_call.1} parent=0
    _
  %s19 = ssub.s32 1, %s17
  %s20 = scalar_select 0, %s19, %s17
  $region1: #{tpu_custom_call.1} parent=0
    #allocation2 [shape = 'u8[4096]{0}', space=vmem, size = 0x1000, scoped, tag = 'input window, operand 0, single buffered']
    #allocation3 [shape = 's32[2]{0}', space=sflag, size = 0x8, scoped, tag = 'scoped memory for tpu_custom_call.1']
    #allocation4 [shape = 's32[2]{0}', space=sflag, size = 0x8, scoped, tag = 'scoped memory for tpu_custom_call.1']
    #allocation5 [shape = 'u8[65536]{0}', space=vmem, size = 0x10000, scoped, tag = 'input window, operand 1']
    #allocation6 [shape = 's32[2]{0}', space=sflag, size = 0x8, scoped, tag = 'scoped memory for tpu_custom_call.1']
    #allocation7 [shape = 'u8[524288]{0}', space=vmem, size = 0x80000, scoped, tag = 'input window, operand 2, single buffered']
    #allocation8 [shape = 'u8[524288]{0}', space=vmem, size = 0x80000, scoped, tag = 'input window, operand 3, single buffered']
    #allocation9 [shape = 's32[1]{0}', space=sflag, size = 0x4, scoped, tag = 'scoped memory for tpu_custom_call.1']
    #allocation10 [shape = 'u8[524288]{0}', space=vmem, size = 0x80000, scoped, tag = 'input window, operand 4, single buffered']
    #allocation11 [shape = 'u8[524288]{0}', space=vmem, size = 0x80000, scoped, tag = 'input window, operand 8, single buffered']
    #allocation12 [shape = 's32[1]{0}', space=sflag, size = 0x4, scoped, tag = 'scoped memory for tpu_custom_call.1']
    #allocation13 [shape = 'u8[524288]{0}', space=vmem, size = 0x80000, scoped, tag = 'input window, operand 10, single buffered']
    #allocation14 [shape = 'u8[524288]{0}', space=vmem, size = 0x80000, scoped, tag = 'input window, operand 12, single buffered']
    #allocation15 [shape = 's32[1]{0}', space=sflag, size = 0x4, scoped, tag = 'scoped memory for tpu_custom_call.1']
    #allocation16 [shape = 'u8[8192]{0}', space=vmem, size = 0x2000, scoped, tag = 'output window, operand 0']
    %21 = vsyncpa [#allocation3], 0
    %22 = vsyncpa [#allocation6], 0
    %s23 = scalar_lea.sflag [#allocation6], 1
    %24 = vsyncpa %s23, 0
    %25 = vsyncpa [#allocation9], 0
    %26 = vsyncpa [#allocation12], 0
    %27 = vsyncpa [#allocation15], 0
    %28 = vsyncpa [#allocation4], 0
    %s29 = scalar_lea.sflag [#allocation4], 1
    %30 = vsyncpa %s29, 0
    loop: start=0, step=1, limit=4
    $region2: #{tpu_custom_call.1} parent=1 // loop_pre_header
      _
    $region3: #{tpu_custom_call.1} parent=1 // loop_header
      %s32 = sphi 0, %s36
      %p33 = scmp.ge.s32.totalorder %s32, 4
      %s40 = sphi 0, %s40
      %s42 = sphi 0, %s40
      %s43 = sphi 0, %s42
      %s57 = sphi 0, %s43
      %s63 = sphi 0, %s65
      %s66 = sphi 0, %s63
      %s67 = sphi 0, %s66
      %s83 = sphi 0, %s67
      %s87 = sphi 0, %s87
      %s89 = sphi 0, %s87
      %s90 = sphi 0, %s89
      %s104 = sphi 0, %s90
      %s108 = sphi 0, %s108
      %s110 = sphi 0, %s108
      %s111 = sphi 0, %s110
      %s125 = sphi 0, %s111
      %s129 = sphi 0, %s129
      %s131 = sphi 0, %s129
      %s132 = sphi 0, %s131
      %s146 = sphi 0, %s132
      %s150 = sphi 0, %s150
      %s152 = sphi 0, %s150
      %s153 = sphi 0, %s152
      %s167 = sphi 0, %s153
      %s171 = sphi 0, %s171
      %s173 = sphi 0, %s171
      %s174 = sphi 0, %s173
      %s188 = sphi 0, %s174
      %s192 = sphi 0, %s192
      %s194 = sphi 0, %s192
      %s195 = sphi 0, %s194
      %s209 = sphi 0, %s195
      %s213 = sphi 0, %s213
      %s215 = sphi 0, %s213
      %s216 = sphi 0, %s215
      %s230 = sphi 0, %s216
      %s234 = sphi 0, %s234
      %s236 = sphi 0, %s234
      %s237 = sphi 0, %s236
      %s251 = sphi 0, %s237
      %s255 = sphi 0, %s255
      %s257 = sphi 0, %s255
      %s258 = sphi 0, %s257
      %s272 = sphi 0, %s258
      %s276 = sphi 0, %s276
      %s278 = sphi 0, %s276
      %s279 = sphi 0, %s278
      %s293 = sphi 0, %s279
      %s297 = sphi 0, %s297
      %s299 = sphi 0, %s297
      %s300 = sphi 0, %s299
      %s314 = sphi 0, %s300
      %s318 = sphi 0, %s318
      %s320 = sphi 0, %s318
      %s321 = sphi 0, %s320
      %s335 = sphi 0, %s321
      %s339 = sphi 0, %s339
      %s341 = sphi 0, %s339
      %s342 = sphi 0, %s341
      %s356 = sphi 0, %s342
      %s360 = sphi 0, %s360
      %s362 = sphi 0, %s360
      %s363 = sphi 0, %s362
      %s377 = sphi 0, %s363
      %s383 = sphi 0, %s385
      %s386 = sphi 0, %s383
      %s387 = sphi 0, %s386
      %s403 = sphi 0, %s387
    $region4: #{tpu_custom_call.1} parent=1 // loop_header_branch
      %35 = sbr.rel (%p33) target = $region8
    $region5: #{tpu_custom_call.1} parent=1 // loop_body
      %s37 = ssub.s32 %s32, 1
      %s38 = ssub.s32 %s32, 2
      %s39 = sadd.s32 %s32, 1
      %s41 = sadd.s32 %s40, 1
      %p44 = scmp.eq.s32.totalorder %s32, 1
      %p45 = scmp.ne.s32.totalorder %s40, %s42
      %p46 = scmp.eq.s32.totalorder %s32, 0
      %p47 = por %p45, %p46
      %p48 = scmp.ne.s32.totalorder %s40, %s42
      %p49 = scmp.eq.s32.totalorder %s37, 1
      %p50 = por %p48, %p49
      %p51 = scmp.ne.s32.totalorder %s42, %s43
      %p52 = scmp.eq.s32.totalorder %s37, 0
      %p53 = por %p51, %p52
      %p54 = scmp.ne.s32.totalorder %s42, %s43
      %p55 = scmp.eq.s32.totalorder %s38, 1
      %p56 = por %p54, %p55
      %p58 = scmp.ne.s32.totalorder %s43, %s57
      %p59 = scmp.eq.s32.totalorder %s38, 0
      %p60 = por %p58, %p59
      %s61 = ssub.s32 %s32, %s39
      %p62 = scmp.eq.s32.totalorder %s61, 0
      %s64 = sadd.s32 %s63, 1
      %s65 = scalar_select %p62, %s63, %s64
      %p68 = pneg %p62
      %p69 = scmp.eq.s32.totalorder %s32, 1
      %p70 = por %p68, %p69
      %p71 = scmp.ne.s32.totalorder %s63, %s66
      %p72 = scmp.eq.s32.totalorder %s32, 0
      %p73 = por %p71, %p72
      %p74 = scmp.ne.s32.totalorder %s63, %s66
      %p75 = scmp.eq.s32.totalorder %s37, 1
      %p76 = por %p74, %p75
      %p77 = scmp.ne.s32.totalorder %s66, %s67
      %p78 = scmp.eq.s32.totalorder %s37, 0
      %p79 = por %p77, %p78
      %p80 = scmp.ne.s32.totalorder %s66, %s67
      %p81 = scmp.eq.s32.totalorder %s38, 1
      %p82 = por %p80, %p81
      %p84 = scmp.ne.s32.totalorder %s67, %s83
      %p85 = scmp.eq.s32.totalorder %s38, 0
      %p86 = por %p84, %p85
      %s88 = sadd.s32 %s87, 1
      %p91 = scmp.eq.s32.totalorder %s32, 1
      %p92 = scmp.ne.s32.totalorder %s87, %s89
      %p93 = scmp.eq.s32.totalorder %s32, 0
      %p94 = por %p92, %p93
      %p95 = scmp.ne.s32.totalorder %s87, %s89
      %p96 = scmp.eq.s32.totalorder %s37, 1
      %p97 = por %p95, %p96
      %p98 = scmp.ne.s32.totalorder %s89, %s90
      %p99 = scmp.eq.s32.totalorder %s37, 0
      %p100 = por %p98, %p99
      %p101 = scmp.ne.s32.totalorder %s89, %s90
      %p102 = scmp.eq.s32.totalorder %s38, 1
      %p103 = por %p101, %p102
      %p105 = scmp.ne.s32.totalorder %s90, %s104
      %p106 = scmp.eq.s32.totalorder %s38, 0
      %p107 = por %p105, %p106
      %s109 = sadd.s32 %s108, 1
      %p112 = scmp.eq.s32.totalorder %s32, 1
      %p113 = scmp.ne.s32.totalorder %s108, %s110
      %p114 = scmp.eq.s32.totalorder %s32, 0
      %p115 = por %p113, %p114
      %p116 = scmp.ne.s32.totalorder %s108, %s110
      %p117 = scmp.eq.s32.totalorder %s37, 1
      %p118 = por %p116, %p117
      %p119 = scmp.ne.s32.totalorder %s110, %s111
      %p120 = scmp.eq.s32.totalorder %s37, 0
      %p121 = por %p119, %p120
      %p122 = scmp.ne.s32.totalorder %s110, %s111
      %p123 = scmp.eq.s32.totalorder %s38, 1
      %p124 = por %p122, %p123
      %p126 = scmp.ne.s32.totalorder %s111, %s125
      %p127 = scmp.eq.s32.totalorder %s38, 0
      %p128 = por %p126, %p127
      %s130 = sadd.s32 %s129, 1
      %p133 = scmp.eq.s32.totalorder %s32, 1
      %p134 = scmp.ne.s32.totalorder %s129, %s131
      %p135 = scmp.eq.s32.totalorder %s32, 0
      %p136 = por %p134, %p135
      %p137 = scmp.ne.s32.totalorder %s129, %s131
      %p138 = scmp.eq.s32.totalorder %s37, 1
      %p139 = por %p137, %p138
      %p140 = scmp.ne.s32.totalorder %s131, %s132
      %p141 = scmp.eq.s32.totalorder %s37, 0
      %p142 = por %p140, %p141
      %p143 = scmp.ne.s32.totalorder %s131, %s132
      %p144 = scmp.eq.s32.totalorder %s38, 1
      %p145 = por %p143, %p144
      %p147 = scmp.ne.s32.totalorder %s132, %s146
      %p148 = scmp.eq.s32.totalorder %s38, 0
      %p149 = por %p147, %p148
      %s151 = sadd.s32 %s150, 1
      %p154 = scmp.eq.s32.totalorder %s32, 1
      %p155 = scmp.ne.s32.totalorder %s150, %s152
      %p156 = scmp.eq.s32.totalorder %s32, 0
      %p157 = por %p155, %p156
      %p158 = scmp.ne.s32.totalorder %s150, %s152
      %p159 = scmp.eq.s32.totalorder %s37, 1
      %p160 = por %p158, %p159
      %p161 = scmp.ne.s32.totalorder %s152, %s153
      %p162 = scmp.eq.s32.totalorder %s37, 0
      %p163 = por %p161, %p162
      %p164 = scmp.ne.s32.totalorder %s152, %s153
      %p165 = scmp.eq.s32.totalorder %s38, 1
      %p166 = por %p164, %p165
      %p168 = scmp.ne.s32.totalorder %s153, %s167
      %p169 = scmp.eq.s32.totalorder %s38, 0
      %p170 = por %p168, %p169
      %s172 = sadd.s32 %s171, 1
      %p175 = scmp.eq.s32.totalorder %s32, 1
      %p176 = scmp.ne.s32.totalorder %s171, %s173
      %p177 = scmp.eq.s32.totalorder %s32, 0
      %p178 = por %p176, %p177
      %p179 = scmp.ne.s32.totalorder %s171, %s173
      %p180 = scmp.eq.s32.totalorder %s37, 1
      %p181 = por %p179, %p180
      %p182 = scmp.ne.s32.totalorder %s173, %s174
      %p183 = scmp.eq.s32.totalorder %s37, 0
      %p184 = por %p182, %p183
      %p185 = scmp.ne.s32.totalorder %s173, %s174
      %p186 = scmp.eq.s32.totalorder %s38, 1
      %p187 = por %p185, %p186
      %p189 = scmp.ne.s32.totalorder %s174, %s188
      %p190 = scmp.eq.s32.totalorder %s38, 0
      %p191 = por %p189, %p190
      %s193 = sadd.s32 %s192, 1
      %p196 = scmp.eq.s32.totalorder %s32, 1
      %p197 = scmp.ne.s32.totalorder %s192, %s194
      %p198 = scmp.eq.s32.totalorder %s32, 0
      %p199 = por %p197, %p198
      %p200 = scmp.ne.s32.totalorder %s192, %s194
      %p201 = scmp.eq.s32.totalorder %s37, 1
      %p202 = por %p200, %p201
      %p203 = scmp.ne.s32.totalorder %s194, %s195
      %p204 = scmp.eq.s32.totalorder %s37, 0
      %p205 = por %p203, %p204
      %p206 = scmp.ne.s32.totalorder %s194, %s195
      %p207 = scmp.eq.s32.totalorder %s38, 1
      %p208 = por %p206, %p207
      %p210 = scmp.ne.s32.totalorder %s195, %s209
      %p211 = scmp.eq.s32.totalorder %s38, 0
      %p212 = por %p210, %p211
      %s214 = sadd.s32 %s213, 1
      %p217 = scmp.eq.s32.totalorder %s32, 1
      %p218 = scmp.ne.s32.totalorder %s213, %s215
      %p219 = scmp.eq.s32.totalorder %s32, 0
      %p220 = por %p218, %p219
      %p221 = scmp.ne.s32.totalorder %s213, %s215
      %p222 = scmp.eq.s32.totalorder %s37, 1
      %p223 = por %p221, %p222
      %p224 = scmp.ne.s32.totalorder %s215, %s216
      %p225 = scmp.eq.s32.totalorder %s37, 0
      %p226 = por %p224, %p225
      %p227 = scmp.ne.s32.totalorder %s215, %s216
      %p228 = scmp.eq.s32.totalorder %s38, 1
      %p229 = por %p227, %p228
      %p231 = scmp.ne.s32.totalorder %s216, %s230
      %p232 = scmp.eq.s32.totalorder %s38, 0
      %p233 = por %p231, %p232
      %s235 = sadd.s32 %s234, 1
      %p238 = scmp.eq.s32.totalorder %s32, 1
      %p239 = scmp.ne.s32.totalorder %s234, %s236
      %p240 = scmp.eq.s32.totalorder %s32, 0
      %p241 = por %p239, %p240
      %p242 = scmp.ne.s32.totalorder %s234, %s236
      %p243 = scmp.eq.s32.totalorder %s37, 1
      %p244 = por %p242, %p243
      %p245 = scmp.ne.s32.totalorder %s236, %s237
      %p246 = scmp.eq.s32.totalorder %s37, 0
      %p247 = por %p245, %p246
      %p248 = scmp.ne.s32.totalorder %s236, %s237
      %p249 = scmp.eq.s32.totalorder %s38, 1
      %p250 = por %p248, %p249
      %p252 = scmp.ne.s32.totalorder %s237, %s251
      %p253 = scmp.eq.s32.totalorder %s38, 0
      %p254 = por %p252, %p253
      %s256 = sadd.s32 %s255, 1
      %p259 = scmp.eq.s32.totalorder %s32, 1
      %p260 = scmp.ne.s32.totalorder %s255, %s257
      %p261 = scmp.eq.s32.totalorder %s32, 0
      %p262 = por %p260, %p261
      %p263 = scmp.ne.s32.totalorder %s255, %s257
      %p264 = scmp.eq.s32.totalorder %s37, 1
      %p265 = por %p263, %p264
      %p266 = scmp.ne.s32.totalorder %s257, %s258
      %p267 = scmp.eq.s32.totalorder %s37, 0
      %p268 = por %p266, %p267
      %p269 = scmp.ne.s32.totalorder %s257, %s258
      %p270 = scmp.eq.s32.totalorder %s38, 1
      %p271 = por %p269, %p270
      %p273 = scmp.ne.s32.totalorder %s258, %s272
      %p274 = scmp.eq.s32.totalorder %s38, 0
      %p275 = por %p273, %p274
      %s277 = sadd.s32 %s276, 1
      %p280 = scmp.eq.s32.totalorder %s32, 1
      %p281 = scmp.ne.s32.totalorder %s276, %s278
      %p282 = scmp.eq.s32.totalorder %s32, 0
      %p283 = por %p281, %p282
      %p284 = scmp.ne.s32.totalorder %s276, %s278
      %p285 = scmp.eq.s32.totalorder %s37, 1
      %p286 = por %p284, %p285
      %p287 = scmp.ne.s32.totalorder %s278, %s279
      %p288 = scmp.eq.s32.totalorder %s37, 0
      %p289 = por %p287, %p288
      %p290 = scmp.ne.s32.totalorder %s278, %s279
      %p291 = scmp.eq.s32.totalorder %s38, 1
      %p292 = por %p290, %p291
      %p294 = scmp.ne.s32.totalorder %s279, %s293
      %p295 = scmp.eq.s32.totalorder %s38, 0
      %p296 = por %p294, %p295
      %s298 = sadd.s32 %s297, 1
      %p301 = scmp.eq.s32.totalorder %s32, 1
      %p302 = scmp.ne.s32.totalorder %s297, %s299
      %p303 = scmp.eq.s32.totalorder %s32, 0
      %p304 = por %p302, %p303
      %p305 = scmp.ne.s32.totalorder %s297, %s299
      %p306 = scmp.eq.s32.totalorder %s37, 1
      %p307 = por %p305, %p306
      %p308 = scmp.ne.s32.totalorder %s299, %s300
      %p309 = scmp.eq.s32.totalorder %s37, 0
      %p310 = por %p308, %p309
      %p311 = scmp.ne.s32.totalorder %s299, %s300
      %p312 = scmp.eq.s32.totalorder %s38, 1
      %p313 = por %p311, %p312
      %p315 = scmp.ne.s32.totalorder %s300, %s314
      %p316 = scmp.eq.s32.totalorder %s38, 0
      %p317 = por %p315, %p316
      %s319 = sadd.s32 %s318, 1
      %p322 = scmp.eq.s32.totalorder %s32, 1
      %p323 = scmp.ne.s32.totalorder %s318, %s320
      %p324 = scmp.eq.s32.totalorder %s32, 0
      %p325 = por %p323, %p324
      %p326 = scmp.ne.s32.totalorder %s318, %s320
      %p327 = scmp.eq.s32.totalorder %s37, 1
      %p328 = por %p326, %p327
      %p329 = scmp.ne.s32.totalorder %s320, %s321
      %p330 = scmp.eq.s32.totalorder %s37, 0
      %p331 = por %p329, %p330
      %p332 = scmp.ne.s32.totalorder %s320, %s321
      %p333 = scmp.eq.s32.totalorder %s38, 1
      %p334 = por %p332, %p333
      %p336 = scmp.ne.s32.totalorder %s321, %s335
      %p337 = scmp.eq.s32.totalorder %s38, 0
      %p338 = por %p336, %p337
      %s340 = sadd.s32 %s339, 1
      %p343 = scmp.eq.s32.totalorder %s32, 1
      %p344 = scmp.ne.s32.totalorder %s339, %s341
      %p345 = scmp.eq.s32.totalorder %s32, 0
      %p346 = por %p344, %p345
      %p347 = scmp.ne.s32.totalorder %s339, %s341
      %p348 = scmp.eq.s32.totalorder %s37, 1
      %p349 = por %p347, %p348
      %p350 = scmp.ne.s32.totalorder %s341, %s342
      %p351 = scmp.eq.s32.totalorder %s37, 0
      %p352 = por %p350, %p351
      %p353 = scmp.ne.s32.totalorder %s341, %s342
      %p354 = scmp.eq.s32.totalorder %s38, 1
      %p355 = por %p353, %p354
      %p357 = scmp.ne.s32.totalorder %s342, %s356
      %p358 = scmp.eq.s32.totalorder %s38, 0
      %p359 = por %p357, %p358
      %s361 = sadd.s32 %s360, 1
      %p364 = scmp.eq.s32.totalorder %s32, 1
      %p365 = scmp.ne.s32.totalorder %s360, %s362
      %p366 = scmp.eq.s32.totalorder %s32, 0
      %p367 = por %p365, %p366
      %p368 = scmp.ne.s32.totalorder %s360, %s362
      %p369 = scmp.eq.s32.totalorder %s37, 1
      %p370 = por %p368, %p369
      %p371 = scmp.ne.s32.totalorder %s362, %s363
      %p372 = scmp.eq.s32.totalorder %s37, 0
      %p373 = por %p371, %p372
      %p374 = scmp.ne.s32.totalorder %s362, %s363
      %p375 = scmp.eq.s32.totalorder %s38, 1
      %p376 = por %p374, %p375
      %p378 = scmp.ne.s32.totalorder %s363, %s377
      %p379 = scmp.eq.s32.totalorder %s38, 0
      %p380 = por %p378, %p379
      %s381 = ssub.s32 %s32, %s39
      %p382 = scmp.eq.s32.totalorder %s381, 0
      %s384 = sadd.s32 %s383, 1
      %s385 = scalar_select %p382, %s383, %s384
      %p388 = pneg %p382
      %p389 = scmp.eq.s32.totalorder %s32, 1
      %p390 = por %p388, %p389
      %p391 = scmp.ne.s32.totalorder %s383, %s386
      %p392 = scmp.eq.s32.totalorder %s32, 0
      %p393 = por %p391, %p392
      %p394 = scmp.ne.s32.totalorder %s383, %s386
      %p395 = scmp.eq.s32.totalorder %s37, 1
      %p396 = por %p394, %p395
      %p397 = scmp.ne.s32.totalorder %s386, %s387
      %p398 = scmp.eq.s32.totalorder %s37, 0
      %p399 = por %p397, %p398
      %p400 = scmp.ne.s32.totalorder %s386, %s387
      %p401 = scmp.eq.s32.totalorder %s38, 1
      %p402 = por %p400, %p401
      %p404 = scmp.ne.s32.totalorder %s387, %s403
      %p405 = scmp.eq.s32.totalorder %s38, 0
      %p406 = por %p404, %p405
      %p407 = scmp.le.s32.totalorder 1, %s32
      %p408 = scmp.lt.s32.totalorder %s32, 3
      %p409 = pnand %p407, %p408
      %p410 = pneg %p409
      // Predicated region
      $region9: #{tpu_custom_call.1} parent=5 // pred_check
        _
      $region10: #{tpu_custom_call.1} parent=5 // pred_check_branch
        %412 = sbr.rel (%p409) target = $region12
      $region11: #{tpu_custom_call.1} parent=5 // pred_region
        %s413 = ssub.s32 %s32, 1
        // Predicated region
        $region13: #{tpu_custom_call.1} parent=11 // pred_check
          %p414 = pneg %p53
        $region14: #{tpu_custom_call.1} parent=11 // pred_check_branch
          %416 = sbr.rel (%p414) target = $region16
        $region15: #{tpu_custom_call.1} parent=11 // pred_region
          %s418 = ssub.s32 128, 128
          %419 = vsyncadd [#allocation3], %s418
          %s421 = sshll.u32 [#allocation2], 4
          %s422 = int_to_ptr.vmem [resolvable:$true] %s421
          %424 = dma.hbm_to_vmem [thread:$0]  %s0, 128, %s422, [#allocation3]
        $region16: #{tpu_custom_call.1} parent=11 // pred_fallthru
          _
        // Predicated region
        $region17: #{tpu_custom_call.1} parent=11 // pred_check
          %p425 = pneg %p100
        $region18: #{tpu_custom_call.1} parent=11 // pred_check_branch
          %427 = sbr.rel (%p425) target = $region20
        $region19: #{tpu_custom_call.1} parent=11 // pred_region
          %s429 = ssub.s32 16384, 16384
          %430 = vsyncadd [#allocation6], %s429
          %s431 = sshll.u32 [#allocation7], 4
          %s432 = int_to_ptr.vmem [resolvable:$true] %s431
          %437 = dma.hbm_to_vmem [thread:$0]  %s2, 16384, %s432, [#allocation6], 256, 256, 16
        $region20: #{tpu_custom_call.1} parent=11 // pred_fallthru
          _
        // Predicated region
        $region21: #{tpu_custom_call.1} parent=11 // pred_check
          %p438 = pneg %p121
        $region22: #{tpu_custom_call.1} parent=11 // pred_check_branch
          %440 = sbr.rel (%p438) target = $region24
        $region23: #{tpu_custom_call.1} parent=11 // pred_region
          %s442 = ssub.s32 16384, 16384
          %443 = vsyncadd [#allocation9], %s442
          %s444 = sshll.u32 [#allocation8], 4
          %s445 = int_to_ptr.vmem [resolvable:$true] %s444
          %450 = dma.hbm_to_vmem [thread:$0]  %s3, 16384, %s445, [#allocation9], 256, 256, 16
        $region24: #{tpu_custom_call.1} parent=11 // pred_fallthru
          _
        // Predicated region
        $region25: #{tpu_custom_call.1} parent=11 // pred_check
          %p451 = pneg %p142
        $region26: #{tpu_custom_call.1} parent=11 // pred_check_branch
          %453 = sbr.rel (%p451) target = $region28
        $region27: #{tpu_custom_call.1} parent=11 // pred_region
          %s455 = ssub.s32 16384, 16384
          %456 = vsyncadd [#allocation9], %s455
          %s457 = sshll.u32 [#allocation10], 4
          %s458 = int_to_ptr.vmem [resolvable:$true] %s457
          %463 = dma.hbm_to_vmem [thread:$0]  %s4, 16384, %s458, [#allocation9], 256, 256, 16
        $region28: #{tpu_custom_call.1} parent=11 // pred_fallthru
          _
        // Predicated region
        $region29: #{tpu_custom_call.1} parent=11 // pred_check
          %p464 = pneg %p163
        $region30: #{tpu_custom_call.1} parent=11 // pred_check_branch
          %466 = sbr.rel (%p464) target = $region32
        $region31: #{tpu_custom_call.1} parent=11 // pred_region
          _
        $region32: #{tpu_custom_call.1} parent=11 // pred_fallthru
          _
        // Predicated region
        $region33: #{tpu_custom_call.1} parent=11 // pred_check
          %p467 = pneg %p184
        $region34: #{tpu_custom_call.1} parent=11 // pred_check_branch
          %469 = sbr.rel (%p467) target = $region36
        $region35: #{tpu_custom_call.1} parent=11 // pred_region
          _
        $region36: #{tpu_custom_call.1} parent=11 // pred_fallthru
          _
        // Predicated region
        $region37: #{tpu_custom_call.1} parent=11 // pred_check
          %p470 = pneg %p205
        $region38: #{tpu_custom_call.1} parent=11 // pred_check_branch
          %472 = sbr.rel (%p470) target = $region40
        $region39: #{tpu_custom_call.1} parent=11 // pred_region
          _
        $region40: #{tpu_custom_call.1} parent=11 // pred_fallthru
          _
        // Predicated region
        $region41: #{tpu_custom_call.1} parent=11 // pred_check
          %p473 = pneg %p226
        $region42: #{tpu_custom_call.1} parent=11 // pred_check_branch
          %475 = sbr.rel (%p473) target = $region44
        $region43: #{tpu_custom_call.1} parent=11 // pred_region
          %s477 = ssub.s32 16384, 16384
          %478 = vsyncadd [#allocation12], %s477
          %s479 = sshll.u32 [#allocation11], 4
          %s480 = int_to_ptr.vmem [resolvable:$true] %s479
          %485 = dma.hbm_to_vmem [thread:$0]  %s8, 16384, %s480, [#allocation12], 256, 256, 16
        $region44: #{tpu_custom_call.1} parent=11 // pred_fallthru
          _
        // Predicated region
        $region45: #{tpu_custom_call.1} parent=11 // pred_check
          %p486 = pneg %p247
        $region46: #{tpu_custom_call.1} parent=11 // pred_check_branch
          %488 = sbr.rel (%p486) target = $region48
        $region47: #{tpu_custom_call.1} parent=11 // pred_region
          _
        $region48: #{tpu_custom_call.1} parent=11 // pred_fallthru
          _
        // Predicated region
        $region49: #{tpu_custom_call.1} parent=11 // pred_check
          %p489 = pneg %p268
        $region50: #{tpu_custom_call.1} parent=11 // pred_check_branch
          %491 = sbr.rel (%p489) target = $region52
        $region51: #{tpu_custom_call.1} parent=11 // pred_region
          %s493 = ssub.s32 16384, 16384
          %494 = vsyncadd [#allocation12], %s493
          %s495 = sshll.u32 [#allocation13], 4
          %s496 = int_to_ptr.vmem [resolvable:$true] %s495
          %501 = dma.hbm_to_vmem [thread:$0]  %s10, 16384, %s496, [#allocation12], 256, 256, 16
        $region52: #{tpu_custom_call.1} parent=11 // pred_fallthru
          _
        // Predicated region
        $region53: #{tpu_custom_call.1} parent=11 // pred_check
          %p502 = pneg %p289
        $region54: #{tpu_custom_call.1} parent=11 // pred_check_branch
          %504 = sbr.rel (%p502) target = $region56
        $region55: #{tpu_custom_call.1} parent=11 // pred_region
          _
        $region56: #{tpu_custom_call.1} parent=11 // pred_fallthru
          _
        // Predicated region
        $region57: #{tpu_custom_call.1} parent=11 // pred_check
          %p505 = pneg %p310
        $region58: #{tpu_custom_call.1} parent=11 // pred_check_branch
          %507 = sbr.rel (%p505) target = $region60
        $region59: #{tpu_custom_call.1} parent=11 // pred_region
          %s509 = ssub.s32 16384, 16384
          %510 = vsyncadd [#allocation15], %s509
          %s511 = sshll.u32 [#allocation14], 4
          %s512 = int_to_ptr.vmem [resolvable:$true] %s511
          %517 = dma.hbm_to_vmem [thread:$0]  %s12, 16384, %s512, [#allocation15], 256, 256, 16
        $region60: #{tpu_custom_call.1} parent=11 // pred_fallthru
          _
        // Predicated region
        $region61: #{tpu_custom_call.1} parent=11 // pred_check
          %p518 = pneg %p331
        $region62: #{tpu_custom_call.1} parent=11 // pred_check_branch
          %520 = sbr.rel (%p518) target = $region64
        $region63: #{tpu_custom_call.1} parent=11 // pred_region
          _
        $region64: #{tpu_custom_call.1} parent=11 // pred_fallthru
          _
        // Predicated region
        $region65: #{tpu_custom_call.1} parent=11 // pred_check
          %p521 = pneg %p352
        $region66: #{tpu_custom_call.1} parent=11 // pred_check_branch
          %523 = sbr.rel (%p521) target = $region68
        $region67: #{tpu_custom_call.1} parent=11 // pred_region
          _
        $region68: #{tpu_custom_call.1} parent=11 // pred_fallthru
          _
        // Predicated region
        $region69: #{tpu_custom_call.1} parent=11 // pred_check
          %p524 = pneg %p373
        $region70: #{tpu_custom_call.1} parent=11 // pred_check_branch
          %526 = sbr.rel (%p524) target = $region72
        $region71: #{tpu_custom_call.1} parent=11 // pred_region
          _
        $region72: #{tpu_custom_call.1} parent=11 // pred_fallthru
          _
      $region12: #{tpu_custom_call.1} parent=5 // pred_fallthru
        _
      %p527 = scmp.lt.s32.totalorder %s32, 2
      // Predicated region
      $region73: #{tpu_custom_call.1} parent=5 // pred_check
        %p528 = pneg %p527
      $region74: #{tpu_custom_call.1} parent=5 // pred_check_branch
        %530 = sbr.rel (%p528) target = $region76
      $region75: #{tpu_custom_call.1} parent=5 // pred_region
        // Predicated region
        $region77: #{tpu_custom_call.1} parent=75 // pred_check
          %p531 = pneg %p73
        $region78: #{tpu_custom_call.1} parent=75 // pred_check_branch
          %533 = sbr.rel (%p531) target = $region80
        $region79: #{tpu_custom_call.1} parent=75 // pred_region
          %s534 = sand.u32 %s32, 1
          %s535 = scalar_lea.sflag [#allocation6], %s534
          %s536 = sand.u32 %s63, 1
          %s537 = smul.addr %s536, 64
          %s538 = scalar_lea.vmem [#allocation5], %s537
          %s540 = ssub.s32 1024, 1024
          %541 = vsyncadd %s535, %s540
          %s542 = smul.addr %s32, 8
          %s543 = smul.addr %s542, 128
          %s544 = scalar_lea.hbm %s1, %s543
          %s545 = sshll.u32 %s538, 4
          %s546 = int_to_ptr.vmem [resolvable:$true] %s545
          %551 = dma.hbm_to_vmem [thread:$0]  %s544, 1024, %s546, %s535, 512, 512, 32
        $region80: #{tpu_custom_call.1} parent=75 // pred_fallthru
          _
      $region76: #{tpu_custom_call.1} parent=5 // pred_fallthru
        _
      %p552 = scmp.le.s32.totalorder 1, %s32
      %p553 = scmp.lt.s32.totalorder %s32, 3
      %p554 = pnand %p552, %p553
      %p555 = pneg %p554
      // Predicated region
      $region81: #{tpu_custom_call.1} parent=5 // pred_check
        _
      $region82: #{tpu_custom_call.1} parent=5 // pred_check_branch
        %557 = sbr.rel (%p554) target = $region84
      $region83: #{tpu_custom_call.1} parent=5 // pred_region
        %s558 = ssub.s32 %s32, 1
        // Predicated region
        $region85: #{tpu_custom_call.1} parent=83 // pred_check
          %p559 = pneg %p53
        $region86: #{tpu_custom_call.1} parent=83 // pred_check_branch
          %561 = sbr.rel (%p559) target = $region88
        $region87: #{tpu_custom_call.1} parent=83 // pred_region
          %562 = dma.done [#allocation3], 128
        $region88: #{tpu_custom_call.1} parent=83 // pred_fallthru
          _
        %s563 = sand.u32 %s37, 1
        %s564 = scalar_lea.sflag [#allocation6], %s563
        %s565 = sand.u32 %s66, 1
        %s566 = smul.addr %s565, 64
        %s567 = scalar_lea.vmem [#allocation5], %s566
        // Predicated region
        $region89: #{tpu_custom_call.1} parent=83 // pred_check
          %p568 = pneg %p79
        $region90: #{tpu_custom_call.1} parent=83 // pred_check_branch
          %570 = sbr.rel (%p568) target = $region92
        $region91: #{tpu_custom_call.1} parent=83 // pred_region
          %571 = dma.done %s564, 1024
        $region92: #{tpu_custom_call.1} parent=83 // pred_fallthru
          _
        // Predicated region
        $region93: #{tpu_custom_call.1} parent=83 // pred_check
          %p572 = pneg %p100
        $region94: #{tpu_custom_call.1} parent=83 // pred_check_branch
          %574 = sbr.rel (%p572) target = $region96
        $region95: #{tpu_custom_call.1} parent=83 // pred_region
          %575 = dma.done [#allocation6], 16384
        $region96: #{tpu_custom_call.1} parent=83 // pred_fallthru
          _
        // Predicated region
        $region97: #{tpu_custom_call.1} parent=83 // pred_check
          %p576 = pneg %p121
        $region98: #{tpu_custom_call.1} parent=83 // pred_check_branch
          %578 = sbr.rel (%p576) target = $region100
        $region99: #{tpu_custom_call.1} parent=83 // pred_region
          %579 = dma.done [#allocation9], 16384
        $region100: #{tpu_custom_call.1} parent=83 // pred_fallthru
          _
        // Predicated region
        $region101: #{tpu_custom_call.1} parent=83 // pred_check
          %p580 = pneg %p142
        $region102: #{tpu_custom_call.1} parent=83 // pred_check_branch
          %582 = sbr.rel (%p580) target = $region104
        $region103: #{tpu_custom_call.1} parent=83 // pred_region
          %583 = dma.done [#allocation9], 16384
        $region104: #{tpu_custom_call.1} parent=83 // pred_fallthru
          _
        // Predicated region
        $region105: #{tpu_custom_call.1} parent=83 // pred_check
          %p584 = pneg %p226
        $region106: #{tpu_custom_call.1} parent=83 // pred_check_branch
          %586 = sbr.rel (%p584) target = $region108
        $region107: #{tpu_custom_call.1} parent=83 // pred_region
          %587 = dma.done [#allocation12], 16384
        $region108: #{tpu_custom_call.1} parent=83 // pred_fallthru
          _
        // Predicated region
        $region109: #{tpu_custom_call.1} parent=83 // pred_check
          %p588 = pneg %p268
        $region110: #{tpu_custom_call.1} parent=83 // pred_check_branch
          %590 = sbr.rel (%p588) target = $region112
        $region111: #{tpu_custom_call.1} parent=83 // pred_region
          %591 = dma.done [#allocation12], 16384
        $region112: #{tpu_custom_call.1} parent=83 // pred_fallthru
          _
        // Predicated region
        $region113: #{tpu_custom_call.1} parent=83 // pred_check
          %p592 = pneg %p310
        $region114: #{tpu_custom_call.1} parent=83 // pred_check_branch
          %594 = sbr.rel (%p592) target = $region116
        $region115: #{tpu_custom_call.1} parent=83 // pred_region
          %595 = dma.done [#allocation15], 16384
        $region116: #{tpu_custom_call.1} parent=83 // pred_fallthru
          _
        %p596 = pneg %p53
        %p597 = pneg %p50
        %s598 = sand.u32 %s37, 1
        %s599 = scalar_lea.sflag [#allocation6], %s598
        %s600 = sand.u32 %s66, 1
        %s601 = smul.addr %s600, 64
        %s602 = scalar_lea.vmem [#allocation5], %s601
        %p603 = pneg %p79
        %p604 = pneg %p76
        %p605 = pneg %p100
        %p606 = pneg %p97
        %p607 = pneg %p121
        %p608 = pneg %p118
        %p609 = pneg %p142
        %p610 = pneg %p139
        %p611 = pneg %p163
        %p612 = pneg %p160
        %p613 = pneg %p184
        %p614 = pneg %p181
        %p615 = pneg %p205
        %p616 = pneg %p202
        %p617 = pneg %p226
        %p618 = pneg %p223
        %p619 = pneg %p247
        %p620 = pneg %p244
        %p621 = pneg %p268
        %p622 = pneg %p265
        %p623 = pneg %p289
        %p624 = pneg %p286
        %p625 = pneg %p310
        %p626 = pneg %p307
        %p627 = pneg %p331
        %p628 = pneg %p328
        %p629 = pneg %p352
        %p630 = pneg %p349
        %p631 = pneg %p373
        %p632 = pneg %p370
        %p633 = pneg %p399
        %p634 = pneg %p396
        %s635 = sand.u32 %s386, 1
        %s636 = scalar_lea.sflag [#allocation4], %s635
        %s637 = sand.u32 %s386, 1
        %s638 = smul.addr %s637, 8
        %s639 = scalar_lea.vmem [#allocation16], %s638
        %v641 = vld [vmem:[#allocation2] sm:$0xff]
        %v642 = vld [vmem:[%s567] sm:$0xff]
        %v643 = vld [vmem:[%s567 + $0x8] sm:$0xff]
        %v644 = vld [vmem:[%s567 + $0x10] sm:$0xff]
        %v645 = vld [vmem:[%s567 + $0x18] sm:$0xff]
        %v646 = vld [vmem:[%s567 + $0x20] sm:$0xff]
        %v647 = vld [vmem:[%s567 + $0x28] sm:$0xff]
        %v648 = vld [vmem:[%s567 + $0x30] sm:$0xff]
        %v649 = vld [vmem:[%s567 + $0x38] sm:$0xff]
        %v651 = vcombine.high %v641, %v641
        %v653 = vunpack.c.l.s4 1983009808
        %v654 = vunpack.c.0.s8 %v653
        %v655 = vlaneseq
        %v656 = vshrl.u32 %v655, 7
        %v657 = vsub.s32 %v654, %v656
        %v658 = vrot.slane %v641, %v657
        %v660 = vunpack.c.l.s4 1983009808
        %v661 = vunpack.c.0.s8 %v660
        %v662 = vlaneseq
        %v663 = vshrl.u32 %v662, 7
        %v664 = vsub.s32 %v661, %v663
        %v665 = vrot.slane %v651, %v664
        %v666 = vcombine.high %v658, %v658
        %v667 = vcombine.high %v665, %v665
        %v672 = vpack.c.bf16 %v658, %v658
        %v673 = vpack.c.bf16 %v666, %v666
        %v674 = vpack.c.bf16 %v665, %v665
        %v675 = vpack.c.bf16 %v667, %v667
        %v676 = vld [vmem:[#allocation7] sm:$0xff]
        %v677 = vld [vmem:[#allocation7 + $0x8] sm:$0xff]
        %v678 = vld [vmem:[#allocation7 + $0x10] sm:$0xff]
        %v679 = vld [vmem:[#allocation7 + $0x18] sm:$0xff]
        %v680 = vld [vmem:[#allocation7 + $0x20] sm:$0xff]
        %v681 = vld [vmem:[#allocation7 + $0x28] sm:$0xff]
        %v682 = vld [vmem:[#allocation7 + $0x30] sm:$0xff]
        %v683 = vld [vmem:[#allocation7 + $0x38] sm:$0xff]
        %v684 = vld [vmem:[#allocation7 + $0x40] sm:$0xff]
        %v685 = vld [vmem:[#allocation7 + $0x48] sm:$0xff]
        %v686 = vld [vmem:[#allocation7 + $0x50] sm:$0xff]
        %v687 = vld [vmem:[#allocation7 + $0x58] sm:$0xff]
        %v688 = vld [vmem:[#allocation7 + $0x60] sm:$0xff]
        %v689 = vld [vmem:[#allocation7 + $0x68] sm:$0xff]
        %v690 = vld [vmem:[#allocation7 + $0x70] sm:$0xff]
        %v691 = vld [vmem:[#allocation7 + $0x78] sm:$0xff]
        %v692 = vld [vmem:[#allocation7 + $0x80] sm:$0xff]
        %v693 = vld [vmem:[#allocation7 + $0x88] sm:$0xff]
        %v694 = vld [vmem:[#allocation7 + $0x90] sm:$0xff]
        %v695 = vld [vmem:[#allocation7 + $0x98] sm:$0xff]
        %v696 = vld [vmem:[#allocation7 + $0xa0] sm:$0xff]
        %v697 = vld [vmem:[#allocation7 + $0xa8] sm:$0xff]
        %v698 = vld [vmem:[#allocation7 + $0xb0] sm:$0xff]
        %v699 = vld [vmem:[#allocation7 + $0xb8] sm:$0xff]
        %v700 = vld [vmem:[#allocation7 + $0xc0] sm:$0xff]
        %v701 = vld [vmem:[#allocation7 + $0xc8] sm:$0xff]
        %v702 = vld [vmem:[#allocation7 + $0xd0] sm:$0xff]
        %v703 = vld [vmem:[#allocation7 + $0xd8] sm:$0xff]
        %v704 = vld [vmem:[#allocation7 + $0xe0] sm:$0xff]
        %v705 = vld [vmem:[#allocation7 + $0xe8] sm:$0xff]
        %v706 = vld [vmem:[#allocation7 + $0xf0] sm:$0xff]
        %v707 = vld [vmem:[#allocation7 + $0xf8] sm:$0xff]
        %v708 = vld [vmem:[#allocation7 + $0x100] sm:$0xff]
        %v709 = vld [vmem:[#allocation7 + $0x108] sm:$0xff]
        %v710 = vld [vmem:[#allocation7 + $0x110] sm:$0xff]
        %v711 = vld [vmem:[#allocation7 + $0x118] sm:$0xff]
        %v712 = vld [vmem:[#allocation7 + $0x120] sm:$0xff]
        %v713 = vld [vmem:[#allocation7 + $0x128] sm:$0xff]
        %v714 = vld [vmem:[#allocation7 + $0x130] sm:$0xff]
        %v715 = vld [vmem:[#allocation7 + $0x138] sm:$0xff]
        %v716 = vld [vmem:[#allocation7 + $0x140] sm:$0xff]
        %v717 = vld [vmem:[#allocation7 + $0x148] sm:$0xff]
        %v718 = vld [vmem:[#allocation7 + $0x150] sm:$0xff]
        %v719 = vld [vmem:[#allocation7 + $0x158] sm:$0xff]
        %v720 = vld [vmem:[#allocation7 + $0x160] sm:$0xff]
        %v721 = vld [vmem:[#allocation7 + $0x168] sm:$0xff]
        %v722 = vld [vmem:[#allocation7 + $0x170] sm:$0xff]
        %v723 = vld [vmem:[#allocation7 + $0x178] sm:$0xff]
        %v724 = vld [vmem:[#allocation7 + $0x180] sm:$0xff]
        %v725 = vld [vmem:[#allocation7 + $0x188] sm:$0xff]
        %v726 = vld [vmem:[#allocation7 + $0x190] sm:$0xff]
        %v727 = vld [vmem:[#allocation7 + $0x198] sm:$0xff]
        %v728 = vld [vmem:[#allocation7 + $0x1a0] sm:$0xff]
        %v729 = vld [vmem:[#allocation7 + $0x1a8] sm:$0xff]
        %v730 = vld [vmem:[#allocation7 + $0x1b0] sm:$0xff]
        %v731 = vld [vmem:[#allocation7 + $0x1b8] sm:$0xff]
        %v732 = vld [vmem:[#allocation7 + $0x1c0] sm:$0xff]
        %v733 = vld [vmem:[#allocation7 + $0x1c8] sm:$0xff]
        %v734 = vld [vmem:[#allocation7 + $0x1d0] sm:$0xff]
        %v735 = vld [vmem:[#allocation7 + $0x1d8] sm:$0xff]
        %v736 = vld [vmem:[#allocation7 + $0x1e0] sm:$0xff]
        %v737 = vld [vmem:[#allocation7 + $0x1e8] sm:$0xff]
        %v738 = vld [vmem:[#allocation7 + $0x1f0] sm:$0xff]
        %v739 = vld [vmem:[#allocation7 + $0x1f8] sm:$0xff]
        %v740 = vld [vmem:[#allocation7 + $0x200] sm:$0xff]
        %v741 = vld [vmem:[#allocation7 + $0x208] sm:$0xff]
        %v742 = vld [vmem:[#allocation7 + $0x210] sm:$0xff]
        %v743 = vld [vmem:[#allocation7 + $0x218] sm:$0xff]
        %v744 = vld [vmem:[#allocation7 + $0x220] sm:$0xff]
        %v745 = vld [vmem:[#allocation7 + $0x228] sm:$0xff]
        %v746 = vld [vmem:[#allocation7 + $0x230] sm:$0xff]
        %v747 = vld [vmem:[#allocation7 + $0x238] sm:$0xff]
        %v748 = vld [vmem:[#allocation7 + $0x240] sm:$0xff]
        %v749 = vld [vmem:[#allocation7 + $0x248] sm:$0xff]
        %v750 = vld [vmem:[#allocation7 + $0x250] sm:$0xff]
        %v751 = vld [vmem:[#allocation7 + $0x258] sm:$0xff]
        %v752 = vld [vmem:[#allocation7 + $0x260] sm:$0xff]
        %v753 = vld [vmem:[#allocation7 + $0x268] sm:$0xff]
        %v754 = vld [vmem:[#allocation7 + $0x270] sm:$0xff]
        %v755 = vld [vmem:[#allocation7 + $0x278] sm:$0xff]
        %v756 = vld [vmem:[#allocation7 + $0x280] sm:$0xff]
        %v757 = vld [vmem:[#allocation7 + $0x288] sm:$0xff]
        %v758 = vld [vmem:[#allocation7 + $0x290] sm:$0xff]
        %v759 = vld [vmem:[#allocation7 + $0x298] sm:$0xff]
        %v760 = vld [vmem:[#allocation7 + $0x2a0] sm:$0xff]
        %v761 = vld [vmem:[#allocation7 + $0x2a8] sm:$0xff]
        %v762 = vld [vmem:[#allocation7 + $0x2b0] sm:$0xff]
        %v763 = vld [vmem:[#allocation7 + $0x2b8] sm:$0xff]
        %v764 = vld [vmem:[#allocation7 + $0x2c0] sm:$0xff]
        %v765 = vld [vmem:[#allocation7 + $0x2c8] sm:$0xff]
        %v766 = vld [vmem:[#allocation7 + $0x2d0] sm:$0xff]
        %v767 = vld [vmem:[#allocation7 + $0x2d8] sm:$0xff]
        %v768 = vld [vmem:[#allocation7 + $0x2e0] sm:$0xff]
        %v769 = vld [vmem:[#allocation7 + $0x2e8] sm:$0xff]
        %v770 = vld [vmem:[#allocation7 + $0x2f0] sm:$0xff]
        %v771 = vld [vmem:[#allocation7 + $0x2f8] sm:$0xff]
        %v772 = vld [vmem:[#allocation7 + $0x300] sm:$0xff]
        %v773 = vld [vmem:[#allocation7 + $0x308] sm:$0xff]
        %v774 = vld [vmem:[#allocation7 + $0x310] sm:$0xff]
        %v775 = vld [vmem:[#allocation7 + $0x318] sm:$0xff]
        %v776 = vld [vmem:[#allocation7 + $0x320] sm:$0xff]
        %v777 = vld [vmem:[#allocation7 + $0x328] sm:$0xff]
        %v778 = vld [vmem:[#allocation7 + $0x330] sm:$0xff]
        %v779 = vld [vmem:[#allocation7 + $0x338] sm:$0xff]
        %v780 = vld [vmem:[#allocation7 + $0x340] sm:$0xff]
        %v781 = vld [vmem:[#allocation7 + $0x348] sm:$0xff]
        %v782 = vld [vmem:[#allocation7 + $0x350] sm:$0xff]
        %v783 = vld [vmem:[#allocation7 + $0x358] sm:$0xff]
        %v784 = vld [vmem:[#allocation7 + $0x360] sm:$0xff]
        %v785 = vld [vmem:[#allocation7 + $0x368] sm:$0xff]
        %v786 = vld [vmem:[#allocation7 + $0x370] sm:$0xff]
        %v787 = vld [vmem:[#allocation7 + $0x378] sm:$0xff]
        %v788 = vld [vmem:[#allocation7 + $0x380] sm:$0xff]
        %v789 = vld [vmem:[#allocation7 + $0x388] sm:$0xff]
        %v790 = vld [vmem:[#allocation7 + $0x390] sm:$0xff]
        %v791 = vld [vmem:[#allocation7 + $0x398] sm:$0xff]
        %v792 = vld [vmem:[#allocation7 + $0x3a0] sm:$0xff]
        %v793 = vld [vmem:[#allocation7 + $0x3a8] sm:$0xff]
        %v794 = vld [vmem:[#allocation7 + $0x3b0] sm:$0xff]
        %v795 = vld [vmem:[#allocation7 + $0x3b8] sm:$0xff]
        %v796 = vld [vmem:[#allocation7 + $0x3c0] sm:$0xff]
        %v797 = vld [vmem:[#allocation7 + $0x3c8] sm:$0xff]
        %v798 = vld [vmem:[#allocation7 + $0x3d0] sm:$0xff]
        %v799 = vld [vmem:[#allocation7 + $0x3d8] sm:$0xff]
        %v800 = vld [vmem:[#allocation7 + $0x3e0] sm:$0xff]
        %v801 = vld [vmem:[#allocation7 + $0x3e8] sm:$0xff]
        %v802 = vld [vmem:[#allocation7 + $0x3f0] sm:$0xff]
        %v803 = vld [vmem:[#allocation7 + $0x3f8] sm:$0xff]
        %v804 = vld [vmem:[%s5] sm:$0xf]
        %v806 = vlaneseq
        %v807 = vshrl.u32 %v806, 7
        %v808 = vsub.s32 0, %v807
        %v809 = vrot.slane %v804, %v808
        %v810 = vlaneseq
        %v811 = vshrl.u32 %v810, 7
        %v812 = vsub.s32 1, %v811
        %v813 = vrot.slane %v804, %v812
        %v814 = vlaneseq
        %v815 = vshrl.u32 %v814, 7
        %v816 = vsub.s32 2, %v815
        %v817 = vrot.slane %v804, %v816
        %v818 = vlaneseq
        %v819 = vshrl.u32 %v818, 7
        %v820 = vsub.s32 3, %v819
        %v821 = vrot.slane %v804, %v820
        %v954 = vunpack.c.l.b16 %v676
        %v955 = vunpack.c.h.b16 %v676
        %v956 = vunpack.c.l.b16 %v677
        %v957 = vunpack.c.h.b16 %v677
        %v958 = vunpack.c.l.b16 %v678
        %v959 = vunpack.c.h.b16 %v678
        %v960 = vunpack.c.l.b16 %v679
        %v961 = vunpack.c.h.b16 %v679
        %v962 = vunpack.c.l.b16 %v680
        %v963 = vunpack.c.h.b16 %v680
        %v964 = vunpack.c.l.b16 %v681
        %v965 = vunpack.c.h.b16 %v681
        %v966 = vunpack.c.l.b16 %v682
        %v967 = vunpack.c.h.b16 %v682
        %v968 = vunpack.c.l.b16 %v683
        %v969 = vunpack.c.h.b16 %v683
        %v970 = vunpack.c.l.b16 %v684
        %v971 = vunpack.c.h.b16 %v684
        %v972 = vunpack.c.l.b16 %v685
        %v973 = vunpack.c.h.b16 %v685
        %v974 = vunpack.c.l.b16 %v686
        %v975 = vunpack.c.h.b16 %v686
        %v976 = vunpack.c.l.b16 %v687
        %v977 = vunpack.c.h.b16 %v687
        %v978 = vunpack.c.l.b16 %v688
        %v979 = vunpack.c.h.b16 %v688
        %v980 = vunpack.c.l.b16 %v689
        %v981 = vunpack.c.h.b16 %v689
        %v982 = vunpack.c.l.b16 %v690
        %v983 = vunpack.c.h.b16 %v690
        %v984 = vunpack.c.l.b16 %v691
        %v985 = vunpack.c.h.b16 %v691
        %v986 = vunpack.c.l.b16 %v692
        %v987 = vunpack.c.h.b16 %v692
        %v988 = vunpack.c.l.b16 %v693
        %v989 = vunpack.c.h.b16 %v693
        %v990 = vunpack.c.l.b16 %v694
        %v991 = vunpack.c.h.b16 %v694
        %v992 = vunpack.c.l.b16 %v695
        %v993 = vunpack.c.h.b16 %v695
        %v994 = vunpack.c.l.b16 %v696
        %v995 = vunpack.c.h.b16 %v696
        %v996 = vunpack.c.l.b16 %v697
        %v997 = vunpack.c.h.b16 %v697
        %v998 = vunpack.c.l.b16 %v698
        %v999 = vunpack.c.h.b16 %v698
        %v1000 = vunpack.c.l.b16 %v699
        %v1001 = vunpack.c.h.b16 %v699
        %v1002 = vunpack.c.l.b16 %v700
        %v1003 = vunpack.c.h.b16 %v700
        %v1004 = vunpack.c.l.b16 %v701
        %v1005 = vunpack.c.h.b16 %v701
        %v1006 = vunpack.c.l.b16 %v702
        %v1007 = vunpack.c.h.b16 %v702
        %v1008 = vunpack.c.l.b16 %v703
        %v1009 = vunpack.c.h.b16 %v703
        %v1010 = vunpack.c.l.b16 %v704
        %v1011 = vunpack.c.h.b16 %v704
        %v1012 = vunpack.c.l.b16 %v705
        %v1013 = vunpack.c.h.b16 %v705
        %v1014 = vunpack.c.l.b16 %v706
        %v1015 = vunpack.c.h.b16 %v706
        %v1016 = vunpack.c.l.b16 %v707
        %v1017 = vunpack.c.h.b16 %v707
        %v1018 = vunpack.c.l.b16 %v708
        %v1019 = vunpack.c.h.b16 %v708
        %v1020 = vunpack.c.l.b16 %v709
        %v1021 = vunpack.c.h.b16 %v709
        %v1022 = vunpack.c.l.b16 %v710
        %v1023 = vunpack.c.h.b16 %v710
        %v1024 = vunpack.c.l.b16 %v711
        %v1025 = vunpack.c.h.b16 %v711
        %v1026 = vunpack.c.l.b16 %v712
        %v1027 = vunpack.c.h.b16 %v712
        %v1028 = vunpack.c.l.b16 %v713
        %v1029 = vunpack.c.h.b16 %v713
        %v1030 = vunpack.c.l.b16 %v714
        %v1031 = vunpack.c.h.b16 %v714
        %v1032 = vunpack.c.l.b16 %v715
        %v1033 = vunpack.c.h.b16 %v715
        %v1034 = vunpack.c.l.b16 %v716
        %v1035 = vunpack.c.h.b16 %v716
        %v1036 = vunpack.c.l.b16 %v717
        %v1037 = vunpack.c.h.b16 %v717
        %v1038 = vunpack.c.l.b16 %v718
        %v1039 = vunpack.c.h.b16 %v718
        %v1040 = vunpack.c.l.b16 %v719
        %v1041 = vunpack.c.h.b16 %v719
        %v1042 = vunpack.c.l.b16 %v720
        %v1043 = vunpack.c.h.b16 %v720
        %v1044 = vunpack.c.l.b16 %v721
        %v1045 = vunpack.c.h.b16 %v721
        %v1046 = vunpack.c.l.b16 %v722
        %v1047 = vunpack.c.h.b16 %v722
        %v1048 = vunpack.c.l.b16 %v723
        %v1049 = vunpack.c.h.b16 %v723
        %v1050 = vunpack.c.l.b16 %v724
        %v1051 = vunpack.c.h.b16 %v724
        %v1052 = vunpack.c.l.b16 %v725
        %v1053 = vunpack.c.h.b16 %v725
        %v1054 = vunpack.c.l.b16 %v726
        %v1055 = vunpack.c.h.b16 %v726
        %v1056 = vunpack.c.l.b16 %v727
        %v1057 = vunpack.c.h.b16 %v727
        %v1058 = vunpack.c.l.b16 %v728
        %v1059 = vunpack.c.h.b16 %v728
        %v1060 = vunpack.c.l.b16 %v729
        %v1061 = vunpack.c.h.b16 %v729
        %v1062 = vunpack.c.l.b16 %v730
        %v1063 = vunpack.c.h.b16 %v730
        %v1064 = vunpack.c.l.b16 %v731
        %v1065 = vunpack.c.h.b16 %v731
        %v1066 = vunpack.c.l.b16 %v732
        %v1067 = vunpack.c.h.b16 %v732
        %v1068 = vunpack.c.l.b16 %v733
        %v1069 = vunpack.c.h.b16 %v733
        %v1070 = vunpack.c.l.b16 %v734
        %v1071 = vunpack.c.h.b16 %v734
        %v1072 = vunpack.c.l.b16 %v735
        %v1073 = vunpack.c.h.b16 %v735
        %v1074 = vunpack.c.l.b16 %v736
        %v1075 = vunpack.c.h.b16 %v736
        %v1076 = vunpack.c.l.b16 %v737
        %v1077 = vunpack.c.h.b16 %v737
        %v1078 = vunpack.c.l.b16 %v738
        %v1079 = vunpack.c.h.b16 %v738
        %v1080 = vunpack.c.l.b16 %v739
        %v1081 = vunpack.c.h.b16 %v739
        %v1082 = vunpack.c.l.b16 %v740
        %v1083 = vunpack.c.h.b16 %v740
        %v1084 = vunpack.c.l.b16 %v741
        %v1085 = vunpack.c.h.b16 %v741
        %v1086 = vunpack.c.l.b16 %v742
        %v1087 = vunpack.c.h.b16 %v742
        %v1088 = vunpack.c.l.b16 %v743
        %v1089 = vunpack.c.h.b16 %v743
        %v1090 = vunpack.c.l.b16 %v744
        %v1091 = vunpack.c.h.b16 %v744
        %v1092 = vunpack.c.l.b16 %v745
        %v1093 = vunpack.c.h.b16 %v745
        %v1094 = vunpack.c.l.b16 %v746
        %v1095 = vunpack.c.h.b16 %v746
        %v1096 = vunpack.c.l.b16 %v747
        %v1097 = vunpack.c.h.b16 %v747
        %v1098 = vunpack.c.l.b16 %v748
        %v1099 = vunpack.c.h.b16 %v748
        %v1100 = vunpack.c.l.b16 %v749
        %v1101 = vunpack.c.h.b16 %v749
        %v1102 = vunpack.c.l.b16 %v750
        %v1103 = vunpack.c.h.b16 %v750
        %v1104 = vunpack.c.l.b16 %v751
        %v1105 = vunpack.c.h.b16 %v751
        %v1106 = vunpack.c.l.b16 %v752
        %v1107 = vunpack.c.h.b16 %v752
        %v1108 = vunpack.c.l.b16 %v753
        %v1109 = vunpack.c.h.b16 %v753
        %v1110 = vunpack.c.l.b16 %v754
        %v1111 = vunpack.c.h.b16 %v754
        %v1112 = vunpack.c.l.b16 %v755
        %v1113 = vunpack.c.h.b16 %v755
        %v1114 = vunpack.c.l.b16 %v756
        %v1115 = vunpack.c.h.b16 %v756
        %v1116 = vunpack.c.l.b16 %v757
        %v1117 = vunpack.c.h.b16 %v757
        %v1118 = vunpack.c.l.b16 %v758
        %v1119 = vunpack.c.h.b16 %v758
        %v1120 = vunpack.c.l.b16 %v759
        %v1121 = vunpack.c.h.b16 %v759
        %v1122 = vunpack.c.l.b16 %v760
        %v1123 = vunpack.c.h.b16 %v760
        %v1124 = vunpack.c.l.b16 %v761
        %v1125 = vunpack.c.h.b16 %v761
        %v1126 = vunpack.c.l.b16 %v762
        %v1127 = vunpack.c.h.b16 %v762
        %v1128 = vunpack.c.l.b16 %v763
        %v1129 = vunpack.c.h.b16 %v763
        %v1130 = vunpack.c.l.b16 %v764
        %v1131 = vunpack.c.h.b16 %v764
        %v1132 = vunpack.c.l.b16 %v765
        %v1133 = vunpack.c.h.b16 %v765
        %v1134 = vunpack.c.l.b16 %v766
        %v1135 = vunpack.c.h.b16 %v766
        %v1136 = vunpack.c.l.b16 %v767
        %v1137 = vunpack.c.h.b16 %v767
        %v1138 = vunpack.c.l.b16 %v768
        %v1139 = vunpack.c.h.b16 %v768
        %v1140 = vunpack.c.l.b16 %v769
        %v1141 = vunpack.c.h.b16 %v769
        %v1142 = vunpack.c.l.b16 %v770
        %v1143 = vunpack.c.h.b16 %v770
        %v1144 = vunpack.c.l.b16 %v771
        %v1145 = vunpack.c.h.b16 %v771
        %v1146 = vunpack.c.l.b16 %v772
        %v1147 = vunpack.c.h.b16 %v772
        %v1148 = vunpack.c.l.b16 %v773
        %v1149 = vunpack.c.h.b16 %v773
        %v1150 = vunpack.c.l.b16 %v774
        %v1151 = vunpack.c.h.b16 %v774
        %v1152 = vunpack.c.l.b16 %v775
        %v1153 = vunpack.c.h.b16 %v775
        %v1154 = vunpack.c.l.b16 %v776
        %v1155 = vunpack.c.h.b16 %v776
        %v1156 = vunpack.c.l.b16 %v777
        %v1157 = vunpack.c.h.b16 %v777
        %v1158 = vunpack.c.l.b16 %v778
        %v1159 = vunpack.c.h.b16 %v778
        %v1160 = vunpack.c.l.b16 %v779
        %v1161 = vunpack.c.h.b16 %v779
        %v1162 = vunpack.c.l.b16 %v780
        %v1163 = vunpack.c.h.b16 %v780
        %v1164 = vunpack.c.l.b16 %v781
        %v1165 = vunpack.c.h.b16 %v781
        %v1166 = vunpack.c.l.b16 %v782
        %v1167 = vunpack.c.h.b16 %v782
        %v1168 = vunpack.c.l.b16 %v783
        %v1169 = vunpack.c.h.b16 %v783
        %v1170 = vunpack.c.l.b16 %v784
        %v1171 = vunpack.c.h.b16 %v784
        %v1172 = vunpack.c.l.b16 %v785
        %v1173 = vunpack.c.h.b16 %v785
        %v1174 = vunpack.c.l.b16 %v786
        %v1175 = vunpack.c.h.b16 %v786
        %v1176 = vunpack.c.l.b16 %v787
        %v1177 = vunpack.c.h.b16 %v787
        %v1178 = vunpack.c.l.b16 %v788
        %v1179 = vunpack.c.h.b16 %v788
        %v1180 = vunpack.c.l.b16 %v789
        %v1181 = vunpack.c.h.b16 %v789
        %v1182 = vunpack.c.l.b16 %v790
        %v1183 = vunpack.c.h.b16 %v790
        %v1184 = vunpack.c.l.b16 %v791
        %v1185 = vunpack.c.h.b16 %v791
        %v1186 = vunpack.c.l.b16 %v792
        %v1187 = vunpack.c.h.b16 %v792
        %v1188 = vunpack.c.l.b16 %v793
        %v1189 = vunpack.c.h.b16 %v793
        %v1190 = vunpack.c.l.b16 %v794
        %v1191 = vunpack.c.h.b16 %v794
        %v1192 = vunpack.c.l.b16 %v795
        %v1193 = vunpack.c.h.b16 %v795
        %v1194 = vunpack.c.l.b16 %v796
        %v1195 = vunpack.c.h.b16 %v796
        %v1196 = vunpack.c.l.b16 %v797
        %v1197 = vunpack.c.h.b16 %v797
        %v1198 = vunpack.c.l.b16 %v798
        %v1199 = vunpack.c.h.b16 %v798
        %v1200 = vunpack.c.l.b16 %v799
        %v1201 = vunpack.c.h.b16 %v799
        %v1202 = vunpack.c.l.b16 %v800
        %v1203 = vunpack.c.h.b16 %v800
        %v1204 = vunpack.c.l.b16 %v801
        %v1205 = vunpack.c.h.b16 %v801
        %v1206 = vunpack.c.l.b16 %v802
        %v1207 = vunpack.c.h.b16 %v802
        %v1208 = vunpack.c.l.b16 %v803
        %v1209 = vunpack.c.h.b16 %v803
        %v1210 = vpack.c.b16 %v958, %v954
        %v1211 = vpack.c.b16 %v959, %v955
        %v1212 = vpack.c.b16 %v960, %v956
        %v1213 = vpack.c.b16 %v961, %v957
        %v1214 = vpack.c.b16 %v966, %v962
        %v1215 = vpack.c.b16 %v967, %v963
        %v1216 = vpack.c.b16 %v968, %v964
        %v1217 = vpack.c.b16 %v969, %v965
        %v1218 = vpack.c.b16 %v974, %v970
        %v1219 = vpack.c.b16 %v975, %v971
        %v1220 = vpack.c.b16 %v976, %v972
        %v1221 = vpack.c.b16 %v977, %v973
        %v1222 = vpack.c.b16 %v982, %v978
        %v1223 = vpack.c.b16 %v983, %v979
        %v1224 = vpack.c.b16 %v984, %v980
        %v1225 = vpack.c.b16 %v985, %v981
        %v1226 = vpack.c.b16 %v990, %v986
        %v1227 = vpack.c.b16 %v991, %v987
        %v1228 = vpack.c.b16 %v992, %v988
        %v1229 = vpack.c.b16 %v993, %v989
        %v1230 = vpack.c.b16 %v998, %v994
        %v1231 = vpack.c.b16 %v999, %v995
        %v1232 = vpack.c.b16 %v1000, %v996
        %v1233 = vpack.c.b16 %v1001, %v997
        %v1234 = vpack.c.b16 %v1006, %v1002
        %v1235 = vpack.c.b16 %v1007, %v1003
        %v1236 = vpack.c.b16 %v1008, %v1004
        %v1237 = vpack.c.b16 %v1009, %v1005
        %v1238 = vpack.c.b16 %v1014, %v1010
        %v1239 = vpack.c.b16 %v1015, %v1011
        %v1240 = vpack.c.b16 %v1016, %v1012
        %v1241 = vpack.c.b16 %v1017, %v1013
        %v1242 = vpack.c.b16 %v1022, %v1018
        %v1243 = vpack.c.b16 %v1023, %v1019
        %v1244 = vpack.c.b16 %v1024, %v1020
        %v1245 = vpack.c.b16 %v1025, %v1021
        %v1246 = vpack.c.b16 %v1030, %v1026
        %v1247 = vpack.c.b16 %v1031, %v1027
        %v1248 = vpack.c.b16 %v1032, %v1028
        %v1249 = vpack.c.b16 %v1033, %v1029
        %v1250 = vpack.c.b16 %v1038, %v1034
        %v1251 = vpack.c.b16 %v1039, %v1035
        %v1252 = vpack.c.b16 %v1040, %v1036
        %v1253 = vpack.c.b16 %v1041, %v1037
        %v1254 = vpack.c.b16 %v1046, %v1042
        %v1255 = vpack.c.b16 %v1047, %v1043
        %v1256 = vpack.c.b16 %v1048, %v1044
        %v1257 = vpack.c.b16 %v1049, %v1045
        %v1258 = vpack.c.b16 %v1054, %v1050
        %v1259 = vpack.c.b16 %v1055, %v1051
        %v1260 = vpack.c.b16 %v1056, %v1052
        %v1261 = vpack.c.b16 %v1057, %v1053
        %v1262 = vpack.c.b16 %v1062, %v1058
        %v1263 = vpack.c.b16 %v1063, %v1059
        %v1264 = vpack.c.b16 %v1064, %v1060
        %v1265 = vpack.c.b16 %v1065, %v1061
        %v1266 = vpack.c.b16 %v1070, %v1066
        %v1267 = vpack.c.b16 %v1071, %v1067
        %v1268 = vpack.c.b16 %v1072, %v1068
        %v1269 = vpack.c.b16 %v1073, %v1069
        %v1270 = vpack.c.b16 %v1078, %v1074
        %v1271 = vpack.c.b16 %v1079, %v1075
        %v1272 = vpack.c.b16 %v1080, %v1076
        %v1273 = vpack.c.b16 %v1081, %v1077
        %v1274 = vpack.c.b16 %v1086, %v1082
        %v1275 = vpack.c.b16 %v1087, %v1083
        %v1276 = vpack.c.b16 %v1088, %v1084
        %v1277 = vpack.c.b16 %v1089, %v1085
        %v1278 = vpack.c.b16 %v1094, %v1090
        %v1279 = vpack.c.b16 %v1095, %v1091
        %v1280 = vpack.c.b16 %v1096, %v1092
        %v1281 = vpack.c.b16 %v1097, %v1093
        %v1282 = vpack.c.b16 %v1102, %v1098
        %v1283 = vpack.c.b16 %v1103, %v1099
        %v1284 = vpack.c.b16 %v1104, %v1100
        %v1285 = vpack.c.b16 %v1105, %v1101
        %v1286 = vpack.c.b16 %v1110, %v1106
        %v1287 = vpack.c.b16 %v1111, %v1107
        %v1288 = vpack.c.b16 %v1112, %v1108
        %v1289 = vpack.c.b16 %v1113, %v1109
        %v1290 = vpack.c.b16 %v1118, %v1114
        %v1291 = vpack.c.b16 %v1119, %v1115
        %v1292 = vpack.c.b16 %v1120, %v1116
        %v1293 = vpack.c.b16 %v1121, %v1117
        %v1294 = vpack.c.b16 %v1126, %v1122
        %v1295 = vpack.c.b16 %v1127, %v1123
        %v1296 = vpack.c.b16 %v1128, %v1124
        %v1297 = vpack.c.b16 %v1129, %v1125
        %v1298 = vpack.c.b16 %v1134, %v1130
        %v1299 = vpack.c.b16 %v1135, %v1131
        %v1300 = vpack.c.b16 %v1136, %v1132
        %v1301 = vpack.c.b16 %v1137, %v1133
        %v1302 = vpack.c.b16 %v1142, %v1138
        %v1303 = vpack.c.b16 %v1143, %v1139
        %v1304 = vpack.c.b16 %v1144, %v1140
        %v1305 = vpack.c.b16 %v1145, %v1141
        %v1306 = vpack.c.b16 %v1150, %v1146
        %v1307 = vpack.c.b16 %v1151, %v1147
        %v1308 = vpack.c.b16 %v1152, %v1148
        %v1309 = vpack.c.b16 %v1153, %v1149
        %v1310 = vpack.c.b16 %v1158, %v1154
        %v1311 = vpack.c.b16 %v1159, %v1155
        %v1312 = vpack.c.b16 %v1160, %v1156
        %v1313 = vpack.c.b16 %v1161, %v1157
        %v1314 = vpack.c.b16 %v1166, %v1162
        %v1315 = vpack.c.b16 %v1167, %v1163
        %v1316 = vpack.c.b16 %v1168, %v1164
        %v1317 = vpack.c.b16 %v1169, %v1165
        %v1318 = vpack.c.b16 %v1174, %v1170
        %v1319 = vpack.c.b16 %v1175, %v1171
        %v1320 = vpack.c.b16 %v1176, %v1172
        %v1321 = vpack.c.b16 %v1177, %v1173
        %v1322 = vpack.c.b16 %v1182, %v1178
        %v1323 = vpack.c.b16 %v1183, %v1179
        %v1324 = vpack.c.b16 %v1184, %v1180
        %v1325 = vpack.c.b16 %v1185, %v1181
        %v1326 = vpack.c.b16 %v1190, %v1186
        %v1327 = vpack.c.b16 %v1191, %v1187
        %v1328 = vpack.c.b16 %v1192, %v1188
        %v1329 = vpack.c.b16 %v1193, %v1189
        %v1330 = vpack.c.b16 %v1198, %v1194
        %v1331 = vpack.c.b16 %v1199, %v1195
        %v1332 = vpack.c.b16 %v1200, %v1196
        %v1333 = vpack.c.b16 %v1201, %v1197
        %v1334 = vpack.c.b16 %v1206, %v1202
        %v1335 = vpack.c.b16 %v1207, %v1203
        %v1336 = vpack.c.b16 %v1208, %v1204
        %v1337 = vpack.c.b16 %v1209, %v1205
        %1466 = vmatprep.subr.bf16.mxu0 %v1211
        %1467 = vmatpush1.bf16.msra.mxu0 %v1210
        %1468 = vmatprep.subr.bf16.mxu0 %v1215
        %1469 = vmatpush1.bf16.msra.mxu0 %v1214
        %1470 = vmatprep.subr.bf16.mxu0 %v1219
        %1471 = vmatpush1.bf16.msra.mxu0 %v1218
        %1472 = vmatprep.subr.bf16.mxu0 %v1223
        %1473 = vmatpush1.bf16.msra.mxu0 %v1222
        %1474 = vmatprep.subr.bf16.mxu0 %v1227
        %1475 = vmatpush1.bf16.msra.mxu0 %v1226
        %1476 = vmatprep.subr.bf16.mxu0 %v1231
        %1477 = vmatpush1.bf16.msra.mxu0 %v1230
        %1478 = vmatprep.subr.bf16.mxu0 %v1235
        %1479 = vmatpush1.bf16.msra.mxu0 %v1234
        %1480 = vmatprep.subr.bf16.mxu0 %v1239
        %1481 = vmatpush1.bf16.msra.mxu0 %v1238
        %1482 = vmatprep.subr.bf16.mxu0 %v1243
        %1483 = vmatpush1.bf16.msra.mxu0 %v1242
        %1484 = vmatprep.subr.bf16.mxu0 %v1247
        %1485 = vmatpush1.bf16.msra.mxu0 %v1246
        %1486 = vmatprep.subr.bf16.mxu0 %v1251
        %1487 = vmatpush1.bf16.msra.mxu0 %v1250
        %1488 = vmatprep.subr.bf16.mxu0 %v1255
        %1489 = vmatpush1.bf16.msra.mxu0 %v1254
        %1490 = vmatprep.subr.bf16.mxu0 %v1259
        %1491 = vmatpush1.bf16.msra.mxu0 %v1258
        %1492 = vmatprep.subr.bf16.mxu0 %v1263
        %1493 = vmatpush1.bf16.msra.mxu0 %v1262
        %1494 = vmatprep.subr.bf16.mxu0 %v1267
        %1495 = vmatpush1.bf16.msra.mxu0 %v1266
        %1496 = vmatprep.subr.bf16.mxu0 %v1271
        %1497 = vmatpush1.bf16.msra.mxu0 %v1270
        %1498 = vmatprep.mubr.bf16.mxu0 %v673
        %1499 = vmatmul.mubr.bf16.gmra.mrb[0].mxu0 %v672
        %v1500 = vpop.f32.mrb[0].mxu0
        %v1501 = vadd.f32 %v809, %v1500
        %v1502 = vpop.f32.mrb[0].mxu0
        %v1503 = vadd.f32 %v813, %v1502
        %v1504 = vpop.f32.mrb[0].mxu0
        %v1505 = vpop.f32.mrb[0].mxu0
        %1506 = vdwg.mxu0
        %1507 = vmatprep.subr.bf16.mxu0 %v1275
        %1508 = vmatpush1.bf16.msra.mxu0 %v1274
        %1509 = vmatprep.subr.bf16.mxu0 %v1279
        %1510 = vmatpush1.bf16.msra.mxu0 %v1278
        %1511 = vmatprep.subr.bf16.mxu0 %v1283
        %1512 = vmatpush1.bf16.msra.mxu0 %v1282
        %1513 = vmatprep.subr.bf16.mxu0 %v1287
        %1514 = vmatpush1.bf16.msra.mxu0 %v1286
        %1515 = vmatprep.subr.bf16.mxu0 %v1291
        %1516 = vmatpush1.bf16.msra.mxu0 %v1290
        %1517 = vmatprep.subr.bf16.mxu0 %v1295
        %1518 = vmatpush1.bf16.msra.mxu0 %v1294
        %1519 = vmatprep.subr.bf16.mxu0 %v1299
        %1520 = vmatpush1.bf16.msra.mxu0 %v1298
        %1521 = vmatprep.subr.bf16.mxu0 %v1303
        %1522 = vmatpush1.bf16.msra.mxu0 %v1302
        %1523 = vmatprep.subr.bf16.mxu0 %v1307
        %1524 = vmatpush1.bf16.msra.mxu0 %v1306
        %1525 = vmatprep.subr.bf16.mxu0 %v1311
        %1526 = vmatpush1.bf16.msra.mxu0 %v1310
        %1527 = vmatprep.subr.bf16.mxu0 %v1315
        %1528 = vmatpush1.bf16.msra.mxu0 %v1314
        %1529 = vmatprep.subr.bf16.mxu0 %v1319
        %1530 = vmatpush1.bf16.msra.mxu0 %v1318
        %1531 = vmatprep.subr.bf16.mxu0 %v1323
        %1532 = vmatpush1.bf16.msra.mxu0 %v1322
        %1533 = vmatprep.subr.bf16.mxu0 %v1327
        %1534 = vmatpush1.bf16.msra.mxu0 %v1326
        %1535 = vmatprep.subr.bf16.mxu0 %v1331
        %1536 = vmatpush1.bf16.msra.mxu0 %v1330
        %1537 = vmatprep.subr.bf16.mxu0 %v1335
        %1538 = vmatpush1.bf16.msra.mxu0 %v1334
        %1539 = vmatprep.mubr.bf16.mxu0 %v675
        %1540 = vmatmul.mubr.bf16.gmra.mrb[0].mxu0 %v674
        %v1541 = vpop.f32.mrb[0].mxu0
        %v1542 = vadd.f32 %v1501, %v1541
        %v1543 = vpop.f32.mrb[0].mxu0
        %v1544 = vadd.f32 %v1503, %v1543
        %v1545 = vpop.f32.mrb[0].mxu0
        %v1546 = vpop.f32.mrb[0].mxu0
        %1547 = vdwg.mxu0
        %1548 = vmatprep.subr.bf16.mxu0 %v1213
        %1549 = vmatpush1.bf16.msra.mxu0 %v1212
        %1550 = vmatprep.subr.bf16.mxu0 %v1217
        %1551 = vmatpush1.bf16.msra.mxu0 %v1216
        %1552 = vmatprep.subr.bf16.mxu0 %v1221
        %1553 = vmatpush1.bf16.msra.mxu0 %v1220
        %1554 = vmatprep.subr.bf16.mxu0 %v1225
        %1555 = vmatpush1.bf16.msra.mxu0 %v1224
        %1556 = vmatprep.subr.bf16.mxu0 %v1229
        %1557 = vmatpush1.bf16.msra.mxu0 %v1228
        %1558 = vmatprep.subr.bf16.mxu0 %v1233
        %1559 = vmatpush1.bf16.msra.mxu0 %v1232
        %1560 = vmatprep.subr.bf16.mxu0 %v1237
        %1561 = vmatpush1.bf16.msra.mxu0 %v1236
        %1562 = vmatprep.subr.bf16.mxu0 %v1241
        %1563 = vmatpush1.bf16.msra.mxu0 %v1240
        %1564 = vmatprep.subr.bf16.mxu0 %v1245
        %1565 = vmatpush1.bf16.msra.mxu0 %v1244
        %1566 = vmatprep.subr.bf16.mxu0 %v1249
        %1567 = vmatpush1.bf16.msra.mxu0 %v1248
        %1568 = vmatprep.subr.bf16.mxu0 %v1253
        %1569 = vmatpush1.bf16.msra.mxu0 %v1252
        %1570 = vmatprep.subr.bf16.mxu0 %v1257
        %1571 = vmatpush1.bf16.msra.mxu0 %v1256
        %1572 = vmatprep.subr.bf16.mxu0 %v1261
        %1573 = vmatpush1.bf16.msra.mxu0 %v1260
        %1574 = vmatprep.subr.bf16.mxu0 %v1265
        %1575 = vmatpush1.bf16.msra.mxu0 %v1264
        %1576 = vmatprep.subr.bf16.mxu0 %v1269
        %1577 = vmatpush1.bf16.msra.mxu0 %v1268
        %1578 = vmatprep.subr.bf16.mxu0 %v1273
        %1579 = vmatpush1.bf16.msra.mxu0 %v1272
        %1580 = vmatprep.mubr.bf16.mxu0 %v673
        %1581 = vmatmul.mubr.bf16.gmra.mrb[0].mxu0 %v672
        %v1582 = vpop.f32.mrb[0].mxu0
        %v1583 = vadd.f32 %v817, %v1582
        %v1584 = vpop.f32.mrb[0].mxu0
        %v1585 = vadd.f32 %v821, %v1584
        %v1586 = vpop.f32.mrb[0].mxu0
        %v1587 = vpop.f32.mrb[0].mxu0
        %1588 = vdwg.mxu0
        %1589 = vmatprep.subr.bf16.mxu0 %v1277
        %1590 = vmatpush1.bf16.msra.mxu0 %v1276
        %1591 = vmatprep.subr.bf16.mxu0 %v1281
        %1592 = vmatpush1.bf16.msra.mxu0 %v1280
        %1593 = vmatprep.subr.bf16.mxu0 %v1285
        %1594 = vmatpush1.bf16.msra.mxu0 %v1284
        %1595 = vmatprep.subr.bf16.mxu0 %v1289
        %1596 = vmatpush1.bf16.msra.mxu0 %v1288
        %1597 = vmatprep.subr.bf16.mxu0 %v1293
        %1598 = vmatpush1.bf16.msra.mxu0 %v1292
        %1599 = vmatprep.subr.bf16.mxu0 %v1297
        %1600 = vmatpush1.bf16.msra.mxu0 %v1296
        %1601 = vmatprep.subr.bf16.mxu0 %v1301
        %1602 = vmatpush1.bf16.msra.mxu0 %v1300
        %1603 = vmatprep.subr.bf16.mxu0 %v1305
        %1604 = vmatpush1.bf16.msra.mxu0 %v1304
        %1605 = vmatprep.subr.bf16.mxu0 %v1309
        %1606 = vmatpush1.bf16.msra.mxu0 %v1308
        %1607 = vmatprep.subr.bf16.mxu0 %v1313
        %1608 = vmatpush1.bf16.msra.mxu0 %v1312
        %1609 = vmatprep.subr.bf16.mxu0 %v1317
        %1610 = vmatpush1.bf16.msra.mxu0 %v1316
        %1611 = vmatprep.subr.bf16.mxu0 %v1321
        %1612 = vmatpush1.bf16.msra.mxu0 %v1320
        %1613 = vmatprep.subr.bf16.mxu0 %v1325
        %1614 = vmatpush1.bf16.msra.mxu0 %v1324
        %1615 = vmatprep.subr.bf16.mxu0 %v1329
        %1616 = vmatpush1.bf16.msra.mxu0 %v1328
        %1617 = vmatprep.subr.bf16.mxu0 %v1333
        %1618 = vmatpush1.bf16.msra.mxu0 %v1332
        %1619 = vmatprep.subr.bf16.mxu0 %v1337
        %1620 = vmatpush1.bf16.msra.mxu0 %v1336
        %1621 = vmatprep.mubr.bf16.mxu0 %v675
        %1622 = vmatmul.mubr.bf16.gmra.mrb[0].mxu0 %v674
        %v1623 = vpop.f32.mrb[0].mxu0
        %v1624 = vadd.f32 %v1583, %v1623
        %v1625 = vpop.f32.mrb[0].mxu0
        %v1626 = vadd.f32 %v1585, %v1625
        %v1627 = vpop.f32.mrb[0].mxu0
        %v1628 = vpop.f32.mrb[0].mxu0
        %1629 = vdwg.mxu0
        %v1630 = vpack.c.bf16 %v646, %v642
        %v1631 = vpack.c.bf16 %v647, %v643
        %v1632 = vpack.c.bf16 %v648, %v644
        %v1633 = vpack.c.bf16 %v649, %v645
        %v1634 = vld [vmem:[#allocation8] sm:$0xff]
        %v1635 = vld [vmem:[#allocation8 + $0x8] sm:$0xff]
        %v1636 = vld [vmem:[#allocation8 + $0x10] sm:$0xff]
        %v1637 = vld [vmem:[#allocation8 + $0x18] sm:$0xff]
        %v1638 = vld [vmem:[#allocation8 + $0x20] sm:$0xff]
        %v1639 = vld [vmem:[#allocation8 + $0x28] sm:$0xff]
        %v1640 = vld [vmem:[#allocation8 + $0x30] sm:$0xff]
        %v1641 = vld [vmem:[#allocation8 + $0x38] sm:$0xff]
        %v1642 = vld [vmem:[#allocation8 + $0x40] sm:$0xff]
        %v1643 = vld [vmem:[#allocation8 + $0x48] sm:$0xff]
        %v1644 = vld [vmem:[#allocation8 + $0x50] sm:$0xff]
        %v1645 = vld [vmem:[#allocation8 + $0x58] sm:$0xff]
        %v1646 = vld [vmem:[#allocation8 + $0x60] sm:$0xff]
        %v1647 = vld [vmem:[#allocation8 + $0x68] sm:$0xff]
        %v1648 = vld [vmem:[#allocation8 + $0x70] sm:$0xff]
        %v1649 = vld [vmem:[#allocation8 + $0x78] sm:$0xff]
        %v1650 = vld [vmem:[#allocation8 + $0x80] sm:$0xff]
        %v1651 = vld [vmem:[#allocation8 + $0x88] sm:$0xff]
        %v1652 = vld [vmem:[#allocation8 + $0x90] sm:$0xff]
        %v1653 = vld [vmem:[#allocation8 + $0x98] sm:$0xff]
        %v1654 = vld [vmem:[#allocation8 + $0xa0] sm:$0xff]
        %v1655 = vld [vmem:[#allocation8 + $0xa8] sm:$0xff]
        %v1656 = vld [vmem:[#allocation8 + $0xb0] sm:$0xff]
        %v1657 = vld [vmem:[#allocation8 + $0xb8] sm:$0xff]
        %v1658 = vld [vmem:[#allocation8 + $0xc0] sm:$0xff]
        %v1659 = vld [vmem:[#allocation8 + $0xc8] sm:$0xff]
        %v1660 = vld [vmem:[#allocation8 + $0xd0] sm:$0xff]
        %v1661 = vld [vmem:[#allocation8 + $0xd8] sm:$0xff]
        %v1662 = vld [vmem:[#allocation8 + $0xe0] sm:$0xff]
        %v1663 = vld [vmem:[#allocation8 + $0xe8] sm:$0xff]
        %v1664 = vld [vmem:[#allocation8 + $0xf0] sm:$0xff]
        %v1665 = vld [vmem:[#allocation8 + $0xf8] sm:$0xff]
        %v1666 = vld [vmem:[#allocation8 + $0x100] sm:$0xff]
        %v1667 = vld [vmem:[#allocation8 + $0x108] sm:$0xff]
        %v1668 = vld [vmem:[#allocation8 + $0x110] sm:$0xff]
        %v1669 = vld [vmem:[#allocation8 + $0x118] sm:$0xff]
        %v1670 = vld [vmem:[#allocation8 + $0x120] sm:$0xff]
        %v1671 = vld [vmem:[#allocation8 + $0x128] sm:$0xff]
        %v1672 = vld [vmem:[#allocation8 + $0x130] sm:$0xff]
        %v1673 = vld [vmem:[#allocation8 + $0x138] sm:$0xff]
        %v1674 = vld [vmem:[#allocation8 + $0x140] sm:$0xff]
        %v1675 = vld [vmem:[#allocation8 + $0x148] sm:$0xff]
        %v1676 = vld [vmem:[#allocation8 + $0x150] sm:$0xff]
        %v1677 = vld [vmem:[#allocation8 + $0x158] sm:$0xff]
        %v1678 = vld [vmem:[#allocation8 + $0x160] sm:$0xff]
        %v1679 = vld [vmem:[#allocation8 + $0x168] sm:$0xff]
        %v1680 = vld [vmem:[#allocation8 + $0x170] sm:$0xff]
        %v1681 = vld [vmem:[#allocation8 + $0x178] sm:$0xff]
        %v1682 = vld [vmem:[#allocation8 + $0x180] sm:$0xff]
        %v1683 = vld [vmem:[#allocation8 + $0x188] sm:$0xff]
        %v1684 = vld [vmem:[#allocation8 + $0x190] sm:$0xff]
        %v1685 = vld [vmem:[#allocation8 + $0x198] sm:$0xff]
        %v1686 = vld [vmem:[#allocation8 + $0x1a0] sm:$0xff]
        %v1687 = vld [vmem:[#allocation8 + $0x1a8] sm:$0xff]
        %v1688 = vld [vmem:[#allocation8 + $0x1b0] sm:$0xff]
        %v1689 = vld [vmem:[#allocation8 + $0x1b8] sm:$0xff]
        %v1690 = vld [vmem:[#allocation8 + $0x1c0] sm:$0xff]
        %v1691 = vld [vmem:[#allocation8 + $0x1c8] sm:$0xff]
        %v1692 = vld [vmem:[#allocation8 + $0x1d0] sm:$0xff]
        %v1693 = vld [vmem:[#allocation8 + $0x1d8] sm:$0xff]
        %v1694 = vld [vmem:[#allocation8 + $0x1e0] sm:$0xff]
        %v1695 = vld [vmem:[#allocation8 + $0x1e8] sm:$0xff]
        %v1696 = vld [vmem:[#allocation8 + $0x1f0] sm:$0xff]
        %v1697 = vld [vmem:[#allocation8 + $0x1f8] sm:$0xff]
        %v1698 = vld [vmem:[#allocation8 + $0x200] sm:$0xff]
        %v1699 = vld [vmem:[#allocation8 + $0x208] sm:$0xff]
        %v1700 = vld [vmem:[#allocation8 + $0x210] sm:$0xff]
        %v1701 = vld [vmem:[#allocation8 + $0x218] sm:$0xff]
        %v1702 = vld [vmem:[#allocation8 + $0x220] sm:$0xff]
        %v1703 = vld [vmem:[#allocation8 + $0x228] sm:$0xff]
        %v1704 = vld [vmem:[#allocation8 + $0x230] sm:$0xff]
        %v1705 = vld [vmem:[#allocation8 + $0x238] sm:$0xff]
        %v1706 = vld [vmem:[#allocation8 + $0x240] sm:$0xff]
        %v1707 = vld [vmem:[#allocation8 + $0x248] sm:$0xff]
        %v1708 = vld [vmem:[#allocation8 + $0x250] sm:$0xff]
        %v1709 = vld [vmem:[#allocation8 + $0x258] sm:$0xff]
        %v1710 = vld [vmem:[#allocation8 + $0x260] sm:$0xff]
        %v1711 = vld [vmem:[#allocation8 + $0x268] sm:$0xff]
        %v1712 = vld [vmem:[#allocation8 + $0x270] sm:$0xff]
        %v1713 = vld [vmem:[#allocation8 + $0x278] sm:$0xff]
        %v1714 = vld [vmem:[#allocation8 + $0x280] sm:$0xff]
        %v1715 = vld [vmem:[#allocation8 + $0x288] sm:$0xff]
        %v1716 = vld [vmem:[#allocation8 + $0x290] sm:$0xff]
        %v1717 = vld [vmem:[#allocation8 + $0x298] sm:$0xff]
        %v1718 = vld [vmem:[#allocation8 + $0x2a0] sm:$0xff]
        %v1719 = vld [vmem:[#allocation8 + $0x2a8] sm:$0xff]
        %v1720 = vld [vmem:[#allocation8 + $0x2b0] sm:$0xff]
        %v1721 = vld [vmem:[#allocation8 + $0x2b8] sm:$0xff]
        %v1722 = vld [vmem:[#allocation8 + $0x2c0] sm:$0xff]
        %v1723 = vld [vmem:[#allocation8 + $0x2c8] sm:$0xff]
        %v1724 = vld [vmem:[#allocation8 + $0x2d0] sm:$0xff]
        %v1725 = vld [vmem:[#allocation8 + $0x2d8] sm:$0xff]
        %v1726 = vld [vmem:[#allocation8 + $0x2e0] sm:$0xff]
        %v1727 = vld [vmem:[#allocation8 + $0x2e8] sm:$0xff]
        %v1728 = vld [vmem:[#allocation8 + $0x2f0] sm:$0xff]
        %v1729 = vld [vmem:[#allocation8 + $0x2f8] sm:$0xff]
        %v1730 = vld [vmem:[#allocation8 + $0x300] sm:$0xff]
        %v1731 = vld [vmem:[#allocation8 + $0x308] sm:$0xff]
        %v1732 = vld [vmem:[#allocation8 + $0x310] sm:$0xff]
        %v1733 = vld [vmem:[#allocation8 + $0x318] sm:$0xff]
        %v1734 = vld [vmem:[#allocation8 + $0x320] sm:$0xff]
        %v1735 = vld [vmem:[#allocation8 + $0x328] sm:$0xff]
        %v1736 = vld [vmem:[#allocation8 + $0x330] sm:$0xff]
        %v1737 = vld [vmem:[#allocation8 + $0x338] sm:$0xff]
        %v1738 = vld [vmem:[#allocation8 + $0x340] sm:$0xff]
        %v1739 = vld [vmem:[#allocation8 + $0x348] sm:$0xff]
        %v1740 = vld [vmem:[#allocation8 + $0x350] sm:$0xff]
        %v1741 = vld [vmem:[#allocation8 + $0x358] sm:$0xff]
        %v1742 = vld [vmem:[#allocation8 + $0x360] sm:$0xff]
        %v1743 = vld [vmem:[#allocation8 + $0x368] sm:$0xff]
        %v1744 = vld [vmem:[#allocation8 + $0x370] sm:$0xff]
        %v1745 = vld [vmem:[#allocation8 + $0x378] sm:$0xff]
        %v1746 = vld [vmem:[#allocation8 + $0x380] sm:$0xff]
        %v1747 = vld [vmem:[#allocation8 + $0x388] sm:$0xff]
        %v1748 = vld [vmem:[#allocation8 + $0x390] sm:$0xff]
        %v1749 = vld [vmem:[#allocation8 + $0x398] sm:$0xff]
        %v1750 = vld [vmem:[#allocation8 + $0x3a0] sm:$0xff]
        %v1751 = vld [vmem:[#allocation8 + $0x3a8] sm:$0xff]
        %v1752 = vld [vmem:[#allocation8 + $0x3b0] sm:$0xff]
        %v1753 = vld [vmem:[#allocation8 + $0x3b8] sm:$0xff]
        %v1754 = vld [vmem:[#allocation8 + $0x3c0] sm:$0xff]
        %v1755 = vld [vmem:[#allocation8 + $0x3c8] sm:$0xff]
        %v1756 = vld [vmem:[#allocation8 + $0x3d0] sm:$0xff]
        %v1757 = vld [vmem:[#allocation8 + $0x3d8] sm:$0xff]
        %v1758 = vld [vmem:[#allocation8 + $0x3e0] sm:$0xff]
        %v1759 = vld [vmem:[#allocation8 + $0x3e8] sm:$0xff]
        %v1760 = vld [vmem:[#allocation8 + $0x3f0] sm:$0xff]
        %v1761 = vld [vmem:[#allocation8 + $0x3f8] sm:$0xff]
        %v1762 = vld [vmem:[%s6] sm:$0xf]
        %v1764 = vlaneseq
        %v1765 = vshrl.u32 %v1764, 7
        %v1766 = vsub.s32 0, %v1765
        %v1767 = vrot.slane %v1762, %v1766
        %v1768 = vlaneseq
        %v1769 = vshrl.u32 %v1768, 7
        %v1770 = vsub.s32 1, %v1769
        %v1771 = vrot.slane %v1762, %v1770
        %v1772 = vlaneseq
        %v1773 = vshrl.u32 %v1772, 7
        %v1774 = vsub.s32 2, %v1773
        %v1775 = vrot.slane %v1762, %v1774
        %v1776 = vlaneseq
        %v1777 = vshrl.u32 %v1776, 7
        %v1778 = vsub.s32 3, %v1777
        %v1779 = vrot.slane %v1762, %v1778
        %v1912 = vunpack.c.l.b16 %v1634
        %v1913 = vunpack.c.h.b16 %v1634
        %v1914 = vunpack.c.l.b16 %v1635
        %v1915 = vunpack.c.h.b16 %v1635
        %v1916 = vunpack.c.l.b16 %v1636
        %v1917 = vunpack.c.h.b16 %v1636
        %v1918 = vunpack.c.l.b16 %v1637
        %v1919 = vunpack.c.h.b16 %v1637
        %v1920 = vunpack.c.l.b16 %v1638
        %v1921 = vunpack.c.h.b16 %v1638
        %v1922 = vunpack.c.l.b16 %v1639
        %v1923 = vunpack.c.h.b16 %v1639
        %v1924 = vunpack.c.l.b16 %v1640
        %v1925 = vunpack.c.h.b16 %v1640
        %v1926 = vunpack.c.l.b16 %v1641
        %v1927 = vunpack.c.h.b16 %v1641
        %v1928 = vunpack.c.l.b16 %v1642
        %v1929 = vunpack.c.h.b16 %v1642
        %v1930 = vunpack.c.l.b16 %v1643
        %v1931 = vunpack.c.h.b16 %v1643
        %v1932 = vunpack.c.l.b16 %v1644
        %v1933 = vunpack.c.h.b16 %v1644
        %v1934 = vunpack.c.l.b16 %v1645
        %v1935 = vunpack.c.h.b16 %v1645
        %v1936 = vunpack.c.l.b16 %v1646
        %v1937 = vunpack.c.h.b16 %v1646
        %v1938 = vunpack.c.l.b16 %v1647
        %v1939 = vunpack.c.h.b16 %v1647
        %v1940 = vunpack.c.l.b16 %v1648
        %v1941 = vunpack.c.h.b16 %v1648
        %v1942 = vunpack.c.l.b16 %v1649
        %v1943 = vunpack.c.h.b16 %v1649
        %v1944 = vunpack.c.l.b16 %v1650
        %v1945 = vunpack.c.h.b16 %v1650
        %v1946 = vunpack.c.l.b16 %v1651
        %v1947 = vunpack.c.h.b16 %v1651
        %v1948 = vunpack.c.l.b16 %v1652
        %v1949 = vunpack.c.h.b16 %v1652
        %v1950 = vunpack.c.l.b16 %v1653
        %v1951 = vunpack.c.h.b16 %v1653
        %v1952 = vunpack.c.l.b16 %v1654
        %v1953 = vunpack.c.h.b16 %v1654
        %v1954 = vunpack.c.l.b16 %v1655
        %v1955 = vunpack.c.h.b16 %v1655
        %v1956 = vunpack.c.l.b16 %v1656
        %v1957 = vunpack.c.h.b16 %v1656
        %v1958 = vunpack.c.l.b16 %v1657
        %v1959 = vunpack.c.h.b16 %v1657
        %v1960 = vunpack.c.l.b16 %v1658
        %v1961 = vunpack.c.h.b16 %v1658
        %v1962 = vunpack.c.l.b16 %v1659
        %v1963 = vunpack.c.h.b16 %v1659
        %v1964 = vunpack.c.l.b16 %v1660
        %v1965 = vunpack.c.h.b16 %v1660
        %v1966 = vunpack.c.l.b16 %v1661
        %v1967 = vunpack.c.h.b16 %v1661
        %v1968 = vunpack.c.l.b16 %v1662
        %v1969 = vunpack.c.h.b16 %v1662
        %v1970 = vunpack.c.l.b16 %v1663
        %v1971 = vunpack.c.h.b16 %v1663
        %v1972 = vunpack.c.l.b16 %v1664
        %v1973 = vunpack.c.h.b16 %v1664
        %v1974 = vunpack.c.l.b16 %v1665
        %v1975 = vunpack.c.h.b16 %v1665
        %v1976 = vunpack.c.l.b16 %v1666
        %v1977 = vunpack.c.h.b16 %v1666
        %v1978 = vunpack.c.l.b16 %v1667
        %v1979 = vunpack.c.h.b16 %v1667
        %v1980 = vunpack.c.l.b16 %v1668
        %v1981 = vunpack.c.h.b16 %v1668
        %v1982 = vunpack.c.l.b16 %v1669
        %v1983 = vunpack.c.h.b16 %v1669
        %v1984 = vunpack.c.l.b16 %v1670
        %v1985 = vunpack.c.h.b16 %v1670
        %v1986 = vunpack.c.l.b16 %v1671
        %v1987 = vunpack.c.h.b16 %v1671
        %v1988 = vunpack.c.l.b16 %v1672
        %v1989 = vunpack.c.h.b16 %v1672
        %v1990 = vunpack.c.l.b16 %v1673
        %v1991 = vunpack.c.h.b16 %v1673
        %v1992 = vunpack.c.l.b16 %v1674
        %v1993 = vunpack.c.h.b16 %v1674
        %v1994 = vunpack.c.l.b16 %v1675
        %v1995 = vunpack.c.h.b16 %v1675
        %v1996 = vunpack.c.l.b16 %v1676
        %v1997 = vunpack.c.h.b16 %v1676
        %v1998 = vunpack.c.l.b16 %v1677
        %v1999 = vunpack.c.h.b16 %v1677
        %v2000 = vunpack.c.l.b16 %v1678
        %v2001 = vunpack.c.h.b16 %v1678
        %v2002 = vunpack.c.l.b16 %v1679
        %v2003 = vunpack.c.h.b16 %v1679
        %v2004 = vunpack.c.l.b16 %v1680
        %v2005 = vunpack.c.h.b16 %v1680
        %v2006 = vunpack.c.l.b16 %v1681
        %v2007 = vunpack.c.h.b16 %v1681
        %v2008 = vunpack.c.l.b16 %v1682
        %v2009 = vunpack.c.h.b16 %v1682
        %v2010 = vunpack.c.l.b16 %v1683
        %v2011 = vunpack.c.h.b16 %v1683
        %v2012 = vunpack.c.l.b16 %v1684
        %v2013 = vunpack.c.h.b16 %v1684
        %v2014 = vunpack.c.l.b16 %v1685
        %v2015 = vunpack.c.h.b16 %v1685
        %v2016 = vunpack.c.l.b16 %v1686
        %v2017 = vunpack.c.h.b16 %v1686
        %v2018 = vunpack.c.l.b16 %v1687
        %v2019 = vunpack.c.h.b16 %v1687
        %v2020 = vunpack.c.l.b16 %v1688
        %v2021 = vunpack.c.h.b16 %v1688
        %v2022 = vunpack.c.l.b16 %v1689
        %v2023 = vunpack.c.h.b16 %v1689
        %v2024 = vunpack.c.l.b16 %v1690
        %v2025 = vunpack.c.h.b16 %v1690
        %v2026 = vunpack.c.l.b16 %v1691
        %v2027 = vunpack.c.h.b16 %v1691
        %v2028 = vunpack.c.l.b16 %v1692
        %v2029 = vunpack.c.h.b16 %v1692
        %v2030 = vunpack.c.l.b16 %v1693
        %v2031 = vunpack.c.h.b16 %v1693
        %v2032 = vunpack.c.l.b16 %v1694
        %v2033 = vunpack.c.h.b16 %v1694
        %v2034 = vunpack.c.l.b16 %v1695
        %v2035 = vunpack.c.h.b16 %v1695
        %v2036 = vunpack.c.l.b16 %v1696
        %v2037 = vunpack.c.h.b16 %v1696
        %v2038 = vunpack.c.l.b16 %v1697
        %v2039 = vunpack.c.h.b16 %v1697
        %v2040 = vunpack.c.l.b16 %v1698
        %v2041 = vunpack.c.h.b16 %v1698
        %v2042 = vunpack.c.l.b16 %v1699
        %v2043 = vunpack.c.h.b16 %v1699
        %v2044 = vunpack.c.l.b16 %v1700
        %v2045 = vunpack.c.h.b16 %v1700
        %v2046 = vunpack.c.l.b16 %v1701
        %v2047 = vunpack.c.h.b16 %v1701
        %v2048 = vunpack.c.l.b16 %v1702
        %v2049 = vunpack.c.h.b16 %v1702
        %v2050 = vunpack.c.l.b16 %v1703
        %v2051 = vunpack.c.h.b16 %v1703
        %v2052 = vunpack.c.l.b16 %v1704
        %v2053 = vunpack.c.h.b16 %v1704
        %v2054 = vunpack.c.l.b16 %v1705
        %v2055 = vunpack.c.h.b16 %v1705
        %v2056 = vunpack.c.l.b16 %v1706
        %v2057 = vunpack.c.h.b16 %v1706
        %v2058 = vunpack.c.l.b16 %v1707
        %v2059 = vunpack.c.h.b16 %v1707
        %v2060 = vunpack.c.l.b16 %v1708
        %v2061 = vunpack.c.h.b16 %v1708
        %v2062 = vunpack.c.l.b16 %v1709
        %v2063 = vunpack.c.h.b16 %v1709
        %v2064 = vunpack.c.l.b16 %v1710
        %v2065 = vunpack.c.h.b16 %v1710
        %v2066 = vunpack.c.l.b16 %v1711
        %v2067 = vunpack.c.h.b16 %v1711
        %v2068 = vunpack.c.l.b16 %v1712
        %v2069 = vunpack.c.h.b16 %v1712
        %v2070 = vunpack.c.l.b16 %v1713
        %v2071 = vunpack.c.h.b16 %v1713
        %v2072 = vunpack.c.l.b16 %v1714
        %v2073 = vunpack.c.h.b16 %v1714
        %v2074 = vunpack.c.l.b16 %v1715
        %v2075 = vunpack.c.h.b16 %v1715
        %v2076 = vunpack.c.l.b16 %v1716
        %v2077 = vunpack.c.h.b16 %v1716
        %v2078 = vunpack.c.l.b16 %v1717
        %v2079 = vunpack.c.h.b16 %v1717
        %v2080 = vunpack.c.l.b16 %v1718
        %v2081 = vunpack.c.h.b16 %v1718
        %v2082 = vunpack.c.l.b16 %v1719
        %v2083 = vunpack.c.h.b16 %v1719
        %v2084 = vunpack.c.l.b16 %v1720
        %v2085 = vunpack.c.h.b16 %v1720
        %v2086 = vunpack.c.l.b16 %v1721
        %v2087 = vunpack.c.h.b16 %v1721
        %v2088 = vunpack.c.l.b16 %v1722
        %v2089 = vunpack.c.h.b16 %v1722
        %v2090 = vunpack.c.l.b16 %v1723
        %v2091 = vunpack.c.h.b16 %v1723
        %v2092 = vunpack.c.l.b16 %v1724
        %v2093 = vunpack.c.h.b16 %v1724
        %v2094 = vunpack.c.l.b16 %v1725
        %v2095 = vunpack.c.h.b16 %v1725
        %v2096 = vunpack.c.l.b16 %v1726
        %v2097 = vunpack.c.h.b16 %v1726
        %v2098 = vunpack.c.l.b16 %v1727
        %v2099 = vunpack.c.h.b16 %v1727
        %v2100 = vunpack.c.l.b16 %v1728
        %v2101 = vunpack.c.h.b16 %v1728
        %v2102 = vunpack.c.l.b16 %v1729
        %v2103 = vunpack.c.h.b16 %v1729
        %v2104 = vunpack.c.l.b16 %v1730
        %v2105 = vunpack.c.h.b16 %v1730
        %v2106 = vunpack.c.l.b16 %v1731
        %v2107 = vunpack.c.h.b16 %v1731
        %v2108 = vunpack.c.l.b16 %v1732
        %v2109 = vunpack.c.h.b16 %v1732
        %v2110 = vunpack.c.l.b16 %v1733
        %v2111 = vunpack.c.h.b16 %v1733
        %v2112 = vunpack.c.l.b16 %v1734
        %v2113 = vunpack.c.h.b16 %v1734
        %v2114 = vunpack.c.l.b16 %v1735
        %v2115 = vunpack.c.h.b16 %v1735
        %v2116 = vunpack.c.l.b16 %v1736
        %v2117 = vunpack.c.h.b16 %v1736
        %v2118 = vunpack.c.l.b16 %v1737
        %v2119 = vunpack.c.h.b16 %v1737
        %v2120 = vunpack.c.l.b16 %v1738
        %v2121 = vunpack.c.h.b16 %v1738
        %v2122 = vunpack.c.l.b16 %v1739
        %v2123 = vunpack.c.h.b16 %v1739
        %v2124 = vunpack.c.l.b16 %v1740
        %v2125 = vunpack.c.h.b16 %v1740
        %v2126 = vunpack.c.l.b16 %v1741
        %v2127 = vunpack.c.h.b16 %v1741
        %v2128 = vunpack.c.l.b16 %v1742
        %v2129 = vunpack.c.h.b16 %v1742
        %v2130 = vunpack.c.l.b16 %v1743
        %v2131 = vunpack.c.h.b16 %v1743
        %v2132 = vunpack.c.l.b16 %v1744
        %v2133 = vunpack.c.h.b16 %v1744
        %v2134 = vunpack.c.l.b16 %v1745
        %v2135 = vunpack.c.h.b16 %v1745
        %v2136 = vunpack.c.l.b16 %v1746
        %v2137 = vunpack.c.h.b16 %v1746
        %v2138 = vunpack.c.l.b16 %v1747
        %v2139 = vunpack.c.h.b16 %v1747
        %v2140 = vunpack.c.l.b16 %v1748
        %v2141 = vunpack.c.h.b16 %v1748
        %v2142 = vunpack.c.l.b16 %v1749
        %v2143 = vunpack.c.h.b16 %v1749
        %v2144 = vunpack.c.l.b16 %v1750
        %v2145 = vunpack.c.h.b16 %v1750
        %v2146 = vunpack.c.l.b16 %v1751
        %v2147 = vunpack.c.h.b16 %v1751
        %v2148 = vunpack.c.l.b16 %v1752
        %v2149 = vunpack.c.h.b16 %v1752
        %v2150 = vunpack.c.l.b16 %v1753
        %v2151 = vunpack.c.h.b16 %v1753
        %v2152 = vunpack.c.l.b16 %v1754
        %v2153 = vunpack.c.h.b16 %v1754
        %v2154 = vunpack.c.l.b16 %v1755
        %v2155 = vunpack.c.h.b16 %v1755
        %v2156 = vunpack.c.l.b16 %v1756
        %v2157 = vunpack.c.h.b16 %v1756
        %v2158 = vunpack.c.l.b16 %v1757
        %v2159 = vunpack.c.h.b16 %v1757
        %v2160 = vunpack.c.l.b16 %v1758
        %v2161 = vunpack.c.h.b16 %v1758
        %v2162 = vunpack.c.l.b16 %v1759
        %v2163 = vunpack.c.h.b16 %v1759
        %v2164 = vunpack.c.l.b16 %v1760
        %v2165 = vunpack.c.h.b16 %v1760
        %v2166 = vunpack.c.l.b16 %v1761
        %v2167 = vunpack.c.h.b16 %v1761
        %v2168 = vpack.c.b16 %v1916, %v1912
        %v2169 = vpack.c.b16 %v1917, %v1913
        %v2170 = vpack.c.b16 %v1918, %v1914
        %v2171 = vpack.c.b16 %v1919, %v1915
        %v2172 = vpack.c.b16 %v1924, %v1920
        %v2173 = vpack.c.b16 %v1925, %v1921
        %v2174 = vpack.c.b16 %v1926, %v1922
        %v2175 = vpack.c.b16 %v1927, %v1923
        %v2176 = vpack.c.b16 %v1932, %v1928
        %v2177 = vpack.c.b16 %v1933, %v1929
        %v2178 = vpack.c.b16 %v1934, %v1930
        %v2179 = vpack.c.b16 %v1935, %v1931
        %v2180 = vpack.c.b16 %v1940, %v1936
        %v2181 = vpack.c.b16 %v1941, %v1937
        %v2182 = vpack.c.b16 %v1942, %v1938
        %v2183 = vpack.c.b16 %v1943, %v1939
        %v2184 = vpack.c.b16 %v1948, %v1944
        %v2185 = vpack.c.b16 %v1949, %v1945
        %v2186 = vpack.c.b16 %v1950, %v1946
        %v2187 = vpack.c.b16 %v1951, %v1947
        %v2188 = vpack.c.b16 %v1956, %v1952
        %v2189 = vpack.c.b16 %v1957, %v1953
        %v2190 = vpack.c.b16 %v1958, %v1954
        %v2191 = vpack.c.b16 %v1959, %v1955
        %v2192 = vpack.c.b16 %v1964, %v1960
        %v2193 = vpack.c.b16 %v1965, %v1961
        %v2194 = vpack.c.b16 %v1966, %v1962
        %v2195 = vpack.c.b16 %v1967, %v1963
        %v2196 = vpack.c.b16 %v1972, %v1968
        %v2197 = vpack.c.b16 %v1973, %v1969
        %v2198 = vpack.c.b16 %v1974, %v1970
        %v2199 = vpack.c.b16 %v1975, %v1971
        %v2200 = vpack.c.b16 %v1980, %v1976
        %v2201 = vpack.c.b16 %v1981, %v1977
        %v2202 = vpack.c.b16 %v1982, %v1978
        %v2203 = vpack.c.b16 %v1983, %v1979
        %v2204 = vpack.c.b16 %v1988, %v1984
        %v2205 = vpack.c.b16 %v1989, %v1985
        %v2206 = vpack.c.b16 %v1990, %v1986
        %v2207 = vpack.c.b16 %v1991, %v1987
        %v2208 = vpack.c.b16 %v1996, %v1992
        %v2209 = vpack.c.b16 %v1997, %v1993
        %v2210 = vpack.c.b16 %v1998, %v1994
        %v2211 = vpack.c.b16 %v1999, %v1995
        %v2212 = vpack.c.b16 %v2004, %v2000
        %v2213 = vpack.c.b16 %v2005, %v2001
        %v2214 = vpack.c.b16 %v2006, %v2002
        %v2215 = vpack.c.b16 %v2007, %v2003
        %v2216 = vpack.c.b16 %v2012, %v2008
        %v2217 = vpack.c.b16 %v2013, %v2009
        %v2218 = vpack.c.b16 %v2014, %v2010
        %v2219 = vpack.c.b16 %v2015, %v2011
        %v2220 = vpack.c.b16 %v2020, %v2016
        %v2221 = vpack.c.b16 %v2021, %v2017
        %v2222 = vpack.c.b16 %v2022, %v2018
        %v2223 = vpack.c.b16 %v2023, %v2019
        %v2224 = vpack.c.b16 %v2028, %v2024
        %v2225 = vpack.c.b16 %v2029, %v2025
        %v2226 = vpack.c.b16 %v2030, %v2026
        %v2227 = vpack.c.b16 %v2031, %v2027
        %v2228 = vpack.c.b16 %v2036, %v2032
        %v2229 = vpack.c.b16 %v2037, %v2033
        %v2230 = vpack.c.b16 %v2038, %v2034
        %v2231 = vpack.c.b16 %v2039, %v2035
        %v2232 = vpack.c.b16 %v2044, %v2040
        %v2233 = vpack.c.b16 %v2045, %v2041
        %v2234 = vpack.c.b16 %v2046, %v2042
        %v2235 = vpack.c.b16 %v2047, %v2043
        %v2236 = vpack.c.b16 %v2052, %v2048
        %v2237 = vpack.c.b16 %v2053, %v2049
        %v2238 = vpack.c.b16 %v2054, %v2050
        %v2239 = vpack.c.b16 %v2055, %v2051
        %v2240 = vpack.c.b16 %v2060, %v2056
        %v2241 = vpack.c.b16 %v2061, %v2057
        %v2242 = vpack.c.b16 %v2062, %v2058
        %v2243 = vpack.c.b16 %v2063, %v2059
        %v2244 = vpack.c.b16 %v2068, %v2064
        %v2245 = vpack.c.b16 %v2069, %v2065
        %v2246 = vpack.c.b16 %v2070, %v2066
        %v2247 = vpack.c.b16 %v2071, %v2067
        %v2248 = vpack.c.b16 %v2076, %v2072
        %v2249 = vpack.c.b16 %v2077, %v2073
        %v2250 = vpack.c.b16 %v2078, %v2074
        %v2251 = vpack.c.b16 %v2079, %v2075
        %v2252 = vpack.c.b16 %v2084, %v2080
        %v2253 = vpack.c.b16 %v2085, %v2081
        %v2254 = vpack.c.b16 %v2086, %v2082
        %v2255 = vpack.c.b16 %v2087, %v2083
        %v2256 = vpack.c.b16 %v2092, %v2088
        %v2257 = vpack.c.b16 %v2093, %v2089
        %v2258 = vpack.c.b16 %v2094, %v2090
        %v2259 = vpack.c.b16 %v2095, %v2091
        %v2260 = vpack.c.b16 %v2100, %v2096
        %v2261 = vpack.c.b16 %v2101, %v2097
        %v2262 = vpack.c.b16 %v2102, %v2098
        %v2263 = vpack.c.b16 %v2103, %v2099
        %v2264 = vpack.c.b16 %v2108, %v2104
        %v2265 = vpack.c.b16 %v2109, %v2105
        %v2266 = vpack.c.b16 %v2110, %v2106
        %v2267 = vpack.c.b16 %v2111, %v2107
        %v2268 = vpack.c.b16 %v2116, %v2112
        %v2269 = vpack.c.b16 %v2117, %v2113
        %v2270 = vpack.c.b16 %v2118, %v2114
        %v2271 = vpack.c.b16 %v2119, %v2115
        %v2272 = vpack.c.b16 %v2124, %v2120
        %v2273 = vpack.c.b16 %v2125, %v2121
        %v2274 = vpack.c.b16 %v2126, %v2122
        %v2275 = vpack.c.b16 %v2127, %v2123
        %v2276 = vpack.c.b16 %v2132, %v2128
        %v2277 = vpack.c.b16 %v2133, %v2129
        %v2278 = vpack.c.b16 %v2134, %v2130
        %v2279 = vpack.c.b16 %v2135, %v2131
        %v2280 = vpack.c.b16 %v2140, %v2136
        %v2281 = vpack.c.b16 %v2141, %v2137
        %v2282 = vpack.c.b16 %v2142, %v2138
        %v2283 = vpack.c.b16 %v2143, %v2139
        %v2284 = vpack.c.b16 %v2148, %v2144
        %v2285 = vpack.c.b16 %v2149, %v2145
        %v2286 = vpack.c.b16 %v2150, %v2146
        %v2287 = vpack.c.b16 %v2151, %v2147
        %v2288 = vpack.c.b16 %v2156, %v2152
        %v2289 = vpack.c.b16 %v2157, %v2153
        %v2290 = vpack.c.b16 %v2158, %v2154
        %v2291 = vpack.c.b16 %v2159, %v2155
        %v2292 = vpack.c.b16 %v2164, %v2160
        %v2293 = vpack.c.b16 %v2165, %v2161
        %v2294 = vpack.c.b16 %v2166, %v2162
        %v2295 = vpack.c.b16 %v2167, %v2163
        %2424 = vmatprep.subr.bf16.mxu0 %v2169
        %2425 = vmatpush1.bf16.msra.mxu0 %v2168
        %2426 = vmatprep.subr.bf16.mxu0 %v2173
        %2427 = vmatpush1.bf16.msra.mxu0 %v2172
        %2428 = vmatprep.subr.bf16.mxu0 %v2177
        %2429 = vmatpush1.bf16.msra.mxu0 %v2176
        %2430 = vmatprep.subr.bf16.mxu0 %v2181
        %2431 = vmatpush1.bf16.msra.mxu0 %v2180
        %2432 = vmatprep.subr.bf16.mxu0 %v2185
        %2433 = vmatpush1.bf16.msra.mxu0 %v2184
        %2434 = vmatprep.subr.bf16.mxu0 %v2189
        %2435 = vmatpush1.bf16.msra.mxu0 %v2188
        %2436 = vmatprep.subr.bf16.mxu0 %v2193
        %2437 = vmatpush1.bf16.msra.mxu0 %v2192
        %2438 = vmatprep.subr.bf16.mxu0 %v2197
        %2439 = vmatpush1.bf16.msra.mxu0 %v2196
        %2440 = vmatprep.subr.bf16.mxu0 %v2201
        %2441 = vmatpush1.bf16.msra.mxu0 %v2200
        %2442 = vmatprep.subr.bf16.mxu0 %v2205
        %2443 = vmatpush1.bf16.msra.mxu0 %v2204
        %2444 = vmatprep.subr.bf16.mxu0 %v2209
        %2445 = vmatpush1.bf16.msra.mxu0 %v2208
        %2446 = vmatprep.subr.bf16.mxu0 %v2213
        %2447 = vmatpush1.bf16.msra.mxu0 %v2212
        %2448 = vmatprep.subr.bf16.mxu0 %v2217
        %2449 = vmatpush1.bf16.msra.mxu0 %v2216
        %2450 = vmatprep.subr.bf16.mxu0 %v2221
        %2451 = vmatpush1.bf16.msra.mxu0 %v2220
        %2452 = vmatprep.subr.bf16.mxu0 %v2225
        %2453 = vmatpush1.bf16.msra.mxu0 %v2224
        %2454 = vmatprep.subr.bf16.mxu0 %v2229
        %2455 = vmatpush1.bf16.msra.mxu0 %v2228
        %2456 = vmatprep.mubr.bf16.mxu0 %v1631
        %2457 = vmatmul.mubr.bf16.gmra.mrb[0].mxu0 %v1630
        %v2458 = vpop.f32.mrb[0].mxu0
        %v2459 = vadd.f32 %v1767, %v2458
        %v2460 = vpop.f32.mrb[0].mxu0
        %v2461 = vadd.f32 %v1771, %v2460
        %v2462 = vpop.f32.mrb[0].mxu0
        %v2463 = vadd.f32 %v1767, %v2462
        %v2464 = vpop.f32.mrb[0].mxu0
        %v2465 = vadd.f32 %v1771, %v2464
        %2466 = vdwg.mxu0
        %2467 = vmatprep.subr.bf16.mxu0 %v2233
        %2468 = vmatpush1.bf16.msra.mxu0 %v2232
        %2469 = vmatprep.subr.bf16.mxu0 %v2237
        %2470 = vmatpush1.bf16.msra.mxu0 %v2236
        %2471 = vmatprep.subr.bf16.mxu0 %v2241
        %2472 = vmatpush1.bf16.msra.mxu0 %v2240
        %2473 = vmatprep.subr.bf16.mxu0 %v2245
        %2474 = vmatpush1.bf16.msra.mxu0 %v2244
        %2475 = vmatprep.subr.bf16.mxu0 %v2249
        %2476 = vmatpush1.bf16.msra.mxu0 %v2248
        %2477 = vmatprep.subr.bf16.mxu0 %v2253
        %2478 = vmatpush1.bf16.msra.mxu0 %v2252
        %2479 = vmatprep.subr.bf16.mxu0 %v2257
        %2480 = vmatpush1.bf16.msra.mxu0 %v2256
        %2481 = vmatprep.subr.bf16.mxu0 %v2261
        %2482 = vmatpush1.bf16.msra.mxu0 %v2260
        %2483 = vmatprep.subr.bf16.mxu0 %v2265
        %2484 = vmatpush1.bf16.msra.mxu0 %v2264
        %2485 = vmatprep.subr.bf16.mxu0 %v2269
        %2486 = vmatpush1.bf16.msra.mxu0 %v2268
        %2487 = vmatprep.subr.bf16.mxu0 %v2273
        %2488 = vmatpush1.bf16.msra.mxu0 %v2272
        %2489 = vmatprep.subr.bf16.mxu0 %v2277
        %2490 = vmatpush1.bf16.msra.mxu0 %v2276
        %2491 = vmatprep.subr.bf16.mxu0 %v2281
        %2492 = vmatpush1.bf16.msra.mxu0 %v2280
        %2493 = vmatprep.subr.bf16.mxu0 %v2285
        %2494 = vmatpush1.bf16.msra.mxu0 %v2284
        %2495 = vmatprep.subr.bf16.mxu0 %v2289
        %2496 = vmatpush1.bf16.msra.mxu0 %v2288
        %2497 = vmatprep.subr.bf16.mxu0 %v2293
        %2498 = vmatpush1.bf16.msra.mxu0 %v2292
        %2499 = vmatprep.mubr.bf16.mxu0 %v1633
        %2500 = vmatmul.mubr.bf16.gmra.mrb[0].mxu0 %v1632
        %v2501 = vpop.f32.mrb[0].mxu0
        %v2502 = vadd.f32 %v2459, %v2501
        %v2503 = vpop.f32.mrb[0].mxu0
        %v2504 = vadd.f32 %v2461, %v2503
        %v2505 = vpop.f32.mrb[0].mxu0
        %v2506 = vadd.f32 %v2463, %v2505
        %v2507 = vpop.f32.mrb[0].mxu0
        %v2508 = vadd.f32 %v2465, %v2507
        %2509 = vdwg.mxu0
        %2510 = vmatprep.subr.bf16.mxu0 %v2171
        %2511 = vmatpush1.bf16.msra.mxu0 %v2170
        %2512 = vmatprep.subr.bf16.mxu0 %v2175
        %2513 = vmatpush1.bf16.msra.mxu0 %v2174
        %2514 = vmatprep.subr.bf16.mxu0 %v2179
        %2515 = vmatpush1.bf16.msra.mxu0 %v2178
        %2516 = vmatprep.subr.bf16.mxu0 %v2183
        %2517 = vmatpush1.bf16.msra.mxu0 %v2182
        %2518 = vmatprep.subr.bf16.mxu0 %v2187
        %2519 = vmatpush1.bf16.msra.mxu0 %v2186
        %2520 = vmatprep.subr.bf16.mxu0 %v2191
        %2521 = vmatpush1.bf16.msra.mxu0 %v2190
        %2522 = vmatprep.subr.bf16.mxu0 %v2195
        %2523 = vmatpush1.bf16.msra.mxu0 %v2194
        %2524 = vmatprep.subr.bf16.mxu0 %v2199
        %2525 = vmatpush1.bf16.msra.mxu0 %v2198
        %2526 = vmatprep.subr.bf16.mxu0 %v2203
        %2527 = vmatpush1.bf16.msra.mxu0 %v2202
        %2528 = vmatprep.subr.bf16.mxu0 %v2207
        %2529 = vmatpush1.bf16.msra.mxu0 %v2206
        %2530 = vmatprep.subr.bf16.mxu0 %v2211
        %2531 = vmatpush1.bf16.msra.mxu0 %v2210
        %2532 = vmatprep.subr.bf16.mxu0 %v2215
        %2533 = vmatpush1.bf16.msra.mxu0 %v2214
        %2534 = vmatprep.subr.bf16.mxu0 %v2219
        %2535 = vmatpush1.bf16.msra.mxu0 %v2218
        %2536 = vmatprep.subr.bf16.mxu0 %v2223
        %2537 = vmatpush1.bf16.msra.mxu0 %v2222
        %2538 = vmatprep.subr.bf16.mxu0 %v2227
        %2539 = vmatpush1.bf16.msra.mxu0 %v2226
        %2540 = vmatprep.subr.bf16.mxu0 %v2231
        %2541 = vmatpush1.bf16.msra.mxu0 %v2230
        %2542 = vmatprep.mubr.bf16.mxu0 %v1631
        %2543 = vmatmul.mubr.bf16.gmra.mrb[0].mxu0 %v1630
        %v2544 = vpop.f32.mrb[0].mxu0
        %v2545 = vadd.f32 %v1775, %v2544
        %v2546 = vpop.f32.mrb[0].mxu0
        %v2547 = vadd.f32 %v1779, %v2546
        %v2548 = vpop.f32.mrb[0].mxu0
        %v2549 = vadd.f32 %v1775, %v2548
        %v2550 = vpop.f32.mrb[0].mxu0
        %v2551 = vadd.f32 %v1779, %v2550
        %2552 = vdwg.mxu0
        %2553 = vmatprep.subr.bf16.mxu0 %v2235
        %2554 = vmatpush1.bf16.msra.mxu0 %v2234
        %2555 = vmatprep.subr.bf16.mxu0 %v2239
        %2556 = vmatpush1.bf16.msra.mxu0 %v2238
        %2557 = vmatprep.subr.bf16.mxu0 %v2243
        %2558 = vmatpush1.bf16.msra.mxu0 %v2242
        %2559 = vmatprep.subr.bf16.mxu0 %v2247
        %2560 = vmatpush1.bf16.msra.mxu0 %v2246
        %2561 = vmatprep.subr.bf16.mxu0 %v2251
        %2562 = vmatpush1.bf16.msra.mxu0 %v2250
        %2563 = vmatprep.subr.bf16.mxu0 %v2255
        %2564 = vmatpush1.bf16.msra.mxu0 %v2254
        %2565 = vmatprep.subr.bf16.mxu0 %v2259
        %2566 = vmatpush1.bf16.msra.mxu0 %v2258
        %2567 = vmatprep.subr.bf16.mxu0 %v2263
        %2568 = vmatpush1.bf16.msra.mxu0 %v2262
        %2569 = vmatprep.subr.bf16.mxu0 %v2267
        %2570 = vmatpush1.bf16.msra.mxu0 %v2266
        %2571 = vmatprep.subr.bf16.mxu0 %v2271
        %2572 = vmatpush1.bf16.msra.mxu0 %v2270
        %2573 = vmatprep.subr.bf16.mxu0 %v2275
        %2574 = vmatpush1.bf16.msra.mxu0 %v2274
        %2575 = vmatprep.subr.bf16.mxu0 %v2279
        %2576 = vmatpush1.bf16.msra.mxu0 %v2278
        %2577 = vmatprep.subr.bf16.mxu0 %v2283
        %2578 = vmatpush1.bf16.msra.mxu0 %v2282
        %2579 = vmatprep.subr.bf16.mxu0 %v2287
        %2580 = vmatpush1.bf16.msra.mxu0 %v2286
        %2581 = vmatprep.subr.bf16.mxu0 %v2291
        %2582 = vmatpush1.bf16.msra.mxu0 %v2290
        %2583 = vmatprep.subr.bf16.mxu0 %v2295
        %2584 = vmatpush1.bf16.msra.mxu0 %v2294
        %2585 = vmatprep.mubr.bf16.mxu0 %v1633
        %2586 = vmatmul.mubr.bf16.gmra.mrb[0].mxu0 %v1632
        %v2587 = vpop.f32.mrb[0].mxu0
        %v2588 = vadd.f32 %v2545, %v2587
        %v2589 = vpop.f32.mrb[0].mxu0
        %v2590 = vadd.f32 %v2547, %v2589
        %v2591 = vpop.f32.mrb[0].mxu0
        %v2592 = vadd.f32 %v2549, %v2591
        %v2593 = vpop.f32.mrb[0].mxu0
        %v2594 = vadd.f32 %v2551, %v2593
        %2595 = vdwg.mxu0
        %v2596 = vld [vmem:[#allocation10] sm:$0xff]
        %v2597 = vld [vmem:[#allocation10 + $0x8] sm:$0xff]
        %v2598 = vld [vmem:[#allocation10 + $0x10] sm:$0xff]
        %v2599 = vld [vmem:[#allocation10 + $0x18] sm:$0xff]
        %v2600 = vld [vmem:[#allocation10 + $0x20] sm:$0xff]
        %v2601 = vld [vmem:[#allocation10 + $0x28] sm:$0xff]
        %v2602 = vld [vmem:[#allocation10 + $0x30] sm:$0xff]
        %v2603 = vld [vmem:[#allocation10 + $0x38] sm:$0xff]
        %v2604 = vld [vmem:[#allocation10 + $0x40] sm:$0xff]
        %v2605 = vld [vmem:[#allocation10 + $0x48] sm:$0xff]
        %v2606 = vld [vmem:[#allocation10 + $0x50] sm:$0xff]
        %v2607 = vld [vmem:[#allocation10 + $0x58] sm:$0xff]
        %v2608 = vld [vmem:[#allocation10 + $0x60] sm:$0xff]
        %v2609 = vld [vmem:[#allocation10 + $0x68] sm:$0xff]
        %v2610 = vld [vmem:[#allocation10 + $0x70] sm:$0xff]
        %v2611 = vld [vmem:[#allocation10 + $0x78] sm:$0xff]
        %v2612 = vld [vmem:[#allocation10 + $0x80] sm:$0xff]
        %v2613 = vld [vmem:[#allocation10 + $0x88] sm:$0xff]
        %v2614 = vld [vmem:[#allocation10 + $0x90] sm:$0xff]
        %v2615 = vld [vmem:[#allocation10 + $0x98] sm:$0xff]
        %v2616 = vld [vmem:[#allocation10 + $0xa0] sm:$0xff]
        %v2617 = vld [vmem:[#allocation10 + $0xa8] sm:$0xff]
        %v2618 = vld [vmem:[#allocation10 + $0xb0] sm:$0xff]
        %v2619 = vld [vmem:[#allocation10 + $0xb8] sm:$0xff]
        %v2620 = vld [vmem:[#allocation10 + $0xc0] sm:$0xff]
        %v2621 = vld [vmem:[#allocation10 + $0xc8] sm:$0xff]
        %v2622 = vld [vmem:[#allocation10 + $0xd0] sm:$0xff]
        %v2623 = vld [vmem:[#allocation10 + $0xd8] sm:$0xff]
        %v2624 = vld [vmem:[#allocation10 + $0xe0] sm:$0xff]
        %v2625 = vld [vmem:[#allocation10 + $0xe8] sm:$0xff]
        %v2626 = vld [vmem:[#allocation10 + $0xf0] sm:$0xff]
        %v2627 = vld [vmem:[#allocation10 + $0xf8] sm:$0xff]
        %v2628 = vld [vmem:[#allocation10 + $0x100] sm:$0xff]
        %v2629 = vld [vmem:[#allocation10 + $0x108] sm:$0xff]
        %v2630 = vld [vmem:[#allocation10 + $0x110] sm:$0xff]
        %v2631 = vld [vmem:[#allocation10 + $0x118] sm:$0xff]
        %v2632 = vld [vmem:[#allocation10 + $0x120] sm:$0xff]
        %v2633 = vld [vmem:[#allocation10 + $0x128] sm:$0xff]
        %v2634 = vld [vmem:[#allocation10 + $0x130] sm:$0xff]
        %v2635 = vld [vmem:[#allocation10 + $0x138] sm:$0xff]
        %v2636 = vld [vmem:[#allocation10 + $0x140] sm:$0xff]
        %v2637 = vld [vmem:[#allocation10 + $0x148] sm:$0xff]
        %v2638 = vld [vmem:[#allocation10 + $0x150] sm:$0xff]
        %v2639 = vld [vmem:[#allocation10 + $0x158] sm:$0xff]
        %v2640 = vld [vmem:[#allocation10 + $0x160] sm:$0xff]
        %v2641 = vld [vmem:[#allocation10 + $0x168] sm:$0xff]
        %v2642 = vld [vmem:[#allocation10 + $0x170] sm:$0xff]
        %v2643 = vld [vmem:[#allocation10 + $0x178] sm:$0xff]
        %v2644 = vld [vmem:[#allocation10 + $0x180] sm:$0xff]
        %v2645 = vld [vmem:[#allocation10 + $0x188] sm:$0xff]
        %v2646 = vld [vmem:[#allocation10 + $0x190] sm:$0xff]
        %v2647 = vld [vmem:[#allocation10 + $0x198] sm:$0xff]
        %v2648 = vld [vmem:[#allocation10 + $0x1a0] sm:$0xff]
        %v2649 = vld [vmem:[#allocation10 + $0x1a8] sm:$0xff]
        %v2650 = vld [vmem:[#allocation10 + $0x1b0] sm:$0xff]
        %v2651 = vld [vmem:[#allocation10 + $0x1b8] sm:$0xff]
        %v2652 = vld [vmem:[#allocation10 + $0x1c0] sm:$0xff]
        %v2653 = vld [vmem:[#allocation10 + $0x1c8] sm:$0xff]
        %v2654 = vld [vmem:[#allocation10 + $0x1d0] sm:$0xff]
        %v2655 = vld [vmem:[#allocation10 + $0x1d8] sm:$0xff]
        %v2656 = vld [vmem:[#allocation10 + $0x1e0] sm:$0xff]
        %v2657 = vld [vmem:[#allocation10 + $0x1e8] sm:$0xff]
        %v2658 = vld [vmem:[#allocation10 + $0x1f0] sm:$0xff]
        %v2659 = vld [vmem:[#allocation10 + $0x1f8] sm:$0xff]
        %v2660 = vld [vmem:[#allocation10 + $0x200] sm:$0xff]
        %v2661 = vld [vmem:[#allocation10 + $0x208] sm:$0xff]
        %v2662 = vld [vmem:[#allocation10 + $0x210] sm:$0xff]
        %v2663 = vld [vmem:[#allocation10 + $0x218] sm:$0xff]
        %v2664 = vld [vmem:[#allocation10 + $0x220] sm:$0xff]
        %v2665 = vld [vmem:[#allocation10 + $0x228] sm:$0xff]
        %v2666 = vld [vmem:[#allocation10 + $0x230] sm:$0xff]
        %v2667 = vld [vmem:[#allocation10 + $0x238] sm:$0xff]
        %v2668 = vld [vmem:[#allocation10 + $0x240] sm:$0xff]
        %v2669 = vld [vmem:[#allocation10 + $0x248] sm:$0xff]
        %v2670 = vld [vmem:[#allocation10 + $0x250] sm:$0xff]
        %v2671 = vld [vmem:[#allocation10 + $0x258] sm:$0xff]
        %v2672 = vld [vmem:[#allocation10 + $0x260] sm:$0xff]
        %v2673 = vld [vmem:[#allocation10 + $0x268] sm:$0xff]
        %v2674 = vld [vmem:[#allocation10 + $0x270] sm:$0xff]
        %v2675 = vld [vmem:[#allocation10 + $0x278] sm:$0xff]
        %v2676 = vld [vmem:[#allocation10 + $0x280] sm:$0xff]
        %v2677 = vld [vmem:[#allocation10 + $0x288] sm:$0xff]
        %v2678 = vld [vmem:[#allocation10 + $0x290] sm:$0xff]
        %v2679 = vld [vmem:[#allocation10 + $0x298] sm:$0xff]
        %v2680 = vld [vmem:[#allocation10 + $0x2a0] sm:$0xff]
        %v2681 = vld [vmem:[#allocation10 + $0x2a8] sm:$0xff]
        %v2682 = vld [vmem:[#allocation10 + $0x2b0] sm:$0xff]
        %v2683 = vld [vmem:[#allocation10 + $0x2b8] sm:$0xff]
        %v2684 = vld [vmem:[#allocation10 + $0x2c0] sm:$0xff]
        %v2685 = vld [vmem:[#allocation10 + $0x2c8] sm:$0xff]
        %v2686 = vld [vmem:[#allocation10 + $0x2d0] sm:$0xff]
        %v2687 = vld [vmem:[#allocation10 + $0x2d8] sm:$0xff]
        %v2688 = vld [vmem:[#allocation10 + $0x2e0] sm:$0xff]
        %v2689 = vld [vmem:[#allocation10 + $0x2e8] sm:$0xff]
        %v2690 = vld [vmem:[#allocation10 + $0x2f0] sm:$0xff]
        %v2691 = vld [vmem:[#allocation10 + $0x2f8] sm:$0xff]
        %v2692 = vld [vmem:[#allocation10 + $0x300] sm:$0xff]
        %v2693 = vld [vmem:[#allocation10 + $0x308] sm:$0xff]
        %v2694 = vld [vmem:[#allocation10 + $0x310] sm:$0xff]
        %v2695 = vld [vmem:[#allocation10 + $0x318] sm:$0xff]
        %v2696 = vld [vmem:[#allocation10 + $0x320] sm:$0xff]
        %v2697 = vld [vmem:[#allocation10 + $0x328] sm:$0xff]
        %v2698 = vld [vmem:[#allocation10 + $0x330] sm:$0xff]
        %v2699 = vld [vmem:[#allocation10 + $0x338] sm:$0xff]
        %v2700 = vld [vmem:[#allocation10 + $0x340] sm:$0xff]
        %v2701 = vld [vmem:[#allocation10 + $0x348] sm:$0xff]
        %v2702 = vld [vmem:[#allocation10 + $0x350] sm:$0xff]
        %v2703 = vld [vmem:[#allocation10 + $0x358] sm:$0xff]
        %v2704 = vld [vmem:[#allocation10 + $0x360] sm:$0xff]
        %v2705 = vld [vmem:[#allocation10 + $0x368] sm:$0xff]
        %v2706 = vld [vmem:[#allocation10 + $0x370] sm:$0xff]
        %v2707 = vld [vmem:[#allocation10 + $0x378] sm:$0xff]
        %v2708 = vld [vmem:[#allocation10 + $0x380] sm:$0xff]
        %v2709 = vld [vmem:[#allocation10 + $0x388] sm:$0xff]
        %v2710 = vld [vmem:[#allocation10 + $0x390] sm:$0xff]
        %v2711 = vld [vmem:[#allocation10 + $0x398] sm:$0xff]
        %v2712 = vld [vmem:[#allocation10 + $0x3a0] sm:$0xff]
        %v2713 = vld [vmem:[#allocation10 + $0x3a8] sm:$0xff]
        %v2714 = vld [vmem:[#allocation10 + $0x3b0] sm:$0xff]
        %v2715 = vld [vmem:[#allocation10 + $0x3b8] sm:$0xff]
        %v2716 = vld [vmem:[#allocation10 + $0x3c0] sm:$0xff]
        %v2717 = vld [vmem:[#allocation10 + $0x3c8] sm:$0xff]
        %v2718 = vld [vmem:[#allocation10 + $0x3d0] sm:$0xff]
        %v2719 = vld [vmem:[#allocation10 + $0x3d8] sm:$0xff]
        %v2720 = vld [vmem:[#allocation10 + $0x3e0] sm:$0xff]
        %v2721 = vld [vmem:[#allocation10 + $0x3e8] sm:$0xff]
        %v2722 = vld [vmem:[#allocation10 + $0x3f0] sm:$0xff]
        %v2723 = vld [vmem:[#allocation10 + $0x3f8] sm:$0xff]
        %v2724 = vld [vmem:[%s7] sm:$0xf]
        %v2726 = vlaneseq
        %v2727 = vshrl.u32 %v2726, 7
        %v2728 = vsub.s32 0, %v2727
        %v2729 = vrot.slane %v2724, %v2728
        %v2730 = vlaneseq
        %v2731 = vshrl.u32 %v2730, 7
        %v2732 = vsub.s32 1, %v2731
        %v2733 = vrot.slane %v2724, %v2732
        %v2734 = vlaneseq
        %v2735 = vshrl.u32 %v2734, 7
        %v2736 = vsub.s32 2, %v2735
        %v2737 = vrot.slane %v2724, %v2736
        %v2738 = vlaneseq
        %v2739 = vshrl.u32 %v2738, 7
        %v2740 = vsub.s32 3, %v2739
        %v2741 = vrot.slane %v2724, %v2740
        %v2874 = vunpack.c.l.b16 %v2596
        %v2875 = vunpack.c.h.b16 %v2596
        %v2876 = vunpack.c.l.b16 %v2597
        %v2877 = vunpack.c.h.b16 %v2597
        %v2878 = vunpack.c.l.b16 %v2598
        %v2879 = vunpack.c.h.b16 %v2598
        %v2880 = vunpack.c.l.b16 %v2599
        %v2881 = vunpack.c.h.b16 %v2599
        %v2882 = vunpack.c.l.b16 %v2600
        %v2883 = vunpack.c.h.b16 %v2600
        %v2884 = vunpack.c.l.b16 %v2601
        %v2885 = vunpack.c.h.b16 %v2601
        %v2886 = vunpack.c.l.b16 %v2602
        %v2887 = vunpack.c.h.b16 %v2602
        %v2888 = vunpack.c.l.b16 %v2603
        %v2889 = vunpack.c.h.b16 %v2603
        %v2890 = vunpack.c.l.b16 %v2604
        %v2891 = vunpack.c.h.b16 %v2604
        %v2892 = vunpack.c.l.b16 %v2605
        %v2893 = vunpack.c.h.b16 %v2605
        %v2894 = vunpack.c.l.b16 %v2606
        %v2895 = vunpack.c.h.b16 %v2606
        %v2896 = vunpack.c.l.b16 %v2607
        %v2897 = vunpack.c.h.b16 %v2607
        %v2898 = vunpack.c.l.b16 %v2608
        %v2899 = vunpack.c.h.b16 %v2608
        %v2900 = vunpack.c.l.b16 %v2609
        %v2901 = vunpack.c.h.b16 %v2609
        %v2902 = vunpack.c.l.b16 %v2610
        %v2903 = vunpack.c.h.b16 %v2610
        %v2904 = vunpack.c.l.b16 %v2611
        %v2905 = vunpack.c.h.b16 %v2611
        %v2906 = vunpack.c.l.b16 %v2612
        %v2907 = vunpack.c.h.b16 %v2612
        %v2908 = vunpack.c.l.b16 %v2613
        %v2909 = vunpack.c.h.b16 %v2613
        %v2910 = vunpack.c.l.b16 %v2614
        %v2911 = vunpack.c.h.b16 %v2614
        %v2912 = vunpack.c.l.b16 %v2615
        %v2913 = vunpack.c.h.b16 %v2615
        %v2914 = vunpack.c.l.b16 %v2616
        %v2915 = vunpack.c.h.b16 %v2616
        %v2916 = vunpack.c.l.b16 %v2617
        %v2917 = vunpack.c.h.b16 %v2617
        %v2918 = vunpack.c.l.b16 %v2618
        %v2919 = vunpack.c.h.b16 %v2618
        %v2920 = vunpack.c.l.b16 %v2619
        %v2921 = vunpack.c.h.b16 %v2619
        %v2922 = vunpack.c.l.b16 %v2620
        %v2923 = vunpack.c.h.b16 %v2620
        %v2924 = vunpack.c.l.b16 %v2621
        %v2925 = vunpack.c.h.b16 %v2621
        %v2926 = vunpack.c.l.b16 %v2622
        %v2927 = vunpack.c.h.b16 %v2622
        %v2928 = vunpack.c.l.b16 %v2623
        %v2929 = vunpack.c.h.b16 %v2623
        %v2930 = vunpack.c.l.b16 %v2624
        %v2931 = vunpack.c.h.b16 %v2624
        %v2932 = vunpack.c.l.b16 %v2625
        %v2933 = vunpack.c.h.b16 %v2625
        %v2934 = vunpack.c.l.b16 %v2626
        %v2935 = vunpack.c.h.b16 %v2626
        %v2936 = vunpack.c.l.b16 %v2627
        %v2937 = vunpack.c.h.b16 %v2627
        %v2938 = vunpack.c.l.b16 %v2628
        %v2939 = vunpack.c.h.b16 %v2628
        %v2940 = vunpack.c.l.b16 %v2629
        %v2941 = vunpack.c.h.b16 %v2629
        %v2942 = vunpack.c.l.b16 %v2630
        %v2943 = vunpack.c.h.b16 %v2630
        %v2944 = vunpack.c.l.b16 %v2631
        %v2945 = vunpack.c.h.b16 %v2631
        %v2946 = vunpack.c.l.b16 %v2632
        %v2947 = vunpack.c.h.b16 %v2632
        %v2948 = vunpack.c.l.b16 %v2633
        %v2949 = vunpack.c.h.b16 %v2633
        %v2950 = vunpack.c.l.b16 %v2634
        %v2951 = vunpack.c.h.b16 %v2634
        %v2952 = vunpack.c.l.b16 %v2635
        %v2953 = vunpack.c.h.b16 %v2635
        %v2954 = vunpack.c.l.b16 %v2636
        %v2955 = vunpack.c.h.b16 %v2636
        %v2956 = vunpack.c.l.b16 %v2637
        %v2957 = vunpack.c.h.b16 %v2637
        %v2958 = vunpack.c.l.b16 %v2638
        %v2959 = vunpack.c.h.b16 %v2638
        %v2960 = vunpack.c.l.b16 %v2639
        %v2961 = vunpack.c.h.b16 %v2639
        %v2962 = vunpack.c.l.b16 %v2640
        %v2963 = vunpack.c.h.b16 %v2640
        %v2964 = vunpack.c.l.b16 %v2641
        %v2965 = vunpack.c.h.b16 %v2641
        %v2966 = vunpack.c.l.b16 %v2642
        %v2967 = vunpack.c.h.b16 %v2642
        %v2968 = vunpack.c.l.b16 %v2643
        %v2969 = vunpack.c.h.b16 %v2643
        %v2970 = vunpack.c.l.b16 %v2644
        %v2971 = vunpack.c.h.b16 %v2644
        %v2972 = vunpack.c.l.b16 %v2645
        %v2973 = vunpack.c.h.b16 %v2645
        %v2974 = vunpack.c.l.b16 %v2646
        %v2975 = vunpack.c.h.b16 %v2646
        %v2976 = vunpack.c.l.b16 %v2647
        %v2977 = vunpack.c.h.b16 %v2647
        %v2978 = vunpack.c.l.b16 %v2648
        %v2979 = vunpack.c.h.b16 %v2648
        %v2980 = vunpack.c.l.b16 %v2649
        %v2981 = vunpack.c.h.b16 %v2649
        %v2982 = vunpack.c.l.b16 %v2650
        %v2983 = vunpack.c.h.b16 %v2650
        %v2984 = vunpack.c.l.b16 %v2651
        %v2985 = vunpack.c.h.b16 %v2651
        %v2986 = vunpack.c.l.b16 %v2652
        %v2987 = vunpack.c.h.b16 %v2652
        %v2988 = vunpack.c.l.b16 %v2653
        %v2989 = vunpack.c.h.b16 %v2653
        %v2990 = vunpack.c.l.b16 %v2654
        %v2991 = vunpack.c.h.b16 %v2654
        %v2992 = vunpack.c.l.b16 %v2655
        %v2993 = vunpack.c.h.b16 %v2655
        %v2994 = vunpack.c.l.b16 %v2656
        %v2995 = vunpack.c.h.b16 %v2656
        %v2996 = vunpack.c.l.b16 %v2657
        %v2997 = vunpack.c.h.b16 %v2657
        %v2998 = vunpack.c.l.b16 %v2658
        %v2999 = vunpack.c.h.b16 %v2658
        %v3000 = vunpack.c.l.b16 %v2659
        %v3001 = vunpack.c.h.b16 %v2659
        %v3002 = vunpack.c.l.b16 %v2660
        %v3003 = vunpack.c.h.b16 %v2660
        %v3004 = vunpack.c.l.b16 %v2661
        %v3005 = vunpack.c.h.b16 %v2661
        %v3006 = vunpack.c.l.b16 %v2662
        %v3007 = vunpack.c.h.b16 %v2662
        %v3008 = vunpack.c.l.b16 %v2663
        %v3009 = vunpack.c.h.b16 %v2663
        %v3010 = vunpack.c.l.b16 %v2664
        %v3011 = vunpack.c.h.b16 %v2664
        %v3012 = vunpack.c.l.b16 %v2665
        %v3013 = vunpack.c.h.b16 %v2665
        %v3014 = vunpack.c.l.b16 %v2666
        %v3015 = vunpack.c.h.b16 %v2666
        %v3016 = vunpack.c.l.b16 %v2667
        %v3017 = vunpack.c.h.b16 %v2667
        %v3018 = vunpack.c.l.b16 %v2668
        %v3019 = vunpack.c.h.b16 %v2668
        %v3020 = vunpack.c.l.b16 %v2669
        %v3021 = vunpack.c.h.b16 %v2669
        %v3022 = vunpack.c.l.b16 %v2670
        %v3023 = vunpack.c.h.b16 %v2670
        %v3024 = vunpack.c.l.b16 %v2671
        %v3025 = vunpack.c.h.b16 %v2671
        %v3026 = vunpack.c.l.b16 %v2672
        %v3027 = vunpack.c.h.b16 %v2672
        %v3028 = vunpack.c.l.b16 %v2673
        %v3029 = vunpack.c.h.b16 %v2673
        %v3030 = vunpack.c.l.b16 %v2674
        %v3031 = vunpack.c.h.b16 %v2674
        %v3032 = vunpack.c.l.b16 %v2675
        %v3033 = vunpack.c.h.b16 %v2675
        %v3034 = vunpack.c.l.b16 %v2676
        %v3035 = vunpack.c.h.b16 %v2676
        %v3036 = vunpack.c.l.b16 %v2677
        %v3037 = vunpack.c.h.b16 %v2677
        %v3038 = vunpack.c.l.b16 %v2678
        %v3039 = vunpack.c.h.b16 %v2678
        %v3040 = vunpack.c.l.b16 %v2679
        %v3041 = vunpack.c.h.b16 %v2679
        %v3042 = vunpack.c.l.b16 %v2680
        %v3043 = vunpack.c.h.b16 %v2680
        %v3044 = vunpack.c.l.b16 %v2681
        %v3045 = vunpack.c.h.b16 %v2681
        %v3046 = vunpack.c.l.b16 %v2682
        %v3047 = vunpack.c.h.b16 %v2682
        %v3048 = vunpack.c.l.b16 %v2683
        %v3049 = vunpack.c.h.b16 %v2683
        %v3050 = vunpack.c.l.b16 %v2684
        %v3051 = vunpack.c.h.b16 %v2684
        %v3052 = vunpack.c.l.b16 %v2685
        %v3053 = vunpack.c.h.b16 %v2685
        %v3054 = vunpack.c.l.b16 %v2686
        %v3055 = vunpack.c.h.b16 %v2686
        %v3056 = vunpack.c.l.b16 %v2687
        %v3057 = vunpack.c.h.b16 %v2687
        %v3058 = vunpack.c.l.b16 %v2688
        %v3059 = vunpack.c.h.b16 %v2688
        %v3060 = vunpack.c.l.b16 %v2689
        %v3061 = vunpack.c.h.b16 %v2689
        %v3062 = vunpack.c.l.b16 %v2690
        %v3063 = vunpack.c.h.b16 %v2690
        %v3064 = vunpack.c.l.b16 %v2691
        %v3065 = vunpack.c.h.b16 %v2691
        %v3066 = vunpack.c.l.b16 %v2692
        %v3067 = vunpack.c.h.b16 %v2692
        %v3068 = vunpack.c.l.b16 %v2693
        %v3069 = vunpack.c.h.b16 %v2693
        %v3070 = vunpack.c.l.b16 %v2694
        %v3071 = vunpack.c.h.b16 %v2694
        %v3072 = vunpack.c.l.b16 %v2695
        %v3073 = vunpack.c.h.b16 %v2695
        %v3074 = vunpack.c.l.b16 %v2696
        %v3075 = vunpack.c.h.b16 %v2696
        %v3076 = vunpack.c.l.b16 %v2697
        %v3077 = vunpack.c.h.b16 %v2697
        %v3078 = vunpack.c.l.b16 %v2698
        %v3079 = vunpack.c.h.b16 %v2698
        %v3080 = vunpack.c.l.b16 %v2699
        %v3081 = vunpack.c.h.b16 %v2699
        %v3082 = vunpack.c.l.b16 %v2700
        %v3083 = vunpack.c.h.b16 %v2700
        %v3084 = vunpack.c.l.b16 %v2701
        %v3085 = vunpack.c.h.b16 %v2701
        %v3086 = vunpack.c.l.b16 %v2702
        %v3087 = vunpack.c.h.b16 %v2702
        %v3088 = vunpack.c.l.b16 %v2703
        %v3089 = vunpack.c.h.b16 %v2703
        %v3090 = vunpack.c.l.b16 %v2704
        %v3091 = vunpack.c.h.b16 %v2704
        %v3092 = vunpack.c.l.b16 %v2705
        %v3093 = vunpack.c.h.b16 %v2705
        %v3094 = vunpack.c.l.b16 %v2706
        %v3095 = vunpack.c.h.b16 %v2706
        %v3096 = vunpack.c.l.b16 %v2707
        %v3097 = vunpack.c.h.b16 %v2707
        %v3098 = vunpack.c.l.b16 %v2708
        %v3099 = vunpack.c.h.b16 %v2708
        %v3100 = vunpack.c.l.b16 %v2709
        %v3101 = vunpack.c.h.b16 %v2709
        %v3102 = vunpack.c.l.b16 %v2710
        %v3103 = vunpack.c.h.b16 %v2710
        %v3104 = vunpack.c.l.b16 %v2711
        %v3105 = vunpack.c.h.b16 %v2711
        %v3106 = vunpack.c.l.b16 %v2712
        %v3107 = vunpack.c.h.b16 %v2712
        %v3108 = vunpack.c.l.b16 %v2713
        %v3109 = vunpack.c.h.b16 %v2713
        %v3110 = vunpack.c.l.b16 %v2714
        %v3111 = vunpack.c.h.b16 %v2714
        %v3112 = vunpack.c.l.b16 %v2715
        %v3113 = vunpack.c.h.b16 %v2715
        %v3114 = vunpack.c.l.b16 %v2716
        %v3115 = vunpack.c.h.b16 %v2716
        %v3116 = vunpack.c.l.b16 %v2717
        %v3117 = vunpack.c.h.b16 %v2717
        %v3118 = vunpack.c.l.b16 %v2718
        %v3119 = vunpack.c.h.b16 %v2718
        %v3120 = vunpack.c.l.b16 %v2719
        %v3121 = vunpack.c.h.b16 %v2719
        %v3122 = vunpack.c.l.b16 %v2720
        %v3123 = vunpack.c.h.b16 %v2720
        %v3124 = vunpack.c.l.b16 %v2721
        %v3125 = vunpack.c.h.b16 %v2721
        %v3126 = vunpack.c.l.b16 %v2722
        %v3127 = vunpack.c.h.b16 %v2722
        %v3128 = vunpack.c.l.b16 %v2723
        %v3129 = vunpack.c.h.b16 %v2723
        %v3130 = vpack.c.b16 %v2878, %v2874
        %v3131 = vpack.c.b16 %v2879, %v2875
        %v3132 = vpack.c.b16 %v2880, %v2876
        %v3133 = vpack.c.b16 %v2881, %v2877
        %v3134 = vpack.c.b16 %v2886, %v2882
        %v3135 = vpack.c.b16 %v2887, %v2883
        %v3136 = vpack.c.b16 %v2888, %v2884
        %v3137 = vpack.c.b16 %v2889, %v2885
        %v3138 = vpack.c.b16 %v2894, %v2890
        %v3139 = vpack.c.b16 %v2895, %v2891
        %v3140 = vpack.c.b16 %v2896, %v2892
        %v3141 = vpack.c.b16 %v2897, %v2893
        %v3142 = vpack.c.b16 %v2902, %v2898
        %v3143 = vpack.c.b16 %v2903, %v2899
        %v3144 = vpack.c.b16 %v2904, %v2900
        %v3145 = vpack.c.b16 %v2905, %v2901
        %v3146 = vpack.c.b16 %v2910, %v2906
        %v3147 = vpack.c.b16 %v2911, %v2907
        %v3148 = vpack.c.b16 %v2912, %v2908
        %v3149 = vpack.c.b16 %v2913, %v2909
        %v3150 = vpack.c.b16 %v2918, %v2914
        %v3151 = vpack.c.b16 %v2919, %v2915
        %v3152 = vpack.c.b16 %v2920, %v2916
        %v3153 = vpack.c.b16 %v2921, %v2917
        %v3154 = vpack.c.b16 %v2926, %v2922
        %v3155 = vpack.c.b16 %v2927, %v2923
        %v3156 = vpack.c.b16 %v2928, %v2924
        %v3157 = vpack.c.b16 %v2929, %v2925
        %v3158 = vpack.c.b16 %v2934, %v2930
        %v3159 = vpack.c.b16 %v2935, %v2931
        %v3160 = vpack.c.b16 %v2936, %v2932
        %v3161 = vpack.c.b16 %v2937, %v2933
        %v3162 = vpack.c.b16 %v2942, %v2938
        %v3163 = vpack.c.b16 %v2943, %v2939
        %v3164 = vpack.c.b16 %v2944, %v2940
        %v3165 = vpack.c.b16 %v2945, %v2941
        %v3166 = vpack.c.b16 %v2950, %v2946
        %v3167 = vpack.c.b16 %v2951, %v2947
        %v3168 = vpack.c.b16 %v2952, %v2948
        %v3169 = vpack.c.b16 %v2953, %v2949
        %v3170 = vpack.c.b16 %v2958, %v2954
        %v3171 = vpack.c.b16 %v2959, %v2955
        %v3172 = vpack.c.b16 %v2960, %v2956
        %v3173 = vpack.c.b16 %v2961, %v2957
        %v3174 = vpack.c.b16 %v2966, %v2962
        %v3175 = vpack.c.b16 %v2967, %v2963
        %v3176 = vpack.c.b16 %v2968, %v2964
        %v3177 = vpack.c.b16 %v2969, %v2965
        %v3178 = vpack.c.b16 %v2974, %v2970
        %v3179 = vpack.c.b16 %v2975, %v2971
        %v3180 = vpack.c.b16 %v2976, %v2972
        %v3181 = vpack.c.b16 %v2977, %v2973
        %v3182 = vpack.c.b16 %v2982, %v2978
        %v3183 = vpack.c.b16 %v2983, %v2979
        %v3184 = vpack.c.b16 %v2984, %v2980
        %v3185 = vpack.c.b16 %v2985, %v2981
        %v3186 = vpack.c.b16 %v2990, %v2986
        %v3187 = vpack.c.b16 %v2991, %v2987
        %v3188 = vpack.c.b16 %v2992, %v2988
        %v3189 = vpack.c.b16 %v2993, %v2989
        %v3190 = vpack.c.b16 %v2998, %v2994
        %v3191 = vpack.c.b16 %v2999, %v2995
        %v3192 = vpack.c.b16 %v3000, %v2996
        %v3193 = vpack.c.b16 %v3001, %v2997
        %v3194 = vpack.c.b16 %v3006, %v3002
        %v3195 = vpack.c.b16 %v3007, %v3003
        %v3196 = vpack.c.b16 %v3008, %v3004
        %v3197 = vpack.c.b16 %v3009, %v3005
        %v3198 = vpack.c.b16 %v3014, %v3010
        %v3199 = vpack.c.b16 %v3015, %v3011
        %v3200 = vpack.c.b16 %v3016, %v3012
        %v3201 = vpack.c.b16 %v3017, %v3013
        %v3202 = vpack.c.b16 %v3022, %v3018
        %v3203 = vpack.c.b16 %v3023, %v3019
        %v3204 = vpack.c.b16 %v3024, %v3020
        %v3205 = vpack.c.b16 %v3025, %v3021
        %v3206 = vpack.c.b16 %v3030, %v3026
        %v3207 = vpack.c.b16 %v3031, %v3027
        %v3208 = vpack.c.b16 %v3032, %v3028
        %v3209 = vpack.c.b16 %v3033, %v3029
        %v3210 = vpack.c.b16 %v3038, %v3034
        %v3211 = vpack.c.b16 %v3039, %v3035
        %v3212 = vpack.c.b16 %v3040, %v3036
        %v3213 = vpack.c.b16 %v3041, %v3037
        %v3214 = vpack.c.b16 %v3046, %v3042
        %v3215 = vpack.c.b16 %v3047, %v3043
        %v3216 = vpack.c.b16 %v3048, %v3044
        %v3217 = vpack.c.b16 %v3049, %v3045
        %v3218 = vpack.c.b16 %v3054, %v3050
        %v3219 = vpack.c.b16 %v3055, %v3051
        %v3220 = vpack.c.b16 %v3056, %v3052
        %v3221 = vpack.c.b16 %v3057, %v3053
        %v3222 = vpack.c.b16 %v3062, %v3058
        %v3223 = vpack.c.b16 %v3063, %v3059
        %v3224 = vpack.c.b16 %v3064, %v3060
        %v3225 = vpack.c.b16 %v3065, %v3061
        %v3226 = vpack.c.b16 %v3070, %v3066
        %v3227 = vpack.c.b16 %v3071, %v3067
        %v3228 = vpack.c.b16 %v3072, %v3068
        %v3229 = vpack.c.b16 %v3073, %v3069
        %v3230 = vpack.c.b16 %v3078, %v3074
        %v3231 = vpack.c.b16 %v3079, %v3075
        %v3232 = vpack.c.b16 %v3080, %v3076
        %v3233 = vpack.c.b16 %v3081, %v3077
        %v3234 = vpack.c.b16 %v3086, %v3082
        %v3235 = vpack.c.b16 %v3087, %v3083
        %v3236 = vpack.c.b16 %v3088, %v3084
        %v3237 = vpack.c.b16 %v3089, %v3085
        %v3238 = vpack.c.b16 %v3094, %v3090
        %v3239 = vpack.c.b16 %v3095, %v3091
        %v3240 = vpack.c.b16 %v3096, %v3092
        %v3241 = vpack.c.b16 %v3097, %v3093
        %v3242 = vpack.c.b16 %v3102, %v3098
        %v3243 = vpack.c.b16 %v3103, %v3099
        %v3244 = vpack.c.b16 %v3104, %v3100
        %v3245 = vpack.c.b16 %v3105, %v3101
        %v3246 = vpack.c.b16 %v3110, %v3106
        %v3247 = vpack.c.b16 %v3111, %v3107
        %v3248 = vpack.c.b16 %v3112, %v3108
        %v3249 = vpack.c.b16 %v3113, %v3109
        %v3250 = vpack.c.b16 %v3118, %v3114
        %v3251 = vpack.c.b16 %v3119, %v3115
        %v3252 = vpack.c.b16 %v3120, %v3116
        %v3253 = vpack.c.b16 %v3121, %v3117
        %v3254 = vpack.c.b16 %v3126, %v3122
        %v3255 = vpack.c.b16 %v3127, %v3123
        %v3256 = vpack.c.b16 %v3128, %v3124
        %v3257 = vpack.c.b16 %v3129, %v3125
        %3386 = vmatprep.subr.bf16.mxu0 %v3131
        %3387 = vmatpush1.bf16.msra.mxu0 %v3130
        %3388 = vmatprep.subr.bf16.mxu0 %v3135
        %3389 = vmatpush1.bf16.msra.mxu0 %v3134
        %3390 = vmatprep.subr.bf16.mxu0 %v3139
        %3391 = vmatpush1.bf16.msra.mxu0 %v3138
        %3392 = vmatprep.subr.bf16.mxu0 %v3143
        %3393 = vmatpush1.bf16.msra.mxu0 %v3142
        %3394 = vmatprep.subr.bf16.mxu0 %v3147
        %3395 = vmatpush1.bf16.msra.mxu0 %v3146
        %3396 = vmatprep.subr.bf16.mxu0 %v3151
        %3397 = vmatpush1.bf16.msra.mxu0 %v3150
        %3398 = vmatprep.subr.bf16.mxu0 %v3155
        %3399 = vmatpush1.bf16.msra.mxu0 %v3154
        %3400 = vmatprep.subr.bf16.mxu0 %v3159
        %3401 = vmatpush1.bf16.msra.mxu0 %v3158
        %3402 = vmatprep.subr.bf16.mxu0 %v3163
        %3403 = vmatpush1.bf16.msra.mxu0 %v3162
        %3404 = vmatprep.subr.bf16.mxu0 %v3167
        %3405 = vmatpush1.bf16.msra.mxu0 %v3166
        %3406 = vmatprep.subr.bf16.mxu0 %v3171
        %3407 = vmatpush1.bf16.msra.mxu0 %v3170
        %3408 = vmatprep.subr.bf16.mxu0 %v3175
        %3409 = vmatpush1.bf16.msra.mxu0 %v3174
        %3410 = vmatprep.subr.bf16.mxu0 %v3179
        %3411 = vmatpush1.bf16.msra.mxu0 %v3178
        %3412 = vmatprep.subr.bf16.mxu0 %v3183
        %3413 = vmatpush1.bf16.msra.mxu0 %v3182
        %3414 = vmatprep.subr.bf16.mxu0 %v3187
        %3415 = vmatpush1.bf16.msra.mxu0 %v3186
        %3416 = vmatprep.subr.bf16.mxu0 %v3191
        %3417 = vmatpush1.bf16.msra.mxu0 %v3190
        %3418 = vmatprep.mubr.bf16.mxu0 %v1631
        %3419 = vmatmul.mubr.bf16.gmra.mrb[0].mxu0 %v1630
        %v3420 = vpop.f32.mrb[0].mxu0
        %v3421 = vadd.f32 %v2729, %v3420
        %v3422 = vpop.f32.mrb[0].mxu0
        %v3423 = vadd.f32 %v2733, %v3422
        %v3424 = vpop.f32.mrb[0].mxu0
        %v3425 = vadd.f32 %v2729, %v3424
        %v3426 = vpop.f32.mrb[0].mxu0
        %v3427 = vadd.f32 %v2733, %v3426
        %3428 = vdwg.mxu0
        %3429 = vmatprep.subr.bf16.mxu0 %v3195
        %3430 = vmatpush1.bf16.msra.mxu0 %v3194
        %3431 = vmatprep.subr.bf16.mxu0 %v3199
        %3432 = vmatpush1.bf16.msra.mxu0 %v3198
        %3433 = vmatprep.subr.bf16.mxu0 %v3203
        %3434 = vmatpush1.bf16.msra.mxu0 %v3202
        %3435 = vmatprep.subr.bf16.mxu0 %v3207
        %3436 = vmatpush1.bf16.msra.mxu0 %v3206
        %3437 = vmatprep.subr.bf16.mxu0 %v3211
        %3438 = vmatpush1.bf16.msra.mxu0 %v3210
        %3439 = vmatprep.subr.bf16.mxu0 %v3215
        %3440 = vmatpush1.bf16.msra.mxu0 %v3214
        %3441 = vmatprep.subr.bf16.mxu0 %v3219
        %3442 = vmatpush1.bf16.msra.mxu0 %v3218
        %3443 = vmatprep.subr.bf16.mxu0 %v3223
        %3444 = vmatpush1.bf16.msra.mxu0 %v3222
        %3445 = vmatprep.subr.bf16.mxu0 %v3227
        %3446 = vmatpush1.bf16.msra.mxu0 %v3226
        %3447 = vmatprep.subr.bf16.mxu0 %v3231
        %3448 = vmatpush1.bf16.msra.mxu0 %v3230
        %3449 = vmatprep.subr.bf16.mxu0 %v3235
        %3450 = vmatpush1.bf16.msra.mxu0 %v3234
        %3451 = vmatprep.subr.bf16.mxu0 %v3239
        %3452 = vmatpush1.bf16.msra.mxu0 %v3238
        %3453 = vmatprep.subr.bf16.mxu0 %v3243
        %3454 = vmatpush1.bf16.msra.mxu0 %v3242
        %3455 = vmatprep.subr.bf16.mxu0 %v3247
        %3456 = vmatpush1.bf16.msra.mxu0 %v3246
        %3457 = vmatprep.subr.bf16.mxu0 %v3251
        %3458 = vmatpush1.bf16.msra.mxu0 %v3250
        %3459 = vmatprep.subr.bf16.mxu0 %v3255
        %3460 = vmatpush1.bf16.msra.mxu0 %v3254
        %3461 = vmatprep.mubr.bf16.mxu0 %v1633
        %3462 = vmatmul.mubr.bf16.gmra.mrb[0].mxu0 %v1632
        %v3463 = vpop.f32.mrb[0].mxu0
        %v3464 = vadd.f32 %v3421, %v3463
        %v3465 = vpop.f32.mrb[0].mxu0
        %v3466 = vadd.f32 %v3423, %v3465
        %v3467 = vpop.f32.mrb[0].mxu0
        %v3468 = vadd.f32 %v3425, %v3467
        %v3469 = vpop.f32.mrb[0].mxu0
        %v3470 = vadd.f32 %v3427, %v3469
        %3471 = vdwg.mxu0
        %3472 = vmatprep.subr.bf16.mxu0 %v3133
        %3473 = vmatpush1.bf16.msra.mxu0 %v3132
        %3474 = vmatprep.subr.bf16.mxu0 %v3137
        %3475 = vmatpush1.bf16.msra.mxu0 %v3136
        %3476 = vmatprep.subr.bf16.mxu0 %v3141
        %3477 = vmatpush1.bf16.msra.mxu0 %v3140
        %3478 = vmatprep.subr.bf16.mxu0 %v3145
        %3479 = vmatpush1.bf16.msra.mxu0 %v3144
        %3480 = vmatprep.subr.bf16.mxu0 %v3149
        %3481 = vmatpush1.bf16.msra.mxu0 %v3148
        %3482 = vmatprep.subr.bf16.mxu0 %v3153
        %3483 = vmatpush1.bf16.msra.mxu0 %v3152
        %3484 = vmatprep.subr.bf16.mxu0 %v3157
        %3485 = vmatpush1.bf16.msra.mxu0 %v3156
        %3486 = vmatprep.subr.bf16.mxu0 %v3161
        %3487 = vmatpush1.bf16.msra.mxu0 %v3160
        %3488 = vmatprep.subr.bf16.mxu0 %v3165
        %3489 = vmatpush1.bf16.msra.mxu0 %v3164
        %3490 = vmatprep.subr.bf16.mxu0 %v3169
        %3491 = vmatpush1.bf16.msra.mxu0 %v3168
        %3492 = vmatprep.subr.bf16.mxu0 %v3173
        %3493 = vmatpush1.bf16.msra.mxu0 %v3172
        %3494 = vmatprep.subr.bf16.mxu0 %v3177
        %3495 = vmatpush1.bf16.msra.mxu0 %v3176
        %3496 = vmatprep.subr.bf16.mxu0 %v3181
        %3497 = vmatpush1.bf16.msra.mxu0 %v3180
        %3498 = vmatprep.subr.bf16.mxu0 %v3185
        %3499 = vmatpush1.bf16.msra.mxu0 %v3184
        %3500 = vmatprep.subr.bf16.mxu0 %v3189
        %3501 = vmatpush1.bf16.msra.mxu0 %v3188
        %3502 = vmatprep.subr.bf16.mxu0 %v3193
        %3503 = vmatpush1.bf16.msra.mxu0 %v3192
        %3504 = vmatprep.mubr.bf16.mxu0 %v1631
        %3505 = vmatmul.mubr.bf16.gmra.mrb[0].mxu0 %v1630
        %v3506 = vpop.f32.mrb[0].mxu0
        %v3507 = vadd.f32 %v2737, %v3506
        %v3508 = vpop.f32.mrb[0].mxu0
        %v3509 = vadd.f32 %v2741, %v3508
        %v3510 = vpop.f32.mrb[0].mxu0
        %v3511 = vadd.f32 %v2737, %v3510
        %v3512 = vpop.f32.mrb[0].mxu0
        %v3513 = vadd.f32 %v2741, %v3512
        %3514 = vdwg.mxu0
        %3515 = vmatprep.subr.bf16.mxu0 %v3197
        %3516 = vmatpush1.bf16.msra.mxu0 %v3196
        %3517 = vmatprep.subr.bf16.mxu0 %v3201
        %3518 = vmatpush1.bf16.msra.mxu0 %v3200
        %3519 = vmatprep.subr.bf16.mxu0 %v3205
        %3520 = vmatpush1.bf16.msra.mxu0 %v3204
        %3521 = vmatprep.subr.bf16.mxu0 %v3209
        %3522 = vmatpush1.bf16.msra.mxu0 %v3208
        %3523 = vmatprep.subr.bf16.mxu0 %v3213
        %3524 = vmatpush1.bf16.msra.mxu0 %v3212
        %3525 = vmatprep.subr.bf16.mxu0 %v3217
        %3526 = vmatpush1.bf16.msra.mxu0 %v3216
        %3527 = vmatprep.subr.bf16.mxu0 %v3221
        %3528 = vmatpush1.bf16.msra.mxu0 %v3220
        %3529 = vmatprep.subr.bf16.mxu0 %v3225
        %3530 = vmatpush1.bf16.msra.mxu0 %v3224
        %3531 = vmatprep.subr.bf16.mxu0 %v3229
        %3532 = vmatpush1.bf16.msra.mxu0 %v3228
        %3533 = vmatprep.subr.bf16.mxu0 %v3233
        %3534 = vmatpush1.bf16.msra.mxu0 %v3232
        %3535 = vmatprep.subr.bf16.mxu0 %v3237
        %3536 = vmatpush1.bf16.msra.mxu0 %v3236
        %3537 = vmatprep.subr.bf16.mxu0 %v3241
        %3538 = vmatpush1.bf16.msra.mxu0 %v3240
        %3539 = vmatprep.subr.bf16.mxu0 %v3245
        %3540 = vmatpush1.bf16.msra.mxu0 %v3244
        %3541 = vmatprep.subr.bf16.mxu0 %v3249
        %3542 = vmatpush1.bf16.msra.mxu0 %v3248
        %3543 = vmatprep.subr.bf16.mxu0 %v3253
        %3544 = vmatpush1.bf16.msra.mxu0 %v3252
        %3545 = vmatprep.subr.bf16.mxu0 %v3257
        %3546 = vmatpush1.bf16.msra.mxu0 %v3256
        %3547 = vmatprep.mubr.bf16.mxu0 %v1633
        %3548 = vmatmul.mubr.bf16.gmra.mrb[0].mxu0 %v1632
        %v3549 = vpop.f32.mrb[0].mxu0
        %v3550 = vadd.f32 %v3507, %v3549
        %v3551 = vpop.f32.mrb[0].mxu0
        %v3552 = vadd.f32 %v3509, %v3551
        %v3553 = vpop.f32.mrb[0].mxu0
        %v3554 = vadd.f32 %v3511, %v3553
        %v3555 = vpop.f32.mrb[0].mxu0
        %v3556 = vadd.f32 %v3513, %v3555
        %3557 = vdwg.mxu0
        %v3562 = vcombine.low %v1542, %v1544
        %v3563 = vcombine.low %v1624, %v1626
        %v3565 = vunpack.c.l.s4 1966171168
        %v3566 = vunpack.c.0.s8 %v3565
        %v3567 = vlaneseq
        %v3568 = vshrl.u32 %v3567, 7
        %v3569 = vsub.s32 %v3566, %v3568
        %v3570 = vrot.slane %v3562, %v3569
        %v3572 = vunpack.c.l.s4 1966171168
        %v3573 = vunpack.c.0.s8 %v3572
        %v3574 = vlaneseq
        %v3575 = vshrl.u32 %v3574, 7
        %v3576 = vsub.s32 %v3573, %v3575
        %v3577 = vrot.slane %v3563, %v3576
        %v3578 = vcombine.low %v3570, %v3577
        %v3579 = vcombine.high %v3570, %v3577
        %v3581 = vunpack.c.l.s4 1966171168
        %v3582 = vunpack.c.0.s8 %v3581
        %v3583 = vlaneseq
        %v3584 = vshrl.u32 %v3583, 7
        %v3585 = vsub.s32 %v3582, %v3584
        %v3586 = vrot.slane %v3578, %v3585
        %v3588 = vunpack.c.l.s4 1966171168
        %v3589 = vunpack.c.0.s8 %v3588
        %v3590 = vlaneseq
        %v3591 = vshrl.u32 %v3590, 7
        %v3592 = vsub.s32 %v3589, %v3591
        %v3593 = vrot.slane %v3579, %v3592
        %3596 = vmatprep.subr.mxu0 0.0
        %3597 = vmatpush1.xpose.msra.mxu0 %v2502
        %3598 = vmatprep.subr.mxu0 0.0
        %3599 = vmatpush1.xpose.msra.mxu0 0.0
        %3600 = vmatprep.subr.mxu0 0.0
        %3601 = vmatpush1.xpose.msra.mxu0 0.0
        %3602 = vmatprep.subr.mxu0 0.0
        %3603 = vmatpush1.xpose.msra.mxu0 0.0
        %3604 = vmatprep.subr.mxu0 0.0
        %3605 = vmatpush1.xpose.msra.mxu0 0.0
        %3606 = vmatprep.subr.mxu0 0.0
        %3607 = vmatpush1.xpose.msra.mxu0 0.0
        %3608 = vmatprep.subr.mxu0 0.0
        %3609 = vmatpush1.xpose.msra.mxu0 0.0
        %3610 = vmatprep.subr.mxu0 0.0
        %3611 = vmatpush1.xpose.msra.mxu0 0.0
        %3612 = vmatprep.subr.mxu0 0.0
        %3613 = vmatpush1.xpose.msra.mxu0 0.0
        %3614 = vmatprep.subr.mxu0 0.0
        %3615 = vmatpush1.xpose.msra.mxu0 0.0
        %3616 = vmatprep.subr.mxu0 0.0
        %3617 = vmatpush1.xpose.msra.mxu0 0.0
        %3618 = vmatprep.subr.mxu0 0.0
        %3619 = vmatpush1.xpose.msra.mxu0 0.0
        %3620 = vmatprep.subr.mxu0 0.0
        %3621 = vmatpush1.xpose.msra.mxu0 0.0
        %3622 = vmatprep.subr.mxu0 0.0
        %3623 = vmatpush1.xpose.msra.mxu0 0.0
        %3624 = vmatprep.subr.mxu0 0.0
        %3625 = vmatpush1.xpose.msra.mxu0 0.0
        %3626 = vmatprep.subr.mxu0 0.0
        %3627 = vmatpush1.xpose.msra.mxu0 0.0
        %3628 = vmatprep.subr.mxu0 0.0
        %3629 = vmatpush1.xpose.msra.mxu0 0.0
        %3630 = vmatprep.subr.mxu0 0.0
        %3631 = vmatpush1.xpose.msra.mxu0 0.0
        %3632 = vmatprep.subr.mxu0 0.0
        %3633 = vmatpush1.xpose.msra.mxu0 0.0
        %3634 = vmatprep.subr.mxu0 0.0
        %3635 = vmatpush1.xpose.msra.mxu0 0.0
        %3636 = vmatprep.subr.mxu0 0.0
        %3637 = vmatpush1.xpose.msra.mxu0 0.0
        %3638 = vmatprep.subr.mxu0 0.0
        %3639 = vmatpush1.xpose.msra.mxu0 0.0
        %3640 = vmatprep.subr.mxu0 0.0
        %3641 = vmatpush1.xpose.msra.mxu0 0.0
        %3642 = vmatprep.subr.mxu0 0.0
        %3643 = vmatpush1.xpose.msra.mxu0 0.0
        %3644 = vmatprep.subr.mxu0 0.0
        %3645 = vmatpush1.xpose.msra.mxu0 0.0
        %3646 = vmatprep.subr.mxu0 0.0
        %3647 = vmatpush1.xpose.msra.mxu0 0.0
        %3648 = vmatprep.subr.mxu0 0.0
        %3649 = vmatpush1.xpose.msra.mxu0 0.0
        %3650 = vmatprep.subr.mxu0 0.0
        %3651 = vmatpush1.xpose.msra.mxu0 0.0
        %3652 = vmatprep.subr.mxu0 0.0
        %3653 = vmatpush1.xpose.msra.mxu0 0.0
        %3654 = vmatprep.subr.mxu0 0.0
        %3655 = vmatpush1.xpose.msra.mxu0 0.0
        %3656 = vmatprep.subr.mxu0 0.0
        %3657 = vmatpush1.xpose.msra.mxu0 0.0
        %3658 = vmatprep.subr.mxu0 0.0
        %3659 = vmatpush1.xpose.msra.mxu0 0.0
        %3660 = vmatprep.mubr.f32.mxu0 0.0
        %3661 = vmatmul.mubr.f32.gmra.mrb[0].mxu0 %v3586
        %v3662 = vpop.f32.mrb[0].mxu0
        %v3663 = vadd.f32 0.0, %v3662
        %v3664 = vpop.f32.mrb[0].mxu0
        %3665 = vdwg.mxu0
        %3666 = vmatprep.subr.mxu0 0.0
        %3667 = vmatpush1.xpose.msra.mxu0 %v2506
        %3668 = vmatprep.subr.mxu0 0.0
        %3669 = vmatpush1.xpose.msra.mxu0 0.0
        %3670 = vmatprep.subr.mxu0 0.0
        %3671 = vmatpush1.xpose.msra.mxu0 0.0
        %3672 = vmatprep.subr.mxu0 0.0
        %3673 = vmatpush1.xpose.msra.mxu0 0.0
        %3674 = vmatprep.subr.mxu0 0.0
        %3675 = vmatpush1.xpose.msra.mxu0 0.0
        %3676 = vmatprep.subr.mxu0 0.0
        %3677 = vmatpush1.xpose.msra.mxu0 0.0
        %3678 = vmatprep.subr.mxu0 0.0
        %3679 = vmatpush1.xpose.msra.mxu0 0.0
        %3680 = vmatprep.subr.mxu0 0.0
        %3681 = vmatpush1.xpose.msra.mxu0 0.0
        %3682 = vmatprep.subr.mxu0 0.0
        %3683 = vmatpush1.xpose.msra.mxu0 0.0
        %3684 = vmatprep.subr.mxu0 0.0
        %3685 = vmatpush1.xpose.msra.mxu0 0.0
        %3686 = vmatprep.subr.mxu0 0.0
        %3687 = vmatpush1.xpose.msra.mxu0 0.0
        %3688 = vmatprep.subr.mxu0 0.0
        %3689 = vmatpush1.xpose.msra.mxu0 0.0
        %3690 = vmatprep.subr.mxu0 0.0
        %3691 = vmatpush1.xpose.msra.mxu0 0.0
        %3692 = vmatprep.subr.mxu0 0.0
        %3693 = vmatpush1.xpose.msra.mxu0 0.0
        %3694 = vmatprep.subr.mxu0 0.0
        %3695 = vmatpush1.xpose.msra.mxu0 0.0
        %3696 = vmatprep.subr.mxu0 0.0
        %3697 = vmatpush1.xpose.msra.mxu0 0.0
        %3698 = vmatprep.subr.mxu0 0.0
        %3699 = vmatpush1.xpose.msra.mxu0 0.0
        %3700 = vmatprep.subr.mxu0 0.0
        %3701 = vmatpush1.xpose.msra.mxu0 0.0
        %3702 = vmatprep.subr.mxu0 0.0
        %3703 = vmatpush1.xpose.msra.mxu0 0.0
        %3704 = vmatprep.subr.mxu0 0.0
        %3705 = vmatpush1.xpose.msra.mxu0 0.0
        %3706 = vmatprep.subr.mxu0 0.0
        %3707 = vmatpush1.xpose.msra.mxu0 0.0
        %3708 = vmatprep.subr.mxu0 0.0
        %3709 = vmatpush1.xpose.msra.mxu0 0.0
        %3710 = vmatprep.subr.mxu0 0.0
        %3711 = vmatpush1.xpose.msra.mxu0 0.0
        %3712 = vmatprep.subr.mxu0 0.0
        %3713 = vmatpush1.xpose.msra.mxu0 0.0
        %3714 = vmatprep.subr.mxu0 0.0
        %3715 = vmatpush1.xpose.msra.mxu0 0.0
        %3716 = vmatprep.subr.mxu0 0.0
        %3717 = vmatpush1.xpose.msra.mxu0 0.0
        %3718 = vmatprep.subr.mxu0 0.0
        %3719 = vmatpush1.xpose.msra.mxu0 0.0
        %3720 = vmatprep.subr.mxu0 0.0
        %3721 = vmatpush1.xpose.msra.mxu0 0.0
        %3722 = vmatprep.subr.mxu0 0.0
        %3723 = vmatpush1.xpose.msra.mxu0 0.0
        %3724 = vmatprep.subr.mxu0 0.0
        %3725 = vmatpush1.xpose.msra.mxu0 0.0
        %3726 = vmatprep.subr.mxu0 0.0
        %3727 = vmatpush1.xpose.msra.mxu0 0.0
        %3728 = vmatprep.subr.mxu0 0.0
        %3729 = vmatpush1.xpose.msra.mxu0 0.0
        %3730 = vmatprep.mubr.f32.mxu0 0.0
        %3731 = vmatmul.mubr.f32.gmra.mrb[0].mxu0 %v3593
        %v3732 = vpop.f32.mrb[0].mxu0
        %v3733 = vadd.f32 0.0, %v3732
        %v3734 = vpop.f32.mrb[0].mxu0
        %3735 = vdwg.mxu0
        %vm3736 = vcmask 57344
        %v3737 = vsel %vm3736, %v3663, -inf
        %3738 = vmax.xlane.f32.xlu0 %v3737
        %v3739 = vpop.xlane.xlu0 %3738
        %v3740 = vsel %vm3736, %v3733, -inf
        %3741 = vmax.xlane.f32.xlu0 %v3740
        %v3742 = vpop.xlane.xlu0 %3741
        %v3743 = vsub.f32 %v3663, %v3739
        %v3744 = vsub.f32 %v3733, %v3742
        %v3745 = vmul.f32 %v3743, 1.442695
        %v3746 = vpow.pop %v3745
        %v3747 = vmul.f32 %v3744, 1.442695
        %v3748 = vpow.pop %v3747
        %v3749 = vsel %vm3736, %v3746, 0.0
        %3750 = vadd.xlane.f32.xlu0 %v3749
        %v3751 = vpop.xlane.xlu0 %3750
        %v3752 = vsel %vm3736, %v3748, 0.0
        %3753 = vadd.xlane.f32.xlu0 %v3752
        %v3754 = vpop.xlane.xlu0 %3753
        %v3755 = vrcp.pop %v3751
        %v3756 = vrcp.pop %v3754
        %v3757 = vmul.f32 %v3746, %v3755
        %v3758 = vmul.f32 %v3748, %v3756
        %vm3759 = vcmask 64512
        %v3761 = vsel %vm3759, %v3757, 0
        %3763 = vmatprep.subr.mxu0 0.0
        %3764 = vmatpush1.msra.mxu0 %v3464
        %3765 = vmatprep.subr.mxu0 0.0
        %3766 = vmatpush1.msra.mxu0 0.0
        %3767 = vmatprep.subr.mxu0 0.0
        %3768 = vmatpush1.msra.mxu0 0.0
        %3769 = vmatprep.subr.mxu0 0.0
        %3770 = vmatpush1.msra.mxu0 0.0
        %3771 = vmatprep.subr.mxu0 0.0
        %3772 = vmatpush1.msra.mxu0 0.0
        %3773 = vmatprep.subr.mxu0 0.0
        %3774 = vmatpush1.msra.mxu0 0.0
        %3775 = vmatprep.subr.mxu0 0.0
        %3776 = vmatpush1.msra.mxu0 0.0
        %3777 = vmatprep.subr.mxu0 0.0
        %3778 = vmatpush1.msra.mxu0 0.0
        %3779 = vmatprep.subr.mxu0 0.0
        %3780 = vmatpush1.msra.mxu0 0.0
        %3781 = vmatprep.subr.mxu0 0.0
        %3782 = vmatpush1.msra.mxu0 0.0
        %3783 = vmatprep.subr.mxu0 0.0
        %3784 = vmatpush1.msra.mxu0 0.0
        %3785 = vmatprep.subr.mxu0 0.0
        %3786 = vmatpush1.msra.mxu0 0.0
        %3787 = vmatprep.subr.mxu0 0.0
        %3788 = vmatpush1.msra.mxu0 0.0
        %3789 = vmatprep.subr.mxu0 0.0
        %3790 = vmatpush1.msra.mxu0 0.0
        %3791 = vmatprep.subr.mxu0 0.0
        %3792 = vmatpush1.msra.mxu0 0.0
        %3793 = vmatprep.subr.mxu0 0.0
        %3794 = vmatpush1.msra.mxu0 0.0
        %3795 = vmatprep.subr.mxu0 0.0
        %3796 = vmatpush1.msra.mxu0 0.0
        %3797 = vmatprep.subr.mxu0 0.0
        %3798 = vmatpush1.msra.mxu0 0.0
        %3799 = vmatprep.subr.mxu0 0.0
        %3800 = vmatpush1.msra.mxu0 0.0
        %3801 = vmatprep.subr.mxu0 0.0
        %3802 = vmatpush1.msra.mxu0 0.0
        %3803 = vmatprep.subr.mxu0 0.0
        %3804 = vmatpush1.msra.mxu0 0.0
        %3805 = vmatprep.subr.mxu0 0.0
        %3806 = vmatpush1.msra.mxu0 0.0
        %3807 = vmatprep.subr.mxu0 0.0
        %3808 = vmatpush1.msra.mxu0 0.0
        %3809 = vmatprep.subr.mxu0 0.0
        %3810 = vmatpush1.msra.mxu0 0.0
        %3811 = vmatprep.subr.mxu0 0.0
        %3812 = vmatpush1.msra.mxu0 0.0
        %3813 = vmatprep.subr.mxu0 0.0
        %3814 = vmatpush1.msra.mxu0 0.0
        %3815 = vmatprep.subr.mxu0 0.0
        %3816 = vmatpush1.msra.mxu0 0.0
        %3817 = vmatprep.subr.mxu0 0.0
        %3818 = vmatpush1.msra.mxu0 0.0
        %3819 = vmatprep.subr.mxu0 0.0
        %3820 = vmatpush1.msra.mxu0 0.0
        %3821 = vmatprep.subr.mxu0 0.0
        %3822 = vmatpush1.msra.mxu0 0.0
        %3823 = vmatprep.subr.mxu0 0.0
        %3824 = vmatpush1.msra.mxu0 0.0
        %3825 = vmatprep.subr.mxu0 0.0
        %3826 = vmatpush1.msra.mxu0 0.0
        %3827 = vmatprep.mubr.f32.mxu0 0.0
        %3828 = vmatmul.mubr.f32.gmra.mrb[0].mxu0 %v3761
        %v3829 = vpop.f32.mrb[0].mxu0
        %v3830 = vadd.f32 0.0, %v3829
        %v3831 = vpop.f32.mrb[0].mxu0
        %3832 = vdwg.mxu0
        %v3834 = vsel %vm3759, %v3758, 0
        %3836 = vmatprep.subr.mxu0 0.0
        %3837 = vmatpush1.msra.mxu0 %v3468
        %3838 = vmatprep.subr.mxu0 0.0
        %3839 = vmatpush1.msra.mxu0 0.0
        %3840 = vmatprep.subr.mxu0 0.0
        %3841 = vmatpush1.msra.mxu0 0.0
        %3842 = vmatprep.subr.mxu0 0.0
        %3843 = vmatpush1.msra.mxu0 0.0
        %3844 = vmatprep.subr.mxu0 0.0
        %3845 = vmatpush1.msra.mxu0 0.0
        %3846 = vmatprep.subr.mxu0 0.0
        %3847 = vmatpush1.msra.mxu0 0.0
        %3848 = vmatprep.subr.mxu0 0.0
        %3849 = vmatpush1.msra.mxu0 0.0
        %3850 = vmatprep.subr.mxu0 0.0
        %3851 = vmatpush1.msra.mxu0 0.0
        %3852 = vmatprep.subr.mxu0 0.0
        %3853 = vmatpush1.msra.mxu0 0.0
        %3854 = vmatprep.subr.mxu0 0.0
        %3855 = vmatpush1.msra.mxu0 0.0
        %3856 = vmatprep.subr.mxu0 0.0
        %3857 = vmatpush1.msra.mxu0 0.0
        %3858 = vmatprep.subr.mxu0 0.0
        %3859 = vmatpush1.msra.mxu0 0.0
        %3860 = vmatprep.subr.mxu0 0.0
        %3861 = vmatpush1.msra.mxu0 0.0
        %3862 = vmatprep.subr.mxu0 0.0
        %3863 = vmatpush1.msra.mxu0 0.0
        %3864 = vmatprep.subr.mxu0 0.0
        %3865 = vmatpush1.msra.mxu0 0.0
        %3866 = vmatprep.subr.mxu0 0.0
        %3867 = vmatpush1.msra.mxu0 0.0
        %3868 = vmatprep.subr.mxu0 0.0
        %3869 = vmatpush1.msra.mxu0 0.0
        %3870 = vmatprep.subr.mxu0 0.0
        %3871 = vmatpush1.msra.mxu0 0.0
        %3872 = vmatprep.subr.mxu0 0.0
        %3873 = vmatpush1.msra.mxu0 0.0
        %3874 = vmatprep.subr.mxu0 0.0
        %3875 = vmatpush1.msra.mxu0 0.0
        %3876 = vmatprep.subr.mxu0 0.0
        %3877 = vmatpush1.msra.mxu0 0.0
        %3878 = vmatprep.subr.mxu0 0.0
        %3879 = vmatpush1.msra.mxu0 0.0
        %3880 = vmatprep.subr.mxu0 0.0
        %3881 = vmatpush1.msra.mxu0 0.0
        %3882 = vmatprep.subr.mxu0 0.0
        %3883 = vmatpush1.msra.mxu0 0.0
        %3884 = vmatprep.subr.mxu0 0.0
        %3885 = vmatpush1.msra.mxu0 0.0
        %3886 = vmatprep.subr.mxu0 0.0
        %3887 = vmatpush1.msra.mxu0 0.0
        %3888 = vmatprep.subr.mxu0 0.0
        %3889 = vmatpush1.msra.mxu0 0.0
        %3890 = vmatprep.subr.mxu0 0.0
        %3891 = vmatpush1.msra.mxu0 0.0
        %3892 = vmatprep.subr.mxu0 0.0
        %3893 = vmatpush1.msra.mxu0 0.0
        %3894 = vmatprep.subr.mxu0 0.0
        %3895 = vmatpush1.msra.mxu0 0.0
        %3896 = vmatprep.subr.mxu0 0.0
        %3897 = vmatpush1.msra.mxu0 0.0
        %3898 = vmatprep.subr.mxu0 0.0
        %3899 = vmatpush1.msra.mxu0 0.0
        %3900 = vmatprep.mubr.f32.mxu0 0.0
        %3901 = vmatmul.mubr.f32.gmra.mrb[0].mxu0 %v3834
        %v3902 = vpop.f32.mrb[0].mxu0
        %v3903 = vadd.f32 0.0, %v3902
        %v3904 = vpop.f32.mrb[0].mxu0
        %3905 = vdwg.mxu0
        %v3906 = vpack.c.bf16 %v3830, %v3830
        %v3907 = vpack.c.bf16 %v3903, %v3903
        %v3908 = vld [vmem:[#allocation11] sm:$0xff]
        %v3909 = vld [vmem:[#allocation11 + $0x8] sm:$0xff]
        %v3910 = vld [vmem:[#allocation11 + $0x10] sm:$0xff]
        %v3911 = vld [vmem:[#allocation11 + $0x18] sm:$0xff]
        %v3912 = vld [vmem:[#allocation11 + $0x20] sm:$0xff]
        %v3913 = vld [vmem:[#allocation11 + $0x28] sm:$0xff]
        %v3914 = vld [vmem:[#allocation11 + $0x30] sm:$0xff]
        %v3915 = vld [vmem:[#allocation11 + $0x38] sm:$0xff]
        %v3916 = vld [vmem:[#allocation11 + $0x40] sm:$0xff]
        %v3917 = vld [vmem:[#allocation11 + $0x48] sm:$0xff]
        %v3918 = vld [vmem:[#allocation11 + $0x50] sm:$0xff]
        %v3919 = vld [vmem:[#allocation11 + $0x58] sm:$0xff]
        %v3920 = vld [vmem:[#allocation11 + $0x60] sm:$0xff]
        %v3921 = vld [vmem:[#allocation11 + $0x68] sm:$0xff]
        %v3922 = vld [vmem:[#allocation11 + $0x70] sm:$0xff]
        %v3923 = vld [vmem:[#allocation11 + $0x78] sm:$0xff]
        %v3924 = vld [vmem:[#allocation11 + $0x80] sm:$0xff]
        %v3925 = vld [vmem:[#allocation11 + $0x88] sm:$0xff]
        %v3926 = vld [vmem:[#allocation11 + $0x90] sm:$0xff]
        %v3927 = vld [vmem:[#allocation11 + $0x98] sm:$0xff]
        %v3928 = vld [vmem:[#allocation11 + $0xa0] sm:$0xff]
        %v3929 = vld [vmem:[#allocation11 + $0xa8] sm:$0xff]
        %v3930 = vld [vmem:[#allocation11 + $0xb0] sm:$0xff]
        %v3931 = vld [vmem:[#allocation11 + $0xb8] sm:$0xff]
        %v3932 = vld [vmem:[#allocation11 + $0xc0] sm:$0xff]
        %v3933 = vld [vmem:[#allocation11 + $0xc8] sm:$0xff]
        %v3934 = vld [vmem:[#allocation11 + $0xd0] sm:$0xff]
        %v3935 = vld [vmem:[#allocation11 + $0xd8] sm:$0xff]
        %v3936 = vld [vmem:[#allocation11 + $0xe0] sm:$0xff]
        %v3937 = vld [vmem:[#allocation11 + $0xe8] sm:$0xff]
        %v3938 = vld [vmem:[#allocation11 + $0xf0] sm:$0xff]
        %v3939 = vld [vmem:[#allocation11 + $0xf8] sm:$0xff]
        %v3940 = vrot.slane %v3586, 1
        %3942 = vmatprep.subr.mxu0 0.0
        %3943 = vmatpush1.xpose.msra.mxu0 %v2504
        %3944 = vmatprep.subr.mxu0 0.0
        %3945 = vmatpush1.xpose.msra.mxu0 0.0
        %3946 = vmatprep.subr.mxu0 0.0
        %3947 = vmatpush1.xpose.msra.mxu0 0.0
        %3948 = vmatprep.subr.mxu0 0.0
        %3949 = vmatpush1.xpose.msra.mxu0 0.0
        %3950 = vmatprep.subr.mxu0 0.0
        %3951 = vmatpush1.xpose.msra.mxu0 0.0
        %3952 = vmatprep.subr.mxu0 0.0
        %3953 = vmatpush1.xpose.msra.mxu0 0.0
        %3954 = vmatprep.subr.mxu0 0.0
        %3955 = vmatpush1.xpose.msra.mxu0 0.0
        %3956 = vmatprep.subr.mxu0 0.0
        %3957 = vmatpush1.xpose.msra.mxu0 0.0
        %3958 = vmatprep.subr.mxu0 0.0
        %3959 = vmatpush1.xpose.msra.mxu0 0.0
        %3960 = vmatprep.subr.mxu0 0.0
        %3961 = vmatpush1.xpose.msra.mxu0 0.0
        %3962 = vmatprep.subr.mxu0 0.0
        %3963 = vmatpush1.xpose.msra.mxu0 0.0
        %3964 = vmatprep.subr.mxu0 0.0
        %3965 = vmatpush1.xpose.msra.mxu0 0.0
        %3966 = vmatprep.subr.mxu0 0.0
        %3967 = vmatpush1.xpose.msra.mxu0 0.0
        %3968 = vmatprep.subr.mxu0 0.0
        %3969 = vmatpush1.xpose.msra.mxu0 0.0
        %3970 = vmatprep.subr.mxu0 0.0
        %3971 = vmatpush1.xpose.msra.mxu0 0.0
        %3972 = vmatprep.subr.mxu0 0.0
        %3973 = vmatpush1.xpose.msra.mxu0 0.0
        %3974 = vmatprep.subr.mxu0 0.0
        %3975 = vmatpush1.xpose.msra.mxu0 0.0
        %3976 = vmatprep.subr.mxu0 0.0
        %3977 = vmatpush1.xpose.msra.mxu0 0.0
        %3978 = vmatprep.subr.mxu0 0.0
        %3979 = vmatpush1.xpose.msra.mxu0 0.0
        %3980 = vmatprep.subr.mxu0 0.0
        %3981 = vmatpush1.xpose.msra.mxu0 0.0
        %3982 = vmatprep.subr.mxu0 0.0
        %3983 = vmatpush1.xpose.msra.mxu0 0.0
        %3984 = vmatprep.subr.mxu0 0.0
        %3985 = vmatpush1.xpose.msra.mxu0 0.0
        %3986 = vmatprep.subr.mxu0 0.0
        %3987 = vmatpush1.xpose.msra.mxu0 0.0
        %3988 = vmatprep.subr.mxu0 0.0
        %3989 = vmatpush1.xpose.msra.mxu0 0.0
        %3990 = vmatprep.subr.mxu0 0.0
        %3991 = vmatpush1.xpose.msra.mxu0 0.0
        %3992 = vmatprep.subr.mxu0 0.0
        %3993 = vmatpush1.xpose.msra.mxu0 0.0
        %3994 = vmatprep.subr.mxu0 0.0
        %3995 = vmatpush1.xpose.msra.mxu0 0.0
        %3996 = vmatprep.subr.mxu0 0.0
        %3997 = vmatpush1.xpose.msra.mxu0 0.0
        %3998 = vmatprep.subr.mxu0 0.0
        %3999 = vmatpush1.xpose.msra.mxu0 0.0
        %4000 = vmatprep.subr.mxu0 0.0
        %4001 = vmatpush1.xpose.msra.mxu0 0.0
        %4002 = vmatprep.subr.mxu0 0.0
        %4003 = vmatpush1.xpose.msra.mxu0 0.0
        %4004 = vmatprep.subr.mxu0 0.0
        %4005 = vmatpush1.xpose.msra.mxu0 0.0
        %4006 = vmatprep.mubr.f32.mxu0 0.0
        %4007 = vmatmul.mubr.f32.gmra.mrb[0].mxu0 %v3940
        %v4008 = vpop.f32.mrb[0].mxu0
        %v4009 = vadd.f32 0.0, %v4008
        %v4010 = vpop.f32.mrb[0].mxu0
        %4011 = vdwg.mxu0
        %v4012 = vrot.slane %v3593, 1
        %4014 = vmatprep.subr.mxu0 0.0
        %4015 = vmatpush1.xpose.msra.mxu0 %v2508
        %4016 = vmatprep.subr.mxu0 0.0
        %4017 = vmatpush1.xpose.msra.mxu0 0.0
        %4018 = vmatprep.subr.mxu0 0.0
        %4019 = vmatpush1.xpose.msra.mxu0 0.0
        %4020 = vmatprep.subr.mxu0 0.0
        %4021 = vmatpush1.xpose.msra.mxu0 0.0
        %4022 = vmatprep.subr.mxu0 0.0
        %4023 = vmatpush1.xpose.msra.mxu0 0.0
        %4024 = vmatprep.subr.mxu0 0.0
        %4025 = vmatpush1.xpose.msra.mxu0 0.0
        %4026 = vmatprep.subr.mxu0 0.0
        %4027 = vmatpush1.xpose.msra.mxu0 0.0
        %4028 = vmatprep.subr.mxu0 0.0
        %4029 = vmatpush1.xpose.msra.mxu0 0.0
        %4030 = vmatprep.subr.mxu0 0.0
        %4031 = vmatpush1.xpose.msra.mxu0 0.0
        %4032 = vmatprep.subr.mxu0 0.0
        %4033 = vmatpush1.xpose.msra.mxu0 0.0
        %4034 = vmatprep.subr.mxu0 0.0
        %4035 = vmatpush1.xpose.msra.mxu0 0.0
        %4036 = vmatprep.subr.mxu0 0.0
        %4037 = vmatpush1.xpose.msra.mxu0 0.0
        %4038 = vmatprep.subr.mxu0 0.0
        %4039 = vmatpush1.xpose.msra.mxu0 0.0
        %4040 = vmatprep.subr.mxu0 0.0
        %4041 = vmatpush1.xpose.msra.mxu0 0.0
        %4042 = vmatprep.subr.mxu0 0.0
        %4043 = vmatpush1.xpose.msra.mxu0 0.0
        %4044 = vmatprep.subr.mxu0 0.0
        %4045 = vmatpush1.xpose.msra.mxu0 0.0
        %4046 = vmatprep.subr.mxu0 0.0
        %4047 = vmatpush1.xpose.msra.mxu0 0.0
        %4048 = vmatprep.subr.mxu0 0.0
        %4049 = vmatpush1.xpose.msra.mxu0 0.0
        %4050 = vmatprep.subr.mxu0 0.0
        %4051 = vmatpush1.xpose.msra.mxu0 0.0
        %4052 = vmatprep.subr.mxu0 0.0
        %4053 = vmatpush1.xpose.msra.mxu0 0.0
        %4054 = vmatprep.subr.mxu0 0.0
        %4055 = vmatpush1.xpose.msra.mxu0 0.0
        %4056 = vmatprep.subr.mxu0 0.0
        %4057 = vmatpush1.xpose.msra.mxu0 0.0
        %4058 = vmatprep.subr.mxu0 0.0
        %4059 = vmatpush1.xpose.msra.mxu0 0.0
        %4060 = vmatprep.subr.mxu0 0.0
        %4061 = vmatpush1.xpose.msra.mxu0 0.0
        %4062 = vmatprep.subr.mxu0 0.0
        %4063 = vmatpush1.xpose.msra.mxu0 0.0
        %4064 = vmatprep.subr.mxu0 0.0
        %4065 = vmatpush1.xpose.msra.mxu0 0.0
        %4066 = vmatprep.subr.mxu0 0.0
        %4067 = vmatpush1.xpose.msra.mxu0 0.0
        %4068 = vmatprep.subr.mxu0 0.0
        %4069 = vmatpush1.xpose.msra.mxu0 0.0
        %4070 = vmatprep.subr.mxu0 0.0
        %4071 = vmatpush1.xpose.msra.mxu0 0.0
        %4072 = vmatprep.subr.mxu0 0.0
        %4073 = vmatpush1.xpose.msra.mxu0 0.0
        %4074 = vmatprep.subr.mxu0 0.0
        %4075 = vmatpush1.xpose.msra.mxu0 0.0
        %4076 = vmatprep.subr.mxu0 0.0
        %4077 = vmatpush1.xpose.msra.mxu0 0.0
        %4078 = vmatprep.mubr.f32.mxu0 0.0
        %4079 = vmatmul.mubr.f32.gmra.mrb[0].mxu0 %v4012
        %v4080 = vpop.f32.mrb[0].mxu0
        %v4081 = vadd.f32 0.0, %v4080
        %v4082 = vpop.f32.mrb[0].mxu0
        %4083 = vdwg.mxu0
        %v4084 = vsel %vm3736, %v4009, -inf
        %4085 = vmax.xlane.f32.xlu0 %v4084
        %v4086 = vpop.xlane.xlu0 %4085
        %v4087 = vsel %vm3736, %v4081, -inf
        %4088 = vmax.xlane.f32.xlu0 %v4087
        %v4089 = vpop.xlane.xlu0 %4088
        %v4090 = vsub.f32 %v4009, %v4086
        %v4091 = vsub.f32 %v4081, %v4089
        %v4092 = vmul.f32 %v4090, 1.442695
        %v4093 = vpow.pop %v4092
        %v4094 = vmul.f32 %v4091, 1.442695
        %v4095 = vpow.pop %v4094
        %v4096 = vsel %vm3736, %v4093, 0.0
        %4097 = vadd.xlane.f32.xlu0 %v4096
        %v4098 = vpop.xlane.xlu0 %4097
        %v4099 = vsel %vm3736, %v4095, 0.0
        %4100 = vadd.xlane.f32.xlu0 %v4099
        %v4101 = vpop.xlane.xlu0 %4100
        %v4102 = vrcp.pop %v4098
        %v4103 = vrcp.pop %v4101
        %v4104 = vmul.f32 %v4093, %v4102
        %v4105 = vmul.f32 %v4095, %v4103
        %v4107 = vsel %vm3759, %v4104, 0
        %4109 = vmatprep.subr.mxu0 0.0
        %4110 = vmatpush1.msra.mxu0 %v3466
        %4111 = vmatprep.subr.mxu0 0.0
        %4112 = vmatpush1.msra.mxu0 0.0
        %4113 = vmatprep.subr.mxu0 0.0
        %4114 = vmatpush1.msra.mxu0 0.0
        %4115 = vmatprep.subr.mxu0 0.0
        %4116 = vmatpush1.msra.mxu0 0.0
        %4117 = vmatprep.subr.mxu0 0.0
        %4118 = vmatpush1.msra.mxu0 0.0
        %4119 = vmatprep.subr.mxu0 0.0
        %4120 = vmatpush1.msra.mxu0 0.0
        %4121 = vmatprep.subr.mxu0 0.0
        %4122 = vmatpush1.msra.mxu0 0.0
        %4123 = vmatprep.subr.mxu0 0.0
        %4124 = vmatpush1.msra.mxu0 0.0
        %4125 = vmatprep.subr.mxu0 0.0
        %4126 = vmatpush1.msra.mxu0 0.0
        %4127 = vmatprep.subr.mxu0 0.0
        %4128 = vmatpush1.msra.mxu0 0.0
        %4129 = vmatprep.subr.mxu0 0.0
        %4130 = vmatpush1.msra.mxu0 0.0
        %4131 = vmatprep.subr.mxu0 0.0
        %4132 = vmatpush1.msra.mxu0 0.0
        %4133 = vmatprep.subr.mxu0 0.0
        %4134 = vmatpush1.msra.mxu0 0.0
        %4135 = vmatprep.subr.mxu0 0.0
        %4136 = vmatpush1.msra.mxu0 0.0
        %4137 = vmatprep.subr.mxu0 0.0
        %4138 = vmatpush1.msra.mxu0 0.0
        %4139 = vmatprep.subr.mxu0 0.0
        %4140 = vmatpush1.msra.mxu0 0.0
        %4141 = vmatprep.subr.mxu0 0.0
        %4142 = vmatpush1.msra.mxu0 0.0
        %4143 = vmatprep.subr.mxu0 0.0
        %4144 = vmatpush1.msra.mxu0 0.0
        %4145 = vmatprep.subr.mxu0 0.0
        %4146 = vmatpush1.msra.mxu0 0.0
        %4147 = vmatprep.subr.mxu0 0.0
        %4148 = vmatpush1.msra.mxu0 0.0
        %4149 = vmatprep.subr.mxu0 0.0
        %4150 = vmatpush1.msra.mxu0 0.0
        %4151 = vmatprep.subr.mxu0 0.0
        %4152 = vmatpush1.msra.mxu0 0.0
        %4153 = vmatprep.subr.mxu0 0.0
        %4154 = vmatpush1.msra.mxu0 0.0
        %4155 = vmatprep.subr.mxu0 0.0
        %4156 = vmatpush1.msra.mxu0 0.0
        %4157 = vmatprep.subr.mxu0 0.0
        %4158 = vmatpush1.msra.mxu0 0.0
        %4159 = vmatprep.subr.mxu0 0.0
        %4160 = vmatpush1.msra.mxu0 0.0
        %4161 = vmatprep.subr.mxu0 0.0
        %4162 = vmatpush1.msra.mxu0 0.0
        %4163 = vmatprep.subr.mxu0 0.0
        %4164 = vmatpush1.msra.mxu0 0.0
        %4165 = vmatprep.subr.mxu0 0.0
        %4166 = vmatpush1.msra.mxu0 0.0
        %4167 = vmatprep.subr.mxu0 0.0
        %4168 = vmatpush1.msra.mxu0 0.0
        %4169 = vmatprep.subr.mxu0 0.0
        %4170 = vmatpush1.msra.mxu0 0.0
        %4171 = vmatprep.subr.mxu0 0.0
        %4172 = vmatpush1.msra.mxu0 0.0
        %4173 = vmatprep.mubr.f32.mxu0 0.0
        %4174 = vmatmul.mubr.f32.gmra.mrb[0].mxu0 %v4107
        %v4175 = vpop.f32.mrb[0].mxu0
        %v4176 = vadd.f32 0.0, %v4175
        %v4177 = vpop.f32.mrb[0].mxu0
        %4178 = vdwg.mxu0
        %v4180 = vsel %vm3759, %v4105, 0
        %4182 = vmatprep.subr.mxu0 0.0
        %4183 = vmatpush1.msra.mxu0 %v3470
        %4184 = vmatprep.subr.mxu0 0.0
        %4185 = vmatpush1.msra.mxu0 0.0
        %4186 = vmatprep.subr.mxu0 0.0
        %4187 = vmatpush1.msra.mxu0 0.0
        %4188 = vmatprep.subr.mxu0 0.0
        %4189 = vmatpush1.msra.mxu0 0.0
        %4190 = vmatprep.subr.mxu0 0.0
        %4191 = vmatpush1.msra.mxu0 0.0
        %4192 = vmatprep.subr.mxu0 0.0
        %4193 = vmatpush1.msra.mxu0 0.0
        %4194 = vmatprep.subr.mxu0 0.0
        %4195 = vmatpush1.msra.mxu0 0.0
        %4196 = vmatprep.subr.mxu0 0.0
        %4197 = vmatpush1.msra.mxu0 0.0
        %4198 = vmatprep.subr.mxu0 0.0
        %4199 = vmatpush1.msra.mxu0 0.0
        %4200 = vmatprep.subr.mxu0 0.0
        %4201 = vmatpush1.msra.mxu0 0.0
        %4202 = vmatprep.subr.mxu0 0.0
        %4203 = vmatpush1.msra.mxu0 0.0
        %4204 = vmatprep.subr.mxu0 0.0
        %4205 = vmatpush1.msra.mxu0 0.0
        %4206 = vmatprep.subr.mxu0 0.0
        %4207 = vmatpush1.msra.mxu0 0.0
        %4208 = vmatprep.subr.mxu0 0.0
        %4209 = vmatpush1.msra.mxu0 0.0
        %4210 = vmatprep.subr.mxu0 0.0
        %4211 = vmatpush1.msra.mxu0 0.0
        %4212 = vmatprep.subr.mxu0 0.0
        %4213 = vmatpush1.msra.mxu0 0.0
        %4214 = vmatprep.subr.mxu0 0.0
        %4215 = vmatpush1.msra.mxu0 0.0
        %4216 = vmatprep.subr.mxu0 0.0
        %4217 = vmatpush1.msra.mxu0 0.0
        %4218 = vmatprep.subr.mxu0 0.0
        %4219 = vmatpush1.msra.mxu0 0.0
        %4220 = vmatprep.subr.mxu0 0.0
        %4221 = vmatpush1.msra.mxu0 0.0
        %4222 = vmatprep.subr.mxu0 0.0
        %4223 = vmatpush1.msra.mxu0 0.0
        %4224 = vmatprep.subr.mxu0 0.0
        %4225 = vmatpush1.msra.mxu0 0.0
        %4226 = vmatprep.subr.mxu0 0.0
        %4227 = vmatpush1.msra.mxu0 0.0
        %4228 = vmatprep.subr.mxu0 0.0
        %4229 = vmatpush1.msra.mxu0 0.0
        %4230 = vmatprep.subr.mxu0 0.0
        %4231 = vmatpush1.msra.mxu0 0.0
        %4232 = vmatprep.subr.mxu0 0.0
        %4233 = vmatpush1.msra.mxu0 0.0
        %4234 = vmatprep.subr.mxu0 0.0
        %4235 = vmatpush1.msra.mxu0 0.0
        %4236 = vmatprep.subr.mxu0 0.0
        %4237 = vmatpush1.msra.mxu0 0.0
        %4238 = vmatprep.subr.mxu0 0.0
        %4239 = vmatpush1.msra.mxu0 0.0
        %4240 = vmatprep.subr.mxu0 0.0
        %4241 = vmatpush1.msra.mxu0 0.0
        %4242 = vmatprep.subr.mxu0 0.0
        %4243 = vmatpush1.msra.mxu0 0.0
        %4244 = vmatprep.subr.mxu0 0.0
        %4245 = vmatpush1.msra.mxu0 0.0
        %4246 = vmatprep.mubr.f32.mxu0 0.0
        %4247 = vmatmul.mubr.f32.gmra.mrb[0].mxu0 %v4180
        %v4248 = vpop.f32.mrb[0].mxu0
        %v4249 = vadd.f32 0.0, %v4248
        %v4250 = vpop.f32.mrb[0].mxu0
        %4251 = vdwg.mxu0
        %v4252 = vpack.c.bf16 %v4176, %v4176
        %v4253 = vpack.c.bf16 %v4249, %v4249
        %v4254 = vld [vmem:[#allocation11 + $0x100] sm:$0xff]
        %v4255 = vld [vmem:[#allocation11 + $0x108] sm:$0xff]
        %v4256 = vld [vmem:[#allocation11 + $0x110] sm:$0xff]
        %v4257 = vld [vmem:[#allocation11 + $0x118] sm:$0xff]
        %v4258 = vld [vmem:[#allocation11 + $0x120] sm:$0xff]
        %v4259 = vld [vmem:[#allocation11 + $0x128] sm:$0xff]
        %v4260 = vld [vmem:[#allocation11 + $0x130] sm:$0xff]
        %v4261 = vld [vmem:[#allocation11 + $0x138] sm:$0xff]
        %v4262 = vld [vmem:[#allocation11 + $0x140] sm:$0xff]
        %v4263 = vld [vmem:[#allocation11 + $0x148] sm:$0xff]
        %v4264 = vld [vmem:[#allocation11 + $0x150] sm:$0xff]
        %v4265 = vld [vmem:[#allocation11 + $0x158] sm:$0xff]
        %v4266 = vld [vmem:[#allocation11 + $0x160] sm:$0xff]
        %v4267 = vld [vmem:[#allocation11 + $0x168] sm:$0xff]
        %v4268 = vld [vmem:[#allocation11 + $0x170] sm:$0xff]
        %v4269 = vld [vmem:[#allocation11 + $0x178] sm:$0xff]
        %v4270 = vld [vmem:[#allocation11 + $0x180] sm:$0xff]
        %v4271 = vld [vmem:[#allocation11 + $0x188] sm:$0xff]
        %v4272 = vld [vmem:[#allocation11 + $0x190] sm:$0xff]
        %v4273 = vld [vmem:[#allocation11 + $0x198] sm:$0xff]
        %v4274 = vld [vmem:[#allocation11 + $0x1a0] sm:$0xff]
        %v4275 = vld [vmem:[#allocation11 + $0x1a8] sm:$0xff]
        %v4276 = vld [vmem:[#allocation11 + $0x1b0] sm:$0xff]
        %v4277 = vld [vmem:[#allocation11 + $0x1b8] sm:$0xff]
        %v4278 = vld [vmem:[#allocation11 + $0x1c0] sm:$0xff]
        %v4279 = vld [vmem:[#allocation11 + $0x1c8] sm:$0xff]
        %v4280 = vld [vmem:[#allocation11 + $0x1d0] sm:$0xff]
        %v4281 = vld [vmem:[#allocation11 + $0x1d8] sm:$0xff]
        %v4282 = vld [vmem:[#allocation11 + $0x1e0] sm:$0xff]
        %v4283 = vld [vmem:[#allocation11 + $0x1e8] sm:$0xff]
        %v4284 = vld [vmem:[#allocation11 + $0x1f0] sm:$0xff]
        %v4285 = vld [vmem:[#allocation11 + $0x1f8] sm:$0xff]
        %v4288 = vunpack.c.l.b16 %v4252
        %v4289 = vunpack.c.l.b16 %v4253
        %v4290 = vrot.slane %v4289, 7
        %vm4291 = vcmask 1041409
        %v4292 = vsel %vm4291, %v4290, %v4288
        %v4293 = vpack.c.b16 %v4292, %v4292
        %v4327 = vunpack.c.l.b16 %v4254
        %v4328 = vunpack.c.h.b16 %v4254
        %v4329 = vunpack.c.l.b16 %v4255
        %v4330 = vunpack.c.h.b16 %v4255
        %v4331 = vunpack.c.l.b16 %v4256
        %v4332 = vunpack.c.h.b16 %v4256
        %v4333 = vunpack.c.l.b16 %v4257
        %v4334 = vunpack.c.h.b16 %v4257
        %v4335 = vunpack.c.l.b16 %v4258
        %v4336 = vunpack.c.h.b16 %v4258
        %v4337 = vunpack.c.l.b16 %v4259
        %v4338 = vunpack.c.h.b16 %v4259
        %v4339 = vunpack.c.l.b16 %v4260
        %v4340 = vunpack.c.h.b16 %v4260
        %v4341 = vunpack.c.l.b16 %v4261
        %v4342 = vunpack.c.h.b16 %v4261
        %v4343 = vunpack.c.l.b16 %v4262
        %v4344 = vunpack.c.h.b16 %v4262
        %v4345 = vunpack.c.l.b16 %v4263
        %v4346 = vunpack.c.h.b16 %v4263
        %v4347 = vunpack.c.l.b16 %v4264
        %v4348 = vunpack.c.h.b16 %v4264
        %v4349 = vunpack.c.l.b16 %v4265
        %v4350 = vunpack.c.h.b16 %v4265
        %v4351 = vunpack.c.l.b16 %v4266
        %v4352 = vunpack.c.h.b16 %v4266
        %v4353 = vunpack.c.l.b16 %v4267
        %v4354 = vunpack.c.h.b16 %v4267
        %v4355 = vunpack.c.l.b16 %v4268
        %v4356 = vunpack.c.h.b16 %v4268
        %v4357 = vunpack.c.l.b16 %v4269
        %v4358 = vunpack.c.h.b16 %v4269
        %v4359 = vunpack.c.l.b16 %v4270
        %v4360 = vunpack.c.h.b16 %v4270
        %v4361 = vunpack.c.l.b16 %v4271
        %v4362 = vunpack.c.h.b16 %v4271
        %v4363 = vunpack.c.l.b16 %v4272
        %v4364 = vunpack.c.h.b16 %v4272
        %v4365 = vunpack.c.l.b16 %v4273
        %v4366 = vunpack.c.h.b16 %v4273
        %v4367 = vunpack.c.l.b16 %v4274
        %v4368 = vunpack.c.h.b16 %v4274
        %v4369 = vunpack.c.l.b16 %v4275
        %v4370 = vunpack.c.h.b16 %v4275
        %v4371 = vunpack.c.l.b16 %v4276
        %v4372 = vunpack.c.h.b16 %v4276
        %v4373 = vunpack.c.l.b16 %v4277
        %v4374 = vunpack.c.h.b16 %v4277
        %v4375 = vunpack.c.l.b16 %v4278
        %v4376 = vunpack.c.h.b16 %v4278
        %v4377 = vunpack.c.l.b16 %v4279
        %v4378 = vunpack.c.h.b16 %v4279
        %v4379 = vunpack.c.l.b16 %v4280
        %v4380 = vunpack.c.h.b16 %v4280
        %v4381 = vunpack.c.l.b16 %v4281
        %v4382 = vunpack.c.h.b16 %v4281
        %v4383 = vunpack.c.l.b16 %v4282
        %v4384 = vunpack.c.h.b16 %v4282
        %v4385 = vunpack.c.l.b16 %v4283
        %v4386 = vunpack.c.h.b16 %v4283
        %v4387 = vunpack.c.l.b16 %v4284
        %v4388 = vunpack.c.h.b16 %v4284
        %v4389 = vunpack.c.l.b16 %v4285
        %v4390 = vunpack.c.h.b16 %v4285
        %v4391 = vpack.c.b16 %v4331, %v4327
        %v4392 = vpack.c.b16 %v4332, %v4328
        %v4393 = vpack.c.b16 %v4333, %v4329
        %v4394 = vpack.c.b16 %v4334, %v4330
        %v4395 = vpack.c.b16 %v4339, %v4335
        %v4396 = vpack.c.b16 %v4340, %v4336
        %v4397 = vpack.c.b16 %v4341, %v4337
        %v4398 = vpack.c.b16 %v4342, %v4338
        %v4399 = vpack.c.b16 %v4347, %v4343
        %v4400 = vpack.c.b16 %v4348, %v4344
        %v4401 = vpack.c.b16 %v4349, %v4345
        %v4402 = vpack.c.b16 %v4350, %v4346
        %v4403 = vpack.c.b16 %v4355, %v4351
        %v4404 = vpack.c.b16 %v4356, %v4352
        %v4405 = vpack.c.b16 %v4357, %v4353
        %v4406 = vpack.c.b16 %v4358, %v4354
        %v4407 = vpack.c.b16 %v4363, %v4359
        %v4408 = vpack.c.b16 %v4364, %v4360
        %v4409 = vpack.c.b16 %v4365, %v4361
        %v4410 = vpack.c.b16 %v4366, %v4362
        %v4411 = vpack.c.b16 %v4371, %v4367
        %v4412 = vpack.c.b16 %v4372, %v4368
        %v4413 = vpack.c.b16 %v4373, %v4369
        %v4414 = vpack.c.b16 %v4374, %v4370
        %v4415 = vpack.c.b16 %v4379, %v4375
        %v4416 = vpack.c.b16 %v4380, %v4376
        %v4417 = vpack.c.b16 %v4381, %v4377
        %v4418 = vpack.c.b16 %v4382, %v4378
        %v4419 = vpack.c.b16 %v4387, %v4383
        %v4420 = vpack.c.b16 %v4388, %v4384
        %v4421 = vpack.c.b16 %v4389, %v4385
        %v4422 = vpack.c.b16 %v4390, %v4386
        %4455 = vmatprep.subr.bf16.mxu0 %v4392
        %4456 = vmatpush1.bf16.msra.mxu0 %v4391
        %4457 = vmatprep.subr.bf16.mxu0 %v4396
        %4458 = vmatpush1.bf16.msra.mxu0 %v4395
        %4459 = vmatprep.subr.bf16.mxu0 %v4400
        %4460 = vmatpush1.bf16.msra.mxu0 %v4399
        %4461 = vmatprep.subr.bf16.mxu0 %v4404
        %4462 = vmatpush1.bf16.msra.mxu0 %v4403
        %4463 = vmatprep.subr.bf16.mxu0 %v4408
        %4464 = vmatpush1.bf16.msra.mxu0 %v4407
        %4465 = vmatprep.subr.bf16.mxu0 %v4412
        %4466 = vmatpush1.bf16.msra.mxu0 %v4411
        %4467 = vmatprep.subr.bf16.mxu0 %v4416
        %4468 = vmatpush1.bf16.msra.mxu0 %v4415
        %4469 = vmatprep.subr.bf16.mxu0 %v4420
        %4470 = vmatpush1.bf16.msra.mxu0 %v4419
        %4471 = vmatprep.subr.bf16.mxu0 0
        %4472 = vmatpush1.bf16.msra.mxu0 0
        %4473 = vmatprep.subr.bf16.mxu0 0
        %4474 = vmatpush1.bf16.msra.mxu0 0
        %4475 = vmatprep.subr.bf16.mxu0 0
        %4476 = vmatpush1.bf16.msra.mxu0 0
        %4477 = vmatprep.subr.bf16.mxu0 0
        %4478 = vmatpush1.bf16.msra.mxu0 0
        %4479 = vmatprep.subr.bf16.mxu0 0
        %4480 = vmatpush1.bf16.msra.mxu0 0
        %4481 = vmatprep.subr.bf16.mxu0 0
        %4482 = vmatpush1.bf16.msra.mxu0 0
        %4483 = vmatprep.subr.bf16.mxu0 0
        %4484 = vmatpush1.bf16.msra.mxu0 0
        %4485 = vmatprep.subr.bf16.mxu0 0
        %4486 = vmatpush1.bf16.msra.mxu0 0
        %4487 = vmatprep.mubr.bf16.mxu0 0
        %4488 = vmatmul.mubr.bf16.gmra.mrb[0].mxu0 %v4293
        %v4489 = vpop.f32.mrb[0].mxu0
        %v4490 = vadd.f32 0.0, %v4489
        %v4491 = vpop.f32.mrb[0].mxu0
        %v4492 = vadd.f32 0.0, %v4491
        %v4493 = vpop.f32.mrb[0].mxu0
        %v4494 = vpop.f32.mrb[0].mxu0
        %4495 = vdwg.mxu0
        %4496 = vmatprep.subr.bf16.mxu0 %v4394
        %4497 = vmatpush1.bf16.msra.mxu0 %v4393
        %4498 = vmatprep.subr.bf16.mxu0 %v4398
        %4499 = vmatpush1.bf16.msra.mxu0 %v4397
        %4500 = vmatprep.subr.bf16.mxu0 %v4402
        %4501 = vmatpush1.bf16.msra.mxu0 %v4401
        %4502 = vmatprep.subr.bf16.mxu0 %v4406
        %4503 = vmatpush1.bf16.msra.mxu0 %v4405
        %4504 = vmatprep.subr.bf16.mxu0 %v4410
        %4505 = vmatpush1.bf16.msra.mxu0 %v4409
        %4506 = vmatprep.subr.bf16.mxu0 %v4414
        %4507 = vmatpush1.bf16.msra.mxu0 %v4413
        %4508 = vmatprep.subr.bf16.mxu0 %v4418
        %4509 = vmatpush1.bf16.msra.mxu0 %v4417
        %4510 = vmatprep.subr.bf16.mxu0 %v4422
        %4511 = vmatpush1.bf16.msra.mxu0 %v4421
        %4512 = vmatprep.subr.bf16.mxu0 0
        %4513 = vmatpush1.bf16.msra.mxu0 0
        %4514 = vmatprep.subr.bf16.mxu0 0
        %4515 = vmatpush1.bf16.msra.mxu0 0
        %4516 = vmatprep.subr.bf16.mxu0 0
        %4517 = vmatpush1.bf16.msra.mxu0 0
        %4518 = vmatprep.subr.bf16.mxu0 0
        %4519 = vmatpush1.bf16.msra.mxu0 0
        %4520 = vmatprep.subr.bf16.mxu0 0
        %4521 = vmatpush1.bf16.msra.mxu0 0
        %4522 = vmatprep.subr.bf16.mxu0 0
        %4523 = vmatpush1.bf16.msra.mxu0 0
        %4524 = vmatprep.subr.bf16.mxu0 0
        %4525 = vmatpush1.bf16.msra.mxu0 0
        %4526 = vmatprep.subr.bf16.mxu0 0
        %4527 = vmatpush1.bf16.msra.mxu0 0
        %4528 = vmatprep.mubr.bf16.mxu0 0
        %4529 = vmatmul.mubr.bf16.gmra.mrb[0].mxu0 %v4293
        %v4530 = vpop.f32.mrb[0].mxu0
        %v4531 = vadd.f32 0.0, %v4530
        %v4532 = vpop.f32.mrb[0].mxu0
        %v4533 = vadd.f32 0.0, %v4532
        %v4534 = vpop.f32.mrb[0].mxu0
        %v4535 = vpop.f32.mrb[0].mxu0
        %4536 = vdwg.mxu0
        %v4539 = vunpack.c.l.b16 %v3906
        %v4540 = vunpack.c.l.b16 %v3907
        %v4541 = vrot.slane %v4540, 7
        %v4542 = vsel %vm4291, %v4541, %v4539
        %v4543 = vpack.c.b16 %v4542, %v4542
        %v4577 = vunpack.c.l.b16 %v3908
        %v4578 = vunpack.c.h.b16 %v3908
        %v4579 = vunpack.c.l.b16 %v3909
        %v4580 = vunpack.c.h.b16 %v3909
        %v4581 = vunpack.c.l.b16 %v3910
        %v4582 = vunpack.c.h.b16 %v3910
        %v4583 = vunpack.c.l.b16 %v3911
        %v4584 = vunpack.c.h.b16 %v3911
        %v4585 = vunpack.c.l.b16 %v3912
        %v4586 = vunpack.c.h.b16 %v3912
        %v4587 = vunpack.c.l.b16 %v3913
        %v4588 = vunpack.c.h.b16 %v3913
        %v4589 = vunpack.c.l.b16 %v3914
        %v4590 = vunpack.c.h.b16 %v3914
        %v4591 = vunpack.c.l.b16 %v3915
        %v4592 = vunpack.c.h.b16 %v3915
        %v4593 = vunpack.c.l.b16 %v3916
        %v4594 = vunpack.c.h.b16 %v3916
        %v4595 = vunpack.c.l.b16 %v3917
        %v4596 = vunpack.c.h.b16 %v3917
        %v4597 = vunpack.c.l.b16 %v3918
        %v4598 = vunpack.c.h.b16 %v3918
        %v4599 = vunpack.c.l.b16 %v3919
        %v4600 = vunpack.c.h.b16 %v3919
        %v4601 = vunpack.c.l.b16 %v3920
        %v4602 = vunpack.c.h.b16 %v3920
        %v4603 = vunpack.c.l.b16 %v3921
        %v4604 = vunpack.c.h.b16 %v3921
        %v4605 = vunpack.c.l.b16 %v3922
        %v4606 = vunpack.c.h.b16 %v3922
        %v4607 = vunpack.c.l.b16 %v3923
        %v4608 = vunpack.c.h.b16 %v3923
        %v4609 = vunpack.c.l.b16 %v3924
        %v4610 = vunpack.c.h.b16 %v3924
        %v4611 = vunpack.c.l.b16 %v3925
        %v4612 = vunpack.c.h.b16 %v3925
        %v4613 = vunpack.c.l.b16 %v3926
        %v4614 = vunpack.c.h.b16 %v3926
        %v4615 = vunpack.c.l.b16 %v3927
        %v4616 = vunpack.c.h.b16 %v3927
        %v4617 = vunpack.c.l.b16 %v3928
        %v4618 = vunpack.c.h.b16 %v3928
        %v4619 = vunpack.c.l.b16 %v3929
        %v4620 = vunpack.c.h.b16 %v3929
        %v4621 = vunpack.c.l.b16 %v3930
        %v4622 = vunpack.c.h.b16 %v3930
        %v4623 = vunpack.c.l.b16 %v3931
        %v4624 = vunpack.c.h.b16 %v3931
        %v4625 = vunpack.c.l.b16 %v3932
        %v4626 = vunpack.c.h.b16 %v3932
        %v4627 = vunpack.c.l.b16 %v3933
        %v4628 = vunpack.c.h.b16 %v3933
        %v4629 = vunpack.c.l.b16 %v3934
        %v4630 = vunpack.c.h.b16 %v3934
        %v4631 = vunpack.c.l.b16 %v3935
        %v4632 = vunpack.c.h.b16 %v3935
        %v4633 = vunpack.c.l.b16 %v3936
        %v4634 = vunpack.c.h.b16 %v3936
        %v4635 = vunpack.c.l.b16 %v3937
        %v4636 = vunpack.c.h.b16 %v3937
        %v4637 = vunpack.c.l.b16 %v3938
        %v4638 = vunpack.c.h.b16 %v3938
        %v4639 = vunpack.c.l.b16 %v3939
        %v4640 = vunpack.c.h.b16 %v3939
        %v4641 = vpack.c.b16 %v4581, %v4577
        %v4642 = vpack.c.b16 %v4582, %v4578
        %v4643 = vpack.c.b16 %v4583, %v4579
        %v4644 = vpack.c.b16 %v4584, %v4580
        %v4645 = vpack.c.b16 %v4589, %v4585
        %v4646 = vpack.c.b16 %v4590, %v4586
        %v4647 = vpack.c.b16 %v4591, %v4587
        %v4648 = vpack.c.b16 %v4592, %v4588
        %v4649 = vpack.c.b16 %v4597, %v4593
        %v4650 = vpack.c.b16 %v4598, %v4594
        %v4651 = vpack.c.b16 %v4599, %v4595
        %v4652 = vpack.c.b16 %v4600, %v4596
        %v4653 = vpack.c.b16 %v4605, %v4601
        %v4654 = vpack.c.b16 %v4606, %v4602
        %v4655 = vpack.c.b16 %v4607, %v4603
        %v4656 = vpack.c.b16 %v4608, %v4604
        %v4657 = vpack.c.b16 %v4613, %v4609
        %v4658 = vpack.c.b16 %v4614, %v4610
        %v4659 = vpack.c.b16 %v4615, %v4611
        %v4660 = vpack.c.b16 %v4616, %v4612
        %v4661 = vpack.c.b16 %v4621, %v4617
        %v4662 = vpack.c.b16 %v4622, %v4618
        %v4663 = vpack.c.b16 %v4623, %v4619
        %v4664 = vpack.c.b16 %v4624, %v4620
        %v4665 = vpack.c.b16 %v4629, %v4625
        %v4666 = vpack.c.b16 %v4630, %v4626
        %v4667 = vpack.c.b16 %v4631, %v4627
        %v4668 = vpack.c.b16 %v4632, %v4628
        %v4669 = vpack.c.b16 %v4637, %v4633
        %v4670 = vpack.c.b16 %v4638, %v4634
        %v4671 = vpack.c.b16 %v4639, %v4635
        %v4672 = vpack.c.b16 %v4640, %v4636
        %4705 = vmatprep.subr.bf16.mxu0 %v4642
        %4706 = vmatpush1.bf16.msra.mxu0 %v4641
        %4707 = vmatprep.subr.bf16.mxu0 %v4646
        %4708 = vmatpush1.bf16.msra.mxu0 %v4645
        %4709 = vmatprep.subr.bf16.mxu0 %v4650
        %4710 = vmatpush1.bf16.msra.mxu0 %v4649
        %4711 = vmatprep.subr.bf16.mxu0 %v4654
        %4712 = vmatpush1.bf16.msra.mxu0 %v4653
        %4713 = vmatprep.subr.bf16.mxu0 %v4658
        %4714 = vmatpush1.bf16.msra.mxu0 %v4657
        %4715 = vmatprep.subr.bf16.mxu0 %v4662
        %4716 = vmatpush1.bf16.msra.mxu0 %v4661
        %4717 = vmatprep.subr.bf16.mxu0 %v4666
        %4718 = vmatpush1.bf16.msra.mxu0 %v4665
        %4719 = vmatprep.subr.bf16.mxu0 %v4670
        %4720 = vmatpush1.bf16.msra.mxu0 %v4669
        %4721 = vmatprep.subr.bf16.mxu0 0
        %4722 = vmatpush1.bf16.msra.mxu0 0
        %4723 = vmatprep.subr.bf16.mxu0 0
        %4724 = vmatpush1.bf16.msra.mxu0 0
        %4725 = vmatprep.subr.bf16.mxu0 0
        %4726 = vmatpush1.bf16.msra.mxu0 0
        %4727 = vmatprep.subr.bf16.mxu0 0
        %4728 = vmatpush1.bf16.msra.mxu0 0
        %4729 = vmatprep.subr.bf16.mxu0 0
        %4730 = vmatpush1.bf16.msra.mxu0 0
        %4731 = vmatprep.subr.bf16.mxu0 0
        %4732 = vmatpush1.bf16.msra.mxu0 0
        %4733 = vmatprep.subr.bf16.mxu0 0
        %4734 = vmatpush1.bf16.msra.mxu0 0
        %4735 = vmatprep.subr.bf16.mxu0 0
        %4736 = vmatpush1.bf16.msra.mxu0 0
        %4737 = vmatprep.mubr.bf16.mxu0 0
        %4738 = vmatmul.mubr.bf16.gmra.mrb[0].mxu0 %v4543
        %v4739 = vpop.f32.mrb[0].mxu0
        %v4740 = vadd.f32 %v4490, %v4739
        %v4741 = vpop.f32.mrb[0].mxu0
        %v4742 = vadd.f32 %v4492, %v4741
        %v4743 = vpop.f32.mrb[0].mxu0
        %v4744 = vpop.f32.mrb[0].mxu0
        %4745 = vdwg.mxu0
        %4746 = vmatprep.subr.bf16.mxu0 %v4644
        %4747 = vmatpush1.bf16.msra.mxu0 %v4643
        %4748 = vmatprep.subr.bf16.mxu0 %v4648
        %4749 = vmatpush1.bf16.msra.mxu0 %v4647
        %4750 = vmatprep.subr.bf16.mxu0 %v4652
        %4751 = vmatpush1.bf16.msra.mxu0 %v4651
        %4752 = vmatprep.subr.bf16.mxu0 %v4656
        %4753 = vmatpush1.bf16.msra.mxu0 %v4655
        %4754 = vmatprep.subr.bf16.mxu0 %v4660
        %4755 = vmatpush1.bf16.msra.mxu0 %v4659
        %4756 = vmatprep.subr.bf16.mxu0 %v4664
        %4757 = vmatpush1.bf16.msra.mxu0 %v4663
        %4758 = vmatprep.subr.bf16.mxu0 %v4668
        %4759 = vmatpush1.bf16.msra.mxu0 %v4667
        %4760 = vmatprep.subr.bf16.mxu0 %v4672
        %4761 = vmatpush1.bf16.msra.mxu0 %v4671
        %4762 = vmatprep.subr.bf16.mxu0 0
        %4763 = vmatpush1.bf16.msra.mxu0 0
        %4764 = vmatprep.subr.bf16.mxu0 0
        %4765 = vmatpush1.bf16.msra.mxu0 0
        %4766 = vmatprep.subr.bf16.mxu0 0
        %4767 = vmatpush1.bf16.msra.mxu0 0
        %4768 = vmatprep.subr.bf16.mxu0 0
        %4769 = vmatpush1.bf16.msra.mxu0 0
        %4770 = vmatprep.subr.bf16.mxu0 0
        %4771 = vmatpush1.bf16.msra.mxu0 0
        %4772 = vmatprep.subr.bf16.mxu0 0
        %4773 = vmatpush1.bf16.msra.mxu0 0
        %4774 = vmatprep.subr.bf16.mxu0 0
        %4775 = vmatpush1.bf16.msra.mxu0 0
        %4776 = vmatprep.subr.bf16.mxu0 0
        %4777 = vmatpush1.bf16.msra.mxu0 0
        %4778 = vmatprep.mubr.bf16.mxu0 0
        %4779 = vmatmul.mubr.bf16.gmra.mrb[0].mxu0 %v4543
        %v4780 = vpop.f32.mrb[0].mxu0
        %v4781 = vadd.f32 %v4531, %v4780
        %v4782 = vpop.f32.mrb[0].mxu0
        %v4783 = vadd.f32 %v4533, %v4782
        %v4784 = vpop.f32.mrb[0].mxu0
        %v4785 = vpop.f32.mrb[0].mxu0
        %4786 = vdwg.mxu0
        %v4787 = vrot.slane %v3586, 2
        %4789 = vmatprep.subr.mxu0 0.0
        %4790 = vmatpush1.xpose.msra.mxu0 %v2588
        %4791 = vmatprep.subr.mxu0 0.0
        %4792 = vmatpush1.xpose.msra.mxu0 0.0
        %4793 = vmatprep.subr.mxu0 0.0
        %4794 = vmatpush1.xpose.msra.mxu0 0.0
        %4795 = vmatprep.subr.mxu0 0.0
        %4796 = vmatpush1.xpose.msra.mxu0 0.0
        %4797 = vmatprep.subr.mxu0 0.0
        %4798 = vmatpush1.xpose.msra.mxu0 0.0
        %4799 = vmatprep.subr.mxu0 0.0
        %4800 = vmatpush1.xpose.msra.mxu0 0.0
        %4801 = vmatprep.subr.mxu0 0.0
        %4802 = vmatpush1.xpose.msra.mxu0 0.0
        %4803 = vmatprep.subr.mxu0 0.0
        %4804 = vmatpush1.xpose.msra.mxu0 0.0
        %4805 = vmatprep.subr.mxu0 0.0
        %4806 = vmatpush1.xpose.msra.mxu0 0.0
        %4807 = vmatprep.subr.mxu0 0.0
        %4808 = vmatpush1.xpose.msra.mxu0 0.0
        %4809 = vmatprep.subr.mxu0 0.0
        %4810 = vmatpush1.xpose.msra.mxu0 0.0
        %4811 = vmatprep.subr.mxu0 0.0
        %4812 = vmatpush1.xpose.msra.mxu0 0.0
        %4813 = vmatprep.subr.mxu0 0.0
        %4814 = vmatpush1.xpose.msra.mxu0 0.0
        %4815 = vmatprep.subr.mxu0 0.0
        %4816 = vmatpush1.xpose.msra.mxu0 0.0
        %4817 = vmatprep.subr.mxu0 0.0
        %4818 = vmatpush1.xpose.msra.mxu0 0.0
        %4819 = vmatprep.subr.mxu0 0.0
        %4820 = vmatpush1.xpose.msra.mxu0 0.0
        %4821 = vmatprep.subr.mxu0 0.0
        %4822 = vmatpush1.xpose.msra.mxu0 0.0
        %4823 = vmatprep.subr.mxu0 0.0
        %4824 = vmatpush1.xpose.msra.mxu0 0.0
        %4825 = vmatprep.subr.mxu0 0.0
        %4826 = vmatpush1.xpose.msra.mxu0 0.0
        %4827 = vmatprep.subr.mxu0 0.0
        %4828 = vmatpush1.xpose.msra.mxu0 0.0
        %4829 = vmatprep.subr.mxu0 0.0
        %4830 = vmatpush1.xpose.msra.mxu0 0.0
        %4831 = vmatprep.subr.mxu0 0.0
        %4832 = vmatpush1.xpose.msra.mxu0 0.0
        %4833 = vmatprep.subr.mxu0 0.0
        %4834 = vmatpush1.xpose.msra.mxu0 0.0
        %4835 = vmatprep.subr.mxu0 0.0
        %4836 = vmatpush1.xpose.msra.mxu0 0.0
        %4837 = vmatprep.subr.mxu0 0.0
        %4838 = vmatpush1.xpose.msra.mxu0 0.0
        %4839 = vmatprep.subr.mxu0 0.0
        %4840 = vmatpush1.xpose.msra.mxu0 0.0
        %4841 = vmatprep.subr.mxu0 0.0
        %4842 = vmatpush1.xpose.msra.mxu0 0.0
        %4843 = vmatprep.subr.mxu0 0.0
        %4844 = vmatpush1.xpose.msra.mxu0 0.0
        %4845 = vmatprep.subr.mxu0 0.0
        %4846 = vmatpush1.xpose.msra.mxu0 0.0
        %4847 = vmatprep.subr.mxu0 0.0
        %4848 = vmatpush1.xpose.msra.mxu0 0.0
        %4849 = vmatprep.subr.mxu0 0.0
        %4850 = vmatpush1.xpose.msra.mxu0 0.0
        %4851 = vmatprep.subr.mxu0 0.0
        %4852 = vmatpush1.xpose.msra.mxu0 0.0
        %4853 = vmatprep.mubr.f32.mxu0 0.0
        %4854 = vmatmul.mubr.f32.gmra.mrb[0].mxu0 %v4787
        %v4855 = vpop.f32.mrb[0].mxu0
        %v4856 = vadd.f32 0.0, %v4855
        %v4857 = vpop.f32.mrb[0].mxu0
        %4858 = vdwg.mxu0
        %v4859 = vrot.slane %v3593, 2
        %4861 = vmatprep.subr.mxu0 0.0
        %4862 = vmatpush1.xpose.msra.mxu0 %v2592
        %4863 = vmatprep.subr.mxu0 0.0
        %4864 = vmatpush1.xpose.msra.mxu0 0.0
        %4865 = vmatprep.subr.mxu0 0.0
        %4866 = vmatpush1.xpose.msra.mxu0 0.0
        %4867 = vmatprep.subr.mxu0 0.0
        %4868 = vmatpush1.xpose.msra.mxu0 0.0
        %4869 = vmatprep.subr.mxu0 0.0
        %4870 = vmatpush1.xpose.msra.mxu0 0.0
        %4871 = vmatprep.subr.mxu0 0.0
        %4872 = vmatpush1.xpose.msra.mxu0 0.0
        %4873 = vmatprep.subr.mxu0 0.0
        %4874 = vmatpush1.xpose.msra.mxu0 0.0
        %4875 = vmatprep.subr.mxu0 0.0
        %4876 = vmatpush1.xpose.msra.mxu0 0.0
        %4877 = vmatprep.subr.mxu0 0.0
        %4878 = vmatpush1.xpose.msra.mxu0 0.0
        %4879 = vmatprep.subr.mxu0 0.0
        %4880 = vmatpush1.xpose.msra.mxu0 0.0
        %4881 = vmatprep.subr.mxu0 0.0
        %4882 = vmatpush1.xpose.msra.mxu0 0.0
        %4883 = vmatprep.subr.mxu0 0.0
        %4884 = vmatpush1.xpose.msra.mxu0 0.0
        %4885 = vmatprep.subr.mxu0 0.0
        %4886 = vmatpush1.xpose.msra.mxu0 0.0
        %4887 = vmatprep.subr.mxu0 0.0
        %4888 = vmatpush1.xpose.msra.mxu0 0.0
        %4889 = vmatprep.subr.mxu0 0.0
        %4890 = vmatpush1.xpose.msra.mxu0 0.0
        %4891 = vmatprep.subr.mxu0 0.0
        %4892 = vmatpush1.xpose.msra.mxu0 0.0
        %4893 = vmatprep.subr.mxu0 0.0
        %4894 = vmatpush1.xpose.msra.mxu0 0.0
        %4895 = vmatprep.subr.mxu0 0.0
        %4896 = vmatpush1.xpose.msra.mxu0 0.0
        %4897 = vmatprep.subr.mxu0 0.0
        %4898 = vmatpush1.xpose.msra.mxu0 0.0
        %4899 = vmatprep.subr.mxu0 0.0
        %4900 = vmatpush1.xpose.msra.mxu0 0.0
        %4901 = vmatprep.subr.mxu0 0.0
        %4902 = vmatpush1.xpose.msra.mxu0 0.0
        %4903 = vmatprep.subr.mxu0 0.0
        %4904 = vmatpush1.xpose.msra.mxu0 0.0
        %4905 = vmatprep.subr.mxu0 0.0
        %4906 = vmatpush1.xpose.msra.mxu0 0.0
        %4907 = vmatprep.subr.mxu0 0.0
        %4908 = vmatpush1.xpose.msra.mxu0 0.0
        %4909 = vmatprep.subr.mxu0 0.0
        %4910 = vmatpush1.xpose.msra.mxu0 0.0
        %4911 = vmatprep.subr.mxu0 0.0
        %4912 = vmatpush1.xpose.msra.mxu0 0.0
        %4913 = vmatprep.subr.mxu0 0.0
        %4914 = vmatpush1.xpose.msra.mxu0 0.0
        %4915 = vmatprep.subr.mxu0 0.0
        %4916 = vmatpush1.xpose.msra.mxu0 0.0
        %4917 = vmatprep.subr.mxu0 0.0
        %4918 = vmatpush1.xpose.msra.mxu0 0.0
        %4919 = vmatprep.subr.mxu0 0.0
        %4920 = vmatpush1.xpose.msra.mxu0 0.0
        %4921 = vmatprep.subr.mxu0 0.0
        %4922 = vmatpush1.xpose.msra.mxu0 0.0
        %4923 = vmatprep.subr.mxu0 0.0
        %4924 = vmatpush1.xpose.msra.mxu0 0.0
        %4925 = vmatprep.mubr.f32.mxu0 0.0
        %4926 = vmatmul.mubr.f32.gmra.mrb[0].mxu0 %v4859
        %v4927 = vpop.f32.mrb[0].mxu0
        %v4928 = vadd.f32 0.0, %v4927
        %v4929 = vpop.f32.mrb[0].mxu0
        %4930 = vdwg.mxu0
        %v4931 = vsel %vm3736, %v4856, -inf
        %4932 = vmax.xlane.f32.xlu0 %v4931
        %v4933 = vpop.xlane.xlu0 %4932
        %v4934 = vsel %vm3736, %v4928, -inf
        %4935 = vmax.xlane.f32.xlu0 %v4934
        %v4936 = vpop.xlane.xlu0 %4935
        %v4937 = vsub.f32 %v4856, %v4933
        %v4938 = vsub.f32 %v4928, %v4936
        %v4939 = vmul.f32 %v4937, 1.442695
        %v4940 = vpow.pop %v4939
        %v4941 = vmul.f32 %v4938, 1.442695
        %v4942 = vpow.pop %v4941
        %v4943 = vsel %vm3736, %v4940, 0.0
        %4944 = vadd.xlane.f32.xlu0 %v4943
        %v4945 = vpop.xlane.xlu0 %4944
        %v4946 = vsel %vm3736, %v4942, 0.0
        %4947 = vadd.xlane.f32.xlu0 %v4946
        %v4948 = vpop.xlane.xlu0 %4947
        %v4949 = vrcp.pop %v4945
        %v4950 = vrcp.pop %v4948
        %v4951 = vmul.f32 %v4940, %v4949
        %v4952 = vmul.f32 %v4942, %v4950
        %v4954 = vsel %vm3759, %v4951, 0
        %4956 = vmatprep.subr.mxu0 0.0
        %4957 = vmatpush1.msra.mxu0 %v3550
        %4958 = vmatprep.subr.mxu0 0.0
        %4959 = vmatpush1.msra.mxu0 0.0
        %4960 = vmatprep.subr.mxu0 0.0
        %4961 = vmatpush1.msra.mxu0 0.0
        %4962 = vmatprep.subr.mxu0 0.0
        %4963 = vmatpush1.msra.mxu0 0.0
        %4964 = vmatprep.subr.mxu0 0.0
        %4965 = vmatpush1.msra.mxu0 0.0
        %4966 = vmatprep.subr.mxu0 0.0
        %4967 = vmatpush1.msra.mxu0 0.0
        %4968 = vmatprep.subr.mxu0 0.0
        %4969 = vmatpush1.msra.mxu0 0.0
        %4970 = vmatprep.subr.mxu0 0.0
        %4971 = vmatpush1.msra.mxu0 0.0
        %4972 = vmatprep.subr.mxu0 0.0
        %4973 = vmatpush1.msra.mxu0 0.0
        %4974 = vmatprep.subr.mxu0 0.0
        %4975 = vmatpush1.msra.mxu0 0.0
        %4976 = vmatprep.subr.mxu0 0.0
        %4977 = vmatpush1.msra.mxu0 0.0
        %4978 = vmatprep.subr.mxu0 0.0
        %4979 = vmatpush1.msra.mxu0 0.0
        %4980 = vmatprep.subr.mxu0 0.0
        %4981 = vmatpush1.msra.mxu0 0.0
        %4982 = vmatprep.subr.mxu0 0.0
        %4983 = vmatpush1.msra.mxu0 0.0
        %4984 = vmatprep.subr.mxu0 0.0
        %4985 = vmatpush1.msra.mxu0 0.0
        %4986 = vmatprep.subr.mxu0 0.0
        %4987 = vmatpush1.msra.mxu0 0.0
        %4988 = vmatprep.subr.mxu0 0.0
        %4989 = vmatpush1.msra.mxu0 0.0
        %4990 = vmatprep.subr.mxu0 0.0
        %4991 = vmatpush1.msra.mxu0 0.0
        %4992 = vmatprep.subr.mxu0 0.0
        %4993 = vmatpush1.msra.mxu0 0.0
        %4994 = vmatprep.subr.mxu0 0.0
        %4995 = vmatpush1.msra.mxu0 0.0
        %4996 = vmatprep.subr.mxu0 0.0
        %4997 = vmatpush1.msra.mxu0 0.0
        %4998 = vmatprep.subr.mxu0 0.0
        %4999 = vmatpush1.msra.mxu0 0.0
        %5000 = vmatprep.subr.mxu0 0.0
        %5001 = vmatpush1.msra.mxu0 0.0
        %5002 = vmatprep.subr.mxu0 0.0
        %5003 = vmatpush1.msra.mxu0 0.0
        %5004 = vmatprep.subr.mxu0 0.0
        %5005 = vmatpush1.msra.mxu0 0.0
        %5006 = vmatprep.subr.mxu0 0.0
        %5007 = vmatpush1.msra.mxu0 0.0
        %5008 = vmatprep.subr.mxu0 0.0
        %5009 = vmatpush1.msra.mxu0 0.0
        %5010 = vmatprep.subr.mxu0 0.0
        %5011 = vmatpush1.msra.mxu0 0.0
        %5012 = vmatprep.subr.mxu0 0.0
        %5013 = vmatpush1.msra.mxu0 0.0
        %5014 = vmatprep.subr.mxu0 0.0
        %5015 = vmatpush1.msra.mxu0 0.0
        %5016 = vmatprep.subr.mxu0 0.0
        %5017 = vmatpush1.msra.mxu0 0.0
        %5018 = vmatprep.subr.mxu0 0.0
        %5019 = vmatpush1.msra.mxu0 0.0
        %5020 = vmatprep.mubr.f32.mxu0 0.0
        %5021 = vmatmul.mubr.f32.gmra.mrb[0].mxu0 %v4954
        %v5022 = vpop.f32.mrb[0].mxu0
        %v5023 = vadd.f32 0.0, %v5022
        %v5024 = vpop.f32.mrb[0].mxu0
        %5025 = vdwg.mxu0
        %v5027 = vsel %vm3759, %v4952, 0
        %5029 = vmatprep.subr.mxu0 0.0
        %5030 = vmatpush1.msra.mxu0 %v3554
        %5031 = vmatprep.subr.mxu0 0.0
        %5032 = vmatpush1.msra.mxu0 0.0
        %5033 = vmatprep.subr.mxu0 0.0
        %5034 = vmatpush1.msra.mxu0 0.0
        %5035 = vmatprep.subr.mxu0 0.0
        %5036 = vmatpush1.msra.mxu0 0.0
        %5037 = vmatprep.subr.mxu0 0.0
        %5038 = vmatpush1.msra.mxu0 0.0
        %5039 = vmatprep.subr.mxu0 0.0
        %5040 = vmatpush1.msra.mxu0 0.0
        %5041 = vmatprep.subr.mxu0 0.0
        %5042 = vmatpush1.msra.mxu0 0.0
        %5043 = vmatprep.subr.mxu0 0.0
        %5044 = vmatpush1.msra.mxu0 0.0
        %5045 = vmatprep.subr.mxu0 0.0
        %5046 = vmatpush1.msra.mxu0 0.0
        %5047 = vmatprep.subr.mxu0 0.0
        %5048 = vmatpush1.msra.mxu0 0.0
        %5049 = vmatprep.subr.mxu0 0.0
        %5050 = vmatpush1.msra.mxu0 0.0
        %5051 = vmatprep.subr.mxu0 0.0
        %5052 = vmatpush1.msra.mxu0 0.0
        %5053 = vmatprep.subr.mxu0 0.0
        %5054 = vmatpush1.msra.mxu0 0.0
        %5055 = vmatprep.subr.mxu0 0.0
        %5056 = vmatpush1.msra.mxu0 0.0
        %5057 = vmatprep.subr.mxu0 0.0
        %5058 = vmatpush1.msra.mxu0 0.0
        %5059 = vmatprep.subr.mxu0 0.0
        %5060 = vmatpush1.msra.mxu0 0.0
        %5061 = vmatprep.subr.mxu0 0.0
        %5062 = vmatpush1.msra.mxu0 0.0
        %5063 = vmatprep.subr.mxu0 0.0
        %5064 = vmatpush1.msra.mxu0 0.0
        %5065 = vmatprep.subr.mxu0 0.0
        %5066 = vmatpush1.msra.mxu0 0.0
        %5067 = vmatprep.subr.mxu0 0.0
        %5068 = vmatpush1.msra.mxu0 0.0
        %5069 = vmatprep.subr.mxu0 0.0
        %5070 = vmatpush1.msra.mxu0 0.0
        %5071 = vmatprep.subr.mxu0 0.0
        %5072 = vmatpush1.msra.mxu0 0.0
        %5073 = vmatprep.subr.mxu0 0.0
        %5074 = vmatpush1.msra.mxu0 0.0
        %5075 = vmatprep.subr.mxu0 0.0
        %5076 = vmatpush1.msra.mxu0 0.0
        %5077 = vmatprep.subr.mxu0 0.0
        %5078 = vmatpush1.msra.mxu0 0.0
        %5079 = vmatprep.subr.mxu0 0.0
        %5080 = vmatpush1.msra.mxu0 0.0
        %5081 = vmatprep.subr.mxu0 0.0
        %5082 = vmatpush1.msra.mxu0 0.0
        %5083 = vmatprep.subr.mxu0 0.0
        %5084 = vmatpush1.msra.mxu0 0.0
        %5085 = vmatprep.subr.mxu0 0.0
        %5086 = vmatpush1.msra.mxu0 0.0
        %5087 = vmatprep.subr.mxu0 0.0
        %5088 = vmatpush1.msra.mxu0 0.0
        %5089 = vmatprep.subr.mxu0 0.0
        %5090 = vmatpush1.msra.mxu0 0.0
        %5091 = vmatprep.subr.mxu0 0.0
        %5092 = vmatpush1.msra.mxu0 0.0
        %5093 = vmatprep.mubr.f32.mxu0 0.0
        %5094 = vmatmul.mubr.f32.gmra.mrb[0].mxu0 %v5027
        %v5095 = vpop.f32.mrb[0].mxu0
        %v5096 = vadd.f32 0.0, %v5095
        %v5097 = vpop.f32.mrb[0].mxu0
        %5098 = vdwg.mxu0
        %v5099 = vpack.c.bf16 %v5023, %v5023
        %v5100 = vpack.c.bf16 %v5096, %v5096
        %v5101 = vld [vmem:[#allocation11 + $0x200] sm:$0xff]
        %v5102 = vld [vmem:[#allocation11 + $0x208] sm:$0xff]
        %v5103 = vld [vmem:[#allocation11 + $0x210] sm:$0xff]
        %v5104 = vld [vmem:[#allocation11 + $0x218] sm:$0xff]
        %v5105 = vld [vmem:[#allocation11 + $0x220] sm:$0xff]
        %v5106 = vld [vmem:[#allocation11 + $0x228] sm:$0xff]
        %v5107 = vld [vmem:[#allocation11 + $0x230] sm:$0xff]
        %v5108 = vld [vmem:[#allocation11 + $0x238] sm:$0xff]
        %v5109 = vld [vmem:[#allocation11 + $0x240] sm:$0xff]
        %v5110 = vld [vmem:[#allocation11 + $0x248] sm:$0xff]
        %v5111 = vld [vmem:[#allocation11 + $0x250] sm:$0xff]
        %v5112 = vld [vmem:[#allocation11 + $0x258] sm:$0xff]
        %v5113 = vld [vmem:[#allocation11 + $0x260] sm:$0xff]
        %v5114 = vld [vmem:[#allocation11 + $0x268] sm:$0xff]
        %v5115 = vld [vmem:[#allocation11 + $0x270] sm:$0xff]
        %v5116 = vld [vmem:[#allocation11 + $0x278] sm:$0xff]
        %v5117 = vld [vmem:[#allocation11 + $0x280] sm:$0xff]
        %v5118 = vld [vmem:[#allocation11 + $0x288] sm:$0xff]
        %v5119 = vld [vmem:[#allocation11 + $0x290] sm:$0xff]
        %v5120 = vld [vmem:[#allocation11 + $0x298] sm:$0xff]
        %v5121 = vld [vmem:[#allocation11 + $0x2a0] sm:$0xff]
        %v5122 = vld [vmem:[#allocation11 + $0x2a8] sm:$0xff]
        %v5123 = vld [vmem:[#allocation11 + $0x2b0] sm:$0xff]
        %v5124 = vld [vmem:[#allocation11 + $0x2b8] sm:$0xff]
        %v5125 = vld [vmem:[#allocation11 + $0x2c0] sm:$0xff]
        %v5126 = vld [vmem:[#allocation11 + $0x2c8] sm:$0xff]
        %v5127 = vld [vmem:[#allocation11 + $0x2d0] sm:$0xff]
        %v5128 = vld [vmem:[#allocation11 + $0x2d8] sm:$0xff]
        %v5129 = vld [vmem:[#allocation11 + $0x2e0] sm:$0xff]
        %v5130 = vld [vmem:[#allocation11 + $0x2e8] sm:$0xff]
        %v5131 = vld [vmem:[#allocation11 + $0x2f0] sm:$0xff]
        %v5132 = vld [vmem:[#allocation11 + $0x2f8] sm:$0xff]
        %v5135 = vunpack.c.l.b16 %v5099
        %v5136 = vunpack.c.l.b16 %v5100
        %v5137 = vrot.slane %v5136, 7
        %v5138 = vsel %vm4291, %v5137, %v5135
        %v5139 = vpack.c.b16 %v5138, %v5138
        %v5173 = vunpack.c.l.b16 %v5101
        %v5174 = vunpack.c.h.b16 %v5101
        %v5175 = vunpack.c.l.b16 %v5102
        %v5176 = vunpack.c.h.b16 %v5102
        %v5177 = vunpack.c.l.b16 %v5103
        %v5178 = vunpack.c.h.b16 %v5103
        %v5179 = vunpack.c.l.b16 %v5104
        %v5180 = vunpack.c.h.b16 %v5104
        %v5181 = vunpack.c.l.b16 %v5105
        %v5182 = vunpack.c.h.b16 %v5105
        %v5183 = vunpack.c.l.b16 %v5106
        %v5184 = vunpack.c.h.b16 %v5106
        %v5185 = vunpack.c.l.b16 %v5107
        %v5186 = vunpack.c.h.b16 %v5107
        %v5187 = vunpack.c.l.b16 %v5108
        %v5188 = vunpack.c.h.b16 %v5108
        %v5189 = vunpack.c.l.b16 %v5109
        %v5190 = vunpack.c.h.b16 %v5109
        %v5191 = vunpack.c.l.b16 %v5110
        %v5192 = vunpack.c.h.b16 %v5110
        %v5193 = vunpack.c.l.b16 %v5111
        %v5194 = vunpack.c.h.b16 %v5111
        %v5195 = vunpack.c.l.b16 %v5112
        %v5196 = vunpack.c.h.b16 %v5112
        %v5197 = vunpack.c.l.b16 %v5113
        %v5198 = vunpack.c.h.b16 %v5113
        %v5199 = vunpack.c.l.b16 %v5114
        %v5200 = vunpack.c.h.b16 %v5114
        %v5201 = vunpack.c.l.b16 %v5115
        %v5202 = vunpack.c.h.b16 %v5115
        %v5203 = vunpack.c.l.b16 %v5116
        %v5204 = vunpack.c.h.b16 %v5116
        %v5205 = vunpack.c.l.b16 %v5117
        %v5206 = vunpack.c.h.b16 %v5117
        %v5207 = vunpack.c.l.b16 %v5118
        %v5208 = vunpack.c.h.b16 %v5118
        %v5209 = vunpack.c.l.b16 %v5119
        %v5210 = vunpack.c.h.b16 %v5119
        %v5211 = vunpack.c.l.b16 %v5120
        %v5212 = vunpack.c.h.b16 %v5120
        %v5213 = vunpack.c.l.b16 %v5121
        %v5214 = vunpack.c.h.b16 %v5121
        %v5215 = vunpack.c.l.b16 %v5122
        %v5216 = vunpack.c.h.b16 %v5122
        %v5217 = vunpack.c.l.b16 %v5123
        %v5218 = vunpack.c.h.b16 %v5123
        %v5219 = vunpack.c.l.b16 %v5124
        %v5220 = vunpack.c.h.b16 %v5124
        %v5221 = vunpack.c.l.b16 %v5125
        %v5222 = vunpack.c.h.b16 %v5125
        %v5223 = vunpack.c.l.b16 %v5126
        %v5224 = vunpack.c.h.b16 %v5126
        %v5225 = vunpack.c.l.b16 %v5127
        %v5226 = vunpack.c.h.b16 %v5127
        %v5227 = vunpack.c.l.b16 %v5128
        %v5228 = vunpack.c.h.b16 %v5128
        %v5229 = vunpack.c.l.b16 %v5129
        %v5230 = vunpack.c.h.b16 %v5129
        %v5231 = vunpack.c.l.b16 %v5130
        %v5232 = vunpack.c.h.b16 %v5130
        %v5233 = vunpack.c.l.b16 %v5131
        %v5234 = vunpack.c.h.b16 %v5131
        %v5235 = vunpack.c.l.b16 %v5132
        %v5236 = vunpack.c.h.b16 %v5132
        %v5237 = vpack.c.b16 %v5177, %v5173
        %v5238 = vpack.c.b16 %v5178, %v5174
        %v5239 = vpack.c.b16 %v5179, %v5175
        %v5240 = vpack.c.b16 %v5180, %v5176
        %v5241 = vpack.c.b16 %v5185, %v5181
        %v5242 = vpack.c.b16 %v5186, %v5182
        %v5243 = vpack.c.b16 %v5187, %v5183
        %v5244 = vpack.c.b16 %v5188, %v5184
        %v5245 = vpack.c.b16 %v5193, %v5189
        %v5246 = vpack.c.b16 %v5194, %v5190
        %v5247 = vpack.c.b16 %v5195, %v5191
        %v5248 = vpack.c.b16 %v5196, %v5192
        %v5249 = vpack.c.b16 %v5201, %v5197
        %v5250 = vpack.c.b16 %v5202, %v5198
        %v5251 = vpack.c.b16 %v5203, %v5199
        %v5252 = vpack.c.b16 %v5204, %v5200
        %v5253 = vpack.c.b16 %v5209, %v5205
        %v5254 = vpack.c.b16 %v5210, %v5206
        %v5255 = vpack.c.b16 %v5211, %v5207
        %v5256 = vpack.c.b16 %v5212, %v5208
        %v5257 = vpack.c.b16 %v5217, %v5213
        %v5258 = vpack.c.b16 %v5218, %v5214
        %v5259 = vpack.c.b16 %v5219, %v5215
        %v5260 = vpack.c.b16 %v5220, %v5216
        %v5261 = vpack.c.b16 %v5225, %v5221
        %v5262 = vpack.c.b16 %v5226, %v5222
        %v5263 = vpack.c.b16 %v5227, %v5223
        %v5264 = vpack.c.b16 %v5228, %v5224
        %v5265 = vpack.c.b16 %v5233, %v5229
        %v5266 = vpack.c.b16 %v5234, %v5230
        %v5267 = vpack.c.b16 %v5235, %v5231
        %v5268 = vpack.c.b16 %v5236, %v5232
        %5301 = vmatprep.subr.bf16.mxu0 %v5238
        %5302 = vmatpush1.bf16.msra.mxu0 %v5237
        %5303 = vmatprep.subr.bf16.mxu0 %v5242
        %5304 = vmatpush1.bf16.msra.mxu0 %v5241
        %5305 = vmatprep.subr.bf16.mxu0 %v5246
        %5306 = vmatpush1.bf16.msra.mxu0 %v5245
        %5307 = vmatprep.subr.bf16.mxu0 %v5250
        %5308 = vmatpush1.bf16.msra.mxu0 %v5249
        %5309 = vmatprep.subr.bf16.mxu0 %v5254
        %5310 = vmatpush1.bf16.msra.mxu0 %v5253
        %5311 = vmatprep.subr.bf16.mxu0 %v5258
        %5312 = vmatpush1.bf16.msra.mxu0 %v5257
        %5313 = vmatprep.subr.bf16.mxu0 %v5262
        %5314 = vmatpush1.bf16.msra.mxu0 %v5261
        %5315 = vmatprep.subr.bf16.mxu0 %v5266
        %5316 = vmatpush1.bf16.msra.mxu0 %v5265
        %5317 = vmatprep.subr.bf16.mxu0 0
        %5318 = vmatpush1.bf16.msra.mxu0 0
        %5319 = vmatprep.subr.bf16.mxu0 0
        %5320 = vmatpush1.bf16.msra.mxu0 0
        %5321 = vmatprep.subr.bf16.mxu0 0
        %5322 = vmatpush1.bf16.msra.mxu0 0
        %5323 = vmatprep.subr.bf16.mxu0 0
        %5324 = vmatpush1.bf16.msra.mxu0 0
        %5325 = vmatprep.subr.bf16.mxu0 0
        %5326 = vmatpush1.bf16.msra.mxu0 0
        %5327 = vmatprep.subr.bf16.mxu0 0
        %5328 = vmatpush1.bf16.msra.mxu0 0
        %5329 = vmatprep.subr.bf16.mxu0 0
        %5330 = vmatpush1.bf16.msra.mxu0 0
        %5331 = vmatprep.subr.bf16.mxu0 0
        %5332 = vmatpush1.bf16.msra.mxu0 0
        %5333 = vmatprep.mubr.bf16.mxu0 0
        %5334 = vmatmul.mubr.bf16.gmra.mrb[0].mxu0 %v5139
        %v5335 = vpop.f32.mrb[0].mxu0
        %v5336 = vadd.f32 0.0, %v5335
        %v5337 = vpop.f32.mrb[0].mxu0
        %v5338 = vadd.f32 0.0, %v5337
        %v5339 = vpop.f32.mrb[0].mxu0
        %v5340 = vpop.f32.mrb[0].mxu0
        %5341 = vdwg.mxu0
        %5342 = vmatprep.subr.bf16.mxu0 %v5240
        %5343 = vmatpush1.bf16.msra.mxu0 %v5239
        %5344 = vmatprep.subr.bf16.mxu0 %v5244
        %5345 = vmatpush1.bf16.msra.mxu0 %v5243
        %5346 = vmatprep.subr.bf16.mxu0 %v5248
        %5347 = vmatpush1.bf16.msra.mxu0 %v5247
        %5348 = vmatprep.subr.bf16.mxu0 %v5252
        %5349 = vmatpush1.bf16.msra.mxu0 %v5251
        %5350 = vmatprep.subr.bf16.mxu0 %v5256
        %5351 = vmatpush1.bf16.msra.mxu0 %v5255
        %5352 = vmatprep.subr.bf16.mxu0 %v5260
        %5353 = vmatpush1.bf16.msra.mxu0 %v5259
        %5354 = vmatprep.subr.bf16.mxu0 %v5264
        %5355 = vmatpush1.bf16.msra.mxu0 %v5263
        %5356 = vmatprep.subr.bf16.mxu0 %v5268
        %5357 = vmatpush1.bf16.msra.mxu0 %v5267
        %5358 = vmatprep.subr.bf16.mxu0 0
        %5359 = vmatpush1.bf16.msra.mxu0 0
        %5360 = vmatprep.subr.bf16.mxu0 0
        %5361 = vmatpush1.bf16.msra.mxu0 0
        %5362 = vmatprep.subr.bf16.mxu0 0
        %5363 = vmatpush1.bf16.msra.mxu0 0
        %5364 = vmatprep.subr.bf16.mxu0 0
        %5365 = vmatpush1.bf16.msra.mxu0 0
        %5366 = vmatprep.subr.bf16.mxu0 0
        %5367 = vmatpush1.bf16.msra.mxu0 0
        %5368 = vmatprep.subr.bf16.mxu0 0
        %5369 = vmatpush1.bf16.msra.mxu0 0
        %5370 = vmatprep.subr.bf16.mxu0 0
        %5371 = vmatpush1.bf16.msra.mxu0 0
        %5372 = vmatprep.subr.bf16.mxu0 0
        %5373 = vmatpush1.bf16.msra.mxu0 0
        %5374 = vmatprep.mubr.bf16.mxu0 0
        %5375 = vmatmul.mubr.bf16.gmra.mrb[0].mxu0 %v5139
        %v5376 = vpop.f32.mrb[0].mxu0
        %v5377 = vadd.f32 0.0, %v5376
        %v5378 = vpop.f32.mrb[0].mxu0
        %v5379 = vadd.f32 0.0, %v5378
        %v5380 = vpop.f32.mrb[0].mxu0
        %v5381 = vpop.f32.mrb[0].mxu0
        %5382 = vdwg.mxu0
        %v5383 = vadd.f32 %v4740, %v5336
        %v5384 = vadd.f32 %v4742, %v5338
        %v5385 = vadd.f32 %v4781, %v5377
        %v5386 = vadd.f32 %v4783, %v5379
        %v5387 = vrot.slane %v3586, 3
        %5389 = vmatprep.subr.mxu0 0.0
        %5390 = vmatpush1.xpose.msra.mxu0 %v2590
        %5391 = vmatprep.subr.mxu0 0.0
        %5392 = vmatpush1.xpose.msra.mxu0 0.0
        %5393 = vmatprep.subr.mxu0 0.0
        %5394 = vmatpush1.xpose.msra.mxu0 0.0
        %5395 = vmatprep.subr.mxu0 0.0
        %5396 = vmatpush1.xpose.msra.mxu0 0.0
        %5397 = vmatprep.subr.mxu0 0.0
        %5398 = vmatpush1.xpose.msra.mxu0 0.0
        %5399 = vmatprep.subr.mxu0 0.0
        %5400 = vmatpush1.xpose.msra.mxu0 0.0
        %5401 = vmatprep.subr.mxu0 0.0
        %5402 = vmatpush1.xpose.msra.mxu0 0.0
        %5403 = vmatprep.subr.mxu0 0.0
        %5404 = vmatpush1.xpose.msra.mxu0 0.0
        %5405 = vmatprep.subr.mxu0 0.0
        %5406 = vmatpush1.xpose.msra.mxu0 0.0
        %5407 = vmatprep.subr.mxu0 0.0
        %5408 = vmatpush1.xpose.msra.mxu0 0.0
        %5409 = vmatprep.subr.mxu0 0.0
        %5410 = vmatpush1.xpose.msra.mxu0 0.0
        %5411 = vmatprep.subr.mxu0 0.0
        %5412 = vmatpush1.xpose.msra.mxu0 0.0
        %5413 = vmatprep.subr.mxu0 0.0
        %5414 = vmatpush1.xpose.msra.mxu0 0.0
        %5415 = vmatprep.subr.mxu0 0.0
        %5416 = vmatpush1.xpose.msra.mxu0 0.0
        %5417 = vmatprep.subr.mxu0 0.0
        %5418 = vmatpush1.xpose.msra.mxu0 0.0
        %5419 = vmatprep.subr.mxu0 0.0
        %5420 = vmatpush1.xpose.msra.mxu0 0.0
        %5421 = vmatprep.subr.mxu0 0.0
        %5422 = vmatpush1.xpose.msra.mxu0 0.0
        %5423 = vmatprep.subr.mxu0 0.0
        %5424 = vmatpush1.xpose.msra.mxu0 0.0
        %5425 = vmatprep.subr.mxu0 0.0
        %5426 = vmatpush1.xpose.msra.mxu0 0.0
        %5427 = vmatprep.subr.mxu0 0.0
        %5428 = vmatpush1.xpose.msra.mxu0 0.0
        %5429 = vmatprep.subr.mxu0 0.0
        %5430 = vmatpush1.xpose.msra.mxu0 0.0
        %5431 = vmatprep.subr.mxu0 0.0
        %5432 = vmatpush1.xpose.msra.mxu0 0.0
        %5433 = vmatprep.subr.mxu0 0.0
        %5434 = vmatpush1.xpose.msra.mxu0 0.0
        %5435 = vmatprep.subr.mxu0 0.0
        %5436 = vmatpush1.xpose.msra.mxu0 0.0
        %5437 = vmatprep.subr.mxu0 0.0
        %5438 = vmatpush1.xpose.msra.mxu0 0.0
        %5439 = vmatprep.subr.mxu0 0.0
        %5440 = vmatpush1.xpose.msra.mxu0 0.0
        %5441 = vmatprep.subr.mxu0 0.0
        %5442 = vmatpush1.xpose.msra.mxu0 0.0
        %5443 = vmatprep.subr.mxu0 0.0
        %5444 = vmatpush1.xpose.msra.mxu0 0.0
        %5445 = vmatprep.subr.mxu0 0.0
        %5446 = vmatpush1.xpose.msra.mxu0 0.0
        %5447 = vmatprep.subr.mxu0 0.0
        %5448 = vmatpush1.xpose.msra.mxu0 0.0
        %5449 = vmatprep.subr.mxu0 0.0
        %5450 = vmatpush1.xpose.msra.mxu0 0.0
        %5451 = vmatprep.subr.mxu0 0.0
        %5452 = vmatpush1.xpose.msra.mxu0 0.0
        %5453 = vmatprep.mubr.f32.mxu0 0.0
        %5454 = vmatmul.mubr.f32.gmra.mrb[0].mxu0 %v5387
        %v5455 = vpop.f32.mrb[0].mxu0
        %v5456 = vadd.f32 0.0, %v5455
        %v5457 = vpop.f32.mrb[0].mxu0
        %5458 = vdwg.mxu0
        %v5459 = vrot.slane %v3593, 3
        %5461 = vmatprep.subr.mxu0 0.0
        %5462 = vmatpush1.xpose.msra.mxu0 %v2594
        %5463 = vmatprep.subr.mxu0 0.0
        %5464 = vmatpush1.xpose.msra.mxu0 0.0
        %5465 = vmatprep.subr.mxu0 0.0
        %5466 = vmatpush1.xpose.msra.mxu0 0.0
        %5467 = vmatprep.subr.mxu0 0.0
        %5468 = vmatpush1.xpose.msra.mxu0 0.0
        %5469 = vmatprep.subr.mxu0 0.0
        %5470 = vmatpush1.xpose.msra.mxu0 0.0
        %5471 = vmatprep.subr.mxu0 0.0
        %5472 = vmatpush1.xpose.msra.mxu0 0.0
        %5473 = vmatprep.subr.mxu0 0.0
        %5474 = vmatpush1.xpose.msra.mxu0 0.0
        %5475 = vmatprep.subr.mxu0 0.0
        %5476 = vmatpush1.xpose.msra.mxu0 0.0
        %5477 = vmatprep.subr.mxu0 0.0
        %5478 = vmatpush1.xpose.msra.mxu0 0.0
        %5479 = vmatprep.subr.mxu0 0.0
        %5480 = vmatpush1.xpose.msra.mxu0 0.0
        %5481 = vmatprep.subr.mxu0 0.0
        %5482 = vmatpush1.xpose.msra.mxu0 0.0
        %5483 = vmatprep.subr.mxu0 0.0
        %5484 = vmatpush1.xpose.msra.mxu0 0.0
        %5485 = vmatprep.subr.mxu0 0.0
        %5486 = vmatpush1.xpose.msra.mxu0 0.0
        %5487 = vmatprep.subr.mxu0 0.0
        %5488 = vmatpush1.xpose.msra.mxu0 0.0
        %5489 = vmatprep.subr.mxu0 0.0
        %5490 = vmatpush1.xpose.msra.mxu0 0.0
        %5491 = vmatprep.subr.mxu0 0.0
        %5492 = vmatpush1.xpose.msra.mxu0 0.0
        %5493 = vmatprep.subr.mxu0 0.0
        %5494 = vmatpush1.xpose.msra.mxu0 0.0
        %5495 = vmatprep.subr.mxu0 0.0
        %5496 = vmatpush1.xpose.msra.mxu0 0.0
        %5497 = vmatprep.subr.mxu0 0.0
        %5498 = vmatpush1.xpose.msra.mxu0 0.0
        %5499 = vmatprep.subr.mxu0 0.0
        %5500 = vmatpush1.xpose.msra.mxu0 0.0
        %5501 = vmatprep.subr.mxu0 0.0
        %5502 = vmatpush1.xpose.msra.mxu0 0.0
        %5503 = vmatprep.subr.mxu0 0.0
        %5504 = vmatpush1.xpose.msra.mxu0 0.0
        %5505 = vmatprep.subr.mxu0 0.0
        %5506 = vmatpush1.xpose.msra.mxu0 0.0
        %5507 = vmatprep.subr.mxu0 0.0
        %5508 = vmatpush1.xpose.msra.mxu0 0.0
        %5509 = vmatprep.subr.mxu0 0.0
        %5510 = vmatpush1.xpose.msra.mxu0 0.0
        %5511 = vmatprep.subr.mxu0 0.0
        %5512 = vmatpush1.xpose.msra.mxu0 0.0
        %5513 = vmatprep.subr.mxu0 0.0
        %5514 = vmatpush1.xpose.msra.mxu0 0.0
        %5515 = vmatprep.subr.mxu0 0.0
        %5516 = vmatpush1.xpose.msra.mxu0 0.0
        %5517 = vmatprep.subr.mxu0 0.0
        %5518 = vmatpush1.xpose.msra.mxu0 0.0
        %5519 = vmatprep.subr.mxu0 0.0
        %5520 = vmatpush1.xpose.msra.mxu0 0.0
        %5521 = vmatprep.subr.mxu0 0.0
        %5522 = vmatpush1.xpose.msra.mxu0 0.0
        %5523 = vmatprep.subr.mxu0 0.0
        %5524 = vmatpush1.xpose.msra.mxu0 0.0
        %5525 = vmatprep.mubr.f32.mxu0 0.0
        %5526 = vmatmul.mubr.f32.gmra.mrb[0].mxu0 %v5459
        %v5527 = vpop.f32.mrb[0].mxu0
        %v5528 = vadd.f32 0.0, %v5527
        %v5529 = vpop.f32.mrb[0].mxu0
        %5530 = vdwg.mxu0
        %v5531 = vsel %vm3736, %v5456, -inf
        %5532 = vmax.xlane.f32.xlu0 %v5531
        %v5533 = vpop.xlane.xlu0 %5532
        %v5534 = vsel %vm3736, %v5528, -inf
        %5535 = vmax.xlane.f32.xlu0 %v5534
        %v5536 = vpop.xlane.xlu0 %5535
        %v5537 = vsub.f32 %v5456, %v5533
        %v5538 = vsub.f32 %v5528, %v5536
        %v5539 = vmul.f32 %v5537, 1.442695
        %v5540 = vpow.pop %v5539
        %v5541 = vmul.f32 %v5538, 1.442695
        %v5542 = vpow.pop %v5541
        %v5543 = vsel %vm3736, %v5540, 0.0
        %5544 = vadd.xlane.f32.xlu0 %v5543
        %v5545 = vpop.xlane.xlu0 %5544
        %v5546 = vsel %vm3736, %v5542, 0.0
        %5547 = vadd.xlane.f32.xlu0 %v5546
        %v5548 = vpop.xlane.xlu0 %5547
        %v5549 = vrcp.pop %v5545
        %v5550 = vrcp.pop %v5548
        %v5551 = vmul.f32 %v5540, %v5549
        %v5552 = vmul.f32 %v5542, %v5550
        %v5554 = vsel %vm3759, %v5551, 0
        %5556 = vmatprep.subr.mxu0 0.0
        %5557 = vmatpush1.msra.mxu0 %v3552
        %5558 = vmatprep.subr.mxu0 0.0
        %5559 = vmatpush1.msra.mxu0 0.0
        %5560 = vmatprep.subr.mxu0 0.0
        %5561 = vmatpush1.msra.mxu0 0.0
        %5562 = vmatprep.subr.mxu0 0.0
        %5563 = vmatpush1.msra.mxu0 0.0
        %5564 = vmatprep.subr.mxu0 0.0
        %5565 = vmatpush1.msra.mxu0 0.0
        %5566 = vmatprep.subr.mxu0 0.0
        %5567 = vmatpush1.msra.mxu0 0.0
        %5568 = vmatprep.subr.mxu0 0.0
        %5569 = vmatpush1.msra.mxu0 0.0
        %5570 = vmatprep.subr.mxu0 0.0
        %5571 = vmatpush1.msra.mxu0 0.0
        %5572 = vmatprep.subr.mxu0 0.0
        %5573 = vmatpush1.msra.mxu0 0.0
        %5574 = vmatprep.subr.mxu0 0.0
        %5575 = vmatpush1.msra.mxu0 0.0
        %5576 = vmatprep.subr.mxu0 0.0
        %5577 = vmatpush1.msra.mxu0 0.0
        %5578 = vmatprep.subr.mxu0 0.0
        %5579 = vmatpush1.msra.mxu0 0.0
        %5580 = vmatprep.subr.mxu0 0.0
        %5581 = vmatpush1.msra.mxu0 0.0
        %5582 = vmatprep.subr.mxu0 0.0
        %5583 = vmatpush1.msra.mxu0 0.0
        %5584 = vmatprep.subr.mxu0 0.0
        %5585 = vmatpush1.msra.mxu0 0.0
        %5586 = vmatprep.subr.mxu0 0.0
        %5587 = vmatpush1.msra.mxu0 0.0
        %5588 = vmatprep.subr.mxu0 0.0
        %5589 = vmatpush1.msra.mxu0 0.0
        %5590 = vmatprep.subr.mxu0 0.0
        %5591 = vmatpush1.msra.mxu0 0.0
        %5592 = vmatprep.subr.mxu0 0.0
        %5593 = vmatpush1.msra.mxu0 0.0
        %5594 = vmatprep.subr.mxu0 0.0
        %5595 = vmatpush1.msra.mxu0 0.0
        %5596 = vmatprep.subr.mxu0 0.0
        %5597 = vmatpush1.msra.mxu0 0.0
        %5598 = vmatprep.subr.mxu0 0.0
        %5599 = vmatpush1.msra.mxu0 0.0
        %5600 = vmatprep.subr.mxu0 0.0
        %5601 = vmatpush1.msra.mxu0 0.0
        %5602 = vmatprep.subr.mxu0 0.0
        %5603 = vmatpush1.msra.mxu0 0.0
        %5604 = vmatprep.subr.mxu0 0.0
        %5605 = vmatpush1.msra.mxu0 0.0
        %5606 = vmatprep.subr.mxu0 0.0
        %5607 = vmatpush1.msra.mxu0 0.0
        %5608 = vmatprep.subr.mxu0 0.0
        %5609 = vmatpush1.msra.mxu0 0.0
        %5610 = vmatprep.subr.mxu0 0.0
        %5611 = vmatpush1.msra.mxu0 0.0
        %5612 = vmatprep.subr.mxu0 0.0
        %5613 = vmatpush1.msra.mxu0 0.0
        %5614 = vmatprep.subr.mxu0 0.0
        %5615 = vmatpush1.msra.mxu0 0.0
        %5616 = vmatprep.subr.mxu0 0.0
        %5617 = vmatpush1.msra.mxu0 0.0
        %5618 = vmatprep.subr.mxu0 0.0
        %5619 = vmatpush1.msra.mxu0 0.0
        %5620 = vmatprep.mubr.f32.mxu0 0.0
        %5621 = vmatmul.mubr.f32.gmra.mrb[0].mxu0 %v5554
        %v5622 = vpop.f32.mrb[0].mxu0
        %v5623 = vadd.f32 0.0, %v5622
        %v5624 = vpop.f32.mrb[0].mxu0
        %5625 = vdwg.mxu0
        %v5627 = vsel %vm3759, %v5552, 0
        %5629 = vmatprep.subr.mxu0 0.0
        %5630 = vmatpush1.msra.mxu0 %v3556
        %5631 = vmatprep.subr.mxu0 0.0
        %5632 = vmatpush1.msra.mxu0 0.0
        %5633 = vmatprep.subr.mxu0 0.0
        %5634 = vmatpush1.msra.mxu0 0.0
        %5635 = vmatprep.subr.mxu0 0.0
        %5636 = vmatpush1.msra.mxu0 0.0
        %5637 = vmatprep.subr.mxu0 0.0
        %5638 = vmatpush1.msra.mxu0 0.0
        %5639 = vmatprep.subr.mxu0 0.0
        %5640 = vmatpush1.msra.mxu0 0.0
        %5641 = vmatprep.subr.mxu0 0.0
        %5642 = vmatpush1.msra.mxu0 0.0
        %5643 = vmatprep.subr.mxu0 0.0
        %5644 = vmatpush1.msra.mxu0 0.0
        %5645 = vmatprep.subr.mxu0 0.0
        %5646 = vmatpush1.msra.mxu0 0.0
        %5647 = vmatprep.subr.mxu0 0.0
        %5648 = vmatpush1.msra.mxu0 0.0
        %5649 = vmatprep.subr.mxu0 0.0
        %5650 = vmatpush1.msra.mxu0 0.0
        %5651 = vmatprep.subr.mxu0 0.0
        %5652 = vmatpush1.msra.mxu0 0.0
        %5653 = vmatprep.subr.mxu0 0.0
        %5654 = vmatpush1.msra.mxu0 0.0
        %5655 = vmatprep.subr.mxu0 0.0
        %5656 = vmatpush1.msra.mxu0 0.0
        %5657 = vmatprep.subr.mxu0 0.0
        %5658 = vmatpush1.msra.mxu0 0.0
        %5659 = vmatprep.subr.mxu0 0.0
        %5660 = vmatpush1.msra.mxu0 0.0
        %5661 = vmatprep.subr.mxu0 0.0
        %5662 = vmatpush1.msra.mxu0 0.0
        %5663 = vmatprep.subr.mxu0 0.0
        %5664 = vmatpush1.msra.mxu0 0.0
        %5665 = vmatprep.subr.mxu0 0.0
        %5666 = vmatpush1.msra.mxu0 0.0
        %5667 = vmatprep.subr.mxu0 0.0
        %5668 = vmatpush1.msra.mxu0 0.0
        %5669 = vmatprep.subr.mxu0 0.0
        %5670 = vmatpush1.msra.mxu0 0.0
        %5671 = vmatprep.subr.mxu0 0.0
        %5672 = vmatpush1.msra.mxu0 0.0
        %5673 = vmatprep.subr.mxu0 0.0
        %5674 = vmatpush1.msra.mxu0 0.0
        %5675 = vmatprep.subr.mxu0 0.0
        %5676 = vmatpush1.msra.mxu0 0.0
        %5677 = vmatprep.subr.mxu0 0.0
        %5678 = vmatpush1.msra.mxu0 0.0
        %5679 = vmatprep.subr.mxu0 0.0
        %5680 = vmatpush1.msra.mxu0 0.0
        %5681 = vmatprep.subr.mxu0 0.0
        %5682 = vmatpush1.msra.mxu0 0.0
        %5683 = vmatprep.subr.mxu0 0.0
        %5684 = vmatpush1.msra.mxu0 0.0
        %5685 = vmatprep.subr.mxu0 0.0
        %5686 = vmatpush1.msra.mxu0 0.0
        %5687 = vmatprep.subr.mxu0 0.0
        %5688 = vmatpush1.msra.mxu0 0.0
        %5689 = vmatprep.subr.mxu0 0.0
        %5690 = vmatpush1.msra.mxu0 0.0
        %5691 = vmatprep.subr.mxu0 0.0
        %5692 = vmatpush1.msra.mxu0 0.0
        %5693 = vmatprep.mubr.f32.mxu0 0.0
        %5694 = vmatmul.mubr.f32.gmra.mrb[0].mxu0 %v5627
        %v5695 = vpop.f32.mrb[0].mxu0
        %v5696 = vadd.f32 0.0, %v5695
        %v5697 = vpop.f32.mrb[0].mxu0
        %5698 = vdwg.mxu0
        %v5699 = vpack.c.bf16 %v5623, %v5623
        %v5700 = vpack.c.bf16 %v5696, %v5696
        %v5701 = vld [vmem:[#allocation11 + $0x300] sm:$0xff]
        %v5702 = vld [vmem:[#allocation11 + $0x308] sm:$0xff]
        %v5703 = vld [vmem:[#allocation11 + $0x310] sm:$0xff]
        %v5704 = vld [vmem:[#allocation11 + $0x318] sm:$0xff]
        %v5705 = vld [vmem:[#allocation11 + $0x320] sm:$0xff]
        %v5706 = vld [vmem:[#allocation11 + $0x328] sm:$0xff]
        %v5707 = vld [vmem:[#allocation11 + $0x330] sm:$0xff]
        %v5708 = vld [vmem:[#allocation11 + $0x338] sm:$0xff]
        %v5709 = vld [vmem:[#allocation11 + $0x340] sm:$0xff]
        %v5710 = vld [vmem:[#allocation11 + $0x348] sm:$0xff]
        %v5711 = vld [vmem:[#allocation11 + $0x350] sm:$0xff]
        %v5712 = vld [vmem:[#allocation11 + $0x358] sm:$0xff]
        %v5713 = vld [vmem:[#allocation11 + $0x360] sm:$0xff]
        %v5714 = vld [vmem:[#allocation11 + $0x368] sm:$0xff]
        %v5715 = vld [vmem:[#allocation11 + $0x370] sm:$0xff]
        %v5716 = vld [vmem:[#allocation11 + $0x378] sm:$0xff]
        %v5717 = vld [vmem:[#allocation11 + $0x380] sm:$0xff]
        %v5718 = vld [vmem:[#allocation11 + $0x388] sm:$0xff]
        %v5719 = vld [vmem:[#allocation11 + $0x390] sm:$0xff]
        %v5720 = vld [vmem:[#allocation11 + $0x398] sm:$0xff]
        %v5721 = vld [vmem:[#allocation11 + $0x3a0] sm:$0xff]
        %v5722 = vld [vmem:[#allocation11 + $0x3a8] sm:$0xff]
        %v5723 = vld [vmem:[#allocation11 + $0x3b0] sm:$0xff]
        %v5724 = vld [vmem:[#allocation11 + $0x3b8] sm:$0xff]
        %v5725 = vld [vmem:[#allocation11 + $0x3c0] sm:$0xff]
        %v5726 = vld [vmem:[#allocation11 + $0x3c8] sm:$0xff]
        %v5727 = vld [vmem:[#allocation11 + $0x3d0] sm:$0xff]
        %v5728 = vld [vmem:[#allocation11 + $0x3d8] sm:$0xff]
        %v5729 = vld [vmem:[#allocation11 + $0x3e0] sm:$0xff]
        %v5730 = vld [vmem:[#allocation11 + $0x3e8] sm:$0xff]
        %v5731 = vld [vmem:[#allocation11 + $0x3f0] sm:$0xff]
        %v5732 = vld [vmem:[#allocation11 + $0x3f8] sm:$0xff]
        %v5735 = vunpack.c.l.b16 %v5699
        %v5736 = vunpack.c.l.b16 %v5700
        %v5737 = vrot.slane %v5736, 7
        %v5738 = vsel %vm4291, %v5737, %v5735
        %v5739 = vpack.c.b16 %v5738, %v5738
        %v5773 = vunpack.c.l.b16 %v5701
        %v5774 = vunpack.c.h.b16 %v5701
        %v5775 = vunpack.c.l.b16 %v5702
        %v5776 = vunpack.c.h.b16 %v5702
        %v5777 = vunpack.c.l.b16 %v5703
        %v5778 = vunpack.c.h.b16 %v5703
        %v5779 = vunpack.c.l.b16 %v5704
        %v5780 = vunpack.c.h.b16 %v5704
        %v5781 = vunpack.c.l.b16 %v5705
        %v5782 = vunpack.c.h.b16 %v5705
        %v5783 = vunpack.c.l.b16 %v5706
        %v5784 = vunpack.c.h.b16 %v5706
        %v5785 = vunpack.c.l.b16 %v5707
        %v5786 = vunpack.c.h.b16 %v5707
        %v5787 = vunpack.c.l.b16 %v5708
        %v5788 = vunpack.c.h.b16 %v5708
        %v5789 = vunpack.c.l.b16 %v5709
        %v5790 = vunpack.c.h.b16 %v5709
        %v5791 = vunpack.c.l.b16 %v5710
        %v5792 = vunpack.c.h.b16 %v5710
        %v5793 = vunpack.c.l.b16 %v5711
        %v5794 = vunpack.c.h.b16 %v5711
        %v5795 = vunpack.c.l.b16 %v5712
        %v5796 = vunpack.c.h.b16 %v5712
        %v5797 = vunpack.c.l.b16 %v5713
        %v5798 = vunpack.c.h.b16 %v5713
        %v5799 = vunpack.c.l.b16 %v5714
        %v5800 = vunpack.c.h.b16 %v5714
        %v5801 = vunpack.c.l.b16 %v5715
        %v5802 = vunpack.c.h.b16 %v5715
        %v5803 = vunpack.c.l.b16 %v5716
        %v5804 = vunpack.c.h.b16 %v5716
        %v5805 = vunpack.c.l.b16 %v5717
        %v5806 = vunpack.c.h.b16 %v5717
        %v5807 = vunpack.c.l.b16 %v5718
        %v5808 = vunpack.c.h.b16 %v5718
        %v5809 = vunpack.c.l.b16 %v5719
        %v5810 = vunpack.c.h.b16 %v5719
        %v5811 = vunpack.c.l.b16 %v5720
        %v5812 = vunpack.c.h.b16 %v5720
        %v5813 = vunpack.c.l.b16 %v5721
        %v5814 = vunpack.c.h.b16 %v5721
        %v5815 = vunpack.c.l.b16 %v5722
        %v5816 = vunpack.c.h.b16 %v5722
        %v5817 = vunpack.c.l.b16 %v5723
        %v5818 = vunpack.c.h.b16 %v5723
        %v5819 = vunpack.c.l.b16 %v5724
        %v5820 = vunpack.c.h.b16 %v5724
        %v5821 = vunpack.c.l.b16 %v5725
        %v5822 = vunpack.c.h.b16 %v5725
        %v5823 = vunpack.c.l.b16 %v5726
        %v5824 = vunpack.c.h.b16 %v5726
        %v5825 = vunpack.c.l.b16 %v5727
        %v5826 = vunpack.c.h.b16 %v5727
        %v5827 = vunpack.c.l.b16 %v5728
        %v5828 = vunpack.c.h.b16 %v5728
        %v5829 = vunpack.c.l.b16 %v5729
        %v5830 = vunpack.c.h.b16 %v5729
        %v5831 = vunpack.c.l.b16 %v5730
        %v5832 = vunpack.c.h.b16 %v5730
        %v5833 = vunpack.c.l.b16 %v5731
        %v5834 = vunpack.c.h.b16 %v5731
        %v5835 = vunpack.c.l.b16 %v5732
        %v5836 = vunpack.c.h.b16 %v5732
        %v5837 = vpack.c.b16 %v5777, %v5773
        %v5838 = vpack.c.b16 %v5778, %v5774
        %v5839 = vpack.c.b16 %v5779, %v5775
        %v5840 = vpack.c.b16 %v5780, %v5776
        %v5841 = vpack.c.b16 %v5785, %v5781
        %v5842 = vpack.c.b16 %v5786, %v5782
        %v5843 = vpack.c.b16 %v5787, %v5783
        %v5844 = vpack.c.b16 %v5788, %v5784
        %v5845 = vpack.c.b16 %v5793, %v5789
        %v5846 = vpack.c.b16 %v5794, %v5790
        %v5847 = vpack.c.b16 %v5795, %v5791
        %v5848 = vpack.c.b16 %v5796, %v5792
        %v5849 = vpack.c.b16 %v5801, %v5797
        %v5850 = vpack.c.b16 %v5802, %v5798
        %v5851 = vpack.c.b16 %v5803, %v5799
        %v5852 = vpack.c.b16 %v5804, %v5800
        %v5853 = vpack.c.b16 %v5809, %v5805
        %v5854 = vpack.c.b16 %v5810, %v5806
        %v5855 = vpack.c.b16 %v5811, %v5807
        %v5856 = vpack.c.b16 %v5812, %v5808
        %v5857 = vpack.c.b16 %v5817, %v5813
        %v5858 = vpack.c.b16 %v5818, %v5814
        %v5859 = vpack.c.b16 %v5819, %v5815
        %v5860 = vpack.c.b16 %v5820, %v5816
        %v5861 = vpack.c.b16 %v5825, %v5821
        %v5862 = vpack.c.b16 %v5826, %v5822
        %v5863 = vpack.c.b16 %v5827, %v5823
        %v5864 = vpack.c.b16 %v5828, %v5824
        %v5865 = vpack.c.b16 %v5833, %v5829
        %v5866 = vpack.c.b16 %v5834, %v5830
        %v5867 = vpack.c.b16 %v5835, %v5831
        %v5868 = vpack.c.b16 %v5836, %v5832
        %5901 = vmatprep.subr.bf16.mxu0 %v5838
        %5902 = vmatpush1.bf16.msra.mxu0 %v5837
        %5903 = vmatprep.subr.bf16.mxu0 %v5842
        %5904 = vmatpush1.bf16.msra.mxu0 %v5841
        %5905 = vmatprep.subr.bf16.mxu0 %v5846
        %5906 = vmatpush1.bf16.msra.mxu0 %v5845
        %5907 = vmatprep.subr.bf16.mxu0 %v5850
        %5908 = vmatpush1.bf16.msra.mxu0 %v5849
        %5909 = vmatprep.subr.bf16.mxu0 %v5854
        %5910 = vmatpush1.bf16.msra.mxu0 %v5853
        %5911 = vmatprep.subr.bf16.mxu0 %v5858
        %5912 = vmatpush1.bf16.msra.mxu0 %v5857
        %5913 = vmatprep.subr.bf16.mxu0 %v5862
        %5914 = vmatpush1.bf16.msra.mxu0 %v5861
        %5915 = vmatprep.subr.bf16.mxu0 %v5866
        %5916 = vmatpush1.bf16.msra.mxu0 %v5865
        %5917 = vmatprep.subr.bf16.mxu0 0
        %5918 = vmatpush1.bf16.msra.mxu0 0
        %5919 = vmatprep.subr.bf16.mxu0 0
        %5920 = vmatpush1.bf16.msra.mxu0 0
        %5921 = vmatprep.subr.bf16.mxu0 0
        %5922 = vmatpush1.bf16.msra.mxu0 0
        %5923 = vmatprep.subr.bf16.mxu0 0
        %5924 = vmatpush1.bf16.msra.mxu0 0
        %5925 = vmatprep.subr.bf16.mxu0 0
        %5926 = vmatpush1.bf16.msra.mxu0 0
        %5927 = vmatprep.subr.bf16.mxu0 0
        %5928 = vmatpush1.bf16.msra.mxu0 0
        %5929 = vmatprep.subr.bf16.mxu0 0
        %5930 = vmatpush1.bf16.msra.mxu0 0
        %5931 = vmatprep.subr.bf16.mxu0 0
        %5932 = vmatpush1.bf16.msra.mxu0 0
        %5933 = vmatprep.mubr.bf16.mxu0 0
        %5934 = vmatmul.mubr.bf16.gmra.mrb[0].mxu0 %v5739
        %v5935 = vpop.f32.mrb[0].mxu0
        %v5936 = vadd.f32 0.0, %v5935
        %v5937 = vpop.f32.mrb[0].mxu0
        %v5938 = vadd.f32 0.0, %v5937
        %v5939 = vpop.f32.mrb[0].mxu0
        %v5940 = vpop.f32.mrb[0].mxu0
        %5941 = vdwg.mxu0
        %5942 = vmatprep.subr.bf16.mxu0 %v5840
        %5943 = vmatpush1.bf16.msra.mxu0 %v5839
        %5944 = vmatprep.subr.bf16.mxu0 %v5844
        %5945 = vmatpush1.bf16.msra.mxu0 %v5843
        %5946 = vmatprep.subr.bf16.mxu0 %v5848
        %5947 = vmatpush1.bf16.msra.mxu0 %v5847
        %5948 = vmatprep.subr.bf16.mxu0 %v5852
        %5949 = vmatpush1.bf16.msra.mxu0 %v5851
        %5950 = vmatprep.subr.bf16.mxu0 %v5856
        %5951 = vmatpush1.bf16.msra.mxu0 %v5855
        %5952 = vmatprep.subr.bf16.mxu0 %v5860
        %5953 = vmatpush1.bf16.msra.mxu0 %v5859
        %5954 = vmatprep.subr.bf16.mxu0 %v5864
        %5955 = vmatpush1.bf16.msra.mxu0 %v5863
        %5956 = vmatprep.subr.bf16.mxu0 %v5868
        %5957 = vmatpush1.bf16.msra.mxu0 %v5867
        %5958 = vmatprep.subr.bf16.mxu0 0
        %5959 = vmatpush1.bf16.msra.mxu0 0
        %5960 = vmatprep.subr.bf16.mxu0 0
        %5961 = vmatpush1.bf16.msra.mxu0 0
        %5962 = vmatprep.subr.bf16.mxu0 0
        %5963 = vmatpush1.bf16.msra.mxu0 0
        %5964 = vmatprep.subr.bf16.mxu0 0
        %5965 = vmatpush1.bf16.msra.mxu0 0
        %5966 = vmatprep.subr.bf16.mxu0 0
        %5967 = vmatpush1.bf16.msra.mxu0 0
        %5968 = vmatprep.subr.bf16.mxu0 0
        %5969 = vmatpush1.bf16.msra.mxu0 0
        %5970 = vmatprep.subr.bf16.mxu0 0
        %5971 = vmatpush1.bf16.msra.mxu0 0
        %5972 = vmatprep.subr.bf16.mxu0 0
        %5973 = vmatpush1.bf16.msra.mxu0 0
        %5974 = vmatprep.mubr.bf16.mxu0 0
        %5975 = vmatmul.mubr.bf16.gmra.mrb[0].mxu0 %v5739
        %v5976 = vpop.f32.mrb[0].mxu0
        %v5977 = vadd.f32 0.0, %v5976
        %v5978 = vpop.f32.mrb[0].mxu0
        %v5979 = vadd.f32 0.0, %v5978
        %v5980 = vpop.f32.mrb[0].mxu0
        %v5981 = vpop.f32.mrb[0].mxu0
        %5982 = vdwg.mxu0
        %v5983 = vadd.f32 %v5383, %v5936
        %v5984 = vadd.f32 %v5384, %v5938
        %v5985 = vadd.f32 %v5385, %v5977
        %v5986 = vadd.f32 %v5386, %v5979
        %v5987 = vld [vmem:[%s9] sm:$0xf]
        %v5989 = vlaneseq
        %v5990 = vshrl.u32 %v5989, 7
        %v5991 = vsub.s32 0, %v5990
        %v5992 = vrot.slane %v5987, %v5991
        %v5993 = vlaneseq
        %v5994 = vshrl.u32 %v5993, 7
        %v5995 = vsub.s32 1, %v5994
        %v5996 = vrot.slane %v5987, %v5995
        %v5997 = vlaneseq
        %v5998 = vshrl.u32 %v5997, 7
        %v5999 = vsub.s32 2, %v5998
        %v6000 = vrot.slane %v5987, %v5999
        %v6001 = vlaneseq
        %v6002 = vshrl.u32 %v6001, 7
        %v6003 = vsub.s32 3, %v6002
        %v6004 = vrot.slane %v5987, %v6003
        %v6009 = vadd.f32 %v5983, %v5992
        %v6010 = vadd.f32 %v5984, %v5996
        %v6011 = vadd.f32 %v5985, %v6000
        %v6012 = vadd.f32 %v5986, %v6004
        %v6013 = vpack.c.bf16 %v6009, %v6009
        %v6014 = vpack.c.bf16 %v6010, %v6010
        %v6015 = vpack.c.bf16 %v6011, %v6011
        %v6016 = vpack.c.bf16 %v6012, %v6012
        %v6017 = vld [vmem:[#allocation13] sm:$0xff]
        %v6018 = vld [vmem:[#allocation13 + $0x8] sm:$0xff]
        %v6019 = vld [vmem:[#allocation13 + $0x10] sm:$0xff]
        %v6020 = vld [vmem:[#allocation13 + $0x18] sm:$0xff]
        %v6021 = vld [vmem:[#allocation13 + $0x20] sm:$0xff]
        %v6022 = vld [vmem:[#allocation13 + $0x28] sm:$0xff]
        %v6023 = vld [vmem:[#allocation13 + $0x30] sm:$0xff]
        %v6024 = vld [vmem:[#allocation13 + $0x38] sm:$0xff]
        %v6025 = vld [vmem:[#allocation13 + $0x40] sm:$0xff]
        %v6026 = vld [vmem:[#allocation13 + $0x48] sm:$0xff]
        %v6027 = vld [vmem:[#allocation13 + $0x50] sm:$0xff]
        %v6028 = vld [vmem:[#allocation13 + $0x58] sm:$0xff]
        %v6029 = vld [vmem:[#allocation13 + $0x60] sm:$0xff]
        %v6030 = vld [vmem:[#allocation13 + $0x68] sm:$0xff]
        %v6031 = vld [vmem:[#allocation13 + $0x70] sm:$0xff]
        %v6032 = vld [vmem:[#allocation13 + $0x78] sm:$0xff]
        %v6033 = vld [vmem:[#allocation13 + $0x80] sm:$0xff]
        %v6034 = vld [vmem:[#allocation13 + $0x88] sm:$0xff]
        %v6035 = vld [vmem:[#allocation13 + $0x90] sm:$0xff]
        %v6036 = vld [vmem:[#allocation13 + $0x98] sm:$0xff]
        %v6037 = vld [vmem:[#allocation13 + $0xa0] sm:$0xff]
        %v6038 = vld [vmem:[#allocation13 + $0xa8] sm:$0xff]
        %v6039 = vld [vmem:[#allocation13 + $0xb0] sm:$0xff]
        %v6040 = vld [vmem:[#allocation13 + $0xb8] sm:$0xff]
        %v6041 = vld [vmem:[#allocation13 + $0xc0] sm:$0xff]
        %v6042 = vld [vmem:[#allocation13 + $0xc8] sm:$0xff]
        %v6043 = vld [vmem:[#allocation13 + $0xd0] sm:$0xff]
        %v6044 = vld [vmem:[#allocation13 + $0xd8] sm:$0xff]
        %v6045 = vld [vmem:[#allocation13 + $0xe0] sm:$0xff]
        %v6046 = vld [vmem:[#allocation13 + $0xe8] sm:$0xff]
        %v6047 = vld [vmem:[#allocation13 + $0xf0] sm:$0xff]
        %v6048 = vld [vmem:[#allocation13 + $0xf8] sm:$0xff]
        %v6049 = vld [vmem:[#allocation13 + $0x100] sm:$0xff]
        %v6050 = vld [vmem:[#allocation13 + $0x108] sm:$0xff]
        %v6051 = vld [vmem:[#allocation13 + $0x110] sm:$0xff]
        %v6052 = vld [vmem:[#allocation13 + $0x118] sm:$0xff]
        %v6053 = vld [vmem:[#allocation13 + $0x120] sm:$0xff]
        %v6054 = vld [vmem:[#allocation13 + $0x128] sm:$0xff]
        %v6055 = vld [vmem:[#allocation13 + $0x130] sm:$0xff]
        %v6056 = vld [vmem:[#allocation13 + $0x138] sm:$0xff]
        %v6057 = vld [vmem:[#allocation13 + $0x140] sm:$0xff]
        %v6058 = vld [vmem:[#allocation13 + $0x148] sm:$0xff]
        %v6059 = vld [vmem:[#allocation13 + $0x150] sm:$0xff]
        %v6060 = vld [vmem:[#allocation13 + $0x158] sm:$0xff]
        %v6061 = vld [vmem:[#allocation13 + $0x160] sm:$0xff]
        %v6062 = vld [vmem:[#allocation13 + $0x168] sm:$0xff]
        %v6063 = vld [vmem:[#allocation13 + $0x170] sm:$0xff]
        %v6064 = vld [vmem:[#allocation13 + $0x178] sm:$0xff]
        %v6065 = vld [vmem:[#allocation13 + $0x180] sm:$0xff]
        %v6066 = vld [vmem:[#allocation13 + $0x188] sm:$0xff]
        %v6067 = vld [vmem:[#allocation13 + $0x190] sm:$0xff]
        %v6068 = vld [vmem:[#allocation13 + $0x198] sm:$0xff]
        %v6069 = vld [vmem:[#allocation13 + $0x1a0] sm:$0xff]
        %v6070 = vld [vmem:[#allocation13 + $0x1a8] sm:$0xff]
        %v6071 = vld [vmem:[#allocation13 + $0x1b0] sm:$0xff]
        %v6072 = vld [vmem:[#allocation13 + $0x1b8] sm:$0xff]
        %v6073 = vld [vmem:[#allocation13 + $0x1c0] sm:$0xff]
        %v6074 = vld [vmem:[#allocation13 + $0x1c8] sm:$0xff]
        %v6075 = vld [vmem:[#allocation13 + $0x1d0] sm:$0xff]
        %v6076 = vld [vmem:[#allocation13 + $0x1d8] sm:$0xff]
        %v6077 = vld [vmem:[#allocation13 + $0x1e0] sm:$0xff]
        %v6078 = vld [vmem:[#allocation13 + $0x1e8] sm:$0xff]
        %v6079 = vld [vmem:[#allocation13 + $0x1f0] sm:$0xff]
        %v6080 = vld [vmem:[#allocation13 + $0x1f8] sm:$0xff]
        %v6081 = vld [vmem:[#allocation13 + $0x200] sm:$0xff]
        %v6082 = vld [vmem:[#allocation13 + $0x208] sm:$0xff]
        %v6083 = vld [vmem:[#allocation13 + $0x210] sm:$0xff]
        %v6084 = vld [vmem:[#allocation13 + $0x218] sm:$0xff]
        %v6085 = vld [vmem:[#allocation13 + $0x220] sm:$0xff]
        %v6086 = vld [vmem:[#allocation13 + $0x228] sm:$0xff]
        %v6087 = vld [vmem:[#allocation13 + $0x230] sm:$0xff]
        %v6088 = vld [vmem:[#allocation13 + $0x238] sm:$0xff]
        %v6089 = vld [vmem:[#allocation13 + $0x240] sm:$0xff]
        %v6090 = vld [vmem:[#allocation13 + $0x248] sm:$0xff]
        %v6091 = vld [vmem:[#allocation13 + $0x250] sm:$0xff]
        %v6092 = vld [vmem:[#allocation13 + $0x258] sm:$0xff]
        %v6093 = vld [vmem:[#allocation13 + $0x260] sm:$0xff]
        %v6094 = vld [vmem:[#allocation13 + $0x268] sm:$0xff]
        %v6095 = vld [vmem:[#allocation13 + $0x270] sm:$0xff]
        %v6096 = vld [vmem:[#allocation13 + $0x278] sm:$0xff]
        %v6097 = vld [vmem:[#allocation13 + $0x280] sm:$0xff]
        %v6098 = vld [vmem:[#allocation13 + $0x288] sm:$0xff]
        %v6099 = vld [vmem:[#allocation13 + $0x290] sm:$0xff]
        %v6100 = vld [vmem:[#allocation13 + $0x298] sm:$0xff]
        %v6101 = vld [vmem:[#allocation13 + $0x2a0] sm:$0xff]
        %v6102 = vld [vmem:[#allocation13 + $0x2a8] sm:$0xff]
        %v6103 = vld [vmem:[#allocation13 + $0x2b0] sm:$0xff]
        %v6104 = vld [vmem:[#allocation13 + $0x2b8] sm:$0xff]
        %v6105 = vld [vmem:[#allocation13 + $0x2c0] sm:$0xff]
        %v6106 = vld [vmem:[#allocation13 + $0x2c8] sm:$0xff]
        %v6107 = vld [vmem:[#allocation13 + $0x2d0] sm:$0xff]
        %v6108 = vld [vmem:[#allocation13 + $0x2d8] sm:$0xff]
        %v6109 = vld [vmem:[#allocation13 + $0x2e0] sm:$0xff]
        %v6110 = vld [vmem:[#allocation13 + $0x2e8] sm:$0xff]
        %v6111 = vld [vmem:[#allocation13 + $0x2f0] sm:$0xff]
        %v6112 = vld [vmem:[#allocation13 + $0x2f8] sm:$0xff]
        %v6113 = vld [vmem:[#allocation13 + $0x300] sm:$0xff]
        %v6114 = vld [vmem:[#allocation13 + $0x308] sm:$0xff]
        %v6115 = vld [vmem:[#allocation13 + $0x310] sm:$0xff]
        %v6116 = vld [vmem:[#allocation13 + $0x318] sm:$0xff]
        %v6117 = vld [vmem:[#allocation13 + $0x320] sm:$0xff]
        %v6118 = vld [vmem:[#allocation13 + $0x328] sm:$0xff]
        %v6119 = vld [vmem:[#allocation13 + $0x330] sm:$0xff]
        %v6120 = vld [vmem:[#allocation13 + $0x338] sm:$0xff]
        %v6121 = vld [vmem:[#allocation13 + $0x340] sm:$0xff]
        %v6122 = vld [vmem:[#allocation13 + $0x348] sm:$0xff]
        %v6123 = vld [vmem:[#allocation13 + $0x350] sm:$0xff]
        %v6124 = vld [vmem:[#allocation13 + $0x358] sm:$0xff]
        %v6125 = vld [vmem:[#allocation13 + $0x360] sm:$0xff]
        %v6126 = vld [vmem:[#allocation13 + $0x368] sm:$0xff]
        %v6127 = vld [vmem:[#allocation13 + $0x370] sm:$0xff]
        %v6128 = vld [vmem:[#allocation13 + $0x378] sm:$0xff]
        %v6129 = vld [vmem:[#allocation13 + $0x380] sm:$0xff]
        %v6130 = vld [vmem:[#allocation13 + $0x388] sm:$0xff]
        %v6131 = vld [vmem:[#allocation13 + $0x390] sm:$0xff]
        %v6132 = vld [vmem:[#allocation13 + $0x398] sm:$0xff]
        %v6133 = vld [vmem:[#allocation13 + $0x3a0] sm:$0xff]
        %v6134 = vld [vmem:[#allocation13 + $0x3a8] sm:$0xff]
        %v6135 = vld [vmem:[#allocation13 + $0x3b0] sm:$0xff]
        %v6136 = vld [vmem:[#allocation13 + $0x3b8] sm:$0xff]
        %v6137 = vld [vmem:[#allocation13 + $0x3c0] sm:$0xff]
        %v6138 = vld [vmem:[#allocation13 + $0x3c8] sm:$0xff]
        %v6139 = vld [vmem:[#allocation13 + $0x3d0] sm:$0xff]
        %v6140 = vld [vmem:[#allocation13 + $0x3d8] sm:$0xff]
        %v6141 = vld [vmem:[#allocation13 + $0x3e0] sm:$0xff]
        %v6142 = vld [vmem:[#allocation13 + $0x3e8] sm:$0xff]
        %v6143 = vld [vmem:[#allocation13 + $0x3f0] sm:$0xff]
        %v6144 = vld [vmem:[#allocation13 + $0x3f8] sm:$0xff]
        %v6145 = vld [vmem:[%s11] sm:$0xf]
        %v6147 = vlaneseq
        %v6148 = vshrl.u32 %v6147, 7
        %v6149 = vsub.s32 0, %v6148
        %v6150 = vrot.slane %v6145, %v6149
        %v6151 = vlaneseq
        %v6152 = vshrl.u32 %v6151, 7
        %v6153 = vsub.s32 1, %v6152
        %v6154 = vrot.slane %v6145, %v6153
        %v6155 = vlaneseq
        %v6156 = vshrl.u32 %v6155, 7
        %v6157 = vsub.s32 2, %v6156
        %v6158 = vrot.slane %v6145, %v6157
        %v6159 = vlaneseq
        %v6160 = vshrl.u32 %v6159, 7
        %v6161 = vsub.s32 3, %v6160
        %v6162 = vrot.slane %v6145, %v6161
        %v6295 = vunpack.c.l.b16 %v6017
        %v6296 = vunpack.c.h.b16 %v6017
        %v6297 = vunpack.c.l.b16 %v6018
        %v6298 = vunpack.c.h.b16 %v6018
        %v6299 = vunpack.c.l.b16 %v6019
        %v6300 = vunpack.c.h.b16 %v6019
        %v6301 = vunpack.c.l.b16 %v6020
        %v6302 = vunpack.c.h.b16 %v6020
        %v6303 = vunpack.c.l.b16 %v6021
        %v6304 = vunpack.c.h.b16 %v6021
        %v6305 = vunpack.c.l.b16 %v6022
        %v6306 = vunpack.c.h.b16 %v6022
        %v6307 = vunpack.c.l.b16 %v6023
        %v6308 = vunpack.c.h.b16 %v6023
        %v6309 = vunpack.c.l.b16 %v6024
        %v6310 = vunpack.c.h.b16 %v6024
        %v6311 = vunpack.c.l.b16 %v6025
        %v6312 = vunpack.c.h.b16 %v6025
        %v6313 = vunpack.c.l.b16 %v6026
        %v6314 = vunpack.c.h.b16 %v6026
        %v6315 = vunpack.c.l.b16 %v6027
        %v6316 = vunpack.c.h.b16 %v6027
        %v6317 = vunpack.c.l.b16 %v6028
        %v6318 = vunpack.c.h.b16 %v6028
        %v6319 = vunpack.c.l.b16 %v6029
        %v6320 = vunpack.c.h.b16 %v6029
        %v6321 = vunpack.c.l.b16 %v6030
        %v6322 = vunpack.c.h.b16 %v6030
        %v6323 = vunpack.c.l.b16 %v6031
        %v6324 = vunpack.c.h.b16 %v6031
        %v6325 = vunpack.c.l.b16 %v6032
        %v6326 = vunpack.c.h.b16 %v6032
        %v6327 = vunpack.c.l.b16 %v6033
        %v6328 = vunpack.c.h.b16 %v6033
        %v6329 = vunpack.c.l.b16 %v6034
        %v6330 = vunpack.c.h.b16 %v6034
        %v6331 = vunpack.c.l.b16 %v6035
        %v6332 = vunpack.c.h.b16 %v6035
        %v6333 = vunpack.c.l.b16 %v6036
        %v6334 = vunpack.c.h.b16 %v6036
        %v6335 = vunpack.c.l.b16 %v6037
        %v6336 = vunpack.c.h.b16 %v6037
        %v6337 = vunpack.c.l.b16 %v6038
        %v6338 = vunpack.c.h.b16 %v6038
        %v6339 = vunpack.c.l.b16 %v6039
        %v6340 = vunpack.c.h.b16 %v6039
        %v6341 = vunpack.c.l.b16 %v6040
        %v6342 = vunpack.c.h.b16 %v6040
        %v6343 = vunpack.c.l.b16 %v6041
        %v6344 = vunpack.c.h.b16 %v6041
        %v6345 = vunpack.c.l.b16 %v6042
        %v6346 = vunpack.c.h.b16 %v6042
        %v6347 = vunpack.c.l.b16 %v6043
        %v6348 = vunpack.c.h.b16 %v6043
        %v6349 = vunpack.c.l.b16 %v6044
        %v6350 = vunpack.c.h.b16 %v6044
        %v6351 = vunpack.c.l.b16 %v6045
        %v6352 = vunpack.c.h.b16 %v6045
        %v6353 = vunpack.c.l.b16 %v6046
        %v6354 = vunpack.c.h.b16 %v6046
        %v6355 = vunpack.c.l.b16 %v6047
        %v6356 = vunpack.c.h.b16 %v6047
        %v6357 = vunpack.c.l.b16 %v6048
        %v6358 = vunpack.c.h.b16 %v6048
        %v6359 = vunpack.c.l.b16 %v6049
        %v6360 = vunpack.c.h.b16 %v6049
        %v6361 = vunpack.c.l.b16 %v6050
        %v6362 = vunpack.c.h.b16 %v6050
        %v6363 = vunpack.c.l.b16 %v6051
        %v6364 = vunpack.c.h.b16 %v6051
        %v6365 = vunpack.c.l.b16 %v6052
        %v6366 = vunpack.c.h.b16 %v6052
        %v6367 = vunpack.c.l.b16 %v6053
        %v6368 = vunpack.c.h.b16 %v6053
        %v6369 = vunpack.c.l.b16 %v6054
        %v6370 = vunpack.c.h.b16 %v6054
        %v6371 = vunpack.c.l.b16 %v6055
        %v6372 = vunpack.c.h.b16 %v6055
        %v6373 = vunpack.c.l.b16 %v6056
        %v6374 = vunpack.c.h.b16 %v6056
        %v6375 = vunpack.c.l.b16 %v6057
        %v6376 = vunpack.c.h.b16 %v6057
        %v6377 = vunpack.c.l.b16 %v6058
        %v6378 = vunpack.c.h.b16 %v6058
        %v6379 = vunpack.c.l.b16 %v6059
        %v6380 = vunpack.c.h.b16 %v6059
        %v6381 = vunpack.c.l.b16 %v6060
        %v6382 = vunpack.c.h.b16 %v6060
        %v6383 = vunpack.c.l.b16 %v6061
        %v6384 = vunpack.c.h.b16 %v6061
        %v6385 = vunpack.c.l.b16 %v6062
        %v6386 = vunpack.c.h.b16 %v6062
        %v6387 = vunpack.c.l.b16 %v6063
        %v6388 = vunpack.c.h.b16 %v6063
        %v6389 = vunpack.c.l.b16 %v6064
        %v6390 = vunpack.c.h.b16 %v6064
        %v6391 = vunpack.c.l.b16 %v6065
        %v6392 = vunpack.c.h.b16 %v6065
        %v6393 = vunpack.c.l.b16 %v6066
        %v6394 = vunpack.c.h.b16 %v6066
        %v6395 = vunpack.c.l.b16 %v6067
        %v6396 = vunpack.c.h.b16 %v6067
        %v6397 = vunpack.c.l.b16 %v6068
        %v6398 = vunpack.c.h.b16 %v6068
        %v6399 = vunpack.c.l.b16 %v6069
        %v6400 = vunpack.c.h.b16 %v6069
        %v6401 = vunpack.c.l.b16 %v6070
        %v6402 = vunpack.c.h.b16 %v6070
        %v6403 = vunpack.c.l.b16 %v6071
        %v6404 = vunpack.c.h.b16 %v6071
        %v6405 = vunpack.c.l.b16 %v6072
        %v6406 = vunpack.c.h.b16 %v6072
        %v6407 = vunpack.c.l.b16 %v6073
        %v6408 = vunpack.c.h.b16 %v6073
        %v6409 = vunpack.c.l.b16 %v6074
        %v6410 = vunpack.c.h.b16 %v6074
        %v6411 = vunpack.c.l.b16 %v6075
        %v6412 = vunpack.c.h.b16 %v6075
        %v6413 = vunpack.c.l.b16 %v6076
        %v6414 = vunpack.c.h.b16 %v6076
        %v6415 = vunpack.c.l.b16 %v6077
        %v6416 = vunpack.c.h.b16 %v6077
        %v6417 = vunpack.c.l.b16 %v6078
        %v6418 = vunpack.c.h.b16 %v6078
        %v6419 = vunpack.c.l.b16 %v6079
        %v6420 = vunpack.c.h.b16 %v6079
        %v6421 = vunpack.c.l.b16 %v6080
        %v6422 = vunpack.c.h.b16 %v6080
        %v6423 = vunpack.c.l.b16 %v6081
        %v6424 = vunpack.c.h.b16 %v6081
        %v6425 = vunpack.c.l.b16 %v6082
        %v6426 = vunpack.c.h.b16 %v6082
        %v6427 = vunpack.c.l.b16 %v6083
        %v6428 = vunpack.c.h.b16 %v6083
        %v6429 = vunpack.c.l.b16 %v6084
        %v6430 = vunpack.c.h.b16 %v6084
        %v6431 = vunpack.c.l.b16 %v6085
        %v6432 = vunpack.c.h.b16 %v6085
        %v6433 = vunpack.c.l.b16 %v6086
        %v6434 = vunpack.c.h.b16 %v6086
        %v6435 = vunpack.c.l.b16 %v6087
        %v6436 = vunpack.c.h.b16 %v6087
        %v6437 = vunpack.c.l.b16 %v6088
        %v6438 = vunpack.c.h.b16 %v6088
        %v6439 = vunpack.c.l.b16 %v6089
        %v6440 = vunpack.c.h.b16 %v6089
        %v6441 = vunpack.c.l.b16 %v6090
        %v6442 = vunpack.c.h.b16 %v6090
        %v6443 = vunpack.c.l.b16 %v6091
        %v6444 = vunpack.c.h.b16 %v6091
        %v6445 = vunpack.c.l.b16 %v6092
        %v6446 = vunpack.c.h.b16 %v6092
        %v6447 = vunpack.c.l.b16 %v6093
        %v6448 = vunpack.c.h.b16 %v6093
        %v6449 = vunpack.c.l.b16 %v6094
        %v6450 = vunpack.c.h.b16 %v6094
        %v6451 = vunpack.c.l.b16 %v6095
        %v6452 = vunpack.c.h.b16 %v6095
        %v6453 = vunpack.c.l.b16 %v6096
        %v6454 = vunpack.c.h.b16 %v6096
        %v6455 = vunpack.c.l.b16 %v6097
        %v6456 = vunpack.c.h.b16 %v6097
        %v6457 = vunpack.c.l.b16 %v6098
        %v6458 = vunpack.c.h.b16 %v6098
        %v6459 = vunpack.c.l.b16 %v6099
        %v6460 = vunpack.c.h.b16 %v6099
        %v6461 = vunpack.c.l.b16 %v6100
        %v6462 = vunpack.c.h.b16 %v6100
        %v6463 = vunpack.c.l.b16 %v6101
        %v6464 = vunpack.c.h.b16 %v6101
        %v6465 = vunpack.c.l.b16 %v6102
        %v6466 = vunpack.c.h.b16 %v6102
        %v6467 = vunpack.c.l.b16 %v6103
        %v6468 = vunpack.c.h.b16 %v6103
        %v6469 = vunpack.c.l.b16 %v6104
        %v6470 = vunpack.c.h.b16 %v6104
        %v6471 = vunpack.c.l.b16 %v6105
        %v6472 = vunpack.c.h.b16 %v6105
        %v6473 = vunpack.c.l.b16 %v6106
        %v6474 = vunpack.c.h.b16 %v6106
        %v6475 = vunpack.c.l.b16 %v6107
        %v6476 = vunpack.c.h.b16 %v6107
        %v6477 = vunpack.c.l.b16 %v6108
        %v6478 = vunpack.c.h.b16 %v6108
        %v6479 = vunpack.c.l.b16 %v6109
        %v6480 = vunpack.c.h.b16 %v6109
        %v6481 = vunpack.c.l.b16 %v6110
        %v6482 = vunpack.c.h.b16 %v6110
        %v6483 = vunpack.c.l.b16 %v6111
        %v6484 = vunpack.c.h.b16 %v6111
        %v6485 = vunpack.c.l.b16 %v6112
        %v6486 = vunpack.c.h.b16 %v6112
        %v6487 = vunpack.c.l.b16 %v6113
        %v6488 = vunpack.c.h.b16 %v6113
        %v6489 = vunpack.c.l.b16 %v6114
        %v6490 = vunpack.c.h.b16 %v6114
        %v6491 = vunpack.c.l.b16 %v6115
        %v6492 = vunpack.c.h.b16 %v6115
        %v6493 = vunpack.c.l.b16 %v6116
        %v6494 = vunpack.c.h.b16 %v6116
        %v6495 = vunpack.c.l.b16 %v6117
        %v6496 = vunpack.c.h.b16 %v6117
        %v6497 = vunpack.c.l.b16 %v6118
        %v6498 = vunpack.c.h.b16 %v6118
        %v6499 = vunpack.c.l.b16 %v6119
        %v6500 = vunpack.c.h.b16 %v6119
        %v6501 = vunpack.c.l.b16 %v6120
        %v6502 = vunpack.c.h.b16 %v6120
        %v6503 = vunpack.c.l.b16 %v6121
        %v6504 = vunpack.c.h.b16 %v6121
        %v6505 = vunpack.c.l.b16 %v6122
        %v6506 = vunpack.c.h.b16 %v6122
        %v6507 = vunpack.c.l.b16 %v6123
        %v6508 = vunpack.c.h.b16 %v6123
        %v6509 = vunpack.c.l.b16 %v6124
        %v6510 = vunpack.c.h.b16 %v6124
        %v6511 = vunpack.c.l.b16 %v6125
        %v6512 = vunpack.c.h.b16 %v6125
        %v6513 = vunpack.c.l.b16 %v6126
        %v6514 = vunpack.c.h.b16 %v6126
        %v6515 = vunpack.c.l.b16 %v6127
        %v6516 = vunpack.c.h.b16 %v6127
        %v6517 = vunpack.c.l.b16 %v6128
        %v6518 = vunpack.c.h.b16 %v6128
        %v6519 = vunpack.c.l.b16 %v6129
        %v6520 = vunpack.c.h.b16 %v6129
        %v6521 = vunpack.c.l.b16 %v6130
        %v6522 = vunpack.c.h.b16 %v6130
        %v6523 = vunpack.c.l.b16 %v6131
        %v6524 = vunpack.c.h.b16 %v6131
        %v6525 = vunpack.c.l.b16 %v6132
        %v6526 = vunpack.c.h.b16 %v6132
        %v6527 = vunpack.c.l.b16 %v6133
        %v6528 = vunpack.c.h.b16 %v6133
        %v6529 = vunpack.c.l.b16 %v6134
        %v6530 = vunpack.c.h.b16 %v6134
        %v6531 = vunpack.c.l.b16 %v6135
        %v6532 = vunpack.c.h.b16 %v6135
        %v6533 = vunpack.c.l.b16 %v6136
        %v6534 = vunpack.c.h.b16 %v6136
        %v6535 = vunpack.c.l.b16 %v6137
        %v6536 = vunpack.c.h.b16 %v6137
        %v6537 = vunpack.c.l.b16 %v6138
        %v6538 = vunpack.c.h.b16 %v6138
        %v6539 = vunpack.c.l.b16 %v6139
        %v6540 = vunpack.c.h.b16 %v6139
        %v6541 = vunpack.c.l.b16 %v6140
        %v6542 = vunpack.c.h.b16 %v6140
        %v6543 = vunpack.c.l.b16 %v6141
        %v6544 = vunpack.c.h.b16 %v6141
        %v6545 = vunpack.c.l.b16 %v6142
        %v6546 = vunpack.c.h.b16 %v6142
        %v6547 = vunpack.c.l.b16 %v6143
        %v6548 = vunpack.c.h.b16 %v6143
        %v6549 = vunpack.c.l.b16 %v6144
        %v6550 = vunpack.c.h.b16 %v6144
        %v6551 = vpack.c.b16 %v6299, %v6295
        %v6552 = vpack.c.b16 %v6300, %v6296
        %v6553 = vpack.c.b16 %v6301, %v6297
        %v6554 = vpack.c.b16 %v6302, %v6298
        %v6555 = vpack.c.b16 %v6307, %v6303
        %v6556 = vpack.c.b16 %v6308, %v6304
        %v6557 = vpack.c.b16 %v6309, %v6305
        %v6558 = vpack.c.b16 %v6310, %v6306
        %v6559 = vpack.c.b16 %v6315, %v6311
        %v6560 = vpack.c.b16 %v6316, %v6312
        %v6561 = vpack.c.b16 %v6317, %v6313
        %v6562 = vpack.c.b16 %v6318, %v6314
        %v6563 = vpack.c.b16 %v6323, %v6319
        %v6564 = vpack.c.b16 %v6324, %v6320
        %v6565 = vpack.c.b16 %v6325, %v6321
        %v6566 = vpack.c.b16 %v6326, %v6322
        %v6567 = vpack.c.b16 %v6331, %v6327
        %v6568 = vpack.c.b16 %v6332, %v6328
        %v6569 = vpack.c.b16 %v6333, %v6329
        %v6570 = vpack.c.b16 %v6334, %v6330
        %v6571 = vpack.c.b16 %v6339, %v6335
        %v6572 = vpack.c.b16 %v6340, %v6336
        %v6573 = vpack.c.b16 %v6341, %v6337
        %v6574 = vpack.c.b16 %v6342, %v6338
        %v6575 = vpack.c.b16 %v6347, %v6343
        %v6576 = vpack.c.b16 %v6348, %v6344
        %v6577 = vpack.c.b16 %v6349, %v6345
        %v6578 = vpack.c.b16 %v6350, %v6346
        %v6579 = vpack.c.b16 %v6355, %v6351
        %v6580 = vpack.c.b16 %v6356, %v6352
        %v6581 = vpack.c.b16 %v6357, %v6353
        %v6582 = vpack.c.b16 %v6358, %v6354
        %v6583 = vpack.c.b16 %v6363, %v6359
        %v6584 = vpack.c.b16 %v6364, %v6360
        %v6585 = vpack.c.b16 %v6365, %v6361
        %v6586 = vpack.c.b16 %v6366, %v6362
        %v6587 = vpack.c.b16 %v6371, %v6367
        %v6588 = vpack.c.b16 %v6372, %v6368
        %v6589 = vpack.c.b16 %v6373, %v6369
        %v6590 = vpack.c.b16 %v6374, %v6370
        %v6591 = vpack.c.b16 %v6379, %v6375
        %v6592 = vpack.c.b16 %v6380, %v6376
        %v6593 = vpack.c.b16 %v6381, %v6377
        %v6594 = vpack.c.b16 %v6382, %v6378
        %v6595 = vpack.c.b16 %v6387, %v6383
        %v6596 = vpack.c.b16 %v6388, %v6384
        %v6597 = vpack.c.b16 %v6389, %v6385
        %v6598 = vpack.c.b16 %v6390, %v6386
        %v6599 = vpack.c.b16 %v6395, %v6391
        %v6600 = vpack.c.b16 %v6396, %v6392
        %v6601 = vpack.c.b16 %v6397, %v6393
        %v6602 = vpack.c.b16 %v6398, %v6394
        %v6603 = vpack.c.b16 %v6403, %v6399
        %v6604 = vpack.c.b16 %v6404, %v6400
        %v6605 = vpack.c.b16 %v6405, %v6401
        %v6606 = vpack.c.b16 %v6406, %v6402
        %v6607 = vpack.c.b16 %v6411, %v6407
        %v6608 = vpack.c.b16 %v6412, %v6408
        %v6609 = vpack.c.b16 %v6413, %v6409
        %v6610 = vpack.c.b16 %v6414, %v6410
        %v6611 = vpack.c.b16 %v6419, %v6415
        %v6612 = vpack.c.b16 %v6420, %v6416
        %v6613 = vpack.c.b16 %v6421, %v6417
        %v6614 = vpack.c.b16 %v6422, %v6418
        %v6615 = vpack.c.b16 %v6427, %v6423
        %v6616 = vpack.c.b16 %v6428, %v6424
        %v6617 = vpack.c.b16 %v6429, %v6425
        %v6618 = vpack.c.b16 %v6430, %v6426
        %v6619 = vpack.c.b16 %v6435, %v6431
        %v6620 = vpack.c.b16 %v6436, %v6432
        %v6621 = vpack.c.b16 %v6437, %v6433
        %v6622 = vpack.c.b16 %v6438, %v6434
        %v6623 = vpack.c.b16 %v6443, %v6439
        %v6624 = vpack.c.b16 %v6444, %v6440
        %v6625 = vpack.c.b16 %v6445, %v6441
        %v6626 = vpack.c.b16 %v6446, %v6442
        %v6627 = vpack.c.b16 %v6451, %v6447
        %v6628 = vpack.c.b16 %v6452, %v6448
        %v6629 = vpack.c.b16 %v6453, %v6449
        %v6630 = vpack.c.b16 %v6454, %v6450
        %v6631 = vpack.c.b16 %v6459, %v6455
        %v6632 = vpack.c.b16 %v6460, %v6456
        %v6633 = vpack.c.b16 %v6461, %v6457
        %v6634 = vpack.c.b16 %v6462, %v6458
        %v6635 = vpack.c.b16 %v6467, %v6463
        %v6636 = vpack.c.b16 %v6468, %v6464
        %v6637 = vpack.c.b16 %v6469, %v6465
        %v6638 = vpack.c.b16 %v6470, %v6466
        %v6639 = vpack.c.b16 %v6475, %v6471
        %v6640 = vpack.c.b16 %v6476, %v6472
        %v6641 = vpack.c.b16 %v6477, %v6473
        %v6642 = vpack.c.b16 %v6478, %v6474
        %v6643 = vpack.c.b16 %v6483, %v6479
        %v6644 = vpack.c.b16 %v6484, %v6480
        %v6645 = vpack.c.b16 %v6485, %v6481
        %v6646 = vpack.c.b16 %v6486, %v6482
        %v6647 = vpack.c.b16 %v6491, %v6487
        %v6648 = vpack.c.b16 %v6492, %v6488
        %v6649 = vpack.c.b16 %v6493, %v6489
        %v6650 = vpack.c.b16 %v6494, %v6490
        %v6651 = vpack.c.b16 %v6499, %v6495
        %v6652 = vpack.c.b16 %v6500, %v6496
        %v6653 = vpack.c.b16 %v6501, %v6497
        %v6654 = vpack.c.b16 %v6502, %v6498
        %v6655 = vpack.c.b16 %v6507, %v6503
        %v6656 = vpack.c.b16 %v6508, %v6504
        %v6657 = vpack.c.b16 %v6509, %v6505
        %v6658 = vpack.c.b16 %v6510, %v6506
        %v6659 = vpack.c.b16 %v6515, %v6511
        %v6660 = vpack.c.b16 %v6516, %v6512
        %v6661 = vpack.c.b16 %v6517, %v6513
        %v6662 = vpack.c.b16 %v6518, %v6514
        %v6663 = vpack.c.b16 %v6523, %v6519
        %v6664 = vpack.c.b16 %v6524, %v6520
        %v6665 = vpack.c.b16 %v6525, %v6521
        %v6666 = vpack.c.b16 %v6526, %v6522
        %v6667 = vpack.c.b16 %v6531, %v6527
        %v6668 = vpack.c.b16 %v6532, %v6528
        %v6669 = vpack.c.b16 %v6533, %v6529
        %v6670 = vpack.c.b16 %v6534, %v6530
        %v6671 = vpack.c.b16 %v6539, %v6535
        %v6672 = vpack.c.b16 %v6540, %v6536
        %v6673 = vpack.c.b16 %v6541, %v6537
        %v6674 = vpack.c.b16 %v6542, %v6538
        %v6675 = vpack.c.b16 %v6547, %v6543
        %v6676 = vpack.c.b16 %v6548, %v6544
        %v6677 = vpack.c.b16 %v6549, %v6545
        %v6678 = vpack.c.b16 %v6550, %v6546
        %6807 = vmatprep.subr.bf16.mxu0 %v6552
        %6808 = vmatpush1.bf16.msra.mxu0 %v6551
        %6809 = vmatprep.subr.bf16.mxu0 %v6556
        %6810 = vmatpush1.bf16.msra.mxu0 %v6555
        %6811 = vmatprep.subr.bf16.mxu0 %v6560
        %6812 = vmatpush1.bf16.msra.mxu0 %v6559
        %6813 = vmatprep.subr.bf16.mxu0 %v6564
        %6814 = vmatpush1.bf16.msra.mxu0 %v6563
        %6815 = vmatprep.subr.bf16.mxu0 %v6568
        %6816 = vmatpush1.bf16.msra.mxu0 %v6567
        %6817 = vmatprep.subr.bf16.mxu0 %v6572
        %6818 = vmatpush1.bf16.msra.mxu0 %v6571
        %6819 = vmatprep.subr.bf16.mxu0 %v6576
        %6820 = vmatpush1.bf16.msra.mxu0 %v6575
        %6821 = vmatprep.subr.bf16.mxu0 %v6580
        %6822 = vmatpush1.bf16.msra.mxu0 %v6579
        %6823 = vmatprep.subr.bf16.mxu0 %v6584
        %6824 = vmatpush1.bf16.msra.mxu0 %v6583
        %6825 = vmatprep.subr.bf16.mxu0 %v6588
        %6826 = vmatpush1.bf16.msra.mxu0 %v6587
        %6827 = vmatprep.subr.bf16.mxu0 %v6592
        %6828 = vmatpush1.bf16.msra.mxu0 %v6591
        %6829 = vmatprep.subr.bf16.mxu0 %v6596
        %6830 = vmatpush1.bf16.msra.mxu0 %v6595
        %6831 = vmatprep.subr.bf16.mxu0 %v6600
        %6832 = vmatpush1.bf16.msra.mxu0 %v6599
        %6833 = vmatprep.subr.bf16.mxu0 %v6604
        %6834 = vmatpush1.bf16.msra.mxu0 %v6603
        %6835 = vmatprep.subr.bf16.mxu0 %v6608
        %6836 = vmatpush1.bf16.msra.mxu0 %v6607
        %6837 = vmatprep.subr.bf16.mxu0 %v6612
        %6838 = vmatpush1.bf16.msra.mxu0 %v6611
        %6839 = vmatprep.mubr.bf16.mxu0 %v6014
        %6840 = vmatmul.mubr.bf16.gmra.mrb[0].mxu0 %v6013
        %v6841 = vpop.f32.mrb[0].mxu0
        %v6842 = vadd.f32 %v6150, %v6841
        %v6843 = vpop.f32.mrb[0].mxu0
        %v6844 = vadd.f32 %v6154, %v6843
        %v6845 = vpop.f32.mrb[0].mxu0
        %v6846 = vpop.f32.mrb[0].mxu0
        %6847 = vdwg.mxu0
        %6848 = vmatprep.subr.bf16.mxu0 %v6616
        %6849 = vmatpush1.bf16.msra.mxu0 %v6615
        %6850 = vmatprep.subr.bf16.mxu0 %v6620
        %6851 = vmatpush1.bf16.msra.mxu0 %v6619
        %6852 = vmatprep.subr.bf16.mxu0 %v6624
        %6853 = vmatpush1.bf16.msra.mxu0 %v6623
        %6854 = vmatprep.subr.bf16.mxu0 %v6628
        %6855 = vmatpush1.bf16.msra.mxu0 %v6627
        %6856 = vmatprep.subr.bf16.mxu0 %v6632
        %6857 = vmatpush1.bf16.msra.mxu0 %v6631
        %6858 = vmatprep.subr.bf16.mxu0 %v6636
        %6859 = vmatpush1.bf16.msra.mxu0 %v6635
        %6860 = vmatprep.subr.bf16.mxu0 %v6640
        %6861 = vmatpush1.bf16.msra.mxu0 %v6639
        %6862 = vmatprep.subr.bf16.mxu0 %v6644
        %6863 = vmatpush1.bf16.msra.mxu0 %v6643
        %6864 = vmatprep.subr.bf16.mxu0 %v6648
        %6865 = vmatpush1.bf16.msra.mxu0 %v6647
        %6866 = vmatprep.subr.bf16.mxu0 %v6652
        %6867 = vmatpush1.bf16.msra.mxu0 %v6651
        %6868 = vmatprep.subr.bf16.mxu0 %v6656
        %6869 = vmatpush1.bf16.msra.mxu0 %v6655
        %6870 = vmatprep.subr.bf16.mxu0 %v6660
        %6871 = vmatpush1.bf16.msra.mxu0 %v6659
        %6872 = vmatprep.subr.bf16.mxu0 %v6664
        %6873 = vmatpush1.bf16.msra.mxu0 %v6663
        %6874 = vmatprep.subr.bf16.mxu0 %v6668
        %6875 = vmatpush1.bf16.msra.mxu0 %v6667
        %6876 = vmatprep.subr.bf16.mxu0 %v6672
        %6877 = vmatpush1.bf16.msra.mxu0 %v6671
        %6878 = vmatprep.subr.bf16.mxu0 %v6676
        %6879 = vmatpush1.bf16.msra.mxu0 %v6675
        %6880 = vmatprep.mubr.bf16.mxu0 %v6016
        %6881 = vmatmul.mubr.bf16.gmra.mrb[0].mxu0 %v6015
        %v6882 = vpop.f32.mrb[0].mxu0
        %v6883 = vadd.f32 %v6842, %v6882
        %v6884 = vpop.f32.mrb[0].mxu0
        %v6885 = vadd.f32 %v6844, %v6884
        %v6886 = vpop.f32.mrb[0].mxu0
        %v6887 = vpop.f32.mrb[0].mxu0
        %6888 = vdwg.mxu0
        %6889 = vmatprep.subr.bf16.mxu0 %v6554
        %6890 = vmatpush1.bf16.msra.mxu0 %v6553
        %6891 = vmatprep.subr.bf16.mxu0 %v6558
        %6892 = vmatpush1.bf16.msra.mxu0 %v6557
        %6893 = vmatprep.subr.bf16.mxu0 %v6562
        %6894 = vmatpush1.bf16.msra.mxu0 %v6561
        %6895 = vmatprep.subr.bf16.mxu0 %v6566
        %6896 = vmatpush1.bf16.msra.mxu0 %v6565
        %6897 = vmatprep.subr.bf16.mxu0 %v6570
        %6898 = vmatpush1.bf16.msra.mxu0 %v6569
        %6899 = vmatprep.subr.bf16.mxu0 %v6574
        %6900 = vmatpush1.bf16.msra.mxu0 %v6573
        %6901 = vmatprep.subr.bf16.mxu0 %v6578
        %6902 = vmatpush1.bf16.msra.mxu0 %v6577
        %6903 = vmatprep.subr.bf16.mxu0 %v6582
        %6904 = vmatpush1.bf16.msra.mxu0 %v6581
        %6905 = vmatprep.subr.bf16.mxu0 %v6586
        %6906 = vmatpush1.bf16.msra.mxu0 %v6585
        %6907 = vmatprep.subr.bf16.mxu0 %v6590
        %6908 = vmatpush1.bf16.msra.mxu0 %v6589
        %6909 = vmatprep.subr.bf16.mxu0 %v6594
        %6910 = vmatpush1.bf16.msra.mxu0 %v6593
        %6911 = vmatprep.subr.bf16.mxu0 %v6598
        %6912 = vmatpush1.bf16.msra.mxu0 %v6597
        %6913 = vmatprep.subr.bf16.mxu0 %v6602
        %6914 = vmatpush1.bf16.msra.mxu0 %v6601
        %6915 = vmatprep.subr.bf16.mxu0 %v6606
        %6916 = vmatpush1.bf16.msra.mxu0 %v6605
        %6917 = vmatprep.subr.bf16.mxu0 %v6610
        %6918 = vmatpush1.bf16.msra.mxu0 %v6609
        %6919 = vmatprep.subr.bf16.mxu0 %v6614
        %6920 = vmatpush1.bf16.msra.mxu0 %v6613
        %6921 = vmatprep.mubr.bf16.mxu0 %v6014
        %6922 = vmatmul.mubr.bf16.gmra.mrb[0].mxu0 %v6013
        %v6923 = vpop.f32.mrb[0].mxu0
        %v6924 = vadd.f32 %v6158, %v6923
        %v6925 = vpop.f32.mrb[0].mxu0
        %v6926 = vadd.f32 %v6162, %v6925
        %v6927 = vpop.f32.mrb[0].mxu0
        %v6928 = vpop.f32.mrb[0].mxu0
        %6929 = vdwg.mxu0
        %6930 = vmatprep.subr.bf16.mxu0 %v6618
        %6931 = vmatpush1.bf16.msra.mxu0 %v6617
        %6932 = vmatprep.subr.bf16.mxu0 %v6622
        %6933 = vmatpush1.bf16.msra.mxu0 %v6621
        %6934 = vmatprep.subr.bf16.mxu0 %v6626
        %6935 = vmatpush1.bf16.msra.mxu0 %v6625
        %6936 = vmatprep.subr.bf16.mxu0 %v6630
        %6937 = vmatpush1.bf16.msra.mxu0 %v6629
        %6938 = vmatprep.subr.bf16.mxu0 %v6634
        %6939 = vmatpush1.bf16.msra.mxu0 %v6633
        %6940 = vmatprep.subr.bf16.mxu0 %v6638
        %6941 = vmatpush1.bf16.msra.mxu0 %v6637
        %6942 = vmatprep.subr.bf16.mxu0 %v6642
        %6943 = vmatpush1.bf16.msra.mxu0 %v6641
        %6944 = vmatprep.subr.bf16.mxu0 %v6646
        %6945 = vmatpush1.bf16.msra.mxu0 %v6645
        %6946 = vmatprep.subr.bf16.mxu0 %v6650
        %6947 = vmatpush1.bf16.msra.mxu0 %v6649
        %6948 = vmatprep.subr.bf16.mxu0 %v6654
        %6949 = vmatpush1.bf16.msra.mxu0 %v6653
        %6950 = vmatprep.subr.bf16.mxu0 %v6658
        %6951 = vmatpush1.bf16.msra.mxu0 %v6657
        %6952 = vmatprep.subr.bf16.mxu0 %v6662
        %6953 = vmatpush1.bf16.msra.mxu0 %v6661
        %6954 = vmatprep.subr.bf16.mxu0 %v6666
        %6955 = vmatpush1.bf16.msra.mxu0 %v6665
        %6956 = vmatprep.subr.bf16.mxu0 %v6670
        %6957 = vmatpush1.bf16.msra.mxu0 %v6669
        %6958 = vmatprep.subr.bf16.mxu0 %v6674
        %6959 = vmatpush1.bf16.msra.mxu0 %v6673
        %6960 = vmatprep.subr.bf16.mxu0 %v6678
        %6961 = vmatpush1.bf16.msra.mxu0 %v6677
        %6962 = vmatprep.mubr.bf16.mxu0 %v6016
        %6963 = vmatmul.mubr.bf16.gmra.mrb[0].mxu0 %v6015
        %v6964 = vpop.f32.mrb[0].mxu0
        %v6965 = vadd.f32 %v6924, %v6964
        %v6966 = vpop.f32.mrb[0].mxu0
        %v6967 = vadd.f32 %v6926, %v6966
        %v6968 = vpop.f32.mrb[0].mxu0
        %v6969 = vpop.f32.mrb[0].mxu0
        %6970 = vdwg.mxu0
        %v6971 = vmax.f32 %v6883, 0.0
        %v6972 = vmax.f32 %v6885, 0.0
        %v6973 = vmax.f32 %v6965, 0.0
        %v6974 = vmax.f32 %v6967, 0.0
        %v6975 = vpack.c.bf16 %v6971, %v6971
        %v6976 = vpack.c.bf16 %v6972, %v6972
        %v6977 = vpack.c.bf16 %v6973, %v6973
        %v6978 = vpack.c.bf16 %v6974, %v6974
        %v6979 = vld [vmem:[#allocation14] sm:$0xff]
        %v6980 = vld [vmem:[#allocation14 + $0x8] sm:$0xff]
        %v6981 = vld [vmem:[#allocation14 + $0x10] sm:$0xff]
        %v6982 = vld [vmem:[#allocation14 + $0x18] sm:$0xff]
        %v6983 = vld [vmem:[#allocation14 + $0x20] sm:$0xff]
        %v6984 = vld [vmem:[#allocation14 + $0x28] sm:$0xff]
        %v6985 = vld [vmem:[#allocation14 + $0x30] sm:$0xff]
        %v6986 = vld [vmem:[#allocation14 + $0x38] sm:$0xff]
        %v6987 = vld [vmem:[#allocation14 + $0x40] sm:$0xff]
        %v6988 = vld [vmem:[#allocation14 + $0x48] sm:$0xff]
        %v6989 = vld [vmem:[#allocation14 + $0x50] sm:$0xff]
        %v6990 = vld [vmem:[#allocation14 + $0x58] sm:$0xff]
        %v6991 = vld [vmem:[#allocation14 + $0x60] sm:$0xff]
        %v6992 = vld [vmem:[#allocation14 + $0x68] sm:$0xff]
        %v6993 = vld [vmem:[#allocation14 + $0x70] sm:$0xff]
        %v6994 = vld [vmem:[#allocation14 + $0x78] sm:$0xff]
        %v6995 = vld [vmem:[#allocation14 + $0x80] sm:$0xff]
        %v6996 = vld [vmem:[#allocation14 + $0x88] sm:$0xff]
        %v6997 = vld [vmem:[#allocation14 + $0x90] sm:$0xff]
        %v6998 = vld [vmem:[#allocation14 + $0x98] sm:$0xff]
        %v6999 = vld [vmem:[#allocation14 + $0xa0] sm:$0xff]
        %v7000 = vld [vmem:[#allocation14 + $0xa8] sm:$0xff]
        %v7001 = vld [vmem:[#allocation14 + $0xb0] sm:$0xff]
        %v7002 = vld [vmem:[#allocation14 + $0xb8] sm:$0xff]
        %v7003 = vld [vmem:[#allocation14 + $0xc0] sm:$0xff]
        %v7004 = vld [vmem:[#allocation14 + $0xc8] sm:$0xff]
        %v7005 = vld [vmem:[#allocation14 + $0xd0] sm:$0xff]
        %v7006 = vld [vmem:[#allocation14 + $0xd8] sm:$0xff]
        %v7007 = vld [vmem:[#allocation14 + $0xe0] sm:$0xff]
        %v7008 = vld [vmem:[#allocation14 + $0xe8] sm:$0xff]
        %v7009 = vld [vmem:[#allocation14 + $0xf0] sm:$0xff]
        %v7010 = vld [vmem:[#allocation14 + $0xf8] sm:$0xff]
        %v7011 = vld [vmem:[#allocation14 + $0x100] sm:$0xff]
        %v7012 = vld [vmem:[#allocation14 + $0x108] sm:$0xff]
        %v7013 = vld [vmem:[#allocation14 + $0x110] sm:$0xff]
        %v7014 = vld [vmem:[#allocation14 + $0x118] sm:$0xff]
        %v7015 = vld [vmem:[#allocation14 + $0x120] sm:$0xff]
        %v7016 = vld [vmem:[#allocation14 + $0x128] sm:$0xff]
        %v7017 = vld [vmem:[#allocation14 + $0x130] sm:$0xff]
        %v7018 = vld [vmem:[#allocation14 + $0x138] sm:$0xff]
        %v7019 = vld [vmem:[#allocation14 + $0x140] sm:$0xff]
        %v7020 = vld [vmem:[#allocation14 + $0x148] sm:$0xff]
        %v7021 = vld [vmem:[#allocation14 + $0x150] sm:$0xff]
        %v7022 = vld [vmem:[#allocation14 + $0x158] sm:$0xff]
        %v7023 = vld [vmem:[#allocation14 + $0x160] sm:$0xff]
        %v7024 = vld [vmem:[#allocation14 + $0x168] sm:$0xff]
        %v7025 = vld [vmem:[#allocation14 + $0x170] sm:$0xff]
        %v7026 = vld [vmem:[#allocation14 + $0x178] sm:$0xff]
        %v7027 = vld [vmem:[#allocation14 + $0x180] sm:$0xff]
        %v7028 = vld [vmem:[#allocation14 + $0x188] sm:$0xff]
        %v7029 = vld [vmem:[#allocation14 + $0x190] sm:$0xff]
        %v7030 = vld [vmem:[#allocation14 + $0x198] sm:$0xff]
        %v7031 = vld [vmem:[#allocation14 + $0x1a0] sm:$0xff]
        %v7032 = vld [vmem:[#allocation14 + $0x1a8] sm:$0xff]
        %v7033 = vld [vmem:[#allocation14 + $0x1b0] sm:$0xff]
        %v7034 = vld [vmem:[#allocation14 + $0x1b8] sm:$0xff]
        %v7035 = vld [vmem:[#allocation14 + $0x1c0] sm:$0xff]
        %v7036 = vld [vmem:[#allocation14 + $0x1c8] sm:$0xff]
        %v7037 = vld [vmem:[#allocation14 + $0x1d0] sm:$0xff]
        %v7038 = vld [vmem:[#allocation14 + $0x1d8] sm:$0xff]
        %v7039 = vld [vmem:[#allocation14 + $0x1e0] sm:$0xff]
        %v7040 = vld [vmem:[#allocation14 + $0x1e8] sm:$0xff]
        %v7041 = vld [vmem:[#allocation14 + $0x1f0] sm:$0xff]
        %v7042 = vld [vmem:[#allocation14 + $0x1f8] sm:$0xff]
        %v7043 = vld [vmem:[#allocation14 + $0x200] sm:$0xff]
        %v7044 = vld [vmem:[#allocation14 + $0x208] sm:$0xff]
        %v7045 = vld [vmem:[#allocation14 + $0x210] sm:$0xff]
        %v7046 = vld [vmem:[#allocation14 + $0x218] sm:$0xff]
        %v7047 = vld [vmem:[#allocation14 + $0x220] sm:$0xff]
        %v7048 = vld [vmem:[#allocation14 + $0x228] sm:$0xff]
        %v7049 = vld [vmem:[#allocation14 + $0x230] sm:$0xff]
        %v7050 = vld [vmem:[#allocation14 + $0x238] sm:$0xff]
        %v7051 = vld [vmem:[#allocation14 + $0x240] sm:$0xff]
        %v7052 = vld [vmem:[#allocation14 + $0x248] sm:$0xff]
        %v7053 = vld [vmem:[#allocation14 + $0x250] sm:$0xff]
        %v7054 = vld [vmem:[#allocation14 + $0x258] sm:$0xff]
        %v7055 = vld [vmem:[#allocation14 + $0x260] sm:$0xff]
        %v7056 = vld [vmem:[#allocation14 + $0x268] sm:$0xff]
        %v7057 = vld [vmem:[#allocation14 + $0x270] sm:$0xff]
        %v7058 = vld [vmem:[#allocation14 + $0x278] sm:$0xff]
        %v7059 = vld [vmem:[#allocation14 + $0x280] sm:$0xff]
        %v7060 = vld [vmem:[#allocation14 + $0x288] sm:$0xff]
        %v7061 = vld [vmem:[#allocation14 + $0x290] sm:$0xff]
        %v7062 = vld [vmem:[#allocation14 + $0x298] sm:$0xff]
        %v7063 = vld [vmem:[#allocation14 + $0x2a0] sm:$0xff]
        %v7064 = vld [vmem:[#allocation14 + $0x2a8] sm:$0xff]
        %v7065 = vld [vmem:[#allocation14 + $0x2b0] sm:$0xff]
        %v7066 = vld [vmem:[#allocation14 + $0x2b8] sm:$0xff]
        %v7067 = vld [vmem:[#allocation14 + $0x2c0] sm:$0xff]
        %v7068 = vld [vmem:[#allocation14 + $0x2c8] sm:$0xff]
        %v7069 = vld [vmem:[#allocation14 + $0x2d0] sm:$0xff]
        %v7070 = vld [vmem:[#allocation14 + $0x2d8] sm:$0xff]
        %v7071 = vld [vmem:[#allocation14 + $0x2e0] sm:$0xff]
        %v7072 = vld [vmem:[#allocation14 + $0x2e8] sm:$0xff]
        %v7073 = vld [vmem:[#allocation14 + $0x2f0] sm:$0xff]
        %v7074 = vld [vmem:[#allocation14 + $0x2f8] sm:$0xff]
        %v7075 = vld [vmem:[#allocation14 + $0x300] sm:$0xff]
        %v7076 = vld [vmem:[#allocation14 + $0x308] sm:$0xff]
        %v7077 = vld [vmem:[#allocation14 + $0x310] sm:$0xff]
        %v7078 = vld [vmem:[#allocation14 + $0x318] sm:$0xff]
        %v7079 = vld [vmem:[#allocation14 + $0x320] sm:$0xff]
        %v7080 = vld [vmem:[#allocation14 + $0x328] sm:$0xff]
        %v7081 = vld [vmem:[#allocation14 + $0x330] sm:$0xff]
        %v7082 = vld [vmem:[#allocation14 + $0x338] sm:$0xff]
        %v7083 = vld [vmem:[#allocation14 + $0x340] sm:$0xff]
        %v7084 = vld [vmem:[#allocation14 + $0x348] sm:$0xff]
        %v7085 = vld [vmem:[#allocation14 + $0x350] sm:$0xff]
        %v7086 = vld [vmem:[#allocation14 + $0x358] sm:$0xff]
        %v7087 = vld [vmem:[#allocation14 + $0x360] sm:$0xff]
        %v7088 = vld [vmem:[#allocation14 + $0x368] sm:$0xff]
        %v7089 = vld [vmem:[#allocation14 + $0x370] sm:$0xff]
        %v7090 = vld [vmem:[#allocation14 + $0x378] sm:$0xff]
        %v7091 = vld [vmem:[#allocation14 + $0x380] sm:$0xff]
        %v7092 = vld [vmem:[#allocation14 + $0x388] sm:$0xff]
        %v7093 = vld [vmem:[#allocation14 + $0x390] sm:$0xff]
        %v7094 = vld [vmem:[#allocation14 + $0x398] sm:$0xff]
        %v7095 = vld [vmem:[#allocation14 + $0x3a0] sm:$0xff]
        %v7096 = vld [vmem:[#allocation14 + $0x3a8] sm:$0xff]
        %v7097 = vld [vmem:[#allocation14 + $0x3b0] sm:$0xff]
        %v7098 = vld [vmem:[#allocation14 + $0x3b8] sm:$0xff]
        %v7099 = vld [vmem:[#allocation14 + $0x3c0] sm:$0xff]
        %v7100 = vld [vmem:[#allocation14 + $0x3c8] sm:$0xff]
        %v7101 = vld [vmem:[#allocation14 + $0x3d0] sm:$0xff]
        %v7102 = vld [vmem:[#allocation14 + $0x3d8] sm:$0xff]
        %v7103 = vld [vmem:[#allocation14 + $0x3e0] sm:$0xff]
        %v7104 = vld [vmem:[#allocation14 + $0x3e8] sm:$0xff]
        %v7105 = vld [vmem:[#allocation14 + $0x3f0] sm:$0xff]
        %v7106 = vld [vmem:[#allocation14 + $0x3f8] sm:$0xff]
        %v7107 = vld [vmem:[%s13] sm:$0xf]
        %v7109 = vlaneseq
        %v7110 = vshrl.u32 %v7109, 7
        %v7111 = vsub.s32 0, %v7110
        %v7112 = vrot.slane %v7107, %v7111
        %v7113 = vlaneseq
        %v7114 = vshrl.u32 %v7113, 7
        %v7115 = vsub.s32 1, %v7114
        %v7116 = vrot.slane %v7107, %v7115
        %v7117 = vlaneseq
        %v7118 = vshrl.u32 %v7117, 7
        %v7119 = vsub.s32 2, %v7118
        %v7120 = vrot.slane %v7107, %v7119
        %v7121 = vlaneseq
        %v7122 = vshrl.u32 %v7121, 7
        %v7123 = vsub.s32 3, %v7122
        %v7124 = vrot.slane %v7107, %v7123
        %v7257 = vunpack.c.l.b16 %v6979
        %v7258 = vunpack.c.h.b16 %v6979
        %v7259 = vunpack.c.l.b16 %v6980
        %v7260 = vunpack.c.h.b16 %v6980
        %v7261 = vunpack.c.l.b16 %v6981
        %v7262 = vunpack.c.h.b16 %v6981
        %v7263 = vunpack.c.l.b16 %v6982
        %v7264 = vunpack.c.h.b16 %v6982
        %v7265 = vunpack.c.l.b16 %v6983
        %v7266 = vunpack.c.h.b16 %v6983
        %v7267 = vunpack.c.l.b16 %v6984
        %v7268 = vunpack.c.h.b16 %v6984
        %v7269 = vunpack.c.l.b16 %v6985
        %v7270 = vunpack.c.h.b16 %v6985
        %v7271 = vunpack.c.l.b16 %v6986
        %v7272 = vunpack.c.h.b16 %v6986
        %v7273 = vunpack.c.l.b16 %v6987
        %v7274 = vunpack.c.h.b16 %v6987
        %v7275 = vunpack.c.l.b16 %v6988
        %v7276 = vunpack.c.h.b16 %v6988
        %v7277 = vunpack.c.l.b16 %v6989
        %v7278 = vunpack.c.h.b16 %v6989
        %v7279 = vunpack.c.l.b16 %v6990
        %v7280 = vunpack.c.h.b16 %v6990
        %v7281 = vunpack.c.l.b16 %v6991
        %v7282 = vunpack.c.h.b16 %v6991
        %v7283 = vunpack.c.l.b16 %v6992
        %v7284 = vunpack.c.h.b16 %v6992
        %v7285 = vunpack.c.l.b16 %v6993
        %v7286 = vunpack.c.h.b16 %v6993
        %v7287 = vunpack.c.l.b16 %v6994
        %v7288 = vunpack.c.h.b16 %v6994
        %v7289 = vunpack.c.l.b16 %v6995
        %v7290 = vunpack.c.h.b16 %v6995
        %v7291 = vunpack.c.l.b16 %v6996
        %v7292 = vunpack.c.h.b16 %v6996
        %v7293 = vunpack.c.l.b16 %v6997
        %v7294 = vunpack.c.h.b16 %v6997
        %v7295 = vunpack.c.l.b16 %v6998
        %v7296 = vunpack.c.h.b16 %v6998
        %v7297 = vunpack.c.l.b16 %v6999
        %v7298 = vunpack.c.h.b16 %v6999
        %v7299 = vunpack.c.l.b16 %v7000
        %v7300 = vunpack.c.h.b16 %v7000
        %v7301 = vunpack.c.l.b16 %v7001
        %v7302 = vunpack.c.h.b16 %v7001
        %v7303 = vunpack.c.l.b16 %v7002
        %v7304 = vunpack.c.h.b16 %v7002
        %v7305 = vunpack.c.l.b16 %v7003
        %v7306 = vunpack.c.h.b16 %v7003
        %v7307 = vunpack.c.l.b16 %v7004
        %v7308 = vunpack.c.h.b16 %v7004
        %v7309 = vunpack.c.l.b16 %v7005
        %v7310 = vunpack.c.h.b16 %v7005
        %v7311 = vunpack.c.l.b16 %v7006
        %v7312 = vunpack.c.h.b16 %v7006
        %v7313 = vunpack.c.l.b16 %v7007
        %v7314 = vunpack.c.h.b16 %v7007
        %v7315 = vunpack.c.l.b16 %v7008
        %v7316 = vunpack.c.h.b16 %v7008
        %v7317 = vunpack.c.l.b16 %v7009
        %v7318 = vunpack.c.h.b16 %v7009
        %v7319 = vunpack.c.l.b16 %v7010
        %v7320 = vunpack.c.h.b16 %v7010
        %v7321 = vunpack.c.l.b16 %v7011
        %v7322 = vunpack.c.h.b16 %v7011
        %v7323 = vunpack.c.l.b16 %v7012
        %v7324 = vunpack.c.h.b16 %v7012
        %v7325 = vunpack.c.l.b16 %v7013
        %v7326 = vunpack.c.h.b16 %v7013
        %v7327 = vunpack.c.l.b16 %v7014
        %v7328 = vunpack.c.h.b16 %v7014
        %v7329 = vunpack.c.l.b16 %v7015
        %v7330 = vunpack.c.h.b16 %v7015
        %v7331 = vunpack.c.l.b16 %v7016
        %v7332 = vunpack.c.h.b16 %v7016
        %v7333 = vunpack.c.l.b16 %v7017
        %v7334 = vunpack.c.h.b16 %v7017
        %v7335 = vunpack.c.l.b16 %v7018
        %v7336 = vunpack.c.h.b16 %v7018
        %v7337 = vunpack.c.l.b16 %v7019
        %v7338 = vunpack.c.h.b16 %v7019
        %v7339 = vunpack.c.l.b16 %v7020
        %v7340 = vunpack.c.h.b16 %v7020
        %v7341 = vunpack.c.l.b16 %v7021
        %v7342 = vunpack.c.h.b16 %v7021
        %v7343 = vunpack.c.l.b16 %v7022
        %v7344 = vunpack.c.h.b16 %v7022
        %v7345 = vunpack.c.l.b16 %v7023
        %v7346 = vunpack.c.h.b16 %v7023
        %v7347 = vunpack.c.l.b16 %v7024
        %v7348 = vunpack.c.h.b16 %v7024
        %v7349 = vunpack.c.l.b16 %v7025
        %v7350 = vunpack.c.h.b16 %v7025
        %v7351 = vunpack.c.l.b16 %v7026
        %v7352 = vunpack.c.h.b16 %v7026
        %v7353 = vunpack.c.l.b16 %v7027
        %v7354 = vunpack.c.h.b16 %v7027
        %v7355 = vunpack.c.l.b16 %v7028
        %v7356 = vunpack.c.h.b16 %v7028
        %v7357 = vunpack.c.l.b16 %v7029
        %v7358 = vunpack.c.h.b16 %v7029
        %v7359 = vunpack.c.l.b16 %v7030
        %v7360 = vunpack.c.h.b16 %v7030
        %v7361 = vunpack.c.l.b16 %v7031
        %v7362 = vunpack.c.h.b16 %v7031
        %v7363 = vunpack.c.l.b16 %v7032
        %v7364 = vunpack.c.h.b16 %v7032
        %v7365 = vunpack.c.l.b16 %v7033
        %v7366 = vunpack.c.h.b16 %v7033
        %v7367 = vunpack.c.l.b16 %v7034
        %v7368 = vunpack.c.h.b16 %v7034
        %v7369 = vunpack.c.l.b16 %v7035
        %v7370 = vunpack.c.h.b16 %v7035
        %v7371 = vunpack.c.l.b16 %v7036
        %v7372 = vunpack.c.h.b16 %v7036
        %v7373 = vunpack.c.l.b16 %v7037
        %v7374 = vunpack.c.h.b16 %v7037
        %v7375 = vunpack.c.l.b16 %v7038
        %v7376 = vunpack.c.h.b16 %v7038
        %v7377 = vunpack.c.l.b16 %v7039
        %v7378 = vunpack.c.h.b16 %v7039
        %v7379 = vunpack.c.l.b16 %v7040
        %v7380 = vunpack.c.h.b16 %v7040
        %v7381 = vunpack.c.l.b16 %v7041
        %v7382 = vunpack.c.h.b16 %v7041
        %v7383 = vunpack.c.l.b16 %v7042
        %v7384 = vunpack.c.h.b16 %v7042
        %v7385 = vunpack.c.l.b16 %v7043
        %v7386 = vunpack.c.h.b16 %v7043
        %v7387 = vunpack.c.l.b16 %v7044
        %v7388 = vunpack.c.h.b16 %v7044
        %v7389 = vunpack.c.l.b16 %v7045
        %v7390 = vunpack.c.h.b16 %v7045
        %v7391 = vunpack.c.l.b16 %v7046
        %v7392 = vunpack.c.h.b16 %v7046
        %v7393 = vunpack.c.l.b16 %v7047
        %v7394 = vunpack.c.h.b16 %v7047
        %v7395 = vunpack.c.l.b16 %v7048
        %v7396 = vunpack.c.h.b16 %v7048
        %v7397 = vunpack.c.l.b16 %v7049
        %v7398 = vunpack.c.h.b16 %v7049
        %v7399 = vunpack.c.l.b16 %v7050
        %v7400 = vunpack.c.h.b16 %v7050
        %v7401 = vunpack.c.l.b16 %v7051
        %v7402 = vunpack.c.h.b16 %v7051
        %v7403 = vunpack.c.l.b16 %v7052
        %v7404 = vunpack.c.h.b16 %v7052
        %v7405 = vunpack.c.l.b16 %v7053
        %v7406 = vunpack.c.h.b16 %v7053
        %v7407 = vunpack.c.l.b16 %v7054
        %v7408 = vunpack.c.h.b16 %v7054
        %v7409 = vunpack.c.l.b16 %v7055
        %v7410 = vunpack.c.h.b16 %v7055
        %v7411 = vunpack.c.l.b16 %v7056
        %v7412 = vunpack.c.h.b16 %v7056
        %v7413 = vunpack.c.l.b16 %v7057
        %v7414 = vunpack.c.h.b16 %v7057
        %v7415 = vunpack.c.l.b16 %v7058
        %v7416 = vunpack.c.h.b16 %v7058
        %v7417 = vunpack.c.l.b16 %v7059
        %v7418 = vunpack.c.h.b16 %v7059
        %v7419 = vunpack.c.l.b16 %v7060
        %v7420 = vunpack.c.h.b16 %v7060
        %v7421 = vunpack.c.l.b16 %v7061
        %v7422 = vunpack.c.h.b16 %v7061
        %v7423 = vunpack.c.l.b16 %v7062
        %v7424 = vunpack.c.h.b16 %v7062
        %v7425 = vunpack.c.l.b16 %v7063
        %v7426 = vunpack.c.h.b16 %v7063
        %v7427 = vunpack.c.l.b16 %v7064
        %v7428 = vunpack.c.h.b16 %v7064
        %v7429 = vunpack.c.l.b16 %v7065
        %v7430 = vunpack.c.h.b16 %v7065
        %v7431 = vunpack.c.l.b16 %v7066
        %v7432 = vunpack.c.h.b16 %v7066
        %v7433 = vunpack.c.l.b16 %v7067
        %v7434 = vunpack.c.h.b16 %v7067
        %v7435 = vunpack.c.l.b16 %v7068
        %v7436 = vunpack.c.h.b16 %v7068
        %v7437 = vunpack.c.l.b16 %v7069
        %v7438 = vunpack.c.h.b16 %v7069
        %v7439 = vunpack.c.l.b16 %v7070
        %v7440 = vunpack.c.h.b16 %v7070
        %v7441 = vunpack.c.l.b16 %v7071
        %v7442 = vunpack.c.h.b16 %v7071
        %v7443 = vunpack.c.l.b16 %v7072
        %v7444 = vunpack.c.h.b16 %v7072
        %v7445 = vunpack.c.l.b16 %v7073
        %v7446 = vunpack.c.h.b16 %v7073
        %v7447 = vunpack.c.l.b16 %v7074
        %v7448 = vunpack.c.h.b16 %v7074
        %v7449 = vunpack.c.l.b16 %v7075
        %v7450 = vunpack.c.h.b16 %v7075
        %v7451 = vunpack.c.l.b16 %v7076
        %v7452 = vunpack.c.h.b16 %v7076
        %v7453 = vunpack.c.l.b16 %v7077
        %v7454 = vunpack.c.h.b16 %v7077
        %v7455 = vunpack.c.l.b16 %v7078
        %v7456 = vunpack.c.h.b16 %v7078
        %v7457 = vunpack.c.l.b16 %v7079
        %v7458 = vunpack.c.h.b16 %v7079
        %v7459 = vunpack.c.l.b16 %v7080
        %v7460 = vunpack.c.h.b16 %v7080
        %v7461 = vunpack.c.l.b16 %v7081
        %v7462 = vunpack.c.h.b16 %v7081
        %v7463 = vunpack.c.l.b16 %v7082
        %v7464 = vunpack.c.h.b16 %v7082
        %v7465 = vunpack.c.l.b16 %v7083
        %v7466 = vunpack.c.h.b16 %v7083
        %v7467 = vunpack.c.l.b16 %v7084
        %v7468 = vunpack.c.h.b16 %v7084
        %v7469 = vunpack.c.l.b16 %v7085
        %v7470 = vunpack.c.h.b16 %v7085
        %v7471 = vunpack.c.l.b16 %v7086
        %v7472 = vunpack.c.h.b16 %v7086
        %v7473 = vunpack.c.l.b16 %v7087
        %v7474 = vunpack.c.h.b16 %v7087
        %v7475 = vunpack.c.l.b16 %v7088
        %v7476 = vunpack.c.h.b16 %v7088
        %v7477 = vunpack.c.l.b16 %v7089
        %v7478 = vunpack.c.h.b16 %v7089
        %v7479 = vunpack.c.l.b16 %v7090
        %v7480 = vunpack.c.h.b16 %v7090
        %v7481 = vunpack.c.l.b16 %v7091
        %v7482 = vunpack.c.h.b16 %v7091
        %v7483 = vunpack.c.l.b16 %v7092
        %v7484 = vunpack.c.h.b16 %v7092
        %v7485 = vunpack.c.l.b16 %v7093
        %v7486 = vunpack.c.h.b16 %v7093
        %v7487 = vunpack.c.l.b16 %v7094
        %v7488 = vunpack.c.h.b16 %v7094
        %v7489 = vunpack.c.l.b16 %v7095
        %v7490 = vunpack.c.h.b16 %v7095
        %v7491 = vunpack.c.l.b16 %v7096
        %v7492 = vunpack.c.h.b16 %v7096
        %v7493 = vunpack.c.l.b16 %v7097
        %v7494 = vunpack.c.h.b16 %v7097
        %v7495 = vunpack.c.l.b16 %v7098
        %v7496 = vunpack.c.h.b16 %v7098
        %v7497 = vunpack.c.l.b16 %v7099
        %v7498 = vunpack.c.h.b16 %v7099
        %v7499 = vunpack.c.l.b16 %v7100
        %v7500 = vunpack.c.h.b16 %v7100
        %v7501 = vunpack.c.l.b16 %v7101
        %v7502 = vunpack.c.h.b16 %v7101
        %v7503 = vunpack.c.l.b16 %v7102
        %v7504 = vunpack.c.h.b16 %v7102
        %v7505 = vunpack.c.l.b16 %v7103
        %v7506 = vunpack.c.h.b16 %v7103
        %v7507 = vunpack.c.l.b16 %v7104
        %v7508 = vunpack.c.h.b16 %v7104
        %v7509 = vunpack.c.l.b16 %v7105
        %v7510 = vunpack.c.h.b16 %v7105
        %v7511 = vunpack.c.l.b16 %v7106
        %v7512 = vunpack.c.h.b16 %v7106
        %v7513 = vpack.c.b16 %v7261, %v7257
        %v7514 = vpack.c.b16 %v7262, %v7258
        %v7515 = vpack.c.b16 %v7263, %v7259
        %v7516 = vpack.c.b16 %v7264, %v7260
        %v7517 = vpack.c.b16 %v7269, %v7265
        %v7518 = vpack.c.b16 %v7270, %v7266
        %v7519 = vpack.c.b16 %v7271, %v7267
        %v7520 = vpack.c.b16 %v7272, %v7268
        %v7521 = vpack.c.b16 %v7277, %v7273
        %v7522 = vpack.c.b16 %v7278, %v7274
        %v7523 = vpack.c.b16 %v7279, %v7275
        %v7524 = vpack.c.b16 %v7280, %v7276
        %v7525 = vpack.c.b16 %v7285, %v7281
        %v7526 = vpack.c.b16 %v7286, %v7282
        %v7527 = vpack.c.b16 %v7287, %v7283
        %v7528 = vpack.c.b16 %v7288, %v7284
        %v7529 = vpack.c.b16 %v7293, %v7289
        %v7530 = vpack.c.b16 %v7294, %v7290
        %v7531 = vpack.c.b16 %v7295, %v7291
        %v7532 = vpack.c.b16 %v7296, %v7292
        %v7533 = vpack.c.b16 %v7301, %v7297
        %v7534 = vpack.c.b16 %v7302, %v7298
        %v7535 = vpack.c.b16 %v7303, %v7299
        %v7536 = vpack.c.b16 %v7304, %v7300
        %v7537 = vpack.c.b16 %v7309, %v7305
        %v7538 = vpack.c.b16 %v7310, %v7306
        %v7539 = vpack.c.b16 %v7311, %v7307
        %v7540 = vpack.c.b16 %v7312, %v7308
        %v7541 = vpack.c.b16 %v7317, %v7313
        %v7542 = vpack.c.b16 %v7318, %v7314
        %v7543 = vpack.c.b16 %v7319, %v7315
        %v7544 = vpack.c.b16 %v7320, %v7316
        %v7545 = vpack.c.b16 %v7325, %v7321
        %v7546 = vpack.c.b16 %v7326, %v7322
        %v7547 = vpack.c.b16 %v7327, %v7323
        %v7548 = vpack.c.b16 %v7328, %v7324
        %v7549 = vpack.c.b16 %v7333, %v7329
        %v7550 = vpack.c.b16 %v7334, %v7330
        %v7551 = vpack.c.b16 %v7335, %v7331
        %v7552 = vpack.c.b16 %v7336, %v7332
        %v7553 = vpack.c.b16 %v7341, %v7337
        %v7554 = vpack.c.b16 %v7342, %v7338
        %v7555 = vpack.c.b16 %v7343, %v7339
        %v7556 = vpack.c.b16 %v7344, %v7340
        %v7557 = vpack.c.b16 %v7349, %v7345
        %v7558 = vpack.c.b16 %v7350, %v7346
        %v7559 = vpack.c.b16 %v7351, %v7347
        %v7560 = vpack.c.b16 %v7352, %v7348
        %v7561 = vpack.c.b16 %v7357, %v7353
        %v7562 = vpack.c.b16 %v7358, %v7354
        %v7563 = vpack.c.b16 %v7359, %v7355
        %v7564 = vpack.c.b16 %v7360, %v7356
        %v7565 = vpack.c.b16 %v7365, %v7361
        %v7566 = vpack.c.b16 %v7366, %v7362
        %v7567 = vpack.c.b16 %v7367, %v7363
        %v7568 = vpack.c.b16 %v7368, %v7364
        %v7569 = vpack.c.b16 %v7373, %v7369
        %v7570 = vpack.c.b16 %v7374, %v7370
        %v7571 = vpack.c.b16 %v7375, %v7371
        %v7572 = vpack.c.b16 %v7376, %v7372
        %v7573 = vpack.c.b16 %v7381, %v7377
        %v7574 = vpack.c.b16 %v7382, %v7378
        %v7575 = vpack.c.b16 %v7383, %v7379
        %v7576 = vpack.c.b16 %v7384, %v7380
        %v7577 = vpack.c.b16 %v7389, %v7385
        %v7578 = vpack.c.b16 %v7390, %v7386
        %v7579 = vpack.c.b16 %v7391, %v7387
        %v7580 = vpack.c.b16 %v7392, %v7388
        %v7581 = vpack.c.b16 %v7397, %v7393
        %v7582 = vpack.c.b16 %v7398, %v7394
        %v7583 = vpack.c.b16 %v7399, %v7395
        %v7584 = vpack.c.b16 %v7400, %v7396
        %v7585 = vpack.c.b16 %v7405, %v7401
        %v7586 = vpack.c.b16 %v7406, %v7402
        %v7587 = vpack.c.b16 %v7407, %v7403
        %v7588 = vpack.c.b16 %v7408, %v7404
        %v7589 = vpack.c.b16 %v7413, %v7409
        %v7590 = vpack.c.b16 %v7414, %v7410
        %v7591 = vpack.c.b16 %v7415, %v7411
        %v7592 = vpack.c.b16 %v7416, %v7412
        %v7593 = vpack.c.b16 %v7421, %v7417
        %v7594 = vpack.c.b16 %v7422, %v7418
        %v7595 = vpack.c.b16 %v7423, %v7419
        %v7596 = vpack.c.b16 %v7424, %v7420
        %v7597 = vpack.c.b16 %v7429, %v7425
        %v7598 = vpack.c.b16 %v7430, %v7426
        %v7599 = vpack.c.b16 %v7431, %v7427
        %v7600 = vpack.c.b16 %v7432, %v7428
        %v7601 = vpack.c.b16 %v7437, %v7433
        %v7602 = vpack.c.b16 %v7438, %v7434
        %v7603 = vpack.c.b16 %v7439, %v7435
        %v7604 = vpack.c.b16 %v7440, %v7436
        %v7605 = vpack.c.b16 %v7445, %v7441
        %v7606 = vpack.c.b16 %v7446, %v7442
        %v7607 = vpack.c.b16 %v7447, %v7443
        %v7608 = vpack.c.b16 %v7448, %v7444
        %v7609 = vpack.c.b16 %v7453, %v7449
        %v7610 = vpack.c.b16 %v7454, %v7450
        %v7611 = vpack.c.b16 %v7455, %v7451
        %v7612 = vpack.c.b16 %v7456, %v7452
        %v7613 = vpack.c.b16 %v7461, %v7457
        %v7614 = vpack.c.b16 %v7462, %v7458
        %v7615 = vpack.c.b16 %v7463, %v7459
        %v7616 = vpack.c.b16 %v7464, %v7460
        %v7617 = vpack.c.b16 %v7469, %v7465
        %v7618 = vpack.c.b16 %v7470, %v7466
        %v7619 = vpack.c.b16 %v7471, %v7467
        %v7620 = vpack.c.b16 %v7472, %v7468
        %v7621 = vpack.c.b16 %v7477, %v7473
        %v7622 = vpack.c.b16 %v7478, %v7474
        %v7623 = vpack.c.b16 %v7479, %v7475
        %v7624 = vpack.c.b16 %v7480, %v7476
        %v7625 = vpack.c.b16 %v7485, %v7481
        %v7626 = vpack.c.b16 %v7486, %v7482
        %v7627 = vpack.c.b16 %v7487, %v7483
        %v7628 = vpack.c.b16 %v7488, %v7484
        %v7629 = vpack.c.b16 %v7493, %v7489
        %v7630 = vpack.c.b16 %v7494, %v7490
        %v7631 = vpack.c.b16 %v7495, %v7491
        %v7632 = vpack.c.b16 %v7496, %v7492
        %v7633 = vpack.c.b16 %v7501, %v7497
        %v7634 = vpack.c.b16 %v7502, %v7498
        %v7635 = vpack.c.b16 %v7503, %v7499
        %v7636 = vpack.c.b16 %v7504, %v7500
        %v7637 = vpack.c.b16 %v7509, %v7505
        %v7638 = vpack.c.b16 %v7510, %v7506
        %v7639 = vpack.c.b16 %v7511, %v7507
        %v7640 = vpack.c.b16 %v7512, %v7508
        %7769 = vmatprep.subr.bf16.mxu0 %v7514
        %7770 = vmatpush1.bf16.msra.mxu0 %v7513
        %7771 = vmatprep.subr.bf16.mxu0 %v7518
        %7772 = vmatpush1.bf16.msra.mxu0 %v7517
        %7773 = vmatprep.subr.bf16.mxu0 %v7522
        %7774 = vmatpush1.bf16.msra.mxu0 %v7521
        %7775 = vmatprep.subr.bf16.mxu0 %v7526
        %7776 = vmatpush1.bf16.msra.mxu0 %v7525
        %7777 = vmatprep.subr.bf16.mxu0 %v7530
        %7778 = vmatpush1.bf16.msra.mxu0 %v7529
        %7779 = vmatprep.subr.bf16.mxu0 %v7534
        %7780 = vmatpush1.bf16.msra.mxu0 %v7533
        %7781 = vmatprep.subr.bf16.mxu0 %v7538
        %7782 = vmatpush1.bf16.msra.mxu0 %v7537
        %7783 = vmatprep.subr.bf16.mxu0 %v7542
        %7784 = vmatpush1.bf16.msra.mxu0 %v7541
        %7785 = vmatprep.subr.bf16.mxu0 %v7546
        %7786 = vmatpush1.bf16.msra.mxu0 %v7545
        %7787 = vmatprep.subr.bf16.mxu0 %v7550
        %7788 = vmatpush1.bf16.msra.mxu0 %v7549
        %7789 = vmatprep.subr.bf16.mxu0 %v7554
        %7790 = vmatpush1.bf16.msra.mxu0 %v7553
        %7791 = vmatprep.subr.bf16.mxu0 %v7558
        %7792 = vmatpush1.bf16.msra.mxu0 %v7557
        %7793 = vmatprep.subr.bf16.mxu0 %v7562
        %7794 = vmatpush1.bf16.msra.mxu0 %v7561
        %7795 = vmatprep.subr.bf16.mxu0 %v7566
        %7796 = vmatpush1.bf16.msra.mxu0 %v7565
        %7797 = vmatprep.subr.bf16.mxu0 %v7570
        %7798 = vmatpush1.bf16.msra.mxu0 %v7569
        %7799 = vmatprep.subr.bf16.mxu0 %v7574
        %7800 = vmatpush1.bf16.msra.mxu0 %v7573
        %7801 = vmatprep.mubr.bf16.mxu0 %v6976
        %7802 = vmatmul.mubr.bf16.gmra.mrb[0].mxu0 %v6975
        %v7803 = vpop.f32.mrb[0].mxu0
        %v7804 = vadd.f32 %v7112, %v7803
        %v7805 = vpop.f32.mrb[0].mxu0
        %v7806 = vadd.f32 %v7116, %v7805
        %v7807 = vpop.f32.mrb[0].mxu0
        %v7808 = vpop.f32.mrb[0].mxu0
        %7809 = vdwg.mxu0
        %7810 = vmatprep.subr.bf16.mxu0 %v7578
        %7811 = vmatpush1.bf16.msra.mxu0 %v7577
        %7812 = vmatprep.subr.bf16.mxu0 %v7582
        %7813 = vmatpush1.bf16.msra.mxu0 %v7581
        %7814 = vmatprep.subr.bf16.mxu0 %v7586
        %7815 = vmatpush1.bf16.msra.mxu0 %v7585
        %7816 = vmatprep.subr.bf16.mxu0 %v7590
        %7817 = vmatpush1.bf16.msra.mxu0 %v7589
        %7818 = vmatprep.subr.bf16.mxu0 %v7594
        %7819 = vmatpush1.bf16.msra.mxu0 %v7593
        %7820 = vmatprep.subr.bf16.mxu0 %v7598
        %7821 = vmatpush1.bf16.msra.mxu0 %v7597
        %7822 = vmatprep.subr.bf16.mxu0 %v7602
        %7823 = vmatpush1.bf16.msra.mxu0 %v7601
        %7824 = vmatprep.subr.bf16.mxu0 %v7606
        %7825 = vmatpush1.bf16.msra.mxu0 %v7605
        %7826 = vmatprep.subr.bf16.mxu0 %v7610
        %7827 = vmatpush1.bf16.msra.mxu0 %v7609
        %7828 = vmatprep.subr.bf16.mxu0 %v7614
        %7829 = vmatpush1.bf16.msra.mxu0 %v7613
        %7830 = vmatprep.subr.bf16.mxu0 %v7618
        %7831 = vmatpush1.bf16.msra.mxu0 %v7617
        %7832 = vmatprep.subr.bf16.mxu0 %v7622
        %7833 = vmatpush1.bf16.msra.mxu0 %v7621
        %7834 = vmatprep.subr.bf16.mxu0 %v7626
        %7835 = vmatpush1.bf16.msra.mxu0 %v7625
        %7836 = vmatprep.subr.bf16.mxu0 %v7630
        %7837 = vmatpush1.bf16.msra.mxu0 %v7629
        %7838 = vmatprep.subr.bf16.mxu0 %v7634
        %7839 = vmatpush1.bf16.msra.mxu0 %v7633
        %7840 = vmatprep.subr.bf16.mxu0 %v7638
        %7841 = vmatpush1.bf16.msra.mxu0 %v7637
        %7842 = vmatprep.mubr.bf16.mxu0 %v6978
        %7843 = vmatmul.mubr.bf16.gmra.mrb[0].mxu0 %v6977
        %v7844 = vpop.f32.mrb[0].mxu0
        %v7845 = vadd.f32 %v7804, %v7844
        %v7846 = vpop.f32.mrb[0].mxu0
        %v7847 = vadd.f32 %v7806, %v7846
        %v7848 = vpop.f32.mrb[0].mxu0
        %v7849 = vpop.f32.mrb[0].mxu0
        %7850 = vdwg.mxu0
        %7851 = vmatprep.subr.bf16.mxu0 %v7516
        %7852 = vmatpush1.bf16.msra.mxu0 %v7515
        %7853 = vmatprep.subr.bf16.mxu0 %v7520
        %7854 = vmatpush1.bf16.msra.mxu0 %v7519
        %7855 = vmatprep.subr.bf16.mxu0 %v7524
        %7856 = vmatpush1.bf16.msra.mxu0 %v7523
        %7857 = vmatprep.subr.bf16.mxu0 %v7528
        %7858 = vmatpush1.bf16.msra.mxu0 %v7527
        %7859 = vmatprep.subr.bf16.mxu0 %v7532
        %7860 = vmatpush1.bf16.msra.mxu0 %v7531
        %7861 = vmatprep.subr.bf16.mxu0 %v7536
        %7862 = vmatpush1.bf16.msra.mxu0 %v7535
        %7863 = vmatprep.subr.bf16.mxu0 %v7540
        %7864 = vmatpush1.bf16.msra.mxu0 %v7539
        %7865 = vmatprep.subr.bf16.mxu0 %v7544
        %7866 = vmatpush1.bf16.msra.mxu0 %v7543
        %7867 = vmatprep.subr.bf16.mxu0 %v7548
        %7868 = vmatpush1.bf16.msra.mxu0 %v7547
        %7869 = vmatprep.subr.bf16.mxu0 %v7552
        %7870 = vmatpush1.bf16.msra.mxu0 %v7551
        %7871 = vmatprep.subr.bf16.mxu0 %v7556
        %7872 = vmatpush1.bf16.msra.mxu0 %v7555
        %7873 = vmatprep.subr.bf16.mxu0 %v7560
        %7874 = vmatpush1.bf16.msra.mxu0 %v7559
        %7875 = vmatprep.subr.bf16.mxu0 %v7564
        %7876 = vmatpush1.bf16.msra.mxu0 %v7563
        %7877 = vmatprep.subr.bf16.mxu0 %v7568
        %7878 = vmatpush1.bf16.msra.mxu0 %v7567
        %7879 = vmatprep.subr.bf16.mxu0 %v7572
        %7880 = vmatpush1.bf16.msra.mxu0 %v7571
        %7881 = vmatprep.subr.bf16.mxu0 %v7576
        %7882 = vmatpush1.bf16.msra.mxu0 %v7575
        %7883 = vmatprep.mubr.bf16.mxu0 %v6976
        %7884 = vmatmul.mubr.bf16.gmra.mrb[0].mxu0 %v6975
        %v7885 = vpop.f32.mrb[0].mxu0
        %v7886 = vadd.f32 %v7120, %v7885
        %v7887 = vpop.f32.mrb[0].mxu0
        %v7888 = vadd.f32 %v7124, %v7887
        %v7889 = vpop.f32.mrb[0].mxu0
        %v7890 = vpop.f32.mrb[0].mxu0
        %7891 = vdwg.mxu0
        %7892 = vmatprep.subr.bf16.mxu0 %v7580
        %7893 = vmatpush1.bf16.msra.mxu0 %v7579
        %7894 = vmatprep.subr.bf16.mxu0 %v7584
        %7895 = vmatpush1.bf16.msra.mxu0 %v7583
        %7896 = vmatprep.subr.bf16.mxu0 %v7588
        %7897 = vmatpush1.bf16.msra.mxu0 %v7587
        %7898 = vmatprep.subr.bf16.mxu0 %v7592
        %7899 = vmatpush1.bf16.msra.mxu0 %v7591
        %7900 = vmatprep.subr.bf16.mxu0 %v7596
        %7901 = vmatpush1.bf16.msra.mxu0 %v7595
        %7902 = vmatprep.subr.bf16.mxu0 %v7600
        %7903 = vmatpush1.bf16.msra.mxu0 %v7599
        %7904 = vmatprep.subr.bf16.mxu0 %v7604
        %7905 = vmatpush1.bf16.msra.mxu0 %v7603
        %7906 = vmatprep.subr.bf16.mxu0 %v7608
        %7907 = vmatpush1.bf16.msra.mxu0 %v7607
        %7908 = vmatprep.subr.bf16.mxu0 %v7612
        %7909 = vmatpush1.bf16.msra.mxu0 %v7611
        %7910 = vmatprep.subr.bf16.mxu0 %v7616
        %7911 = vmatpush1.bf16.msra.mxu0 %v7615
        %7912 = vmatprep.subr.bf16.mxu0 %v7620
        %7913 = vmatpush1.bf16.msra.mxu0 %v7619
        %7914 = vmatprep.subr.bf16.mxu0 %v7624
        %7915 = vmatpush1.bf16.msra.mxu0 %v7623
        %7916 = vmatprep.subr.bf16.mxu0 %v7628
        %7917 = vmatpush1.bf16.msra.mxu0 %v7627
        %7918 = vmatprep.subr.bf16.mxu0 %v7632
        %7919 = vmatpush1.bf16.msra.mxu0 %v7631
        %7920 = vmatprep.subr.bf16.mxu0 %v7636
        %7921 = vmatpush1.bf16.msra.mxu0 %v7635
        %7922 = vmatprep.subr.bf16.mxu0 %v7640
        %7923 = vmatpush1.bf16.msra.mxu0 %v7639
        %7924 = vmatprep.mubr.bf16.mxu0 %v6978
        %7925 = vmatmul.mubr.bf16.gmra.mrb[0].mxu0 %v6977
        %v7926 = vpop.f32.mrb[0].mxu0
        %v7927 = vadd.f32 %v7886, %v7926
        %v7928 = vpop.f32.mrb[0].mxu0
        %v7929 = vadd.f32 %v7888, %v7928
        %v7930 = vpop.f32.mrb[0].mxu0
        %v7931 = vpop.f32.mrb[0].mxu0
        %7932 = vdwg.mxu0
        %v7933 = vadd.f32 %v6009, %v7845
        %v7934 = vadd.f32 %v6010, %v7847
        %v7935 = vadd.f32 %v6011, %v7927
        %v7936 = vadd.f32 %v6012, %v7929
        %v7937 = vld [vmem:[%s14] sm:$0xf]
        %v7938 = vld [vmem:[%s15] sm:$0xf]
        %vm7939 = vcmask 1041408
        %v7940 = vsel %vm7939, %v7933, 0.0
        %v7941 = vsel %vm7939, %v7934, 0.0
        %v7942 = vadd.f32 %v7940, %v7941
        %v7943 = vsel %vm7939, %v7935, 0.0
        %v7944 = vadd.f32 %v7942, %v7943
        %v7945 = vsel %vm7939, %v7936, 0.0
        %v7946 = vadd.f32 %v7944, %v7945
        %7947 = vadd.xlane.f32.xlu0 %v7946
        %v7948 = vpop.xlane.xlu0 %7947
        %v7949 = vrcp.pop 512.0
        %v7950 = vmul.f32 %v7948, %v7949
        %v7951 = vsub.f32 %v7933, %v7950
        %v7952 = vsub.f32 %v7934, %v7950
        %v7953 = vsub.f32 %v7935, %v7950
        %v7954 = vsub.f32 %v7936, %v7950
        %v7955 = vmul.f32 %v7951, %v7951
        %v7956 = vmul.f32 %v7952, %v7952
        %v7957 = vmul.f32 %v7953, %v7953
        %v7958 = vmul.f32 %v7954, %v7954
        %v7959 = vsel %vm7939, %v7955, 0.0
        %v7960 = vsel %vm7939, %v7956, 0.0
        %v7961 = vadd.f32 %v7959, %v7960
        %v7962 = vsel %vm7939, %v7957, 0.0
        %v7963 = vadd.f32 %v7961, %v7962
        %v7964 = vsel %vm7939, %v7958, 0.0
        %v7965 = vadd.f32 %v7963, %v7964
        %7966 = vadd.xlane.f32.xlu0 %v7965
        %v7967 = vpop.xlane.xlu0 %7966
        %v7968 = vmul.f32 %v7967, %v7949
        %v7969 = vadd.f32 %v7968, 1e-05
        %v7970 = vrsqrt.pop %v7969
        %v7971 = vmul.f32 %v7951, %v7970
        %v7972 = vmul.f32 %v7952, %v7970
        %v7973 = vmul.f32 %v7953, %v7970
        %v7974 = vmul.f32 %v7954, %v7970
        %v7976 = vlaneseq
        %v7977 = vshrl.u32 %v7976, 7
        %v7978 = vsub.s32 0, %v7977
        %v7979 = vrot.slane %v7937, %v7978
        %v7980 = vlaneseq
        %v7981 = vshrl.u32 %v7980, 7
        %v7982 = vsub.s32 1, %v7981
        %v7983 = vrot.slane %v7937, %v7982
        %v7984 = vlaneseq
        %v7985 = vshrl.u32 %v7984, 7
        %v7986 = vsub.s32 2, %v7985
        %v7987 = vrot.slane %v7937, %v7986
        %v7988 = vlaneseq
        %v7989 = vshrl.u32 %v7988, 7
        %v7990 = vsub.s32 3, %v7989
        %v7991 = vrot.slane %v7937, %v7990
        %v7996 = vmul.f32 %v7971, %v7979
        %v7997 = vmul.f32 %v7972, %v7983
        %v7998 = vmul.f32 %v7973, %v7987
        %v7999 = vmul.f32 %v7974, %v7991
        %v8001 = vlaneseq
        %v8002 = vshrl.u32 %v8001, 7
        %v8003 = vsub.s32 0, %v8002
        %v8004 = vrot.slane %v7938, %v8003
        %v8005 = vlaneseq
        %v8006 = vshrl.u32 %v8005, 7
        %v8007 = vsub.s32 1, %v8006
        %v8008 = vrot.slane %v7938, %v8007
        %v8009 = vlaneseq
        %v8010 = vshrl.u32 %v8009, 7
        %v8011 = vsub.s32 2, %v8010
        %v8012 = vrot.slane %v7938, %v8011
        %v8013 = vlaneseq
        %v8014 = vshrl.u32 %v8013, 7
        %v8015 = vsub.s32 3, %v8014
        %v8016 = vrot.slane %v7938, %v8015
        %v8021 = vadd.f32 %v7996, %v8004
        %v8022 = vadd.f32 %v7997, %v8008
        %v8023 = vadd.f32 %v7998, %v8012
        %v8024 = vadd.f32 %v7999, %v8016
        %v8029 = vcombine.low %v8021, %v8022
        %v8030 = vcombine.low %v8023, %v8024
        %v8032 = vunpack.c.l.s4 1983009808
        %v8033 = vunpack.c.0.s8 %v8032
        %v8034 = vlaneseq
        %v8035 = vshrl.u32 %v8034, 7
        %v8036 = vsub.s32 %v8033, %v8035
        %v8037 = vrot.slane %v8029, %v8036
        %v8039 = vunpack.c.l.s4 1983009808
        %v8040 = vunpack.c.0.s8 %v8039
        %v8041 = vlaneseq
        %v8042 = vshrl.u32 %v8041, 7
        %v8043 = vsub.s32 %v8040, %v8042
        %v8044 = vrot.slane %v8030, %v8043
        %v8045 = vcombine.low %v8037, %v8044
        %8047 = vst [vmem:[%s639] sm:$0xff] %v8045
        %s8048 = sand.u32 %s386, 1
        %s8049 = scalar_lea.sflag [#allocation4], %s8048
        %s8050 = sand.u32 %s386, 1
        %s8051 = smul.addr %s8050, 8
        %s8052 = scalar_lea.vmem [#allocation16], %s8051
        // Predicated region
        $region117: #{tpu_custom_call.1} parent=83 // pred_check
          %p8053 = pneg %p396
        $region118: #{tpu_custom_call.1} parent=83 // pred_check_branch
          %8055 = sbr.rel (%p8053) target = $region120
        $region119: #{tpu_custom_call.1} parent=83 // pred_region
          %s8057 = ssub.s32 128, 128
          %8058 = vsyncadd %s8049, %s8057
          %s8059 = smul.addr %s37, 4
          %s8060 = smul.addr %s8059, 32
          %s8061 = scalar_lea.hbm %s16, %s8060
          %s8063 = sshll.u32 %s8052, 4
          %s8064 = int_to_ptr.vmem [resolvable:$true] %s8063
          %8066 = dma.vmem_to_hbm [thread:$0]  %s8064, 128, %s8061, %s8049
        $region120: #{tpu_custom_call.1} parent=83 // pred_fallthru
          _
      $region84: #{tpu_custom_call.1} parent=5 // pred_fallthru
        _
      %p8067 = scmp.le.s32.totalorder 2, %s32
      // Predicated region
      $region121: #{tpu_custom_call.1} parent=5 // pred_check
        %p8068 = pneg %p8067
      $region122: #{tpu_custom_call.1} parent=5 // pred_check_branch
        %8070 = sbr.rel (%p8068) target = $region124
      $region123: #{tpu_custom_call.1} parent=5 // pred_region
        %s8071 = ssub.s32 %s32, 2
        // Predicated region
        $region125: #{tpu_custom_call.1} parent=123 // pred_check
          %p8072 = pneg %p402
        $region126: #{tpu_custom_call.1} parent=123 // pred_check_branch
          %8074 = sbr.rel (%p8072) target = $region128
        $region127: #{tpu_custom_call.1} parent=123 // pred_region
          %s8075 = sand.u32 %s387, 1
          %s8076 = scalar_lea.sflag [#allocation4], %s8075
          %s8077 = sand.u32 %s387, 1
          %s8078 = smul.addr %s8077, 8
          %s8079 = scalar_lea.vmem [#allocation16], %s8078
          %8080 = dma.done %s8076, 128
        $region128: #{tpu_custom_call.1} parent=123 // pred_fallthru
          _
      $region124: #{tpu_custom_call.1} parent=5 // pred_fallthru
        _
    $region6: #{tpu_custom_call.1} parent=1 // loop_footer
      %s36 = sadd.s32 1, %s32
    $region7: #{tpu_custom_call.1} parent=1 // loop_footer_branch
      %31 = sbr.rel target = $region3
    $region8: #{tpu_custom_call.1} parent=1 // loop_exit
      _
    %8081 = vsyncpa [#allocation3], 1
    %s8082 = scalar_lea.sflag [#allocation3], 1
    %8083 = vsyncpa %s8082, 1
    %8084 = vsyncpa [#allocation6], 1
    %s8085 = scalar_lea.sflag [#allocation6], 1
    %8086 = vsyncpa %s8085, 1
    %8087 = vsyncpa [#allocation9], 1
    %8088 = vsyncpa [#allocation12], 1
    %8089 = vsyncpa [#allocation15], 1
    %8090 = vsyncpa [#allocation4], 1
    %s8091 = scalar_lea.sflag [#allocation4], 1
    %8092 = vsyncpa %s8091, 1

</llo_original>
